<compile_context>
chip_gen: v7x
topology: tpu7x:2x2x1
jax: 0.10.0
libtpu: 0.0.40
codegen_flags: <defaults>
</compile_context>

<pallas_src>
import functools
import numpy as np
import jax
import jax.numpy as jnp
from jax.experimental import pallas as pl
from jax.experimental.pallas import tpu as pltpu

# ---- model hyper-parameters (match the PyTorch module defaults except
# ---- smaller synthetic sequence sizes) ----
LATENT_DIM = 16
OUTPUT_DIM = 79
OUT_PAD = 128          # lane-dense padded output channel count
ORIG_SEQ_LEN = 10
LATENT_SEQ_LEN = 4
HIDDEN = 256
C1 = 128               # deconv1 out channels
K = 3                  # kernel size of both ConvTranspose1d
LN_EPS = 1e-5
TB = 8                 # batch rows processed per grid step (batch tile)


def _sigmoid(v):
    # tanh-based sigmoid: one EUP op, numerically stable, identical formula in
    # kernel and reference.
    return 0.5 * (jnp.tanh(0.5 * v) + 1.0)


def _layernorm(v, g, b):
    mu = jnp.mean(v, axis=-1, keepdims=True)
    var = jnp.mean((v - mu) ** 2, axis=-1, keepdims=True)
    return (v - mu) * jax.lax.rsqrt(var + LN_EPS) * g + b


# -------------------------- the Pallas kernel --------------------------
def decoder_kernel(x_ref,
                   wih0_ref, whh0_ref, bih0_ref, bhh0_ref,
                   wih1_ref, whh1_ref, bih1_ref, bhh1_ref,
                   ggru_ref, bgru_ref,
                   a_ref, s_ref,
                   w1_ref, b1_ref, g1_ref, bt1_ref,
                   w2_ref, b2_ref,
                   out_ref,
                   h0_buf, h1_buf,
                   *, tb):
    H = HIDDEN
    bf16 = jnp.bfloat16
    f32 = jnp.float32
    l_in = x_ref.shape[1] // tb

    def gru_layer(x_seq, wih, whh, bih, bhh, out_buf):
        # x_seq: (l_in*tb, in_dim) bf16, time-major rows (row = t*tb + b)
        gx_all = jnp.dot(x_seq, wih, preferred_element_type=f32) + bih
        h = jnp.zeros((tb, H), f32)
        # l_in is tiny (4): keep the serial recurrence unrolled.
        # TODO(synk): switch to lax.fori_loop(unroll=True) if l_in grows.
        for t in range(l_in):
            gx = gx_all[t * tb:(t + 1) * tb, :]
            gh = jnp.dot(h.astype(bf16), whh, preferred_element_type=f32) + bhh
            r = _sigmoid(gx[:, 0:H] + gh[:, 0:H])
            zt = _sigmoid(gx[:, H:2 * H] + gh[:, H:2 * H])
            n = jnp.tanh(gx[:, 2 * H:3 * H] + r * gh[:, 2 * H:3 * H])
            h = (1.0 - zt) * n + zt * h
            out_buf[pl.ds(t * tb, tb), :] = h            # direct scratch write

    x = x_ref[0]                                          # (l_in*tb, D) bf16
    gru_layer(x, wih0_ref[...], whh0_ref[...], bih0_ref[...], bhh0_ref[...],
              h0_buf)
    gru_layer(h0_buf[...].astype(bf16),
              wih1_ref[...], whh1_ref[...], bih1_ref[...], bhh1_ref[...],
              h1_buf)

    # LayerNorm over the hidden (lane) dim
    hn = _layernorm(h1_buf[...], ggru_ref[...], bgru_ref[...]).astype(bf16)

    # Upsample fused with the 3 deconv1 taps: shifted block-diagonal interp
    # matrices A_k, lane-concat, then one stacked (3*H, C1) matmul.
    ups = [jnp.dot(a_ref[k], hn, preferred_element_type=f32) for k in range(K)]
    x1 = jnp.concatenate(ups, axis=1).astype(bf16)        # (l_out*tb, 3*H)
    d1 = jnp.dot(x1, w1_ref[...], preferred_element_type=f32) + b1_ref[...]
    d1 = jnp.maximum(d1, 0.0)                             # ReLU
    d1n = _layernorm(d1, g1_ref[...], bt1_ref[...]).astype(bf16)

    # deconv2: block-diagonal 0/1 shift matrices S_k + one stacked (3*C1,
    # OUT_PAD) matmul; output lanes padded to 128 for dense stores.
    sh = [jnp.dot(s_ref[k], d1n, preferred_element_type=f32) for k in range(K)]
    x2 = jnp.concatenate(sh, axis=1).astype(bf16)         # (l_out*tb, 3*C1)
    d2 = jnp.dot(x2, w2_ref[...], preferred_element_type=f32) + b2_ref[...]
    out_ref[0] = d2.astype(out_ref.dtype)


# -------------------------- host-side precompute --------------------------
def upsample_matrix(l_in, l_out):
    """(l_out, l_in) matrix for 1D linear interpolation, align_corners=True."""
    U = np.zeros((l_out, l_in), np.float32)
    if l_out == 1:
        U[0, 0] = 1.0
        return U
    for j in range(l_out):
        pos = j * (l_in - 1) / (l_out - 1)
        i0 = int(np.floor(pos))
        i1 = min(i0 + 1, l_in - 1)
        w = pos - i0
        U[j, i0] += 1.0 - w
        U[j, i1] += w
    return U


def _shift_rows(M, delta):
    """out[j] = M[j + delta] if the source row exists, else 0."""
    out = np.zeros_like(M)
    rows = M.shape[0]
    lo = max(0, -delta)
    hi = min(rows, rows - delta)
    if hi > lo:
        out[lo:hi] = M[lo + delta:hi + delta]
    return out


def init_params(key):
    keys = jax.random.split(key, 12)

    def u(k, shape, scale):
        return jax.random.uniform(k, shape, jnp.float32, -scale, scale)

    s = 1.0 / np.sqrt(HIDDEN)
    p = {
        # GRU layer 0 (input = latent_dim); weights stored pre-transposed (in, 3H)
        "wih0": u(keys[0], (LATENT_DIM, 3 * HIDDEN), s),
        "whh0": u(keys[1], (HIDDEN, 3 * HIDDEN), s),
        "bih0": u(keys[2], (1, 3 * HIDDEN), s),
        "bhh0": u(keys[3], (1, 3 * HIDDEN), s),
        # GRU layer 1 (input = hidden)
        "wih1": u(keys[4], (HIDDEN, 3 * HIDDEN), s),
        "whh1": u(keys[5], (HIDDEN, 3 * HIDDEN), s),
        "bih1": u(keys[6], (1, 3 * HIDDEN), s),
        "bhh1": u(keys[7], (1, 3 * HIDDEN), s),
        # ln_gru
        "g_gru": jnp.ones((1, HIDDEN), jnp.float32),
        "b_gru": jnp.zeros((1, HIDDEN), jnp.float32),
    }
    s1 = 1.0 / np.sqrt(HIDDEN * K)
    p["w1"] = u(keys[8], (K, HIDDEN, C1), s1)       # ConvTranspose1d(256->128), (k, in, out)
    p["b1"] = u(keys[9], (1, C1), s1)
    p["g1"] = jnp.ones((1, C1), jnp.float32)         # ln1
    p["bt1"] = jnp.zeros((1, C1), jnp.float32)
    s2 = 1.0 / np.sqrt(C1 * K)
    p["w2"] = u(keys[10], (K, C1, OUTPUT_DIM), s2)   # ConvTranspose1d(128->79)
    p["b2"] = u(keys[11], (1, OUTPUT_DIM), s2)
    return p


def prepare_params(p, l_in, l_out, tb):
    """Cast weights to bf16, build stacked conv weights and the fused
    (shifted, block-diagonal) upsample / shift matrices used by the kernel."""
    bf = jnp.bfloat16
    U = upsample_matrix(l_in, l_out)
    # round interp coefficients to bf16 once so kernel and reference agree
    Ub = np.asarray(jnp.asarray(U).astype(bf).astype(jnp.float32))
    eye_tb = np.eye(tb, dtype=np.float32)
    eye_lo = np.eye(l_out, dtype=np.float32)
    A = np.stack([np.kron(_shift_rows(Ub, 1 - k), eye_tb) for k in range(K)])
    S = np.stack([np.kron(_shift_rows(eye_lo, 1 - k), eye_tb) for k in range(K)])

    w1cat = jnp.asarray(p["w1"]).reshape(K * HIDDEN, C1)      # [W1[0]; W1[1]; W1[2]]
    w2pad = jnp.pad(jnp.asarray(p["w2"]),
                    ((0, 0), (0, 0), (0, OUT_PAD - OUTPUT_DIM)))
    w2cat = w2pad.reshape(K * C1, OUT_PAD)
    b2pad = jnp.pad(p["b2"], ((0, 0), (0, OUT_PAD - OUTPUT_DIM)))

    return {
        "wih0": p["wih0"].astype(bf), "whh0": p["whh0"].astype(bf),
        "bih0": p["bih0"], "bhh0": p["bhh0"],
        "wih1": p["wih1"].astype(bf), "whh1": p["whh1"].astype(bf),
        "bih1": p["bih1"], "bhh1": p["bhh1"],
        "g_gru": p["g_gru"], "b_gru": p["b_gru"],
        "a": jnp.asarray(A).astype(bf), "s": jnp.asarray(S).astype(bf),
        "w1cat": w1cat.astype(bf), "b1": p["b1"],
        "g1": p["g1"], "bt1": p["bt1"],
        "w2cat": w2cat.astype(bf), "b2": b2pad,
    }


# -------------------------- wrapper --------------------------
@functools.partial(jax.jit, static_argnames=("tb",))
def decoder_forward(z, kp, *, tb=TB):
    """z: (B, latent_dim, L_in) -> (B, output_dim, L_out)."""
    B, D, l_in = z.shape
    l_out = kp["a"].shape[1] // tb
    G = (B + tb - 1) // tb
    Bp = G * tb

    x = jnp.transpose(z, (0, 2, 1))                           # (B, l_in, D)
    if Bp != B:
        x = jnp.pad(x, ((0, Bp - B), (0, 0), (0, 0)))
    # time-major rows inside each batch tile: row = t*tb + b
    x = x.reshape(G, tb, l_in, D).transpose(0, 2, 1, 3).reshape(G, l_in * tb, D)
    x = x.astype(jnp.bfloat16)

    def full_spec(arr):
        n = arr.ndim
        return pl.BlockSpec(arr.shape, lambda g, n=n: (0,) * n)

    operands = (x, kp["wih0"], kp["whh0"], kp["bih0"], kp["bhh0"],
                kp["wih1"], kp["whh1"], kp["bih1"], kp["bhh1"],
                kp["g_gru"], kp["b_gru"],
                kp["a"], kp["s"],
                kp["w1cat"], kp["b1"], kp["g1"], kp["bt1"],
                kp["w2cat"], kp["b2"])
    in_specs = [pl.BlockSpec((1, l_in * tb, D), lambda g: (g, 0, 0))]
    in_specs += [full_spec(a) for a in operands[1:]]

    out = pl.pallas_call(
        functools.partial(decoder_kernel, tb=tb),
        out_shape=jax.ShapeDtypeStruct((G, l_out * tb, OUT_PAD), jnp.float32),
        grid=(G,),
        in_specs=in_specs,
        out_specs=pl.BlockSpec((1, l_out * tb, OUT_PAD), lambda g: (g, 0, 0)),
        scratch_shapes=[pltpu.VMEM((l_in * tb, HIDDEN), jnp.float32),
                        pltpu.VMEM((l_in * tb, HIDDEN), jnp.float32)],
        compiler_params=pltpu.CompilerParams(
            dimension_semantics=("parallel",)),
    )(*operands)

    # un-flatten: rows are (time-major, batch-minor) per tile
    out = out.reshape(G, l_out, tb, OUT_PAD).transpose(0, 2, 1, 3)
    out = out.reshape(Bp, l_out, OUT_PAD)[:B, :, :OUTPUT_DIM]
    return jnp.transpose(out, (0, 2, 1))                      # (B, output_dim, L_out)


# -------------------------- pure-JAX reference --------------------------
# Mirrors the kernel's numerical recipe (bf16 matmul operands, f32 accumulate,
# same tanh-based sigmoid) but with the straightforward module structure
# (explicit upsample matrix, zero-padded shifted convs).
def decoder_reference(z, p, l_out):
    bf = jnp.bfloat16
    f32 = jnp.float32
    H = HIDDEN
    x = jnp.transpose(z, (0, 2, 1)).astype(bf)                # (B, L_in, D)
    B, L, _ = x.shape

    def bdot(a, b):
        return jnp.einsum('...ij,jk->...ik', a.astype(bf), b.astype(bf),
                          preferred_element_type=f32)

    def gru_layer(xs, wih, whh, bih, bhh):
        gx_all = bdot(xs, wih) + bih                          # (B, L, 3H)
        h = jnp.zeros((B, H), f32)
        outs = []
        for t in range(L):
            gx = gx_all[:, t, :]
            gh = bdot(h, whh) + bhh
            r = _sigmoid(gx[:, 0:H] + gh[:, 0:H])
            zt = _sigmoid(gx[:, H:2 * H] + gh[:, H:2 * H])
            n = jnp.tanh(gx[:, 2 * H:] + r * gh[:, 2 * H:])
            h = (1.0 - zt) * n + zt * h
            outs.append(h)
        return jnp.stack(outs, axis=1)

    h = gru_layer(x, p["wih0"], p["whh0"], p["bih0"], p["bhh0"])
    h = gru_layer(h, p["wih1"], p["whh1"], p["bih1"], p["bhh1"])
    hn = _layernorm(h, p["g_gru"], p["b_gru"])

    U = jnp.asarray(upsample_matrix(L, l_out))
    up = jnp.einsum('oi,bih->boh', U.astype(bf), hn.astype(bf),
                    preferred_element_type=f32)               # (B, l_out, H)

    def conv_t(v, w, b):
        Lp = v.shape[1]
        vp = jnp.pad(v, ((0, 0), (1, 1), (0, 0)))
        out = b
        for k in range(K):
            out = out + jnp.einsum('blc,cd->bld',
                                   vp[:, 2 - k:2 - k + Lp, :].astype(bf),
                                   w[k].astype(bf),
                                   preferred_element_type=f32)
        return out

    d1 = jnp.maximum(conv_t(up, p["w1"], p["b1"]), 0.0)
    d1 = _layernorm(d1, p["g1"], p["bt1"])
    d2 = conv_t(d1, p["w2"], p["b2"])
    return jnp.transpose(d2, (0, 2, 1))                       # (B, output_dim, L_out)


# -------------------------- main --------------------------
if __name__ == "__main__":
    key = jax.random.PRNGKey(0)
    k_param, k_data = jax.random.split(key)

    params = init_params(k_param)
    kparams = prepare_params(params, LATENT_SEQ_LEN, ORIG_SEQ_LEN, TB)

    B = 16                                                     # 2 batch tiles of TB=8
    z = jax.random.normal(k_data, (B, LATENT_DIM, LATENT_SEQ_LEN), jnp.float32)

    out = jax.block_until_ready(decoder_forward(z, kparams, tb=TB))
    ref = jax.block_until_ready(decoder_reference(z, params, ORIG_SEQ_LEN))

    assert out.shape == (B, OUTPUT_DIM, ORIG_SEQ_LEN), out.shape
    np.testing.assert_allclose(np.asarray(out), np.asarray(ref),
                               rtol=1e-2, atol=1e-2)
    print("KERNEL_OK")
</pallas_src>

<mosaic_0001>
module attributes {stable_mosaic.version = 11 : i64} {
  func.func @decoder_kernel(%arg0: i32, %arg1: memref<1x32x16xbf16, #tpu.memory_space<vmem>>, %arg2: memref<16x768xbf16, #tpu.memory_space<vmem>>, %arg3: memref<256x768xbf16, #tpu.memory_space<vmem>>, %arg4: memref<1x768xf32, #tpu.memory_space<vmem>>, %arg5: memref<1x768xf32, #tpu.memory_space<vmem>>, %arg6: memref<256x768xbf16, #tpu.memory_space<vmem>>, %arg7: memref<256x768xbf16, #tpu.memory_space<vmem>>, %arg8: memref<1x768xf32, #tpu.memory_space<vmem>>, %arg9: memref<1x768xf32, #tpu.memory_space<vmem>>, %arg10: memref<1x256xf32, #tpu.memory_space<vmem>>, %arg11: memref<1x256xf32, #tpu.memory_space<vmem>>, %arg12: memref<3x80x32xbf16, #tpu.memory_space<vmem>>, %arg13: memref<3x80x80xbf16, #tpu.memory_space<vmem>>, %arg14: memref<768x128xbf16, #tpu.memory_space<vmem>>, %arg15: memref<1x128xf32, #tpu.memory_space<vmem>>, %arg16: memref<1x128xf32, #tpu.memory_space<vmem>>, %arg17: memref<1x128xf32, #tpu.memory_space<vmem>>, %arg18: memref<384x128xbf16, #tpu.memory_space<vmem>>, %arg19: memref<1x128xf32, #tpu.memory_space<vmem>>, %arg20: memref<1x80x128xf32, #tpu.memory_space<vmem>>, %arg21: memref<32x256xf32, #tpu.memory_space<vmem>>, %arg22: memref<32x256xf32, #tpu.memory_space<vmem>>) attributes {dimension_semantics = [#tpu.dimension_semantics<parallel>], iteration_bounds = array<i64: 2>, scalar_prefetch = 0 : i64, scratch_operands = 2 : i64, tpu.core_type = #tpu.core_type<tc>, window_params = [{transform_indices = @transform_0, window_bounds = array<i64: 1, 32, 16>}, {pipeline_mode = #tpu.pipeline_mode<synchronous>, transform_indices = @transform_1, window_bounds = array<i64: 16, 768>}, {pipeline_mode = #tpu.pipeline_mode<synchronous>, transform_indices = @transform_2, window_bounds = array<i64: 256, 768>}, {pipeline_mode = #tpu.pipeline_mode<synchronous>, transform_indices = @transform_3, window_bounds = array<i64: 1, 768>}, {pipeline_mode = #tpu.pipeline_mode<synchronous>, transform_indices = @transform_4, window_bounds = array<i64: 1, 768>}, {pipeline_mode = #tpu.pipeline_mode<synchronous>, transform_indices = @transform_5, window_bounds = array<i64: 256, 768>}, {pipeline_mode = #tpu.pipeline_mode<synchronous>, transform_indices = @transform_6, window_bounds = array<i64: 256, 768>}, {pipeline_mode = #tpu.pipeline_mode<synchronous>, transform_indices = @transform_7, window_bounds = array<i64: 1, 768>}, {pipeline_mode = #tpu.pipeline_mode<synchronous>, transform_indices = @transform_8, window_bounds = array<i64: 1, 768>}, {pipeline_mode = #tpu.pipeline_mode<synchronous>, transform_indices = @transform_9, window_bounds = array<i64: 1, 256>}, {pipeline_mode = #tpu.pipeline_mode<synchronous>, transform_indices = @transform_10, window_bounds = array<i64: 1, 256>}, {pipeline_mode = #tpu.pipeline_mode<synchronous>, transform_indices = @transform_11, window_bounds = array<i64: 3, 80, 32>}, {pipeline_mode = #tpu.pipeline_mode<synchronous>, transform_indices = @transform_12, window_bounds = array<i64: 3, 80, 80>}, {pipeline_mode = #tpu.pipeline_mode<synchronous>, transform_indices = @transform_13, window_bounds = array<i64: 768, 128>}, {pipeline_mode = #tpu.pipeline_mode<synchronous>, transform_indices = @transform_14, window_bounds = array<i64: 1, 128>}, {pipeline_mode = #tpu.pipeline_mode<synchronous>, transform_indices = @transform_15, window_bounds = array<i64: 1, 128>}, {pipeline_mode = #tpu.pipeline_mode<synchronous>, transform_indices = @transform_16, window_bounds = array<i64: 1, 128>}, {pipeline_mode = #tpu.pipeline_mode<synchronous>, transform_indices = @transform_17, window_bounds = array<i64: 384, 128>}, {pipeline_mode = #tpu.pipeline_mode<synchronous>, transform_indices = @transform_18, window_bounds = array<i64: 1, 128>}, {transform_indices = @transform_19, window_bounds = array<i64: 1, 80, 128>}]} {
    %c0 = arith.constant 0 : index
    %c0_0 = arith.constant 0 : index
    %c0_1 = arith.constant 0 : index
    %0 = vector.load %arg1[%c0, %c0_0, %c0_1] : memref<1x32x16xbf16, #tpu.memory_space<vmem>>, vector<1x32x16xbf16>
    %1 = vector.shape_cast %0 : vector<1x32x16xbf16> to vector<32x16xbf16>
    %c0_2 = arith.constant 0 : index
    %c0_3 = arith.constant 0 : index
    %2 = vector.load %arg2[%c0_2, %c0_3] : memref<16x768xbf16, #tpu.memory_space<vmem>>, vector<16x768xbf16>
    %c0_4 = arith.constant 0 : index
    %c0_5 = arith.constant 0 : index
    %3 = vector.load %arg3[%c0_4, %c0_5] : memref<256x768xbf16, #tpu.memory_space<vmem>>, vector<256x768xbf16>
    %c0_6 = arith.constant 0 : index
    %c0_7 = arith.constant 0 : index
    %4 = vector.load %arg4[%c0_6, %c0_7] : memref<1x768xf32, #tpu.memory_space<vmem>>, vector<1x768xf32>
    %c0_8 = arith.constant 0 : index
    %c0_9 = arith.constant 0 : index
    %5 = vector.load %arg5[%c0_8, %c0_9] : memref<1x768xf32, #tpu.memory_space<vmem>>, vector<1x768xf32>
    %cst = arith.constant dense<0.000000e+00> : vector<32x768xf32>
    %6 = tpu.matmul %1, %2, %cst {dimension_numbers = #tpu.dot_dimension_numbers<[1], [0], [0], [1], [0, 0, 1, 1], [], []>} : vector<32x16xbf16>, vector<16x768xbf16>, vector<32x768xf32> -> vector<32x768xf32>
    %7 = vector.broadcast %4 : vector<1x768xf32> to vector<32x768xf32>
    %8 = arith.addf %6, %7 : vector<32x768xf32>
    %cst_10 = arith.constant 0.000000e+00 : f32
    %9 = vector.broadcast %cst_10 : f32 to vector<8x256xf32>
    %10 = vector.extract_strided_slice %8 {offsets = [0, 0], sizes = [8, 768], strides = [1, 1]} : vector<32x768xf32> to vector<8x768xf32>
    %11 = arith.truncf %9 : vector<8x256xf32> to vector<8x256xbf16>
    %cst_11 = arith.constant dense<0.000000e+00> : vector<8x768xf32>
    %12 = tpu.matmul %11, %3, %cst_11 {dimension_numbers = #tpu.dot_dimension_numbers<[1], [0], [0], [1], [0, 0, 1, 1], [], []>} : vector<8x256xbf16>, vector<256x768xbf16>, vector<8x768xf32> -> vector<8x768xf32>
    %13 = vector.broadcast %5 : vector<1x768xf32> to vector<8x768xf32>
    %14 = arith.addf %12, %13 : vector<8x768xf32>
    %15 = vector.extract_strided_slice %10 {offsets = [0, 0], sizes = [8, 256], strides = [1, 1]} : vector<8x768xf32> to vector<8x256xf32>
    %16 = vector.extract_strided_slice %14 {offsets = [0, 0], sizes = [8, 256], strides = [1, 1]} : vector<8x768xf32> to vector<8x256xf32>
    %17 = arith.addf %15, %16 : vector<8x256xf32>
    %cst_12 = arith.constant 5.000000e-01 : f32
    %18 = vector.broadcast %cst_12 : f32 to vector<8x256xf32>
    %19 = arith.mulf %18, %17 : vector<8x256xf32>
    %20 = math.tanh %19 : vector<8x256xf32>
    %cst_13 = arith.constant 1.000000e+00 : f32
    %21 = vector.broadcast %cst_13 : f32 to vector<8x256xf32>
    %22 = arith.addf %20, %21 : vector<8x256xf32>
    %cst_14 = arith.constant 5.000000e-01 : f32
    %23 = vector.broadcast %cst_14 : f32 to vector<8x256xf32>
    %24 = arith.mulf %23, %22 : vector<8x256xf32>
    %25 = vector.extract_strided_slice %10 {offsets = [0, 256], sizes = [8, 256], strides = [1, 1]} : vector<8x768xf32> to vector<8x256xf32>
    %26 = vector.extract_strided_slice %14 {offsets = [0, 256], sizes = [8, 256], strides = [1, 1]} : vector<8x768xf32> to vector<8x256xf32>
    %27 = arith.addf %25, %26 : vector<8x256xf32>
    %cst_15 = arith.constant 5.000000e-01 : f32
    %28 = vector.broadcast %cst_15 : f32 to vector<8x256xf32>
    %29 = arith.mulf %28, %27 : vector<8x256xf32>
    %30 = math.tanh %29 : vector<8x256xf32>
    %cst_16 = arith.constant 1.000000e+00 : f32
    %31 = vector.broadcast %cst_16 : f32 to vector<8x256xf32>
    %32 = arith.addf %30, %31 : vector<8x256xf32>
    %cst_17 = arith.constant 5.000000e-01 : f32
    %33 = vector.broadcast %cst_17 : f32 to vector<8x256xf32>
    %34 = arith.mulf %33, %32 : vector<8x256xf32>
    %35 = vector.extract_strided_slice %10 {offsets = [0, 512], sizes = [8, 256], strides = [1, 1]} : vector<8x768xf32> to vector<8x256xf32>
    %36 = vector.extract_strided_slice %14 {offsets = [0, 512], sizes = [8, 256], strides = [1, 1]} : vector<8x768xf32> to vector<8x256xf32>
    %37 = arith.mulf %24, %36 : vector<8x256xf32>
    %38 = arith.addf %35, %37 : vector<8x256xf32>
    %39 = math.tanh %38 : vector<8x256xf32>
    %cst_18 = arith.constant 1.000000e+00 : f32
    %40 = vector.broadcast %cst_18 : f32 to vector<8x256xf32>
    %41 = arith.subf %40, %34 : vector<8x256xf32>
    %42 = arith.mulf %41, %39 : vector<8x256xf32>
    %43 = arith.mulf %34, %9 : vector<8x256xf32>
    %44 = arith.addf %42, %43 : vector<8x256xf32>
    %c0_19 = arith.constant 0 : index
    %c0_20 = arith.constant 0 : index
    %45 = vector.load %arg21[%c0_19, %c0_20] : memref<32x256xf32, #tpu.memory_space<vmem>>, vector<8x256xf32>
    tpu.vector_store %arg21[%c0_19, %c0_20], %44 {strides = array<i32>} : memref<32x256xf32, #tpu.memory_space<vmem>>, vector<8x256xf32>,
    %46 = vector.extract_strided_slice %8 {offsets = [8, 0], sizes = [8, 768], strides = [1, 1]} : vector<32x768xf32> to vector<8x768xf32>
    %47 = arith.truncf %44 : vector<8x256xf32> to vector<8x256xbf16>
    %cst_21 = arith.constant dense<0.000000e+00> : vector<8x768xf32>
    %48 = tpu.matmul %47, %3, %cst_21 {dimension_numbers = #tpu.dot_dimension_numbers<[1], [0], [0], [1], [0, 0, 1, 1], [], []>} : vector<8x256xbf16>, vector<256x768xbf16>, vector<8x768xf32> -> vector<8x768xf32>
    %49 = vector.broadcast %5 : vector<1x768xf32> to vector<8x768xf32>
    %50 = arith.addf %48, %49 : vector<8x768xf32>
    %51 = vector.extract_strided_slice %46 {offsets = [0, 0], sizes = [8, 256], strides = [1, 1]} : vector<8x768xf32> to vector<8x256xf32>
    %52 = vector.extract_strided_slice %50 {offsets = [0, 0], sizes = [8, 256], strides = [1, 1]} : vector<8x768xf32> to vector<8x256xf32>
    %53 = arith.addf %51, %52 : vector<8x256xf32>
    %cst_22 = arith.constant 5.000000e-01 : f32
    %54 = vector.broadcast %cst_22 : f32 to vector<8x256xf32>
    %55 = arith.mulf %54, %53 : vector<8x256xf32>
    %56 = math.tanh %55 : vector<8x256xf32>
    %cst_23 = arith.constant 1.000000e+00 : f32
    %57 = vector.broadcast %cst_23 : f32 to vector<8x256xf32>
    %58 = arith.addf %56, %57 : vector<8x256xf32>
    %cst_24 = arith.constant 5.000000e-01 : f32
    %59 = vector.broadcast %cst_24 : f32 to vector<8x256xf32>
    %60 = arith.mulf %59, %58 : vector<8x256xf32>
    %61 = vector.extract_strided_slice %46 {offsets = [0, 256], sizes = [8, 256], strides = [1, 1]} : vector<8x768xf32> to vector<8x256xf32>
    %62 = vector.extract_strided_slice %50 {offsets = [0, 256], sizes = [8, 256], strides = [1, 1]} : vector<8x768xf32> to vector<8x256xf32>
    %63 = arith.addf %61, %62 : vector<8x256xf32>
    %cst_25 = arith.constant 5.000000e-01 : f32
    %64 = vector.broadcast %cst_25 : f32 to vector<8x256xf32>
    %65 = arith.mulf %64, %63 : vector<8x256xf32>
    %66 = math.tanh %65 : vector<8x256xf32>
    %cst_26 = arith.constant 1.000000e+00 : f32
    %67 = vector.broadcast %cst_26 : f32 to vector<8x256xf32>
    %68 = arith.addf %66, %67 : vector<8x256xf32>
    %cst_27 = arith.constant 5.000000e-01 : f32
    %69 = vector.broadcast %cst_27 : f32 to vector<8x256xf32>
    %70 = arith.mulf %69, %68 : vector<8x256xf32>
    %71 = vector.extract_strided_slice %46 {offsets = [0, 512], sizes = [8, 256], strides = [1, 1]} : vector<8x768xf32> to vector<8x256xf32>
    %72 = vector.extract_strided_slice %50 {offsets = [0, 512], sizes = [8, 256], strides = [1, 1]} : vector<8x768xf32> to vector<8x256xf32>
    %73 = arith.mulf %60, %72 : vector<8x256xf32>
    %74 = arith.addf %71, %73 : vector<8x256xf32>
    %75 = math.tanh %74 : vector<8x256xf32>
    %cst_28 = arith.constant 1.000000e+00 : f32
    %76 = vector.broadcast %cst_28 : f32 to vector<8x256xf32>
    %77 = arith.subf %76, %70 : vector<8x256xf32>
    %78 = arith.mulf %77, %75 : vector<8x256xf32>
    %79 = arith.mulf %70, %44 : vector<8x256xf32>
    %80 = arith.addf %78, %79 : vector<8x256xf32>
    %c8 = arith.constant 8 : index
    %c0_29 = arith.constant 0 : index
    %81 = vector.load %arg21[%c8, %c0_29] : memref<32x256xf32, #tpu.memory_space<vmem>>, vector<8x256xf32>
    tpu.vector_store %arg21[%c8, %c0_29], %80 {strides = array<i32>} : memref<32x256xf32, #tpu.memory_space<vmem>>, vector<8x256xf32>,
    %82 = vector.extract_strided_slice %8 {offsets = [16, 0], sizes = [8, 768], strides = [1, 1]} : vector<32x768xf32> to vector<8x768xf32>
    %83 = arith.truncf %80 : vector<8x256xf32> to vector<8x256xbf16>
    %cst_30 = arith.constant dense<0.000000e+00> : vector<8x768xf32>
    %84 = tpu.matmul %83, %3, %cst_30 {dimension_numbers = #tpu.dot_dimension_numbers<[1], [0], [0], [1], [0, 0, 1, 1], [], []>} : vector<8x256xbf16>, vector<256x768xbf16>, vector<8x768xf32> -> vector<8x768xf32>
    %85 = vector.broadcast %5 : vector<1x768xf32> to vector<8x768xf32>
    %86 = arith.addf %84, %85 : vector<8x768xf32>
    %87 = vector.extract_strided_slice %82 {offsets = [0, 0], sizes = [8, 256], strides = [1, 1]} : vector<8x768xf32> to vector<8x256xf32>
    %88 = vector.extract_strided_slice %86 {offsets = [0, 0], sizes = [8, 256], strides = [1, 1]} : vector<8x768xf32> to vector<8x256xf32>
    %89 = arith.addf %87, %88 : vector<8x256xf32>
    %cst_31 = arith.constant 5.000000e-01 : f32
    %90 = vector.broadcast %cst_31 : f32 to vector<8x256xf32>
    %91 = arith.mulf %90, %89 : vector<8x256xf32>
    %92 = math.tanh %91 : vector<8x256xf32>
    %cst_32 = arith.constant 1.000000e+00 : f32
    %93 = vector.broadcast %cst_32 : f32 to vector<8x256xf32>
    %94 = arith.addf %92, %93 : vector<8x256xf32>
    %cst_33 = arith.constant 5.000000e-01 : f32
    %95 = vector.broadcast %cst_33 : f32 to vector<8x256xf32>
    %96 = arith.mulf %95, %94 : vector<8x256xf32>
    %97 = vector.extract_strided_slice %82 {offsets = [0, 256], sizes = [8, 256], strides = [1, 1]} : vector<8x768xf32> to vector<8x256xf32>
    %98 = vector.extract_strided_slice %86 {offsets = [0, 256], sizes = [8, 256], strides = [1, 1]} : vector<8x768xf32> to vector<8x256xf32>
    %99 = arith.addf %97, %98 : vector<8x256xf32>
    %cst_34 = arith.constant 5.000000e-01 : f32
    %100 = vector.broadcast %cst_34 : f32 to vector<8x256xf32>
    %101 = arith.mulf %100, %99 : vector<8x256xf32>
    %102 = math.tanh %101 : vector<8x256xf32>
    %cst_35 = arith.constant 1.000000e+00 : f32
    %103 = vector.broadcast %cst_35 : f32 to vector<8x256xf32>
    %104 = arith.addf %102, %103 : vector<8x256xf32>
    %cst_36 = arith.constant 5.000000e-01 : f32
    %105 = vector.broadcast %cst_36 : f32 to vector<8x256xf32>
    %106 = arith.mulf %105, %104 : vector<8x256xf32>
    %107 = vector.extract_strided_slice %82 {offsets = [0, 512], sizes = [8, 256], strides = [1, 1]} : vector<8x768xf32> to vector<8x256xf32>
    %108 = vector.extract_strided_slice %86 {offsets = [0, 512], sizes = [8, 256], strides = [1, 1]} : vector<8x768xf32> to vector<8x256xf32>
    %109 = arith.mulf %96, %108 : vector<8x256xf32>
    %110 = arith.addf %107, %109 : vector<8x256xf32>
    %111 = math.tanh %110 : vector<8x256xf32>
    %cst_37 = arith.constant 1.000000e+00 : f32
    %112 = vector.broadcast %cst_37 : f32 to vector<8x256xf32>
    %113 = arith.subf %112, %106 : vector<8x256xf32>
    %114 = arith.mulf %113, %111 : vector<8x256xf32>
    %115 = arith.mulf %106, %80 : vector<8x256xf32>
    %116 = arith.addf %114, %115 : vector<8x256xf32>
    %c16 = arith.constant 16 : index
    %c0_38 = arith.constant 0 : index
    %117 = vector.load %arg21[%c16, %c0_38] : memref<32x256xf32, #tpu.memory_space<vmem>>, vector<8x256xf32>
    tpu.vector_store %arg21[%c16, %c0_38], %116 {strides = array<i32>} : memref<32x256xf32, #tpu.memory_space<vmem>>, vector<8x256xf32>,
    %118 = vector.extract_strided_slice %8 {offsets = [24, 0], sizes = [8, 768], strides = [1, 1]} : vector<32x768xf32> to vector<8x768xf32>
    %119 = arith.truncf %116 : vector<8x256xf32> to vector<8x256xbf16>
    %cst_39 = arith.constant dense<0.000000e+00> : vector<8x768xf32>
    %120 = tpu.matmul %119, %3, %cst_39 {dimension_numbers = #tpu.dot_dimension_numbers<[1], [0], [0], [1], [0, 0, 1, 1], [], []>} : vector<8x256xbf16>, vector<256x768xbf16>, vector<8x768xf32> -> vector<8x768xf32>
    %121 = vector.broadcast %5 : vector<1x768xf32> to vector<8x768xf32>
    %122 = arith.addf %120, %121 : vector<8x768xf32>
    %123 = vector.extract_strided_slice %118 {offsets = [0, 0], sizes = [8, 256], strides = [1, 1]} : vector<8x768xf32> to vector<8x256xf32>
    %124 = vector.extract_strided_slice %122 {offsets = [0, 0], sizes = [8, 256], strides = [1, 1]} : vector<8x768xf32> to vector<8x256xf32>
    %125 = arith.addf %123, %124 : vector<8x256xf32>
    %cst_40 = arith.constant 5.000000e-01 : f32
    %126 = vector.broadcast %cst_40 : f32 to vector<8x256xf32>
    %127 = arith.mulf %126, %125 : vector<8x256xf32>
    %128 = math.tanh %127 : vector<8x256xf32>
    %cst_41 = arith.constant 1.000000e+00 : f32
    %129 = vector.broadcast %cst_41 : f32 to vector<8x256xf32>
    %130 = arith.addf %128, %129 : vector<8x256xf32>
    %cst_42 = arith.constant 5.000000e-01 : f32
    %131 = vector.broadcast %cst_42 : f32 to vector<8x256xf32>
    %132 = arith.mulf %131, %130 : vector<8x256xf32>
    %133 = vector.extract_strided_slice %118 {offsets = [0, 256], sizes = [8, 256], strides = [1, 1]} : vector<8x768xf32> to vector<8x256xf32>
    %134 = vector.extract_strided_slice %122 {offsets = [0, 256], sizes = [8, 256], strides = [1, 1]} : vector<8x768xf32> to vector<8x256xf32>
    %135 = arith.addf %133, %134 : vector<8x256xf32>
    %cst_43 = arith.constant 5.000000e-01 : f32
    %136 = vector.broadcast %cst_43 : f32 to vector<8x256xf32>
    %137 = arith.mulf %136, %135 : vector<8x256xf32>
    %138 = math.tanh %137 : vector<8x256xf32>
    %cst_44 = arith.constant 1.000000e+00 : f32
    %139 = vector.broadcast %cst_44 : f32 to vector<8x256xf32>
    %140 = arith.addf %138, %139 : vector<8x256xf32>
    %cst_45 = arith.constant 5.000000e-01 : f32
    %141 = vector.broadcast %cst_45 : f32 to vector<8x256xf32>
    %142 = arith.mulf %141, %140 : vector<8x256xf32>
    %143 = vector.extract_strided_slice %118 {offsets = [0, 512], sizes = [8, 256], strides = [1, 1]} : vector<8x768xf32> to vector<8x256xf32>
    %144 = vector.extract_strided_slice %122 {offsets = [0, 512], sizes = [8, 256], strides = [1, 1]} : vector<8x768xf32> to vector<8x256xf32>
    %145 = arith.mulf %132, %144 : vector<8x256xf32>
    %146 = arith.addf %143, %145 : vector<8x256xf32>
    %147 = math.tanh %146 : vector<8x256xf32>
    %cst_46 = arith.constant 1.000000e+00 : f32
    %148 = vector.broadcast %cst_46 : f32 to vector<8x256xf32>
    %149 = arith.subf %148, %142 : vector<8x256xf32>
    %150 = arith.mulf %149, %147 : vector<8x256xf32>
    %151 = arith.mulf %142, %116 : vector<8x256xf32>
    %152 = arith.addf %150, %151 : vector<8x256xf32>
    %c24 = arith.constant 24 : index
    %c0_47 = arith.constant 0 : index
    %153 = vector.load %arg21[%c24, %c0_47] : memref<32x256xf32, #tpu.memory_space<vmem>>, vector<8x256xf32>
    tpu.vector_store %arg21[%c24, %c0_47], %152 {strides = array<i32>} : memref<32x256xf32, #tpu.memory_space<vmem>>, vector<8x256xf32>,
    %c0_48 = arith.constant 0 : index
    %c0_49 = arith.constant 0 : index
    %154 = vector.load %arg21[%c0_48, %c0_49] : memref<32x256xf32, #tpu.memory_space<vmem>>, vector<32x256xf32>
    %155 = arith.truncf %154 : vector<32x256xf32> to vector<32x256xbf16>
    %c0_50 = arith.constant 0 : index
    %c0_51 = arith.constant 0 : index
    %156 = vector.load %arg6[%c0_50, %c0_51] : memref<256x768xbf16, #tpu.memory_space<vmem>>, vector<256x768xbf16>
    %c0_52 = arith.constant 0 : index
    %c0_53 = arith.constant 0 : index
    %157 = vector.load %arg7[%c0_52, %c0_53] : memref<256x768xbf16, #tpu.memory_space<vmem>>, vector<256x768xbf16>
    %c0_54 = arith.constant 0 : index
    %c0_55 = arith.constant 0 : index
    %158 = vector.load %arg8[%c0_54, %c0_55] : memref<1x768xf32, #tpu.memory_space<vmem>>, vector<1x768xf32>
    %c0_56 = arith.constant 0 : index
    %c0_57 = arith.constant 0 : index
    %159 = vector.load %arg9[%c0_56, %c0_57] : memref<1x768xf32, #tpu.memory_space<vmem>>, vector<1x768xf32>
    %cst_58 = arith.constant dense<0.000000e+00> : vector<32x768xf32>
    %160 = tpu.matmul %155, %156, %cst_58 {dimension_numbers = #tpu.dot_dimension_numbers<[1], [0], [0], [1], [0, 0, 1, 1], [], []>} : vector<32x256xbf16>, vector<256x768xbf16>, vector<32x768xf32> -> vector<32x768xf32>
    %161 = vector.broadcast %158 : vector<1x768xf32> to vector<32x768xf32>
    %162 = arith.addf %160, %161 : vector<32x768xf32>
    %cst_59 = arith.constant 0.000000e+00 : f32
    %163 = vector.broadcast %cst_59 : f32 to vector<8x256xf32>
    %164 = vector.extract_strided_slice %162 {offsets = [0, 0], sizes = [8, 768], strides = [1, 1]} : vector<32x768xf32> to vector<8x768xf32>
    %165 = arith.truncf %163 : vector<8x256xf32> to vector<8x256xbf16>
    %cst_60 = arith.constant dense<0.000000e+00> : vector<8x768xf32>
    %166 = tpu.matmul %165, %157, %cst_60 {dimension_numbers = #tpu.dot_dimension_numbers<[1], [0], [0], [1], [0, 0, 1, 1], [], []>} : vector<8x256xbf16>, vector<256x768xbf16>, vector<8x768xf32> -> vector<8x768xf32>
    %167 = vector.broadcast %159 : vector<1x768xf32> to vector<8x768xf32>
    %168 = arith.addf %166, %167 : vector<8x768xf32>
    %169 = vector.extract_strided_slice %164 {offsets = [0, 0], sizes = [8, 256], strides = [1, 1]} : vector<8x768xf32> to vector<8x256xf32>
    %170 = vector.extract_strided_slice %168 {offsets = [0, 0], sizes = [8, 256], strides = [1, 1]} : vector<8x768xf32> to vector<8x256xf32>
    %171 = arith.addf %169, %170 : vector<8x256xf32>
    %cst_61 = arith.constant 5.000000e-01 : f32
    %172 = vector.broadcast %cst_61 : f32 to vector<8x256xf32>
    %173 = arith.mulf %172, %171 : vector<8x256xf32>
    %174 = math.tanh %173 : vector<8x256xf32>
    %cst_62 = arith.constant 1.000000e+00 : f32
    %175 = vector.broadcast %cst_62 : f32 to vector<8x256xf32>
    %176 = arith.addf %174, %175 : vector<8x256xf32>
    %cst_63 = arith.constant 5.000000e-01 : f32
    %177 = vector.broadcast %cst_63 : f32 to vector<8x256xf32>
    %178 = arith.mulf %177, %176 : vector<8x256xf32>
    %179 = vector.extract_strided_slice %164 {offsets = [0, 256], sizes = [8, 256], strides = [1, 1]} : vector<8x768xf32> to vector<8x256xf32>
    %180 = vector.extract_strided_slice %168 {offsets = [0, 256], sizes = [8, 256], strides = [1, 1]} : vector<8x768xf32> to vector<8x256xf32>
    %181 = arith.addf %179, %180 : vector<8x256xf32>
    %cst_64 = arith.constant 5.000000e-01 : f32
    %182 = vector.broadcast %cst_64 : f32 to vector<8x256xf32>
    %183 = arith.mulf %182, %181 : vector<8x256xf32>
    %184 = math.tanh %183 : vector<8x256xf32>
    %cst_65 = arith.constant 1.000000e+00 : f32
    %185 = vector.broadcast %cst_65 : f32 to vector<8x256xf32>
    %186 = arith.addf %184, %185 : vector<8x256xf32>
    %cst_66 = arith.constant 5.000000e-01 : f32
    %187 = vector.broadcast %cst_66 : f32 to vector<8x256xf32>
    %188 = arith.mulf %187, %186 : vector<8x256xf32>
    %189 = vector.extract_strided_slice %164 {offsets = [0, 512], sizes = [8, 256], strides = [1, 1]} : vector<8x768xf32> to vector<8x256xf32>
    %190 = vector.extract_strided_slice %168 {offsets = [0, 512], sizes = [8, 256], strides = [1, 1]} : vector<8x768xf32> to vector<8x256xf32>
    %191 = arith.mulf %178, %190 : vector<8x256xf32>
    %192 = arith.addf %189, %191 : vector<8x256xf32>
    %193 = math.tanh %192 : vector<8x256xf32>
    %cst_67 = arith.constant 1.000000e+00 : f32
    %194 = vector.broadcast %cst_67 : f32 to vector<8x256xf32>
    %195 = arith.subf %194, %188 : vector<8x256xf32>
    %196 = arith.mulf %195, %193 : vector<8x256xf32>
    %197 = arith.mulf %188, %163 : vector<8x256xf32>
    %198 = arith.addf %196, %197 : vector<8x256xf32>
    %c0_68 = arith.constant 0 : index
    %c0_69 = arith.constant 0 : index
    %199 = vector.load %arg22[%c0_68, %c0_69] : memref<32x256xf32, #tpu.memory_space<vmem>>, vector<8x256xf32>
    tpu.vector_store %arg22[%c0_68, %c0_69], %198 {strides = array<i32>} : memref<32x256xf32, #tpu.memory_space<vmem>>, vector<8x256xf32>,
    %200 = vector.extract_strided_slice %162 {offsets = [8, 0], sizes = [8, 768], strides = [1, 1]} : vector<32x768xf32> to vector<8x768xf32>
    %201 = arith.truncf %198 : vector<8x256xf32> to vector<8x256xbf16>
    %cst_70 = arith.constant dense<0.000000e+00> : vector<8x768xf32>
    %202 = tpu.matmul %201, %157, %cst_70 {dimension_numbers = #tpu.dot_dimension_numbers<[1], [0], [0], [1], [0, 0, 1, 1], [], []>} : vector<8x256xbf16>, vector<256x768xbf16>, vector<8x768xf32> -> vector<8x768xf32>
    %203 = vector.broadcast %159 : vector<1x768xf32> to vector<8x768xf32>
    %204 = arith.addf %202, %203 : vector<8x768xf32>
    %205 = vector.extract_strided_slice %200 {offsets = [0, 0], sizes = [8, 256], strides = [1, 1]} : vector<8x768xf32> to vector<8x256xf32>
    %206 = vector.extract_strided_slice %204 {offsets = [0, 0], sizes = [8, 256], strides = [1, 1]} : vector<8x768xf32> to vector<8x256xf32>
    %207 = arith.addf %205, %206 : vector<8x256xf32>
    %cst_71 = arith.constant 5.000000e-01 : f32
    %208 = vector.broadcast %cst_71 : f32 to vector<8x256xf32>
    %209 = arith.mulf %208, %207 : vector<8x256xf32>
    %210 = math.tanh %209 : vector<8x256xf32>
    %cst_72 = arith.constant 1.000000e+00 : f32
    %211 = vector.broadcast %cst_72 : f32 to vector<8x256xf32>
    %212 = arith.addf %210, %211 : vector<8x256xf32>
    %cst_73 = arith.constant 5.000000e-01 : f32
    %213 = vector.broadcast %cst_73 : f32 to vector<8x256xf32>
    %214 = arith.mulf %213, %212 : vector<8x256xf32>
    %215 = vector.extract_strided_slice %200 {offsets = [0, 256], sizes = [8, 256], strides = [1, 1]} : vector<8x768xf32> to vector<8x256xf32>
    %216 = vector.extract_strided_slice %204 {offsets = [0, 256], sizes = [8, 256], strides = [1, 1]} : vector<8x768xf32> to vector<8x256xf32>
    %217 = arith.addf %215, %216 : vector<8x256xf32>
    %cst_74 = arith.constant 5.000000e-01 : f32
    %218 = vector.broadcast %cst_74 : f32 to vector<8x256xf32>
    %219 = arith.mulf %218, %217 : vector<8x256xf32>
    %220 = math.tanh %219 : vector<8x256xf32>
    %cst_75 = arith.constant 1.000000e+00 : f32
    %221 = vector.broadcast %cst_75 : f32 to vector<8x256xf32>
    %222 = arith.addf %220, %221 : vector<8x256xf32>
    %cst_76 = arith.constant 5.000000e-01 : f32
    %223 = vector.broadcast %cst_76 : f32 to vector<8x256xf32>
    %224 = arith.mulf %223, %222 : vector<8x256xf32>
    %225 = vector.extract_strided_slice %200 {offsets = [0, 512], sizes = [8, 256], strides = [1, 1]} : vector<8x768xf32> to vector<8x256xf32>
    %226 = vector.extract_strided_slice %204 {offsets = [0, 512], sizes = [8, 256], strides = [1, 1]} : vector<8x768xf32> to vector<8x256xf32>
    %227 = arith.mulf %214, %226 : vector<8x256xf32>
    %228 = arith.addf %225, %227 : vector<8x256xf32>
    %229 = math.tanh %228 : vector<8x256xf32>
    %cst_77 = arith.constant 1.000000e+00 : f32
    %230 = vector.broadcast %cst_77 : f32 to vector<8x256xf32>
    %231 = arith.subf %230, %224 : vector<8x256xf32>
    %232 = arith.mulf %231, %229 : vector<8x256xf32>
    %233 = arith.mulf %224, %198 : vector<8x256xf32>
    %234 = arith.addf %232, %233 : vector<8x256xf32>
    %c8_78 = arith.constant 8 : index
    %c0_79 = arith.constant 0 : index
    %235 = vector.load %arg22[%c8_78, %c0_79] : memref<32x256xf32, #tpu.memory_space<vmem>>, vector<8x256xf32>
    tpu.vector_store %arg22[%c8_78, %c0_79], %234 {strides = array<i32>} : memref<32x256xf32, #tpu.memory_space<vmem>>, vector<8x256xf32>,
    %236 = vector.extract_strided_slice %162 {offsets = [16, 0], sizes = [8, 768], strides = [1, 1]} : vector<32x768xf32> to vector<8x768xf32>
    %237 = arith.truncf %234 : vector<8x256xf32> to vector<8x256xbf16>
    %cst_80 = arith.constant dense<0.000000e+00> : vector<8x768xf32>
    %238 = tpu.matmul %237, %157, %cst_80 {dimension_numbers = #tpu.dot_dimension_numbers<[1], [0], [0], [1], [0, 0, 1, 1], [], []>} : vector<8x256xbf16>, vector<256x768xbf16>, vector<8x768xf32> -> vector<8x768xf32>
    %239 = vector.broadcast %159 : vector<1x768xf32> to vector<8x768xf32>
    %240 = arith.addf %238, %239 : vector<8x768xf32>
    %241 = vector.extract_strided_slice %236 {offsets = [0, 0], sizes = [8, 256], strides = [1, 1]} : vector<8x768xf32> to vector<8x256xf32>
    %242 = vector.extract_strided_slice %240 {offsets = [0, 0], sizes = [8, 256], strides = [1, 1]} : vector<8x768xf32> to vector<8x256xf32>
    %243 = arith.addf %241, %242 : vector<8x256xf32>
    %cst_81 = arith.constant 5.000000e-01 : f32
    %244 = vector.broadcast %cst_81 : f32 to vector<8x256xf32>
    %245 = arith.mulf %244, %243 : vector<8x256xf32>
    %246 = math.tanh %245 : vector<8x256xf32>
    %cst_82 = arith.constant 1.000000e+00 : f32
    %247 = vector.broadcast %cst_82 : f32 to vector<8x256xf32>
    %248 = arith.addf %246, %247 : vector<8x256xf32>
    %cst_83 = arith.constant 5.000000e-01 : f32
    %249 = vector.broadcast %cst_83 : f32 to vector<8x256xf32>
    %250 = arith.mulf %249, %248 : vector<8x256xf32>
    %251 = vector.extract_strided_slice %236 {offsets = [0, 256], sizes = [8, 256], strides = [1, 1]} : vector<8x768xf32> to vector<8x256xf32>
    %252 = vector.extract_strided_slice %240 {offsets = [0, 256], sizes = [8, 256], strides = [1, 1]} : vector<8x768xf32> to vector<8x256xf32>
    %253 = arith.addf %251, %252 : vector<8x256xf32>
    %cst_84 = arith.constant 5.000000e-01 : f32
    %254 = vector.broadcast %cst_84 : f32 to vector<8x256xf32>
    %255 = arith.mulf %254, %253 : vector<8x256xf32>
    %256 = math.tanh %255 : vector<8x256xf32>
    %cst_85 = arith.constant 1.000000e+00 : f32
    %257 = vector.broadcast %cst_85 : f32 to vector<8x256xf32>
    %258 = arith.addf %256, %257 : vector<8x256xf32>
    %cst_86 = arith.constant 5.000000e-01 : f32
    %259 = vector.broadcast %cst_86 : f32 to vector<8x256xf32>
    %260 = arith.mulf %259, %258 : vector<8x256xf32>
    %261 = vector.extract_strided_slice %236 {offsets = [0, 512], sizes = [8, 256], strides = [1, 1]} : vector<8x768xf32> to vector<8x256xf32>
    %262 = vector.extract_strided_slice %240 {offsets = [0, 512], sizes = [8, 256], strides = [1, 1]} : vector<8x768xf32> to vector<8x256xf32>
    %263 = arith.mulf %250, %262 : vector<8x256xf32>
    %264 = arith.addf %261, %263 : vector<8x256xf32>
    %265 = math.tanh %264 : vector<8x256xf32>
    %cst_87 = arith.constant 1.000000e+00 : f32
    %266 = vector.broadcast %cst_87 : f32 to vector<8x256xf32>
    %267 = arith.subf %266, %260 : vector<8x256xf32>
    %268 = arith.mulf %267, %265 : vector<8x256xf32>
    %269 = arith.mulf %260, %234 : vector<8x256xf32>
    %270 = arith.addf %268, %269 : vector<8x256xf32>
    %c16_88 = arith.constant 16 : index
    %c0_89 = arith.constant 0 : index
    %271 = vector.load %arg22[%c16_88, %c0_89] : memref<32x256xf32, #tpu.memory_space<vmem>>, vector<8x256xf32>
    tpu.vector_store %arg22[%c16_88, %c0_89], %270 {strides = array<i32>} : memref<32x256xf32, #tpu.memory_space<vmem>>, vector<8x256xf32>,
    %272 = vector.extract_strided_slice %162 {offsets = [24, 0], sizes = [8, 768], strides = [1, 1]} : vector<32x768xf32> to vector<8x768xf32>
    %273 = arith.truncf %270 : vector<8x256xf32> to vector<8x256xbf16>
    %cst_90 = arith.constant dense<0.000000e+00> : vector<8x768xf32>
    %274 = tpu.matmul %273, %157, %cst_90 {dimension_numbers = #tpu.dot_dimension_numbers<[1], [0], [0], [1], [0, 0, 1, 1], [], []>} : vector<8x256xbf16>, vector<256x768xbf16>, vector<8x768xf32> -> vector<8x768xf32>
    %275 = vector.broadcast %159 : vector<1x768xf32> to vector<8x768xf32>
    %276 = arith.addf %274, %275 : vector<8x768xf32>
    %277 = vector.extract_strided_slice %272 {offsets = [0, 0], sizes = [8, 256], strides = [1, 1]} : vector<8x768xf32> to vector<8x256xf32>
    %278 = vector.extract_strided_slice %276 {offsets = [0, 0], sizes = [8, 256], strides = [1, 1]} : vector<8x768xf32> to vector<8x256xf32>
    %279 = arith.addf %277, %278 : vector<8x256xf32>
    %cst_91 = arith.constant 5.000000e-01 : f32
    %280 = vector.broadcast %cst_91 : f32 to vector<8x256xf32>
    %281 = arith.mulf %280, %279 : vector<8x256xf32>
    %282 = math.tanh %281 : vector<8x256xf32>
    %cst_92 = arith.constant 1.000000e+00 : f32
    %283 = vector.broadcast %cst_92 : f32 to vector<8x256xf32>
    %284 = arith.addf %282, %283 : vector<8x256xf32>
    %cst_93 = arith.constant 5.000000e-01 : f32
    %285 = vector.broadcast %cst_93 : f32 to vector<8x256xf32>
    %286 = arith.mulf %285, %284 : vector<8x256xf32>
    %287 = vector.extract_strided_slice %272 {offsets = [0, 256], sizes = [8, 256], strides = [1, 1]} : vector<8x768xf32> to vector<8x256xf32>
    %288 = vector.extract_strided_slice %276 {offsets = [0, 256], sizes = [8, 256], strides = [1, 1]} : vector<8x768xf32> to vector<8x256xf32>
    %289 = arith.addf %287, %288 : vector<8x256xf32>
    %cst_94 = arith.constant 5.000000e-01 : f32
    %290 = vector.broadcast %cst_94 : f32 to vector<8x256xf32>
    %291 = arith.mulf %290, %289 : vector<8x256xf32>
    %292 = math.tanh %291 : vector<8x256xf32>
    %cst_95 = arith.constant 1.000000e+00 : f32
    %293 = vector.broadcast %cst_95 : f32 to vector<8x256xf32>
    %294 = arith.addf %292, %293 : vector<8x256xf32>
    %cst_96 = arith.constant 5.000000e-01 : f32
    %295 = vector.broadcast %cst_96 : f32 to vector<8x256xf32>
    %296 = arith.mulf %295, %294 : vector<8x256xf32>
    %297 = vector.extract_strided_slice %272 {offsets = [0, 512], sizes = [8, 256], strides = [1, 1]} : vector<8x768xf32> to vector<8x256xf32>
    %298 = vector.extract_strided_slice %276 {offsets = [0, 512], sizes = [8, 256], strides = [1, 1]} : vector<8x768xf32> to vector<8x256xf32>
    %299 = arith.mulf %286, %298 : vector<8x256xf32>
    %300 = arith.addf %297, %299 : vector<8x256xf32>
    %301 = math.tanh %300 : vector<8x256xf32>
    %cst_97 = arith.constant 1.000000e+00 : f32
    %302 = vector.broadcast %cst_97 : f32 to vector<8x256xf32>
    %303 = arith.subf %302, %296 : vector<8x256xf32>
    %304 = arith.mulf %303, %301 : vector<8x256xf32>
    %305 = arith.mulf %296, %270 : vector<8x256xf32>
    %306 = arith.addf %304, %305 : vector<8x256xf32>
    %c24_98 = arith.constant 24 : index
    %c0_99 = arith.constant 0 : index
    %307 = vector.load %arg22[%c24_98, %c0_99] : memref<32x256xf32, #tpu.memory_space<vmem>>, vector<8x256xf32>
    tpu.vector_store %arg22[%c24_98, %c0_99], %306 {strides = array<i32>} : memref<32x256xf32, #tpu.memory_space<vmem>>, vector<8x256xf32>,
    %c0_100 = arith.constant 0 : index
    %c0_101 = arith.constant 0 : index
    %308 = vector.load %arg22[%c0_100, %c0_101] : memref<32x256xf32, #tpu.memory_space<vmem>>, vector<32x256xf32>
    %c0_102 = arith.constant 0 : index
    %c0_103 = arith.constant 0 : index
    %309 = vector.load %arg10[%c0_102, %c0_103] : memref<1x256xf32, #tpu.memory_space<vmem>>, vector<1x256xf32>
    %c0_104 = arith.constant 0 : index
    %c0_105 = arith.constant 0 : index
    %310 = vector.load %arg11[%c0_104, %c0_105] : memref<1x256xf32, #tpu.memory_space<vmem>>, vector<1x256xf32>
    %cst_106 = arith.constant dense<0.000000e+00> : vector<32xf32>
    %311 = vector.multi_reduction <add>, %308, %cst_106 [1] : vector<32x256xf32> to vector<32xf32>
    %312 = vector.shape_cast %311 : vector<32xf32> to vector<32x1xf32>
    %cst_107 = arith.constant 2.560000e+02 : f32
    %313 = vector.broadcast %cst_107 : f32 to vector<32x1xf32>
    %314 = arith.divf %312, %313 : vector<32x1xf32>
    %315 = vector.broadcast %314 : vector<32x1xf32> to vector<32x256xf32>
    %316 = arith.subf %308, %315 : vector<32x256xf32>
    %317 = arith.mulf %316, %316 : vector<32x256xf32>
    %cst_108 = arith.constant dense<0.000000e+00> : vector<32xf32>
    %318 = vector.multi_reduction <add>, %317, %cst_108 [1] : vector<32x256xf32> to vector<32xf32>
    %319 = vector.shape_cast %318 : vector<32xf32> to vector<32x1xf32>
    %cst_109 = arith.constant 2.560000e+02 : f32
    %320 = vector.broadcast %cst_109 : f32 to vector<32x1xf32>
    %321 = arith.divf %319, %320 : vector<32x1xf32>
    %322 = vector.broadcast %314 : vector<32x1xf32> to vector<32x256xf32>
    %323 = arith.subf %308, %322 : vector<32x256xf32>
    %cst_110 = arith.constant 9.99999974E-6 : f32
    %324 = vector.broadcast %cst_110 : f32 to vector<32x1xf32>
    %325 = arith.addf %321, %324 : vector<32x1xf32>
    %326 = math.rsqrt %325 : vector<32x1xf32>
    %327 = vector.broadcast %326 : vector<32x1xf32> to vector<32x256xf32>
    %328 = arith.mulf %323, %327 : vector<32x256xf32>
    %329 = vector.broadcast %309 : vector<1x256xf32> to vector<32x256xf32>
    %330 = arith.mulf %328, %329 : vector<32x256xf32>
    %331 = vector.broadcast %310 : vector<1x256xf32> to vector<32x256xf32>
    %332 = arith.addf %330, %331 : vector<32x256xf32>
    %333 = arith.truncf %332 : vector<32x256xf32> to vector<32x256xbf16>
    %c0_111 = arith.constant 0 : index
    %c0_112 = arith.constant 0 : index
    %c0_113 = arith.constant 0 : index
    %334 = vector.load %arg12[%c0_111, %c0_112, %c0_113] : memref<3x80x32xbf16, #tpu.memory_space<vmem>>, vector<1x80x32xbf16>
    %335 = vector.shape_cast %334 : vector<1x80x32xbf16> to vector<80x32xbf16>
    %cst_114 = arith.constant dense<0.000000e+00> : vector<80x256xf32>
    %336 = tpu.matmul %335, %333, %cst_114 {dimension_numbers = #tpu.dot_dimension_numbers<[1], [0], [0], [1], [0, 0, 1, 1], [], []>} : vector<80x32xbf16>, vector<32x256xbf16>, vector<80x256xf32> -> vector<80x256xf32>
    %c1 = arith.constant 1 : index
    %c0_115 = arith.constant 0 : index
    %c0_116 = arith.constant 0 : index
    %337 = vector.load %arg12[%c1, %c0_115, %c0_116] : memref<3x80x32xbf16, #tpu.memory_space<vmem>>, vector<1x80x32xbf16>
    %338 = vector.shape_cast %337 : vector<1x80x32xbf16> to vector<80x32xbf16>
    %cst_117 = arith.constant dense<0.000000e+00> : vector<80x256xf32>
    %339 = tpu.matmul %338, %333, %cst_117 {dimension_numbers = #tpu.dot_dimension_numbers<[1], [0], [0], [1], [0, 0, 1, 1], [], []>} : vector<80x32xbf16>, vector<32x256xbf16>, vector<80x256xf32> -> vector<80x256xf32>
    %c2 = arith.constant 2 : index
    %c0_118 = arith.constant 0 : index
    %c0_119 = arith.constant 0 : index
    %340 = vector.load %arg12[%c2, %c0_118, %c0_119] : memref<3x80x32xbf16, #tpu.memory_space<vmem>>, vector<1x80x32xbf16>
    %341 = vector.shape_cast %340 : vector<1x80x32xbf16> to vector<80x32xbf16>
    %cst_120 = arith.constant dense<0.000000e+00> : vector<80x256xf32>
    %342 = tpu.matmul %341, %333, %cst_120 {dimension_numbers = #tpu.dot_dimension_numbers<[1], [0], [0], [1], [0, 0, 1, 1], [], []>} : vector<80x32xbf16>, vector<32x256xbf16>, vector<80x256xf32> -> vector<80x256xf32>
    %343 = tpu.concatenate %336, %339, %342 in 1 : vector<80x256xf32>, vector<80x256xf32>, vector<80x256xf32> -> vector<80x768xf32>
    %344 = arith.truncf %343 : vector<80x768xf32> to vector<80x768xbf16>
    %c0_121 = arith.constant 0 : index
    %c0_122 = arith.constant 0 : index
    %345 = vector.load %arg14[%c0_121, %c0_122] : memref<768x128xbf16, #tpu.memory_space<vmem>>, vector<768x128xbf16>
    %cst_123 = arith.constant dense<0.000000e+00> : vector<80x128xf32>
    %346 = tpu.matmul %344, %345, %cst_123 {dimension_numbers = #tpu.dot_dimension_numbers<[1], [0], [0], [1], [0, 0, 1, 1], [], []>} : vector<80x768xbf16>, vector<768x128xbf16>, vector<80x128xf32> -> vector<80x128xf32>
    %c0_124 = arith.constant 0 : index
    %c0_125 = arith.constant 0 : index
    %347 = vector.load %arg15[%c0_124, %c0_125] : memref<1x128xf32, #tpu.memory_space<vmem>>, vector<1x128xf32>
    %348 = vector.broadcast %347 : vector<1x128xf32> to vector<80x128xf32>
    %349 = arith.addf %346, %348 : vector<80x128xf32>
    %cst_126 = arith.constant 0.000000e+00 : f32
    %350 = vector.broadcast %cst_126 : f32 to vector<80x128xf32>
    %351 = arith.maximumf %349, %350 : vector<80x128xf32>
    %c0_127 = arith.constant 0 : index
    %c0_128 = arith.constant 0 : index
    %352 = vector.load %arg16[%c0_127, %c0_128] : memref<1x128xf32, #tpu.memory_space<vmem>>, vector<1x128xf32>
    %c0_129 = arith.constant 0 : index
    %c0_130 = arith.constant 0 : index
    %353 = vector.load %arg17[%c0_129, %c0_130] : memref<1x128xf32, #tpu.memory_space<vmem>>, vector<1x128xf32>
    %cst_131 = arith.constant dense<0.000000e+00> : vector<80xf32>
    %354 = vector.multi_reduction <add>, %351, %cst_131 [1] : vector<80x128xf32> to vector<80xf32>
    %355 = vector.shape_cast %354 : vector<80xf32> to vector<80x1xf32>
    %cst_132 = arith.constant 1.280000e+02 : f32
    %356 = vector.broadcast %cst_132 : f32 to vector<80x1xf32>
    %357 = arith.divf %355, %356 : vector<80x1xf32>
    %358 = vector.broadcast %357 : vector<80x1xf32> to vector<80x128xf32>
    %359 = arith.subf %351, %358 : vector<80x128xf32>
    %360 = arith.mulf %359, %359 : vector<80x128xf32>
    %cst_133 = arith.constant dense<0.000000e+00> : vector<80xf32>
    %361 = vector.multi_reduction <add>, %360, %cst_133 [1] : vector<80x128xf32> to vector<80xf32>
    %362 = vector.shape_cast %361 : vector<80xf32> to vector<80x1xf32>
    %cst_134 = arith.constant 1.280000e+02 : f32
    %363 = vector.broadcast %cst_134 : f32 to vector<80x1xf32>
    %364 = arith.divf %362, %363 : vector<80x1xf32>
    %365 = vector.broadcast %357 : vector<80x1xf32> to vector<80x128xf32>
    %366 = arith.subf %351, %365 : vector<80x128xf32>
    %cst_135 = arith.constant 9.99999974E-6 : f32
    %367 = vector.broadcast %cst_135 : f32 to vector<80x1xf32>
    %368 = arith.addf %364, %367 : vector<80x1xf32>
    %369 = math.rsqrt %368 : vector<80x1xf32>
    %370 = vector.broadcast %369 : vector<80x1xf32> to vector<80x128xf32>
    %371 = arith.mulf %366, %370 : vector<80x128xf32>
    %372 = vector.broadcast %352 : vector<1x128xf32> to vector<80x128xf32>
    %373 = arith.mulf %371, %372 : vector<80x128xf32>
    %374 = vector.broadcast %353 : vector<1x128xf32> to vector<80x128xf32>
    %375 = arith.addf %373, %374 : vector<80x128xf32>
    %376 = arith.truncf %375 : vector<80x128xf32> to vector<80x128xbf16>
    %c0_136 = arith.constant 0 : index
    %c0_137 = arith.constant 0 : index
    %c0_138 = arith.constant 0 : index
    %377 = vector.load %arg13[%c0_136, %c0_137, %c0_138] : memref<3x80x80xbf16, #tpu.memory_space<vmem>>, vector<1x80x80xbf16>
    %378 = vector.shape_cast %377 : vector<1x80x80xbf16> to vector<80x80xbf16>
    %cst_139 = arith.constant dense<0.000000e+00> : vector<80x128xf32>
    %379 = tpu.matmul %378, %376, %cst_139 {dimension_numbers = #tpu.dot_dimension_numbers<[1], [0], [0], [1], [0, 0, 1, 1], [], []>} : vector<80x80xbf16>, vector<80x128xbf16>, vector<80x128xf32> -> vector<80x128xf32>
    %c1_140 = arith.constant 1 : index
    %c0_141 = arith.constant 0 : index
    %c0_142 = arith.constant 0 : index
    %380 = vector.load %arg13[%c1_140, %c0_141, %c0_142] : memref<3x80x80xbf16, #tpu.memory_space<vmem>>, vector<1x80x80xbf16>
    %381 = vector.shape_cast %380 : vector<1x80x80xbf16> to vector<80x80xbf16>
    %cst_143 = arith.constant dense<0.000000e+00> : vector<80x128xf32>
    %382 = tpu.matmul %381, %376, %cst_143 {dimension_numbers = #tpu.dot_dimension_numbers<[1], [0], [0], [1], [0, 0, 1, 1], [], []>} : vector<80x80xbf16>, vector<80x128xbf16>, vector<80x128xf32> -> vector<80x128xf32>
    %c2_144 = arith.constant 2 : index
    %c0_145 = arith.constant 0 : index
    %c0_146 = arith.constant 0 : index
    %383 = vector.load %arg13[%c2_144, %c0_145, %c0_146] : memref<3x80x80xbf16, #tpu.memory_space<vmem>>, vector<1x80x80xbf16>
    %384 = vector.shape_cast %383 : vector<1x80x80xbf16> to vector<80x80xbf16>
    %cst_147 = arith.constant dense<0.000000e+00> : vector<80x128xf32>
    %385 = tpu.matmul %384, %376, %cst_147 {dimension_numbers = #tpu.dot_dimension_numbers<[1], [0], [0], [1], [0, 0, 1, 1], [], []>} : vector<80x80xbf16>, vector<80x128xbf16>, vector<80x128xf32> -> vector<80x128xf32>
    %386 = tpu.concatenate %379, %382, %385 in 1 : vector<80x128xf32>, vector<80x128xf32>, vector<80x128xf32> -> vector<80x384xf32>
    %387 = arith.truncf %386 : vector<80x384xf32> to vector<80x384xbf16>
    %c0_148 = arith.constant 0 : index
    %c0_149 = arith.constant 0 : index
    %388 = vector.load %arg18[%c0_148, %c0_149] : memref<384x128xbf16, #tpu.memory_space<vmem>>, vector<384x128xbf16>
    %cst_150 = arith.constant dense<0.000000e+00> : vector<80x128xf32>
    %389 = tpu.matmul %387, %388, %cst_150 {dimension_numbers = #tpu.dot_dimension_numbers<[1], [0], [0], [1], [0, 0, 1, 1], [], []>} : vector<80x384xbf16>, vector<384x128xbf16>, vector<80x128xf32> -> vector<80x128xf32>
    %c0_151 = arith.constant 0 : index
    %c0_152 = arith.constant 0 : index
    %390 = vector.load %arg19[%c0_151, %c0_152] : memref<1x128xf32, #tpu.memory_space<vmem>>, vector<1x128xf32>
    %391 = vector.broadcast %390 : vector<1x128xf32> to vector<80x128xf32>
    %392 = arith.addf %389, %391 : vector<80x128xf32>
    %c0_153 = arith.constant 0 : index
    %c0_154 = arith.constant 0 : index
    %c0_155 = arith.constant 0 : index
    %393 = vector.load %arg20[%c0_153, %c0_154, %c0_155] : memref<1x80x128xf32, #tpu.memory_space<vmem>>, vector<1x80x128xf32>
    %394 = vector.shape_cast %393 : vector<1x80x128xf32> to vector<80x128xf32>
    %395 = vector.shape_cast %392 : vector<80x128xf32> to vector<1x80x128xf32>
    tpu.vector_store %arg20[%c0_153, %c0_154, %c0_155], %395 {strides = array<i32>} : memref<1x80x128xf32, #tpu.memory_space<vmem>>, vector<1x80x128xf32>,
    return
  }
  func.func @transform_0(%arg0: i32) -> (i32, i32, i32) {
    %c0_i32 = arith.constant 0 : i32
    %c0_i32_0 = arith.constant 0 : i32
    %c0_i32_1 = arith.constant 0 : i32
    return %arg0, %c0_i32, %c0_i32_0 : i32, i32, i32
  }
  func.func @transform_1(%arg0: i32) -> (i32, i32) {
    %c0_i32 = arith.constant 0 : i32
    %c0_i32_0 = arith.constant 0 : i32
    %c0_i32_1 = arith.constant 0 : i32
    return %c0_i32, %c0_i32_0 : i32, i32
  }
  func.func @transform_2(%arg0: i32) -> (i32, i32) {
    %c0_i32 = arith.constant 0 : i32
    %c0_i32_0 = arith.constant 0 : i32
    %c0_i32_1 = arith.constant 0 : i32
    return %c0_i32, %c0_i32_0 : i32, i32
  }
  func.func @transform_3(%arg0: i32) -> (i32, i32) {
    %c0_i32 = arith.constant 0 : i32
    %c0_i32_0 = arith.constant 0 : i32
    %c0_i32_1 = arith.constant 0 : i32
    return %c0_i32, %c0_i32_0 : i32, i32
  }
  func.func @transform_4(%arg0: i32) -> (i32, i32) {
    %c0_i32 = arith.constant 0 : i32
    %c0_i32_0 = arith.constant 0 : i32
    %c0_i32_1 = arith.constant 0 : i32
    return %c0_i32, %c0_i32_0 : i32, i32
  }
  func.func @transform_5(%arg0: i32) -> (i32, i32) {
    %c0_i32 = arith.constant 0 : i32
    %c0_i32_0 = arith.constant 0 : i32
    %c0_i32_1 = arith.constant 0 : i32
    return %c0_i32, %c0_i32_0 : i32, i32
  }
  func.func @transform_6(%arg0: i32) -> (i32, i32) {
    %c0_i32 = arith.constant 0 : i32
    %c0_i32_0 = arith.constant 0 : i32
    %c0_i32_1 = arith.constant 0 : i32
    return %c0_i32, %c0_i32_0 : i32, i32
  }
  func.func @transform_7(%arg0: i32) -> (i32, i32) {
    %c0_i32 = arith.constant 0 : i32
    %c0_i32_0 = arith.constant 0 : i32
    %c0_i32_1 = arith.constant 0 : i32
    return %c0_i32, %c0_i32_0 : i32, i32
  }
  func.func @transform_8(%arg0: i32) -> (i32, i32) {
    %c0_i32 = arith.constant 0 : i32
    %c0_i32_0 = arith.constant 0 : i32
    %c0_i32_1 = arith.constant 0 : i32
    return %c0_i32, %c0_i32_0 : i32, i32
  }
  func.func @transform_9(%arg0: i32) -> (i32, i32) {
    %c0_i32 = arith.constant 0 : i32
    %c0_i32_0 = arith.constant 0 : i32
    %c0_i32_1 = arith.constant 0 : i32
    return %c0_i32, %c0_i32_0 : i32, i32
  }
  func.func @transform_10(%arg0: i32) -> (i32, i32) {
    %c0_i32 = arith.constant 0 : i32
    %c0_i32_0 = arith.constant 0 : i32
    %c0_i32_1 = arith.constant 0 : i32
    return %c0_i32, %c0_i32_0 : i32, i32
  }
  func.func @transform_11(%arg0: i32) -> (i32, i32, i32) {
    %c0_i32 = arith.constant 0 : i32
    %c0_i32_0 = arith.constant 0 : i32
    %c0_i32_1 = arith.constant 0 : i32
    %c0_i32_2 = arith.constant 0 : i32
    return %c0_i32, %c0_i32_0, %c0_i32_1 : i32, i32, i32
  }
  func.func @transform_12(%arg0: i32) -> (i32, i32, i32) {
    %c0_i32 = arith.constant 0 : i32
    %c0_i32_0 = arith.constant 0 : i32
    %c0_i32_1 = arith.constant 0 : i32
    %c0_i32_2 = arith.constant 0 : i32
    return %c0_i32, %c0_i32_0, %c0_i32_1 : i32, i32, i32
  }
  func.func @transform_13(%arg0: i32) -> (i32, i32) {
    %c0_i32 = arith.constant 0 : i32
    %c0_i32_0 = arith.constant 0 : i32
    %c0_i32_1 = arith.constant 0 : i32
    return %c0_i32, %c0_i32_0 : i32, i32
  }
  func.func @transform_14(%arg0: i32) -> (i32, i32) {
    %c0_i32 = arith.constant 0 : i32
    %c0_i32_0 = arith.constant 0 : i32
    %c0_i32_1 = arith.constant 0 : i32
    return %c0_i32, %c0_i32_0 : i32, i32
  }
  func.func @transform_15(%arg0: i32) -> (i32, i32) {
    %c0_i32 = arith.constant 0 : i32
    %c0_i32_0 = arith.constant 0 : i32
    %c0_i32_1 = arith.constant 0 : i32
    return %c0_i32, %c0_i32_0 : i32, i32
  }
  func.func @transform_16(%arg0: i32) -> (i32, i32) {
    %c0_i32 = arith.constant 0 : i32
    %c0_i32_0 = arith.constant 0 : i32
    %c0_i32_1 = arith.constant 0 : i32
    return %c0_i32, %c0_i32_0 : i32, i32
  }
  func.func @transform_17(%arg0: i32) -> (i32, i32) {
    %c0_i32 = arith.constant 0 : i32
    %c0_i32_0 = arith.constant 0 : i32
    %c0_i32_1 = arith.constant 0 : i32
    return %c0_i32, %c0_i32_0 : i32, i32
  }
  func.func @transform_18(%arg0: i32) -> (i32, i32) {
    %c0_i32 = arith.constant 0 : i32
    %c0_i32_0 = arith.constant 0 : i32
    %c0_i32_1 = arith.constant 0 : i32
    return %c0_i32, %c0_i32_0 : i32, i32
  }
  func.func @transform_19(%arg0: i32) -> (i32, i32, i32) {
    %c0_i32 = arith.constant 0 : i32
    %c0_i32_0 = arith.constant 0 : i32
    %c0_i32_1 = arith.constant 0 : i32
    return %arg0, %c0_i32, %c0_i32_0 : i32, i32, i32
  }
}

</mosaic_0001>

<llo_original>
// kernel: decoder_forward.1
$region0: #{decoder_forward.1}
  #allocation0 [shape = 'u32[]', space=smem, size = 0x4, offset = 0x4, fixed_abs, tag = 'smem constant byte address 0x4 - core index']
  #allocation1 [shape = 'u32[144,128]{1,0:T(1,128)}', space=vmem, size = 0x12000, scoped, tag = 'internal scratch']
  #allocation2 [shape = 'f32[32,256]{1,0:T(8,128)}', space=vmem, size = 0x8000, scoped, tag = 'scratch operand']
  #allocation3 [shape = 'f32[32,256]{1,0:T(8,128)}', space=vmem, size = 0x8000, scoped, tag = 'scratch operand']
  %s0 = inlined_call_operand.vmem [shape: bf16[2,32,16], index: 0, kind: input, shape index: {}]
  %s1 = inlined_call_operand.vmem [shape: bf16[16,768], index: 1, kind: input, shape index: {}]
  %s2 = inlined_call_operand.hbm [shape: bf16[256,768], index: 2, kind: input, shape index: {}]
  %s3 = inlined_call_operand.vmem [shape: f32[1,768], index: 3, kind: input, shape index: {}]
  %s4 = inlined_call_operand.vmem [shape: f32[1,768], index: 4, kind: input, shape index: {}]
  %s5 = inlined_call_operand.hbm [shape: bf16[256,768], index: 5, kind: input, shape index: {}]
  %s6 = inlined_call_operand.hbm [shape: bf16[256,768], index: 6, kind: input, shape index: {}]
  %s7 = inlined_call_operand.vmem [shape: f32[1,768], index: 7, kind: input, shape index: {}]
  %s8 = inlined_call_operand.vmem [shape: f32[1,768], index: 8, kind: input, shape index: {}]
  %s9 = inlined_call_operand.hbm [shape: f32[1,256], index: 9, kind: input, shape index: {}]
  %s10 = inlined_call_operand.hbm [shape: f32[1,256], index: 10, kind: input, shape index: {}]
  %s11 = inlined_call_operand.vmem [shape: bf16[3,80,32], index: 11, kind: input, shape index: {}]
  %s12 = inlined_call_operand.vmem [shape: bf16[3,80,80], index: 12, kind: input, shape index: {}]
  %s13 = inlined_call_operand.hbm [shape: bf16[768,128], index: 13, kind: input, shape index: {}]
  %s14 = inlined_call_operand.hbm [shape: f32[1,128], index: 14, kind: input, shape index: {}]
  %s15 = inlined_call_operand.hbm [shape: f32[1,128], index: 15, kind: input, shape index: {}]
  %s16 = inlined_call_operand.hbm [shape: f32[1,128], index: 16, kind: input, shape index: {}]
  %s17 = inlined_call_operand.vmem [shape: bf16[384,128], index: 17, kind: input, shape index: {}]
  %s18 = inlined_call_operand.hbm [shape: f32[1,128], index: 18, kind: input, shape index: {}]
  %s19 = inlined_call_operand.vmem [shape: f32[2,80,128], index: 19, kind: output, shape index: {}]
  %s20 = sld [smem:[#allocation0]]
  $region149: #{decoder_forward.1} parent=0
    _
  %s22 = ssub.s32 1, %s20
  %s23 = scalar_select 0, %s22, %s20
  $region1: #{decoder_forward.1} parent=0
    #allocation4 [shape = 'u8[393216]{0}', space=vmem, size = 0x60000, scoped, tag = 'input window, operand 2, single buffered']
    #allocation5 [shape = 's32[2]{0}', space=sflag, size = 0x8, scoped, tag = 'scoped memory for decoder_forward.1']
    #allocation6 [shape = 'u8[393216]{0}', space=vmem, size = 0x60000, scoped, tag = 'input window, operand 5, single buffered']
    #allocation7 [shape = 's32[1]{0}', space=sflag, size = 0x4, scoped, tag = 'scoped memory for decoder_forward.1']
    #allocation8 [shape = 'u8[393216]{0}', space=vmem, size = 0x60000, scoped, tag = 'input window, operand 6, single buffered']
    #allocation9 [shape = 'u8[1024]{0}', space=vmem, size = 0x400, scoped, tag = 'input window, operand 9, single buffered']
    #allocation10 [shape = 's32[1]{0}', space=sflag, size = 0x4, scoped, tag = 'scoped memory for decoder_forward.1']
    #allocation11 [shape = 'u8[1024]{0}', space=vmem, size = 0x400, scoped, tag = 'input window, operand 10, single buffered']
    #allocation12 [shape = 'u8[196608]{0}', space=vmem, size = 0x30000, scoped, tag = 'input window, operand 13, single buffered']
    #allocation13 [shape = 's32[1]{0}', space=sflag, size = 0x4, scoped, tag = 'scoped memory for decoder_forward.1']
    #allocation14 [shape = 'u8[512]{0}', space=vmem, size = 0x400, scoped, tag = 'input window, operand 14, single buffered']
    #allocation15 [shape = 'u8[512]{0}', space=vmem, size = 0x400, scoped, tag = 'input window, operand 15, single buffered']
    #allocation16 [shape = 's32[1]{0}', space=sflag, size = 0x4, scoped, tag = 'scoped memory for decoder_forward.1']
    #allocation17 [shape = 'u8[512]{0}', space=vmem, size = 0x400, scoped, tag = 'input window, operand 16, single buffered']
    #allocation18 [shape = 'u8[512]{0}', space=vmem, size = 0x400, scoped, tag = 'input window, operand 18, single buffered']
    #allocation19 [shape = 's32[1]{0}', space=sflag, size = 0x4, scoped, tag = 'scoped memory for decoder_forward.1']
    %24 = vsyncpa [#allocation5], 0
    %25 = vsyncpa [#allocation7], 0
    %26 = vsyncpa [#allocation10], 0
    %27 = vsyncpa [#allocation13], 0
    %28 = vsyncpa [#allocation16], 0
    %29 = vsyncpa [#allocation19], 0
    loop: start=0, step=1, limit=4
    $region2: #{decoder_forward.1} parent=1 // loop_pre_header
      _
    $region3: #{decoder_forward.1} parent=1 // loop_header
      %s31 = sphi 0, %s35
      %p32 = scmp.ge.s32.totalorder %s31, 4
      %s41 = sphi 0, %s43
      %s44 = sphi 0, %s41
      %s45 = sphi 0, %s44
      %s61 = sphi 0, %s45
      %s65 = sphi 0, %s65
      %s67 = sphi 0, %s65
      %s68 = sphi 0, %s67
      %s82 = sphi 0, %s68
      %s86 = sphi 0, %s86
      %s88 = sphi 0, %s86
      %s89 = sphi 0, %s88
      %s103 = sphi 0, %s89
      %s107 = sphi 0, %s107
      %s109 = sphi 0, %s107
      %s110 = sphi 0, %s109
      %s124 = sphi 0, %s110
      %s128 = sphi 0, %s128
      %s130 = sphi 0, %s128
      %s131 = sphi 0, %s130
      %s145 = sphi 0, %s131
      %s149 = sphi 0, %s149
      %s151 = sphi 0, %s149
      %s152 = sphi 0, %s151
      %s166 = sphi 0, %s152
      %s170 = sphi 0, %s170
      %s172 = sphi 0, %s170
      %s173 = sphi 0, %s172
      %s187 = sphi 0, %s173
      %s191 = sphi 0, %s191
      %s193 = sphi 0, %s191
      %s194 = sphi 0, %s193
      %s208 = sphi 0, %s194
      %s212 = sphi 0, %s212
      %s214 = sphi 0, %s212
      %s215 = sphi 0, %s214
      %s229 = sphi 0, %s215
      %s233 = sphi 0, %s233
      %s235 = sphi 0, %s233
      %s236 = sphi 0, %s235
      %s250 = sphi 0, %s236
      %s254 = sphi 0, %s254
      %s256 = sphi 0, %s254
      %s257 = sphi 0, %s256
      %s271 = sphi 0, %s257
      %s275 = sphi 0, %s275
      %s277 = sphi 0, %s275
      %s278 = sphi 0, %s277
      %s292 = sphi 0, %s278
      %s296 = sphi 0, %s296
      %s298 = sphi 0, %s296
      %s299 = sphi 0, %s298
      %s313 = sphi 0, %s299
      %s317 = sphi 0, %s317
      %s319 = sphi 0, %s317
      %s320 = sphi 0, %s319
      %s334 = sphi 0, %s320
      %s338 = sphi 0, %s338
      %s340 = sphi 0, %s338
      %s341 = sphi 0, %s340
      %s355 = sphi 0, %s341
      %s359 = sphi 0, %s359
      %s361 = sphi 0, %s359
      %s362 = sphi 0, %s361
      %s376 = sphi 0, %s362
      %s380 = sphi 0, %s380
      %s382 = sphi 0, %s380
      %s383 = sphi 0, %s382
      %s397 = sphi 0, %s383
      %s401 = sphi 0, %s401
      %s403 = sphi 0, %s401
      %s404 = sphi 0, %s403
      %s418 = sphi 0, %s404
      %s422 = sphi 0, %s422
      %s424 = sphi 0, %s422
      %s425 = sphi 0, %s424
      %s439 = sphi 0, %s425
      %s445 = sphi 0, %s447
      %s448 = sphi 0, %s445
      %s449 = sphi 0, %s448
      %s465 = sphi 0, %s449
    $region4: #{decoder_forward.1} parent=1 // loop_header_branch
      %34 = sbr.rel (%p32) target = $region8
    $region5: #{decoder_forward.1} parent=1 // loop_body
      %s36 = ssub.s32 %s31, 1
      %s37 = ssub.s32 %s31, 2
      %s38 = sadd.s32 %s31, 1
      %s39 = ssub.s32 %s31, %s38
      %p40 = scmp.eq.s32.totalorder %s39, 0
      %s42 = sadd.s32 %s41, 1
      %s43 = scalar_select %p40, %s41, %s42
      %p46 = pneg %p40
      %p47 = scmp.eq.s32.totalorder %s31, 1
      %p48 = por %p46, %p47
      %p49 = scmp.ne.s32.totalorder %s41, %s44
      %p50 = scmp.eq.s32.totalorder %s31, 0
      %p51 = por %p49, %p50
      %p52 = scmp.ne.s32.totalorder %s41, %s44
      %p53 = scmp.eq.s32.totalorder %s36, 1
      %p54 = por %p52, %p53
      %p55 = scmp.ne.s32.totalorder %s44, %s45
      %p56 = scmp.eq.s32.totalorder %s36, 0
      %p57 = por %p55, %p56
      %p58 = scmp.ne.s32.totalorder %s44, %s45
      %p59 = scmp.eq.s32.totalorder %s37, 1
      %p60 = por %p58, %p59
      %p62 = scmp.ne.s32.totalorder %s45, %s61
      %p63 = scmp.eq.s32.totalorder %s37, 0
      %p64 = por %p62, %p63
      %s66 = sadd.s32 %s65, 1
      %p69 = scmp.eq.s32.totalorder %s31, 1
      %p70 = scmp.ne.s32.totalorder %s65, %s67
      %p71 = scmp.eq.s32.totalorder %s31, 0
      %p72 = por %p70, %p71
      %p73 = scmp.ne.s32.totalorder %s65, %s67
      %p74 = scmp.eq.s32.totalorder %s36, 1
      %p75 = por %p73, %p74
      %p76 = scmp.ne.s32.totalorder %s67, %s68
      %p77 = scmp.eq.s32.totalorder %s36, 0
      %p78 = por %p76, %p77
      %p79 = scmp.ne.s32.totalorder %s67, %s68
      %p80 = scmp.eq.s32.totalorder %s37, 1
      %p81 = por %p79, %p80
      %p83 = scmp.ne.s32.totalorder %s68, %s82
      %p84 = scmp.eq.s32.totalorder %s37, 0
      %p85 = por %p83, %p84
      %s87 = sadd.s32 %s86, 1
      %p90 = scmp.eq.s32.totalorder %s31, 1
      %p91 = scmp.ne.s32.totalorder %s86, %s88
      %p92 = scmp.eq.s32.totalorder %s31, 0
      %p93 = por %p91, %p92
      %p94 = scmp.ne.s32.totalorder %s86, %s88
      %p95 = scmp.eq.s32.totalorder %s36, 1
      %p96 = por %p94, %p95
      %p97 = scmp.ne.s32.totalorder %s88, %s89
      %p98 = scmp.eq.s32.totalorder %s36, 0
      %p99 = por %p97, %p98
      %p100 = scmp.ne.s32.totalorder %s88, %s89
      %p101 = scmp.eq.s32.totalorder %s37, 1
      %p102 = por %p100, %p101
      %p104 = scmp.ne.s32.totalorder %s89, %s103
      %p105 = scmp.eq.s32.totalorder %s37, 0
      %p106 = por %p104, %p105
      %s108 = sadd.s32 %s107, 1
      %p111 = scmp.eq.s32.totalorder %s31, 1
      %p112 = scmp.ne.s32.totalorder %s107, %s109
      %p113 = scmp.eq.s32.totalorder %s31, 0
      %p114 = por %p112, %p113
      %p115 = scmp.ne.s32.totalorder %s107, %s109
      %p116 = scmp.eq.s32.totalorder %s36, 1
      %p117 = por %p115, %p116
      %p118 = scmp.ne.s32.totalorder %s109, %s110
      %p119 = scmp.eq.s32.totalorder %s36, 0
      %p120 = por %p118, %p119
      %p121 = scmp.ne.s32.totalorder %s109, %s110
      %p122 = scmp.eq.s32.totalorder %s37, 1
      %p123 = por %p121, %p122
      %p125 = scmp.ne.s32.totalorder %s110, %s124
      %p126 = scmp.eq.s32.totalorder %s37, 0
      %p127 = por %p125, %p126
      %s129 = sadd.s32 %s128, 1
      %p132 = scmp.eq.s32.totalorder %s31, 1
      %p133 = scmp.ne.s32.totalorder %s128, %s130
      %p134 = scmp.eq.s32.totalorder %s31, 0
      %p135 = por %p133, %p134
      %p136 = scmp.ne.s32.totalorder %s128, %s130
      %p137 = scmp.eq.s32.totalorder %s36, 1
      %p138 = por %p136, %p137
      %p139 = scmp.ne.s32.totalorder %s130, %s131
      %p140 = scmp.eq.s32.totalorder %s36, 0
      %p141 = por %p139, %p140
      %p142 = scmp.ne.s32.totalorder %s130, %s131
      %p143 = scmp.eq.s32.totalorder %s37, 1
      %p144 = por %p142, %p143
      %p146 = scmp.ne.s32.totalorder %s131, %s145
      %p147 = scmp.eq.s32.totalorder %s37, 0
      %p148 = por %p146, %p147
      %s150 = sadd.s32 %s149, 1
      %p153 = scmp.eq.s32.totalorder %s31, 1
      %p154 = scmp.ne.s32.totalorder %s149, %s151
      %p155 = scmp.eq.s32.totalorder %s31, 0
      %p156 = por %p154, %p155
      %p157 = scmp.ne.s32.totalorder %s149, %s151
      %p158 = scmp.eq.s32.totalorder %s36, 1
      %p159 = por %p157, %p158
      %p160 = scmp.ne.s32.totalorder %s151, %s152
      %p161 = scmp.eq.s32.totalorder %s36, 0
      %p162 = por %p160, %p161
      %p163 = scmp.ne.s32.totalorder %s151, %s152
      %p164 = scmp.eq.s32.totalorder %s37, 1
      %p165 = por %p163, %p164
      %p167 = scmp.ne.s32.totalorder %s152, %s166
      %p168 = scmp.eq.s32.totalorder %s37, 0
      %p169 = por %p167, %p168
      %s171 = sadd.s32 %s170, 1
      %p174 = scmp.eq.s32.totalorder %s31, 1
      %p175 = scmp.ne.s32.totalorder %s170, %s172
      %p176 = scmp.eq.s32.totalorder %s31, 0
      %p177 = por %p175, %p176
      %p178 = scmp.ne.s32.totalorder %s170, %s172
      %p179 = scmp.eq.s32.totalorder %s36, 1
      %p180 = por %p178, %p179
      %p181 = scmp.ne.s32.totalorder %s172, %s173
      %p182 = scmp.eq.s32.totalorder %s36, 0
      %p183 = por %p181, %p182
      %p184 = scmp.ne.s32.totalorder %s172, %s173
      %p185 = scmp.eq.s32.totalorder %s37, 1
      %p186 = por %p184, %p185
      %p188 = scmp.ne.s32.totalorder %s173, %s187
      %p189 = scmp.eq.s32.totalorder %s37, 0
      %p190 = por %p188, %p189
      %s192 = sadd.s32 %s191, 1
      %p195 = scmp.eq.s32.totalorder %s31, 1
      %p196 = scmp.ne.s32.totalorder %s191, %s193
      %p197 = scmp.eq.s32.totalorder %s31, 0
      %p198 = por %p196, %p197
      %p199 = scmp.ne.s32.totalorder %s191, %s193
      %p200 = scmp.eq.s32.totalorder %s36, 1
      %p201 = por %p199, %p200
      %p202 = scmp.ne.s32.totalorder %s193, %s194
      %p203 = scmp.eq.s32.totalorder %s36, 0
      %p204 = por %p202, %p203
      %p205 = scmp.ne.s32.totalorder %s193, %s194
      %p206 = scmp.eq.s32.totalorder %s37, 1
      %p207 = por %p205, %p206
      %p209 = scmp.ne.s32.totalorder %s194, %s208
      %p210 = scmp.eq.s32.totalorder %s37, 0
      %p211 = por %p209, %p210
      %s213 = sadd.s32 %s212, 1
      %p216 = scmp.eq.s32.totalorder %s31, 1
      %p217 = scmp.ne.s32.totalorder %s212, %s214
      %p218 = scmp.eq.s32.totalorder %s31, 0
      %p219 = por %p217, %p218
      %p220 = scmp.ne.s32.totalorder %s212, %s214
      %p221 = scmp.eq.s32.totalorder %s36, 1
      %p222 = por %p220, %p221
      %p223 = scmp.ne.s32.totalorder %s214, %s215
      %p224 = scmp.eq.s32.totalorder %s36, 0
      %p225 = por %p223, %p224
      %p226 = scmp.ne.s32.totalorder %s214, %s215
      %p227 = scmp.eq.s32.totalorder %s37, 1
      %p228 = por %p226, %p227
      %p230 = scmp.ne.s32.totalorder %s215, %s229
      %p231 = scmp.eq.s32.totalorder %s37, 0
      %p232 = por %p230, %p231
      %s234 = sadd.s32 %s233, 1
      %p237 = scmp.eq.s32.totalorder %s31, 1
      %p238 = scmp.ne.s32.totalorder %s233, %s235
      %p239 = scmp.eq.s32.totalorder %s31, 0
      %p240 = por %p238, %p239
      %p241 = scmp.ne.s32.totalorder %s233, %s235
      %p242 = scmp.eq.s32.totalorder %s36, 1
      %p243 = por %p241, %p242
      %p244 = scmp.ne.s32.totalorder %s235, %s236
      %p245 = scmp.eq.s32.totalorder %s36, 0
      %p246 = por %p244, %p245
      %p247 = scmp.ne.s32.totalorder %s235, %s236
      %p248 = scmp.eq.s32.totalorder %s37, 1
      %p249 = por %p247, %p248
      %p251 = scmp.ne.s32.totalorder %s236, %s250
      %p252 = scmp.eq.s32.totalorder %s37, 0
      %p253 = por %p251, %p252
      %s255 = sadd.s32 %s254, 1
      %p258 = scmp.eq.s32.totalorder %s31, 1
      %p259 = scmp.ne.s32.totalorder %s254, %s256
      %p260 = scmp.eq.s32.totalorder %s31, 0
      %p261 = por %p259, %p260
      %p262 = scmp.ne.s32.totalorder %s254, %s256
      %p263 = scmp.eq.s32.totalorder %s36, 1
      %p264 = por %p262, %p263
      %p265 = scmp.ne.s32.totalorder %s256, %s257
      %p266 = scmp.eq.s32.totalorder %s36, 0
      %p267 = por %p265, %p266
      %p268 = scmp.ne.s32.totalorder %s256, %s257
      %p269 = scmp.eq.s32.totalorder %s37, 1
      %p270 = por %p268, %p269
      %p272 = scmp.ne.s32.totalorder %s257, %s271
      %p273 = scmp.eq.s32.totalorder %s37, 0
      %p274 = por %p272, %p273
      %s276 = sadd.s32 %s275, 1
      %p279 = scmp.eq.s32.totalorder %s31, 1
      %p280 = scmp.ne.s32.totalorder %s275, %s277
      %p281 = scmp.eq.s32.totalorder %s31, 0
      %p282 = por %p280, %p281
      %p283 = scmp.ne.s32.totalorder %s275, %s277
      %p284 = scmp.eq.s32.totalorder %s36, 1
      %p285 = por %p283, %p284
      %p286 = scmp.ne.s32.totalorder %s277, %s278
      %p287 = scmp.eq.s32.totalorder %s36, 0
      %p288 = por %p286, %p287
      %p289 = scmp.ne.s32.totalorder %s277, %s278
      %p290 = scmp.eq.s32.totalorder %s37, 1
      %p291 = por %p289, %p290
      %p293 = scmp.ne.s32.totalorder %s278, %s292
      %p294 = scmp.eq.s32.totalorder %s37, 0
      %p295 = por %p293, %p294
      %s297 = sadd.s32 %s296, 1
      %p300 = scmp.eq.s32.totalorder %s31, 1
      %p301 = scmp.ne.s32.totalorder %s296, %s298
      %p302 = scmp.eq.s32.totalorder %s31, 0
      %p303 = por %p301, %p302
      %p304 = scmp.ne.s32.totalorder %s296, %s298
      %p305 = scmp.eq.s32.totalorder %s36, 1
      %p306 = por %p304, %p305
      %p307 = scmp.ne.s32.totalorder %s298, %s299
      %p308 = scmp.eq.s32.totalorder %s36, 0
      %p309 = por %p307, %p308
      %p310 = scmp.ne.s32.totalorder %s298, %s299
      %p311 = scmp.eq.s32.totalorder %s37, 1
      %p312 = por %p310, %p311
      %p314 = scmp.ne.s32.totalorder %s299, %s313
      %p315 = scmp.eq.s32.totalorder %s37, 0
      %p316 = por %p314, %p315
      %s318 = sadd.s32 %s317, 1
      %p321 = scmp.eq.s32.totalorder %s31, 1
      %p322 = scmp.ne.s32.totalorder %s317, %s319
      %p323 = scmp.eq.s32.totalorder %s31, 0
      %p324 = por %p322, %p323
      %p325 = scmp.ne.s32.totalorder %s317, %s319
      %p326 = scmp.eq.s32.totalorder %s36, 1
      %p327 = por %p325, %p326
      %p328 = scmp.ne.s32.totalorder %s319, %s320
      %p329 = scmp.eq.s32.totalorder %s36, 0
      %p330 = por %p328, %p329
      %p331 = scmp.ne.s32.totalorder %s319, %s320
      %p332 = scmp.eq.s32.totalorder %s37, 1
      %p333 = por %p331, %p332
      %p335 = scmp.ne.s32.totalorder %s320, %s334
      %p336 = scmp.eq.s32.totalorder %s37, 0
      %p337 = por %p335, %p336
      %s339 = sadd.s32 %s338, 1
      %p342 = scmp.eq.s32.totalorder %s31, 1
      %p343 = scmp.ne.s32.totalorder %s338, %s340
      %p344 = scmp.eq.s32.totalorder %s31, 0
      %p345 = por %p343, %p344
      %p346 = scmp.ne.s32.totalorder %s338, %s340
      %p347 = scmp.eq.s32.totalorder %s36, 1
      %p348 = por %p346, %p347
      %p349 = scmp.ne.s32.totalorder %s340, %s341
      %p350 = scmp.eq.s32.totalorder %s36, 0
      %p351 = por %p349, %p350
      %p352 = scmp.ne.s32.totalorder %s340, %s341
      %p353 = scmp.eq.s32.totalorder %s37, 1
      %p354 = por %p352, %p353
      %p356 = scmp.ne.s32.totalorder %s341, %s355
      %p357 = scmp.eq.s32.totalorder %s37, 0
      %p358 = por %p356, %p357
      %s360 = sadd.s32 %s359, 1
      %p363 = scmp.eq.s32.totalorder %s31, 1
      %p364 = scmp.ne.s32.totalorder %s359, %s361
      %p365 = scmp.eq.s32.totalorder %s31, 0
      %p366 = por %p364, %p365
      %p367 = scmp.ne.s32.totalorder %s359, %s361
      %p368 = scmp.eq.s32.totalorder %s36, 1
      %p369 = por %p367, %p368
      %p370 = scmp.ne.s32.totalorder %s361, %s362
      %p371 = scmp.eq.s32.totalorder %s36, 0
      %p372 = por %p370, %p371
      %p373 = scmp.ne.s32.totalorder %s361, %s362
      %p374 = scmp.eq.s32.totalorder %s37, 1
      %p375 = por %p373, %p374
      %p377 = scmp.ne.s32.totalorder %s362, %s376
      %p378 = scmp.eq.s32.totalorder %s37, 0
      %p379 = por %p377, %p378
      %s381 = sadd.s32 %s380, 1
      %p384 = scmp.eq.s32.totalorder %s31, 1
      %p385 = scmp.ne.s32.totalorder %s380, %s382
      %p386 = scmp.eq.s32.totalorder %s31, 0
      %p387 = por %p385, %p386
      %p388 = scmp.ne.s32.totalorder %s380, %s382
      %p389 = scmp.eq.s32.totalorder %s36, 1
      %p390 = por %p388, %p389
      %p391 = scmp.ne.s32.totalorder %s382, %s383
      %p392 = scmp.eq.s32.totalorder %s36, 0
      %p393 = por %p391, %p392
      %p394 = scmp.ne.s32.totalorder %s382, %s383
      %p395 = scmp.eq.s32.totalorder %s37, 1
      %p396 = por %p394, %p395
      %p398 = scmp.ne.s32.totalorder %s383, %s397
      %p399 = scmp.eq.s32.totalorder %s37, 0
      %p400 = por %p398, %p399
      %s402 = sadd.s32 %s401, 1
      %p405 = scmp.eq.s32.totalorder %s31, 1
      %p406 = scmp.ne.s32.totalorder %s401, %s403
      %p407 = scmp.eq.s32.totalorder %s31, 0
      %p408 = por %p406, %p407
      %p409 = scmp.ne.s32.totalorder %s401, %s403
      %p410 = scmp.eq.s32.totalorder %s36, 1
      %p411 = por %p409, %p410
      %p412 = scmp.ne.s32.totalorder %s403, %s404
      %p413 = scmp.eq.s32.totalorder %s36, 0
      %p414 = por %p412, %p413
      %p415 = scmp.ne.s32.totalorder %s403, %s404
      %p416 = scmp.eq.s32.totalorder %s37, 1
      %p417 = por %p415, %p416
      %p419 = scmp.ne.s32.totalorder %s404, %s418
      %p420 = scmp.eq.s32.totalorder %s37, 0
      %p421 = por %p419, %p420
      %s423 = sadd.s32 %s422, 1
      %p426 = scmp.eq.s32.totalorder %s31, 1
      %p427 = scmp.ne.s32.totalorder %s422, %s424
      %p428 = scmp.eq.s32.totalorder %s31, 0
      %p429 = por %p427, %p428
      %p430 = scmp.ne.s32.totalorder %s422, %s424
      %p431 = scmp.eq.s32.totalorder %s36, 1
      %p432 = por %p430, %p431
      %p433 = scmp.ne.s32.totalorder %s424, %s425
      %p434 = scmp.eq.s32.totalorder %s36, 0
      %p435 = por %p433, %p434
      %p436 = scmp.ne.s32.totalorder %s424, %s425
      %p437 = scmp.eq.s32.totalorder %s37, 1
      %p438 = por %p436, %p437
      %p440 = scmp.ne.s32.totalorder %s425, %s439
      %p441 = scmp.eq.s32.totalorder %s37, 0
      %p442 = por %p440, %p441
      %s443 = ssub.s32 %s31, %s38
      %p444 = scmp.eq.s32.totalorder %s443, 0
      %s446 = sadd.s32 %s445, 1
      %s447 = scalar_select %p444, %s445, %s446
      %p450 = pneg %p444
      %p451 = scmp.eq.s32.totalorder %s31, 1
      %p452 = por %p450, %p451
      %p453 = scmp.ne.s32.totalorder %s445, %s448
      %p454 = scmp.eq.s32.totalorder %s31, 0
      %p455 = por %p453, %p454
      %p456 = scmp.ne.s32.totalorder %s445, %s448
      %p457 = scmp.eq.s32.totalorder %s36, 1
      %p458 = por %p456, %p457
      %p459 = scmp.ne.s32.totalorder %s448, %s449
      %p460 = scmp.eq.s32.totalorder %s36, 0
      %p461 = por %p459, %p460
      %p462 = scmp.ne.s32.totalorder %s448, %s449
      %p463 = scmp.eq.s32.totalorder %s37, 1
      %p464 = por %p462, %p463
      %p466 = scmp.ne.s32.totalorder %s449, %s465
      %p467 = scmp.eq.s32.totalorder %s37, 0
      %p468 = por %p466, %p467
      %p469 = scmp.le.s32.totalorder 1, %s31
      %p470 = scmp.lt.s32.totalorder %s31, 3
      %p471 = pnand %p469, %p470
      %p472 = pneg %p471
      // Predicated region
      $region9: #{decoder_forward.1} parent=5 // pred_check
        _
      $region10: #{decoder_forward.1} parent=5 // pred_check_branch
        %474 = sbr.rel (%p471) target = $region12
      $region11: #{decoder_forward.1} parent=5 // pred_region
        %s475 = ssub.s32 %s31, 1
        // Predicated region
        $region13: #{decoder_forward.1} parent=11 // pred_check
          %p476 = pneg %p78
        $region14: #{decoder_forward.1} parent=11 // pred_check_branch
          %478 = sbr.rel (%p476) target = $region16
        $region15: #{decoder_forward.1} parent=11 // pred_region
          _
        $region16: #{decoder_forward.1} parent=11 // pred_fallthru
          _
        // Predicated region
        $region17: #{decoder_forward.1} parent=11 // pred_check
          %p479 = pneg %p99
        $region18: #{decoder_forward.1} parent=11 // pred_check_branch
          %481 = sbr.rel (%p479) target = $region20
        $region19: #{decoder_forward.1} parent=11 // pred_region
          %s483 = ssub.s32 12288, 12288
          %484 = vsyncadd [#allocation5], %s483
          %s485 = sshll.u32 [#allocation4], 4
          %s486 = int_to_ptr.vmem [resolvable:$true] %s485
          %491 = dma.hbm_to_vmem [thread:$0]  %s2, 12288, %s486, [#allocation5], 384, 384, 24
        $region20: #{decoder_forward.1} parent=11 // pred_fallthru
          _
        // Predicated region
        $region21: #{decoder_forward.1} parent=11 // pred_check
          %p492 = pneg %p120
        $region22: #{decoder_forward.1} parent=11 // pred_check_branch
          %494 = sbr.rel (%p492) target = $region24
        $region23: #{decoder_forward.1} parent=11 // pred_region
          _
        $region24: #{decoder_forward.1} parent=11 // pred_fallthru
          _
        // Predicated region
        $region25: #{decoder_forward.1} parent=11 // pred_check
          %p495 = pneg %p141
        $region26: #{decoder_forward.1} parent=11 // pred_check_branch
          %497 = sbr.rel (%p495) target = $region28
        $region27: #{decoder_forward.1} parent=11 // pred_region
          _
        $region28: #{decoder_forward.1} parent=11 // pred_fallthru
          _
        // Predicated region
        $region29: #{decoder_forward.1} parent=11 // pred_check
          %p498 = pneg %p162
        $region30: #{decoder_forward.1} parent=11 // pred_check_branch
          %500 = sbr.rel (%p498) target = $region32
        $region31: #{decoder_forward.1} parent=11 // pred_region
          %s502 = ssub.s32 12288, 12288
          %503 = vsyncadd [#allocation7], %s502
          %s504 = sshll.u32 [#allocation6], 4
          %s505 = int_to_ptr.vmem [resolvable:$true] %s504
          %510 = dma.hbm_to_vmem [thread:$0]  %s5, 12288, %s505, [#allocation7], 384, 384, 24
        $region32: #{decoder_forward.1} parent=11 // pred_fallthru
          _
        // Predicated region
        $region33: #{decoder_forward.1} parent=11 // pred_check
          %p511 = pneg %p183
        $region34: #{decoder_forward.1} parent=11 // pred_check_branch
          %513 = sbr.rel (%p511) target = $region36
        $region35: #{decoder_forward.1} parent=11 // pred_region
          %s515 = ssub.s32 12288, 12288
          %516 = vsyncadd [#allocation7], %s515
          %s517 = sshll.u32 [#allocation8], 4
          %s518 = int_to_ptr.vmem [resolvable:$true] %s517
          %523 = dma.hbm_to_vmem [thread:$0]  %s6, 12288, %s518, [#allocation7], 384, 384, 24
        $region36: #{decoder_forward.1} parent=11 // pred_fallthru
          _
        // Predicated region
        $region37: #{decoder_forward.1} parent=11 // pred_check
          %p524 = pneg %p204
        $region38: #{decoder_forward.1} parent=11 // pred_check_branch
          %526 = sbr.rel (%p524) target = $region40
        $region39: #{decoder_forward.1} parent=11 // pred_region
          _
        $region40: #{decoder_forward.1} parent=11 // pred_fallthru
          _
        // Predicated region
        $region41: #{decoder_forward.1} parent=11 // pred_check
          %p527 = pneg %p225
        $region42: #{decoder_forward.1} parent=11 // pred_check_branch
          %529 = sbr.rel (%p527) target = $region44
        $region43: #{decoder_forward.1} parent=11 // pred_region
          _
        $region44: #{decoder_forward.1} parent=11 // pred_fallthru
          _
        // Predicated region
        $region45: #{decoder_forward.1} parent=11 // pred_check
          %p530 = pneg %p246
        $region46: #{decoder_forward.1} parent=11 // pred_check_branch
          %532 = sbr.rel (%p530) target = $region48
        $region47: #{decoder_forward.1} parent=11 // pred_region
          %s534 = ssub.s32 32, 32
          %535 = vsyncadd [#allocation10], %s534
          %s537 = sshll.u32 [#allocation9], 4
          %s538 = int_to_ptr.vmem [resolvable:$true] %s537
          %540 = dma.hbm_to_vmem [thread:$0]  %s9, 32, %s538, [#allocation10]
        $region48: #{decoder_forward.1} parent=11 // pred_fallthru
          _
        // Predicated region
        $region49: #{decoder_forward.1} parent=11 // pred_check
          %p541 = pneg %p267
        $region50: #{decoder_forward.1} parent=11 // pred_check_branch
          %543 = sbr.rel (%p541) target = $region52
        $region51: #{decoder_forward.1} parent=11 // pred_region
          %s545 = ssub.s32 32, 32
          %546 = vsyncadd [#allocation10], %s545
          %s548 = sshll.u32 [#allocation11], 4
          %s549 = int_to_ptr.vmem [resolvable:$true] %s548
          %551 = dma.hbm_to_vmem [thread:$0]  %s10, 32, %s549, [#allocation10]
        $region52: #{decoder_forward.1} parent=11 // pred_fallthru
          _
        // Predicated region
        $region53: #{decoder_forward.1} parent=11 // pred_check
          %p552 = pneg %p288
        $region54: #{decoder_forward.1} parent=11 // pred_check_branch
          %554 = sbr.rel (%p552) target = $region56
        $region55: #{decoder_forward.1} parent=11 // pred_region
          _
        $region56: #{decoder_forward.1} parent=11 // pred_fallthru
          _
        // Predicated region
        $region57: #{decoder_forward.1} parent=11 // pred_check
          %p555 = pneg %p309
        $region58: #{decoder_forward.1} parent=11 // pred_check_branch
          %557 = sbr.rel (%p555) target = $region60
        $region59: #{decoder_forward.1} parent=11 // pred_region
          _
        $region60: #{decoder_forward.1} parent=11 // pred_fallthru
          _
        // Predicated region
        $region61: #{decoder_forward.1} parent=11 // pred_check
          %p558 = pneg %p330
        $region62: #{decoder_forward.1} parent=11 // pred_check_branch
          %560 = sbr.rel (%p558) target = $region64
        $region63: #{decoder_forward.1} parent=11 // pred_region
          %s562 = ssub.s32 6144, 6144
          %563 = vsyncadd [#allocation13], %s562
          %s564 = sshll.u32 [#allocation12], 4
          %s565 = int_to_ptr.vmem [resolvable:$true] %s564
          %570 = dma.hbm_to_vmem [thread:$0]  %s13, 6144, %s565, [#allocation13], 64, 64, 4
        $region64: #{decoder_forward.1} parent=11 // pred_fallthru
          _
        // Predicated region
        $region65: #{decoder_forward.1} parent=11 // pred_check
          %p571 = pneg %p351
        $region66: #{decoder_forward.1} parent=11 // pred_check_branch
          %573 = sbr.rel (%p571) target = $region68
        $region67: #{decoder_forward.1} parent=11 // pred_region
          %s575 = ssub.s32 16, 16
          %576 = vsyncadd [#allocation13], %s575
          %s578 = sshll.u32 [#allocation14], 4
          %s579 = int_to_ptr.vmem [resolvable:$true] %s578
          %581 = dma.hbm_to_vmem [thread:$0]  %s14, 16, %s579, [#allocation13]
        $region68: #{decoder_forward.1} parent=11 // pred_fallthru
          _
        // Predicated region
        $region69: #{decoder_forward.1} parent=11 // pred_check
          %p582 = pneg %p372
        $region70: #{decoder_forward.1} parent=11 // pred_check_branch
          %584 = sbr.rel (%p582) target = $region72
        $region71: #{decoder_forward.1} parent=11 // pred_region
          %s586 = ssub.s32 16, 16
          %587 = vsyncadd [#allocation16], %s586
          %s589 = sshll.u32 [#allocation15], 4
          %s590 = int_to_ptr.vmem [resolvable:$true] %s589
          %592 = dma.hbm_to_vmem [thread:$0]  %s15, 16, %s590, [#allocation16]
        $region72: #{decoder_forward.1} parent=11 // pred_fallthru
          _
        // Predicated region
        $region73: #{decoder_forward.1} parent=11 // pred_check
          %p593 = pneg %p393
        $region74: #{decoder_forward.1} parent=11 // pred_check_branch
          %595 = sbr.rel (%p593) target = $region76
        $region75: #{decoder_forward.1} parent=11 // pred_region
          %s597 = ssub.s32 16, 16
          %598 = vsyncadd [#allocation16], %s597
          %s600 = sshll.u32 [#allocation17], 4
          %s601 = int_to_ptr.vmem [resolvable:$true] %s600
          %603 = dma.hbm_to_vmem [thread:$0]  %s16, 16, %s601, [#allocation16]
        $region76: #{decoder_forward.1} parent=11 // pred_fallthru
          _
        // Predicated region
        $region77: #{decoder_forward.1} parent=11 // pred_check
          %p604 = pneg %p414
        $region78: #{decoder_forward.1} parent=11 // pred_check_branch
          %606 = sbr.rel (%p604) target = $region80
        $region79: #{decoder_forward.1} parent=11 // pred_region
          _
        $region80: #{decoder_forward.1} parent=11 // pred_fallthru
          _
        // Predicated region
        $region81: #{decoder_forward.1} parent=11 // pred_check
          %p607 = pneg %p435
        $region82: #{decoder_forward.1} parent=11 // pred_check_branch
          %609 = sbr.rel (%p607) target = $region84
        $region83: #{decoder_forward.1} parent=11 // pred_region
          %s611 = ssub.s32 16, 16
          %612 = vsyncadd [#allocation19], %s611
          %s614 = sshll.u32 [#allocation18], 4
          %s615 = int_to_ptr.vmem [resolvable:$true] %s614
          %617 = dma.hbm_to_vmem [thread:$0]  %s18, 16, %s615, [#allocation19]
        $region84: #{decoder_forward.1} parent=11 // pred_fallthru
          _
      $region12: #{decoder_forward.1} parent=5 // pred_fallthru
        _
      %p618 = scmp.lt.s32.totalorder %s31, 2
      // Predicated region
      $region85: #{decoder_forward.1} parent=5 // pred_check
        %p619 = pneg %p618
      $region86: #{decoder_forward.1} parent=5 // pred_check_branch
        %621 = sbr.rel (%p619) target = $region88
      $region87: #{decoder_forward.1} parent=5 // pred_region
        // Predicated region
        $region89: #{decoder_forward.1} parent=87 // pred_check
          %p622 = pneg %p51
        $region90: #{decoder_forward.1} parent=87 // pred_check_branch
          %624 = sbr.rel (%p622) target = $region92
        $region91: #{decoder_forward.1} parent=87 // pred_region
          %p625 = scmp.lt.s32.totalorder %s31, 1
          %s626 = scalar_select %p625, %s31, 1
          %s627 = smul.addr %s626, 4
          %s628 = smul.addr %s627, 4
          %s629 = scalar_lea.vmem %s0, %s628
        $region92: #{decoder_forward.1} parent=87 // pred_fallthru
          _
      $region88: #{decoder_forward.1} parent=5 // pred_fallthru
        _
      %p630 = scmp.le.s32.totalorder 1, %s31
      %p631 = scmp.lt.s32.totalorder %s31, 3
      %p632 = pnand %p630, %p631
      %p633 = pneg %p632
      // Predicated region
      $region93: #{decoder_forward.1} parent=5 // pred_check
        _
      $region94: #{decoder_forward.1} parent=5 // pred_check_branch
        %635 = sbr.rel (%p632) target = $region96
      $region95: #{decoder_forward.1} parent=5 // pred_region
        %s636 = ssub.s32 %s31, 1
        // Predicated region
        $region97: #{decoder_forward.1} parent=95 // pred_check
          %p637 = pneg %p99
        $region98: #{decoder_forward.1} parent=95 // pred_check_branch
          %639 = sbr.rel (%p637) target = $region100
        $region99: #{decoder_forward.1} parent=95 // pred_region
          %640 = dma.done [#allocation5], 12288
        $region100: #{decoder_forward.1} parent=95 // pred_fallthru
          _
        // Predicated region
        $region101: #{decoder_forward.1} parent=95 // pred_check
          %p641 = pneg %p162
        $region102: #{decoder_forward.1} parent=95 // pred_check_branch
          %643 = sbr.rel (%p641) target = $region104
        $region103: #{decoder_forward.1} parent=95 // pred_region
          %644 = dma.done [#allocation7], 12288
        $region104: #{decoder_forward.1} parent=95 // pred_fallthru
          _
        // Predicated region
        $region105: #{decoder_forward.1} parent=95 // pred_check
          %p645 = pneg %p183
        $region106: #{decoder_forward.1} parent=95 // pred_check_branch
          %647 = sbr.rel (%p645) target = $region108
        $region107: #{decoder_forward.1} parent=95 // pred_region
          %648 = dma.done [#allocation7], 12288
        $region108: #{decoder_forward.1} parent=95 // pred_fallthru
          _
        // Predicated region
        $region109: #{decoder_forward.1} parent=95 // pred_check
          %p649 = pneg %p246
        $region110: #{decoder_forward.1} parent=95 // pred_check_branch
          %651 = sbr.rel (%p649) target = $region112
        $region111: #{decoder_forward.1} parent=95 // pred_region
          %652 = dma.done [#allocation10], 32
        $region112: #{decoder_forward.1} parent=95 // pred_fallthru
          _
        // Predicated region
        $region113: #{decoder_forward.1} parent=95 // pred_check
          %p653 = pneg %p267
        $region114: #{decoder_forward.1} parent=95 // pred_check_branch
          %655 = sbr.rel (%p653) target = $region116
        $region115: #{decoder_forward.1} parent=95 // pred_region
          %656 = dma.done [#allocation10], 32
        $region116: #{decoder_forward.1} parent=95 // pred_fallthru
          _
        // Predicated region
        $region117: #{decoder_forward.1} parent=95 // pred_check
          %p657 = pneg %p330
        $region118: #{decoder_forward.1} parent=95 // pred_check_branch
          %659 = sbr.rel (%p657) target = $region120
        $region119: #{decoder_forward.1} parent=95 // pred_region
          %660 = dma.done [#allocation13], 6144
        $region120: #{decoder_forward.1} parent=95 // pred_fallthru
          _
        // Predicated region
        $region121: #{decoder_forward.1} parent=95 // pred_check
          %p661 = pneg %p351
        $region122: #{decoder_forward.1} parent=95 // pred_check_branch
          %663 = sbr.rel (%p661) target = $region124
        $region123: #{decoder_forward.1} parent=95 // pred_region
          %664 = dma.done [#allocation13], 16
        $region124: #{decoder_forward.1} parent=95 // pred_fallthru
          _
        // Predicated region
        $region125: #{decoder_forward.1} parent=95 // pred_check
          %p665 = pneg %p372
        $region126: #{decoder_forward.1} parent=95 // pred_check_branch
          %667 = sbr.rel (%p665) target = $region128
        $region127: #{decoder_forward.1} parent=95 // pred_region
          %668 = dma.done [#allocation16], 16
        $region128: #{decoder_forward.1} parent=95 // pred_fallthru
          _
        // Predicated region
        $region129: #{decoder_forward.1} parent=95 // pred_check
          %p669 = pneg %p393
        $region130: #{decoder_forward.1} parent=95 // pred_check_branch
          %671 = sbr.rel (%p669) target = $region132
        $region131: #{decoder_forward.1} parent=95 // pred_region
          %672 = dma.done [#allocation16], 16
        $region132: #{decoder_forward.1} parent=95 // pred_fallthru
          _
        // Predicated region
        $region133: #{decoder_forward.1} parent=95 // pred_check
          %p673 = pneg %p435
        $region134: #{decoder_forward.1} parent=95 // pred_check_branch
          %675 = sbr.rel (%p673) target = $region136
        $region135: #{decoder_forward.1} parent=95 // pred_region
          %676 = dma.done [#allocation19], 16
        $region136: #{decoder_forward.1} parent=95 // pred_fallthru
          _
        %p677 = scmp.lt.s32.totalorder %s36, 1
        %s678 = scalar_select %p677, %s36, 1
        %s679 = smul.addr %s678, 4
        %s680 = smul.addr %s679, 4
        %s681 = scalar_lea.vmem %s0, %s680
        %p682 = pneg %p57
        %p683 = pneg %p54
        %p684 = pneg %p78
        %p685 = pneg %p75
        %p686 = pneg %p99
        %p687 = pneg %p96
        %p688 = pneg %p120
        %p689 = pneg %p117
        %p690 = pneg %p141
        %p691 = pneg %p138
        %p692 = pneg %p162
        %p693 = pneg %p159
        %p694 = pneg %p183
        %p695 = pneg %p180
        %p696 = pneg %p204
        %p697 = pneg %p201
        %p698 = pneg %p225
        %p699 = pneg %p222
        %p700 = pneg %p246
        %p701 = pneg %p243
        %p702 = pneg %p267
        %p703 = pneg %p264
        %p704 = pneg %p288
        %p705 = pneg %p285
        %p706 = pneg %p309
        %p707 = pneg %p306
        %p708 = pneg %p330
        %p709 = pneg %p327
        %p710 = pneg %p351
        %p711 = pneg %p348
        %p712 = pneg %p372
        %p713 = pneg %p369
        %p714 = pneg %p393
        %p715 = pneg %p390
        %p716 = pneg %p414
        %p717 = pneg %p411
        %p718 = pneg %p435
        %p719 = pneg %p432
        %p720 = pneg %p461
        %p721 = pneg %p458
        %p722 = scmp.lt.s32.totalorder %s36, 1
        %s723 = scalar_select %p722, %s36, 1
        %s724 = smul.addr %s723, 10
        %s725 = smul.addr %s724, 8
        %s726 = scalar_lea.vmem %s19, %s725
        %p727 = scmp.lt.s32.totalorder %s36, 1
        %s728 = scalar_select %p727, %s36, 1
        %s729 = smul.addr %s728, 4
        %s730 = smul.addr %s729, 4
        %s731 = scalar_lea.vmem %s0, %s730
        %p732 = scmp.lt.s32.totalorder %s36, 1
        %s733 = scalar_select %p732, %s36, 1
        %s734 = smul.addr %s733, 10
        %s735 = smul.addr %s734, 8
        %s736 = scalar_lea.vmem %s19, %s735
        %v738 = vld [vmem:[%s731] sm:$0xf]
        %v739 = vld [vmem:[%s731 + $0x4] sm:$0xf]
        %v740 = vld [vmem:[%s731 + $0x8] sm:$0xf]
        %v741 = vld [vmem:[%s731 + $0xc] sm:$0xf]
        %v742 = vld [vmem:[%s1] sm:$0xff]
        %v743 = vld [vmem:[%s1 + $0x8] sm:$0xff]
        %v744 = vld [vmem:[%s1 + $0x10] sm:$0xff]
        %v745 = vld [vmem:[%s1 + $0x18] sm:$0xff]
        %v746 = vld [vmem:[%s1 + $0x20] sm:$0xff]
        %v747 = vld [vmem:[%s1 + $0x28] sm:$0xff]
        %v748 = vld [vmem:[#allocation4] sm:$0xff]
        %v749 = vld [vmem:[#allocation4 + $0x8] sm:$0xff]
        %v750 = vld [vmem:[#allocation4 + $0x10] sm:$0xff]
        %v751 = vld [vmem:[#allocation4 + $0x18] sm:$0xff]
        %v752 = vld [vmem:[#allocation4 + $0x20] sm:$0xff]
        %v753 = vld [vmem:[#allocation4 + $0x28] sm:$0xff]
        %v754 = vld [vmem:[#allocation4 + $0x30] sm:$0xff]
        %v755 = vld [vmem:[#allocation4 + $0x38] sm:$0xff]
        %v756 = vld [vmem:[#allocation4 + $0x40] sm:$0xff]
        %v757 = vld [vmem:[#allocation4 + $0x48] sm:$0xff]
        %v758 = vld [vmem:[#allocation4 + $0x50] sm:$0xff]
        %v759 = vld [vmem:[#allocation4 + $0x58] sm:$0xff]
        %v760 = vld [vmem:[#allocation4 + $0x60] sm:$0xff]
        %v761 = vld [vmem:[#allocation4 + $0x68] sm:$0xff]
        %v762 = vld [vmem:[#allocation4 + $0x70] sm:$0xff]
        %v763 = vld [vmem:[#allocation4 + $0x78] sm:$0xff]
        %v764 = vld [vmem:[#allocation4 + $0x80] sm:$0xff]
        %v765 = vld [vmem:[#allocation4 + $0x88] sm:$0xff]
        %v766 = vld [vmem:[#allocation4 + $0x90] sm:$0xff]
        %v767 = vld [vmem:[#allocation4 + $0x98] sm:$0xff]
        %v768 = vld [vmem:[#allocation4 + $0xa0] sm:$0xff]
        %v769 = vld [vmem:[#allocation4 + $0xa8] sm:$0xff]
        %v770 = vld [vmem:[#allocation4 + $0xb0] sm:$0xff]
        %v771 = vld [vmem:[#allocation4 + $0xb8] sm:$0xff]
        %v772 = vld [vmem:[#allocation4 + $0xc0] sm:$0xff]
        %v773 = vld [vmem:[#allocation4 + $0xc8] sm:$0xff]
        %v774 = vld [vmem:[#allocation4 + $0xd0] sm:$0xff]
        %v775 = vld [vmem:[#allocation4 + $0xd8] sm:$0xff]
        %v776 = vld [vmem:[#allocation4 + $0xe0] sm:$0xff]
        %v777 = vld [vmem:[#allocation4 + $0xe8] sm:$0xff]
        %v778 = vld [vmem:[#allocation4 + $0xf0] sm:$0xff]
        %v779 = vld [vmem:[#allocation4 + $0xf8] sm:$0xff]
        %v780 = vld [vmem:[#allocation4 + $0x100] sm:$0xff]
        %v781 = vld [vmem:[#allocation4 + $0x108] sm:$0xff]
        %v782 = vld [vmem:[#allocation4 + $0x110] sm:$0xff]
        %v783 = vld [vmem:[#allocation4 + $0x118] sm:$0xff]
        %v784 = vld [vmem:[#allocation4 + $0x120] sm:$0xff]
        %v785 = vld [vmem:[#allocation4 + $0x128] sm:$0xff]
        %v786 = vld [vmem:[#allocation4 + $0x130] sm:$0xff]
        %v787 = vld [vmem:[#allocation4 + $0x138] sm:$0xff]
        %v788 = vld [vmem:[#allocation4 + $0x140] sm:$0xff]
        %v789 = vld [vmem:[#allocation4 + $0x148] sm:$0xff]
        %v790 = vld [vmem:[#allocation4 + $0x150] sm:$0xff]
        %v791 = vld [vmem:[#allocation4 + $0x158] sm:$0xff]
        %v792 = vld [vmem:[#allocation4 + $0x160] sm:$0xff]
        %v793 = vld [vmem:[#allocation4 + $0x168] sm:$0xff]
        %v794 = vld [vmem:[#allocation4 + $0x170] sm:$0xff]
        %v795 = vld [vmem:[#allocation4 + $0x178] sm:$0xff]
        %v796 = vld [vmem:[#allocation4 + $0x180] sm:$0xff]
        %v797 = vld [vmem:[#allocation4 + $0x188] sm:$0xff]
        %v798 = vld [vmem:[#allocation4 + $0x190] sm:$0xff]
        %v799 = vld [vmem:[#allocation4 + $0x198] sm:$0xff]
        %v800 = vld [vmem:[#allocation4 + $0x1a0] sm:$0xff]
        %v801 = vld [vmem:[#allocation4 + $0x1a8] sm:$0xff]
        %v802 = vld [vmem:[#allocation4 + $0x1b0] sm:$0xff]
        %v803 = vld [vmem:[#allocation4 + $0x1b8] sm:$0xff]
        %v804 = vld [vmem:[#allocation4 + $0x1c0] sm:$0xff]
        %v805 = vld [vmem:[#allocation4 + $0x1c8] sm:$0xff]
        %v806 = vld [vmem:[#allocation4 + $0x1d0] sm:$0xff]
        %v807 = vld [vmem:[#allocation4 + $0x1d8] sm:$0xff]
        %v808 = vld [vmem:[#allocation4 + $0x1e0] sm:$0xff]
        %v809 = vld [vmem:[#allocation4 + $0x1e8] sm:$0xff]
        %v810 = vld [vmem:[#allocation4 + $0x1f0] sm:$0xff]
        %v811 = vld [vmem:[#allocation4 + $0x1f8] sm:$0xff]
        %v812 = vld [vmem:[#allocation4 + $0x200] sm:$0xff]
        %v813 = vld [vmem:[#allocation4 + $0x208] sm:$0xff]
        %v814 = vld [vmem:[#allocation4 + $0x210] sm:$0xff]
        %v815 = vld [vmem:[#allocation4 + $0x218] sm:$0xff]
        %v816 = vld [vmem:[#allocation4 + $0x220] sm:$0xff]
        %v817 = vld [vmem:[#allocation4 + $0x228] sm:$0xff]
        %v818 = vld [vmem:[#allocation4 + $0x230] sm:$0xff]
        %v819 = vld [vmem:[#allocation4 + $0x238] sm:$0xff]
        %v820 = vld [vmem:[#allocation4 + $0x240] sm:$0xff]
        %v821 = vld [vmem:[#allocation4 + $0x248] sm:$0xff]
        %v822 = vld [vmem:[#allocation4 + $0x250] sm:$0xff]
        %v823 = vld [vmem:[#allocation4 + $0x258] sm:$0xff]
        %v824 = vld [vmem:[#allocation4 + $0x260] sm:$0xff]
        %v825 = vld [vmem:[#allocation4 + $0x268] sm:$0xff]
        %v826 = vld [vmem:[#allocation4 + $0x270] sm:$0xff]
        %v827 = vld [vmem:[#allocation4 + $0x278] sm:$0xff]
        %v828 = vld [vmem:[#allocation4 + $0x280] sm:$0xff]
        %v829 = vld [vmem:[#allocation4 + $0x288] sm:$0xff]
        %v830 = vld [vmem:[#allocation4 + $0x290] sm:$0xff]
        %v831 = vld [vmem:[#allocation4 + $0x298] sm:$0xff]
        %v832 = vld [vmem:[#allocation4 + $0x2a0] sm:$0xff]
        %v833 = vld [vmem:[#allocation4 + $0x2a8] sm:$0xff]
        %v834 = vld [vmem:[#allocation4 + $0x2b0] sm:$0xff]
        %v835 = vld [vmem:[#allocation4 + $0x2b8] sm:$0xff]
        %v836 = vld [vmem:[#allocation4 + $0x2c0] sm:$0xff]
        %v837 = vld [vmem:[#allocation4 + $0x2c8] sm:$0xff]
        %v838 = vld [vmem:[#allocation4 + $0x2d0] sm:$0xff]
        %v839 = vld [vmem:[#allocation4 + $0x2d8] sm:$0xff]
        %v840 = vld [vmem:[#allocation4 + $0x2e0] sm:$0xff]
        %v841 = vld [vmem:[#allocation4 + $0x2e8] sm:$0xff]
        %v842 = vld [vmem:[#allocation4 + $0x2f0] sm:$0xff]
        %v843 = vld [vmem:[#allocation4 + $0x2f8] sm:$0xff]
        %v844 = vld [vmem:[%s3] sm:$0x3f]
        %v845 = vld [vmem:[%s4] sm:$0x3f]
        %v847 = vlaneseq
        %v848 = vshrl.u32 %v847, 7
        %v849 = vsub.s32 0, %v848
        %v850 = vrot.slane %v844, %v849
        %v851 = vlaneseq
        %v852 = vshrl.u32 %v851, 7
        %v853 = vsub.s32 1, %v852
        %v854 = vrot.slane %v844, %v853
        %v855 = vlaneseq
        %v856 = vshrl.u32 %v855, 7
        %v857 = vsub.s32 2, %v856
        %v858 = vrot.slane %v844, %v857
        %v859 = vlaneseq
        %v860 = vshrl.u32 %v859, 7
        %v861 = vsub.s32 3, %v860
        %v862 = vrot.slane %v844, %v861
        %v863 = vlaneseq
        %v864 = vshrl.u32 %v863, 7
        %v865 = vsub.s32 4, %v864
        %v866 = vrot.slane %v844, %v865
        %v867 = vlaneseq
        %v868 = vshrl.u32 %v867, 7
        %v869 = vsub.s32 5, %v868
        %v870 = vrot.slane %v844, %v869
        %v881 = vunpack.c.l.b16 %v738
        %v882 = vunpack.c.l.b16 %v739
        %v883 = vunpack.c.l.b16 %v740
        %v884 = vunpack.c.l.b16 %v741
        %v885 = vpack.c.b16 %v882, %v881
        %v886 = vpack.c.b16 %v884, %v883
        %v893 = vunpack.c.l.b16 %v742
        %v894 = vunpack.c.h.b16 %v742
        %v895 = vunpack.c.l.b16 %v743
        %v896 = vunpack.c.h.b16 %v743
        %v897 = vunpack.c.l.b16 %v744
        %v898 = vunpack.c.h.b16 %v744
        %v899 = vunpack.c.l.b16 %v745
        %v900 = vunpack.c.h.b16 %v745
        %v901 = vunpack.c.l.b16 %v746
        %v902 = vunpack.c.h.b16 %v746
        %v903 = vunpack.c.l.b16 %v747
        %v904 = vunpack.c.h.b16 %v747
        %v905 = vpack.c.b16 %v899, %v893
        %v906 = vpack.c.b16 %v900, %v894
        %v907 = vpack.c.b16 %v901, %v895
        %v908 = vpack.c.b16 %v902, %v896
        %v909 = vpack.c.b16 %v903, %v897
        %v910 = vpack.c.b16 %v904, %v898
        %vm917 = vcmask 130048
        %v919 = vsel %vm917, %v885, 0
        %v922 = vsel %vm917, %v886, 0
        %924 = vmatprep.subr.bf16.mxu0 %v906
        %925 = vmatpush1.bf16.msra.mxu0 %v905
        %926 = vmatprep.subr.bf16.mxu0 0
        %927 = vmatpush1.bf16.msra.mxu0 0
        %928 = vmatprep.subr.bf16.mxu0 0
        %929 = vmatpush1.bf16.msra.mxu0 0
        %930 = vmatprep.subr.bf16.mxu0 0
        %931 = vmatpush1.bf16.msra.mxu0 0
        %932 = vmatprep.subr.bf16.mxu0 0
        %933 = vmatpush1.bf16.msra.mxu0 0
        %934 = vmatprep.subr.bf16.mxu0 0
        %935 = vmatpush1.bf16.msra.mxu0 0
        %936 = vmatprep.subr.bf16.mxu0 0
        %937 = vmatpush1.bf16.msra.mxu0 0
        %938 = vmatprep.subr.bf16.mxu0 0
        %939 = vmatpush1.bf16.msra.mxu0 0
        %940 = vmatprep.subr.bf16.mxu0 0
        %941 = vmatpush1.bf16.msra.mxu0 0
        %942 = vmatprep.subr.bf16.mxu0 0
        %943 = vmatpush1.bf16.msra.mxu0 0
        %944 = vmatprep.subr.bf16.mxu0 0
        %945 = vmatpush1.bf16.msra.mxu0 0
        %946 = vmatprep.subr.bf16.mxu0 0
        %947 = vmatpush1.bf16.msra.mxu0 0
        %948 = vmatprep.subr.bf16.mxu0 0
        %949 = vmatpush1.bf16.msra.mxu0 0
        %950 = vmatprep.subr.bf16.mxu0 0
        %951 = vmatpush1.bf16.msra.mxu0 0
        %952 = vmatprep.subr.bf16.mxu0 0
        %953 = vmatpush1.bf16.msra.mxu0 0
        %954 = vmatprep.subr.bf16.mxu0 0
        %955 = vmatpush1.bf16.msra.mxu0 0
        %956 = vmatprep.mubr.bf16.mxu0 0
        %957 = vmatmul.mubr.bf16.gmra.mrb[0].mxu0 %v919
        %v958 = vpop.f32.mrb[0].mxu0
        %v959 = vadd.f32 %v850, %v958
        %v960 = vpop.f32.mrb[0].mxu0
        %v961 = vadd.f32 %v854, %v960
        %v962 = vpop.f32.mrb[0].mxu0
        %v963 = vadd.f32 %v850, %v962
        %v964 = vpop.f32.mrb[0].mxu0
        %v965 = vadd.f32 %v854, %v964
        %966 = vmatprep.mubr.bf16.mxu0 0
        %967 = vmatmul.mubr.bf16.gmra.mrb[0].mxu0 %v922
        %v968 = vpop.f32.mrb[0].mxu0
        %v969 = vadd.f32 %v850, %v968
        %v970 = vpop.f32.mrb[0].mxu0
        %v971 = vadd.f32 %v854, %v970
        %v972 = vpop.f32.mrb[0].mxu0
        %v973 = vadd.f32 %v850, %v972
        %v974 = vpop.f32.mrb[0].mxu0
        %v975 = vadd.f32 %v854, %v974
        %976 = vdwg.mxu0
        %977 = vmatprep.subr.bf16.mxu0 %v908
        %978 = vmatpush1.bf16.msra.mxu0 %v907
        %979 = vmatprep.subr.bf16.mxu0 0
        %980 = vmatpush1.bf16.msra.mxu0 0
        %981 = vmatprep.subr.bf16.mxu0 0
        %982 = vmatpush1.bf16.msra.mxu0 0
        %983 = vmatprep.subr.bf16.mxu0 0
        %984 = vmatpush1.bf16.msra.mxu0 0
        %985 = vmatprep.subr.bf16.mxu0 0
        %986 = vmatpush1.bf16.msra.mxu0 0
        %987 = vmatprep.subr.bf16.mxu0 0
        %988 = vmatpush1.bf16.msra.mxu0 0
        %989 = vmatprep.subr.bf16.mxu0 0
        %990 = vmatpush1.bf16.msra.mxu0 0
        %991 = vmatprep.subr.bf16.mxu0 0
        %992 = vmatpush1.bf16.msra.mxu0 0
        %993 = vmatprep.subr.bf16.mxu0 0
        %994 = vmatpush1.bf16.msra.mxu0 0
        %995 = vmatprep.subr.bf16.mxu0 0
        %996 = vmatpush1.bf16.msra.mxu0 0
        %997 = vmatprep.subr.bf16.mxu0 0
        %998 = vmatpush1.bf16.msra.mxu0 0
        %999 = vmatprep.subr.bf16.mxu0 0
        %1000 = vmatpush1.bf16.msra.mxu0 0
        %1001 = vmatprep.subr.bf16.mxu0 0
        %1002 = vmatpush1.bf16.msra.mxu0 0
        %1003 = vmatprep.subr.bf16.mxu0 0
        %1004 = vmatpush1.bf16.msra.mxu0 0
        %1005 = vmatprep.subr.bf16.mxu0 0
        %1006 = vmatpush1.bf16.msra.mxu0 0
        %1007 = vmatprep.subr.bf16.mxu0 0
        %1008 = vmatpush1.bf16.msra.mxu0 0
        %1009 = vmatprep.mubr.bf16.mxu0 0
        %1010 = vmatmul.mubr.bf16.gmra.mrb[0].mxu0 %v919
        %v1011 = vpop.f32.mrb[0].mxu0
        %v1012 = vadd.f32 %v858, %v1011
        %v1013 = vpop.f32.mrb[0].mxu0
        %v1014 = vadd.f32 %v862, %v1013
        %v1015 = vpop.f32.mrb[0].mxu0
        %v1016 = vadd.f32 %v858, %v1015
        %v1017 = vpop.f32.mrb[0].mxu0
        %v1018 = vadd.f32 %v862, %v1017
        %1019 = vmatprep.mubr.bf16.mxu0 0
        %1020 = vmatmul.mubr.bf16.gmra.mrb[0].mxu0 %v922
        %v1021 = vpop.f32.mrb[0].mxu0
        %v1022 = vadd.f32 %v858, %v1021
        %v1023 = vpop.f32.mrb[0].mxu0
        %v1024 = vadd.f32 %v862, %v1023
        %v1025 = vpop.f32.mrb[0].mxu0
        %v1026 = vadd.f32 %v858, %v1025
        %v1027 = vpop.f32.mrb[0].mxu0
        %v1028 = vadd.f32 %v862, %v1027
        %1029 = vdwg.mxu0
        %1030 = vmatprep.subr.bf16.mxu0 %v910
        %1031 = vmatpush1.bf16.msra.mxu0 %v909
        %1032 = vmatprep.subr.bf16.mxu0 0
        %1033 = vmatpush1.bf16.msra.mxu0 0
        %1034 = vmatprep.subr.bf16.mxu0 0
        %1035 = vmatpush1.bf16.msra.mxu0 0
        %1036 = vmatprep.subr.bf16.mxu0 0
        %1037 = vmatpush1.bf16.msra.mxu0 0
        %1038 = vmatprep.subr.bf16.mxu0 0
        %1039 = vmatpush1.bf16.msra.mxu0 0
        %1040 = vmatprep.subr.bf16.mxu0 0
        %1041 = vmatpush1.bf16.msra.mxu0 0
        %1042 = vmatprep.subr.bf16.mxu0 0
        %1043 = vmatpush1.bf16.msra.mxu0 0
        %1044 = vmatprep.subr.bf16.mxu0 0
        %1045 = vmatpush1.bf16.msra.mxu0 0
        %1046 = vmatprep.subr.bf16.mxu0 0
        %1047 = vmatpush1.bf16.msra.mxu0 0
        %1048 = vmatprep.subr.bf16.mxu0 0
        %1049 = vmatpush1.bf16.msra.mxu0 0
        %1050 = vmatprep.subr.bf16.mxu0 0
        %1051 = vmatpush1.bf16.msra.mxu0 0
        %1052 = vmatprep.subr.bf16.mxu0 0
        %1053 = vmatpush1.bf16.msra.mxu0 0
        %1054 = vmatprep.subr.bf16.mxu0 0
        %1055 = vmatpush1.bf16.msra.mxu0 0
        %1056 = vmatprep.subr.bf16.mxu0 0
        %1057 = vmatpush1.bf16.msra.mxu0 0
        %1058 = vmatprep.subr.bf16.mxu0 0
        %1059 = vmatpush1.bf16.msra.mxu0 0
        %1060 = vmatprep.subr.bf16.mxu0 0
        %1061 = vmatpush1.bf16.msra.mxu0 0
        %1062 = vmatprep.mubr.bf16.mxu0 0
        %1063 = vmatmul.mubr.bf16.gmra.mrb[0].mxu0 %v919
        %v1064 = vpop.f32.mrb[0].mxu0
        %v1065 = vadd.f32 %v866, %v1064
        %v1066 = vpop.f32.mrb[0].mxu0
        %v1067 = vadd.f32 %v870, %v1066
        %v1068 = vpop.f32.mrb[0].mxu0
        %v1069 = vadd.f32 %v866, %v1068
        %v1070 = vpop.f32.mrb[0].mxu0
        %v1071 = vadd.f32 %v870, %v1070
        %1072 = vmatprep.mubr.bf16.mxu0 0
        %1073 = vmatmul.mubr.bf16.gmra.mrb[0].mxu0 %v922
        %v1074 = vpop.f32.mrb[0].mxu0
        %v1075 = vadd.f32 %v866, %v1074
        %v1076 = vpop.f32.mrb[0].mxu0
        %v1077 = vadd.f32 %v870, %v1076
        %v1078 = vpop.f32.mrb[0].mxu0
        %v1079 = vadd.f32 %v866, %v1078
        %v1080 = vpop.f32.mrb[0].mxu0
        %v1081 = vadd.f32 %v870, %v1080
        %1082 = vdwg.mxu0
        %v1084 = vlaneseq
        %v1085 = vshrl.u32 %v1084, 7
        %v1086 = vsub.s32 0, %v1085
        %v1087 = vrot.slane %v845, %v1086
        %v1088 = vlaneseq
        %v1089 = vshrl.u32 %v1088, 7
        %v1090 = vsub.s32 1, %v1089
        %v1091 = vrot.slane %v845, %v1090
        %v1092 = vlaneseq
        %v1093 = vshrl.u32 %v1092, 7
        %v1094 = vsub.s32 2, %v1093
        %v1095 = vrot.slane %v845, %v1094
        %v1096 = vlaneseq
        %v1097 = vshrl.u32 %v1096, 7
        %v1098 = vsub.s32 3, %v1097
        %v1099 = vrot.slane %v845, %v1098
        %v1100 = vlaneseq
        %v1101 = vshrl.u32 %v1100, 7
        %v1102 = vsub.s32 4, %v1101
        %v1103 = vrot.slane %v845, %v1102
        %v1104 = vlaneseq
        %v1105 = vshrl.u32 %v1104, 7
        %v1106 = vsub.s32 5, %v1105
        %v1107 = vrot.slane %v845, %v1106
        %v1210 = vunpack.c.l.b16 %v748
        %v1211 = vunpack.c.h.b16 %v748
        %v1212 = vunpack.c.l.b16 %v749
        %v1213 = vunpack.c.h.b16 %v749
        %v1214 = vunpack.c.l.b16 %v750
        %v1215 = vunpack.c.h.b16 %v750
        %v1216 = vunpack.c.l.b16 %v751
        %v1217 = vunpack.c.h.b16 %v751
        %v1218 = vunpack.c.l.b16 %v752
        %v1219 = vunpack.c.h.b16 %v752
        %v1220 = vunpack.c.l.b16 %v753
        %v1221 = vunpack.c.h.b16 %v753
        %v1222 = vunpack.c.l.b16 %v754
        %v1223 = vunpack.c.h.b16 %v754
        %v1224 = vunpack.c.l.b16 %v755
        %v1225 = vunpack.c.h.b16 %v755
        %v1226 = vunpack.c.l.b16 %v756
        %v1227 = vunpack.c.h.b16 %v756
        %v1228 = vunpack.c.l.b16 %v757
        %v1229 = vunpack.c.h.b16 %v757
        %v1230 = vunpack.c.l.b16 %v758
        %v1231 = vunpack.c.h.b16 %v758
        %v1232 = vunpack.c.l.b16 %v759
        %v1233 = vunpack.c.h.b16 %v759
        %v1234 = vunpack.c.l.b16 %v760
        %v1235 = vunpack.c.h.b16 %v760
        %v1236 = vunpack.c.l.b16 %v761
        %v1237 = vunpack.c.h.b16 %v761
        %v1238 = vunpack.c.l.b16 %v762
        %v1239 = vunpack.c.h.b16 %v762
        %v1240 = vunpack.c.l.b16 %v763
        %v1241 = vunpack.c.h.b16 %v763
        %v1242 = vunpack.c.l.b16 %v764
        %v1243 = vunpack.c.h.b16 %v764
        %v1244 = vunpack.c.l.b16 %v765
        %v1245 = vunpack.c.h.b16 %v765
        %v1246 = vunpack.c.l.b16 %v766
        %v1247 = vunpack.c.h.b16 %v766
        %v1248 = vunpack.c.l.b16 %v767
        %v1249 = vunpack.c.h.b16 %v767
        %v1250 = vunpack.c.l.b16 %v768
        %v1251 = vunpack.c.h.b16 %v768
        %v1252 = vunpack.c.l.b16 %v769
        %v1253 = vunpack.c.h.b16 %v769
        %v1254 = vunpack.c.l.b16 %v770
        %v1255 = vunpack.c.h.b16 %v770
        %v1256 = vunpack.c.l.b16 %v771
        %v1257 = vunpack.c.h.b16 %v771
        %v1258 = vunpack.c.l.b16 %v772
        %v1259 = vunpack.c.h.b16 %v772
        %v1260 = vunpack.c.l.b16 %v773
        %v1261 = vunpack.c.h.b16 %v773
        %v1262 = vunpack.c.l.b16 %v774
        %v1263 = vunpack.c.h.b16 %v774
        %v1264 = vunpack.c.l.b16 %v775
        %v1265 = vunpack.c.h.b16 %v775
        %v1266 = vunpack.c.l.b16 %v776
        %v1267 = vunpack.c.h.b16 %v776
        %v1268 = vunpack.c.l.b16 %v777
        %v1269 = vunpack.c.h.b16 %v777
        %v1270 = vunpack.c.l.b16 %v778
        %v1271 = vunpack.c.h.b16 %v778
        %v1272 = vunpack.c.l.b16 %v779
        %v1273 = vunpack.c.h.b16 %v779
        %v1274 = vunpack.c.l.b16 %v780
        %v1275 = vunpack.c.h.b16 %v780
        %v1276 = vunpack.c.l.b16 %v781
        %v1277 = vunpack.c.h.b16 %v781
        %v1278 = vunpack.c.l.b16 %v782
        %v1279 = vunpack.c.h.b16 %v782
        %v1280 = vunpack.c.l.b16 %v783
        %v1281 = vunpack.c.h.b16 %v783
        %v1282 = vunpack.c.l.b16 %v784
        %v1283 = vunpack.c.h.b16 %v784
        %v1284 = vunpack.c.l.b16 %v785
        %v1285 = vunpack.c.h.b16 %v785
        %v1286 = vunpack.c.l.b16 %v786
        %v1287 = vunpack.c.h.b16 %v786
        %v1288 = vunpack.c.l.b16 %v787
        %v1289 = vunpack.c.h.b16 %v787
        %v1290 = vunpack.c.l.b16 %v788
        %v1291 = vunpack.c.h.b16 %v788
        %v1292 = vunpack.c.l.b16 %v789
        %v1293 = vunpack.c.h.b16 %v789
        %v1294 = vunpack.c.l.b16 %v790
        %v1295 = vunpack.c.h.b16 %v790
        %v1296 = vunpack.c.l.b16 %v791
        %v1297 = vunpack.c.h.b16 %v791
        %v1298 = vunpack.c.l.b16 %v792
        %v1299 = vunpack.c.h.b16 %v792
        %v1300 = vunpack.c.l.b16 %v793
        %v1301 = vunpack.c.h.b16 %v793
        %v1302 = vunpack.c.l.b16 %v794
        %v1303 = vunpack.c.h.b16 %v794
        %v1304 = vunpack.c.l.b16 %v795
        %v1305 = vunpack.c.h.b16 %v795
        %v1306 = vunpack.c.l.b16 %v796
        %v1307 = vunpack.c.h.b16 %v796
        %v1308 = vunpack.c.l.b16 %v797
        %v1309 = vunpack.c.h.b16 %v797
        %v1310 = vunpack.c.l.b16 %v798
        %v1311 = vunpack.c.h.b16 %v798
        %v1312 = vunpack.c.l.b16 %v799
        %v1313 = vunpack.c.h.b16 %v799
        %v1314 = vunpack.c.l.b16 %v800
        %v1315 = vunpack.c.h.b16 %v800
        %v1316 = vunpack.c.l.b16 %v801
        %v1317 = vunpack.c.h.b16 %v801
        %v1318 = vunpack.c.l.b16 %v802
        %v1319 = vunpack.c.h.b16 %v802
        %v1320 = vunpack.c.l.b16 %v803
        %v1321 = vunpack.c.h.b16 %v803
        %v1322 = vunpack.c.l.b16 %v804
        %v1323 = vunpack.c.h.b16 %v804
        %v1324 = vunpack.c.l.b16 %v805
        %v1325 = vunpack.c.h.b16 %v805
        %v1326 = vunpack.c.l.b16 %v806
        %v1327 = vunpack.c.h.b16 %v806
        %v1328 = vunpack.c.l.b16 %v807
        %v1329 = vunpack.c.h.b16 %v807
        %v1330 = vunpack.c.l.b16 %v808
        %v1331 = vunpack.c.h.b16 %v808
        %v1332 = vunpack.c.l.b16 %v809
        %v1333 = vunpack.c.h.b16 %v809
        %v1334 = vunpack.c.l.b16 %v810
        %v1335 = vunpack.c.h.b16 %v810
        %v1336 = vunpack.c.l.b16 %v811
        %v1337 = vunpack.c.h.b16 %v811
        %v1338 = vunpack.c.l.b16 %v812
        %v1339 = vunpack.c.h.b16 %v812
        %v1340 = vunpack.c.l.b16 %v813
        %v1341 = vunpack.c.h.b16 %v813
        %v1342 = vunpack.c.l.b16 %v814
        %v1343 = vunpack.c.h.b16 %v814
        %v1344 = vunpack.c.l.b16 %v815
        %v1345 = vunpack.c.h.b16 %v815
        %v1346 = vunpack.c.l.b16 %v816
        %v1347 = vunpack.c.h.b16 %v816
        %v1348 = vunpack.c.l.b16 %v817
        %v1349 = vunpack.c.h.b16 %v817
        %v1350 = vunpack.c.l.b16 %v818
        %v1351 = vunpack.c.h.b16 %v818
        %v1352 = vunpack.c.l.b16 %v819
        %v1353 = vunpack.c.h.b16 %v819
        %v1354 = vunpack.c.l.b16 %v820
        %v1355 = vunpack.c.h.b16 %v820
        %v1356 = vunpack.c.l.b16 %v821
        %v1357 = vunpack.c.h.b16 %v821
        %v1358 = vunpack.c.l.b16 %v822
        %v1359 = vunpack.c.h.b16 %v822
        %v1360 = vunpack.c.l.b16 %v823
        %v1361 = vunpack.c.h.b16 %v823
        %v1362 = vunpack.c.l.b16 %v824
        %v1363 = vunpack.c.h.b16 %v824
        %v1364 = vunpack.c.l.b16 %v825
        %v1365 = vunpack.c.h.b16 %v825
        %v1366 = vunpack.c.l.b16 %v826
        %v1367 = vunpack.c.h.b16 %v826
        %v1368 = vunpack.c.l.b16 %v827
        %v1369 = vunpack.c.h.b16 %v827
        %v1370 = vunpack.c.l.b16 %v828
        %v1371 = vunpack.c.h.b16 %v828
        %v1372 = vunpack.c.l.b16 %v829
        %v1373 = vunpack.c.h.b16 %v829
        %v1374 = vunpack.c.l.b16 %v830
        %v1375 = vunpack.c.h.b16 %v830
        %v1376 = vunpack.c.l.b16 %v831
        %v1377 = vunpack.c.h.b16 %v831
        %v1378 = vunpack.c.l.b16 %v832
        %v1379 = vunpack.c.h.b16 %v832
        %v1380 = vunpack.c.l.b16 %v833
        %v1381 = vunpack.c.h.b16 %v833
        %v1382 = vunpack.c.l.b16 %v834
        %v1383 = vunpack.c.h.b16 %v834
        %v1384 = vunpack.c.l.b16 %v835
        %v1385 = vunpack.c.h.b16 %v835
        %v1386 = vunpack.c.l.b16 %v836
        %v1387 = vunpack.c.h.b16 %v836
        %v1388 = vunpack.c.l.b16 %v837
        %v1389 = vunpack.c.h.b16 %v837
        %v1390 = vunpack.c.l.b16 %v838
        %v1391 = vunpack.c.h.b16 %v838
        %v1392 = vunpack.c.l.b16 %v839
        %v1393 = vunpack.c.h.b16 %v839
        %v1394 = vunpack.c.l.b16 %v840
        %v1395 = vunpack.c.h.b16 %v840
        %v1396 = vunpack.c.l.b16 %v841
        %v1397 = vunpack.c.h.b16 %v841
        %v1398 = vunpack.c.l.b16 %v842
        %v1399 = vunpack.c.h.b16 %v842
        %v1400 = vunpack.c.l.b16 %v843
        %v1401 = vunpack.c.h.b16 %v843
        %v1402 = vpack.c.b16 %v1216, %v1210
        %v1403 = vpack.c.b16 %v1217, %v1211
        %v1404 = vpack.c.b16 %v1218, %v1212
        %v1405 = vpack.c.b16 %v1219, %v1213
        %v1406 = vpack.c.b16 %v1220, %v1214
        %v1407 = vpack.c.b16 %v1221, %v1215
        %v1408 = vpack.c.b16 %v1228, %v1222
        %v1409 = vpack.c.b16 %v1229, %v1223
        %v1410 = vpack.c.b16 %v1230, %v1224
        %v1411 = vpack.c.b16 %v1231, %v1225
        %v1412 = vpack.c.b16 %v1232, %v1226
        %v1413 = vpack.c.b16 %v1233, %v1227
        %v1414 = vpack.c.b16 %v1240, %v1234
        %v1415 = vpack.c.b16 %v1241, %v1235
        %v1416 = vpack.c.b16 %v1242, %v1236
        %v1417 = vpack.c.b16 %v1243, %v1237
        %v1418 = vpack.c.b16 %v1244, %v1238
        %v1419 = vpack.c.b16 %v1245, %v1239
        %v1420 = vpack.c.b16 %v1252, %v1246
        %v1421 = vpack.c.b16 %v1253, %v1247
        %v1422 = vpack.c.b16 %v1254, %v1248
        %v1423 = vpack.c.b16 %v1255, %v1249
        %v1424 = vpack.c.b16 %v1256, %v1250
        %v1425 = vpack.c.b16 %v1257, %v1251
        %v1426 = vpack.c.b16 %v1264, %v1258
        %v1427 = vpack.c.b16 %v1265, %v1259
        %v1428 = vpack.c.b16 %v1266, %v1260
        %v1429 = vpack.c.b16 %v1267, %v1261
        %v1430 = vpack.c.b16 %v1268, %v1262
        %v1431 = vpack.c.b16 %v1269, %v1263
        %v1432 = vpack.c.b16 %v1276, %v1270
        %v1433 = vpack.c.b16 %v1277, %v1271
        %v1434 = vpack.c.b16 %v1278, %v1272
        %v1435 = vpack.c.b16 %v1279, %v1273
        %v1436 = vpack.c.b16 %v1280, %v1274
        %v1437 = vpack.c.b16 %v1281, %v1275
        %v1438 = vpack.c.b16 %v1288, %v1282
        %v1439 = vpack.c.b16 %v1289, %v1283
        %v1440 = vpack.c.b16 %v1290, %v1284
        %v1441 = vpack.c.b16 %v1291, %v1285
        %v1442 = vpack.c.b16 %v1292, %v1286
        %v1443 = vpack.c.b16 %v1293, %v1287
        %v1444 = vpack.c.b16 %v1300, %v1294
        %v1445 = vpack.c.b16 %v1301, %v1295
        %v1446 = vpack.c.b16 %v1302, %v1296
        %v1447 = vpack.c.b16 %v1303, %v1297
        %v1448 = vpack.c.b16 %v1304, %v1298
        %v1449 = vpack.c.b16 %v1305, %v1299
        %v1450 = vpack.c.b16 %v1312, %v1306
        %v1451 = vpack.c.b16 %v1313, %v1307
        %v1452 = vpack.c.b16 %v1314, %v1308
        %v1453 = vpack.c.b16 %v1315, %v1309
        %v1454 = vpack.c.b16 %v1316, %v1310
        %v1455 = vpack.c.b16 %v1317, %v1311
        %v1456 = vpack.c.b16 %v1324, %v1318
        %v1457 = vpack.c.b16 %v1325, %v1319
        %v1458 = vpack.c.b16 %v1326, %v1320
        %v1459 = vpack.c.b16 %v1327, %v1321
        %v1460 = vpack.c.b16 %v1328, %v1322
        %v1461 = vpack.c.b16 %v1329, %v1323
        %v1462 = vpack.c.b16 %v1336, %v1330
        %v1463 = vpack.c.b16 %v1337, %v1331
        %v1464 = vpack.c.b16 %v1338, %v1332
        %v1465 = vpack.c.b16 %v1339, %v1333
        %v1466 = vpack.c.b16 %v1340, %v1334
        %v1467 = vpack.c.b16 %v1341, %v1335
        %v1468 = vpack.c.b16 %v1348, %v1342
        %v1469 = vpack.c.b16 %v1349, %v1343
        %v1470 = vpack.c.b16 %v1350, %v1344
        %v1471 = vpack.c.b16 %v1351, %v1345
        %v1472 = vpack.c.b16 %v1352, %v1346
        %v1473 = vpack.c.b16 %v1353, %v1347
        %v1474 = vpack.c.b16 %v1360, %v1354
        %v1475 = vpack.c.b16 %v1361, %v1355
        %v1476 = vpack.c.b16 %v1362, %v1356
        %v1477 = vpack.c.b16 %v1363, %v1357
        %v1478 = vpack.c.b16 %v1364, %v1358
        %v1479 = vpack.c.b16 %v1365, %v1359
        %v1480 = vpack.c.b16 %v1372, %v1366
        %v1481 = vpack.c.b16 %v1373, %v1367
        %v1482 = vpack.c.b16 %v1374, %v1368
        %v1483 = vpack.c.b16 %v1375, %v1369
        %v1484 = vpack.c.b16 %v1376, %v1370
        %v1485 = vpack.c.b16 %v1377, %v1371
        %v1486 = vpack.c.b16 %v1384, %v1378
        %v1487 = vpack.c.b16 %v1385, %v1379
        %v1488 = vpack.c.b16 %v1386, %v1380
        %v1489 = vpack.c.b16 %v1387, %v1381
        %v1490 = vpack.c.b16 %v1388, %v1382
        %v1491 = vpack.c.b16 %v1389, %v1383
        %v1492 = vpack.c.b16 %v1396, %v1390
        %v1493 = vpack.c.b16 %v1397, %v1391
        %v1494 = vpack.c.b16 %v1398, %v1392
        %v1495 = vpack.c.b16 %v1399, %v1393
        %v1496 = vpack.c.b16 %v1400, %v1394
        %v1497 = vpack.c.b16 %v1401, %v1395
        %1594 = vmatprep.subr.bf16.mxu0 %v1403
        %1595 = vmatpush1.bf16.msra.mxu0 %v1402
        %1596 = vmatprep.subr.bf16.mxu0 %v1409
        %1597 = vmatpush1.bf16.msra.mxu0 %v1408
        %1598 = vmatprep.subr.bf16.mxu0 %v1415
        %1599 = vmatpush1.bf16.msra.mxu0 %v1414
        %1600 = vmatprep.subr.bf16.mxu0 %v1421
        %1601 = vmatpush1.bf16.msra.mxu0 %v1420
        %1602 = vmatprep.subr.bf16.mxu0 %v1427
        %1603 = vmatpush1.bf16.msra.mxu0 %v1426
        %1604 = vmatprep.subr.bf16.mxu0 %v1433
        %1605 = vmatpush1.bf16.msra.mxu0 %v1432
        %1606 = vmatprep.subr.bf16.mxu0 %v1439
        %1607 = vmatpush1.bf16.msra.mxu0 %v1438
        %1608 = vmatprep.subr.bf16.mxu0 %v1445
        %1609 = vmatpush1.bf16.msra.mxu0 %v1444
        %1610 = vmatprep.subr.bf16.mxu0 %v1451
        %1611 = vmatpush1.bf16.msra.mxu0 %v1450
        %1612 = vmatprep.subr.bf16.mxu0 %v1457
        %1613 = vmatpush1.bf16.msra.mxu0 %v1456
        %1614 = vmatprep.subr.bf16.mxu0 %v1463
        %1615 = vmatpush1.bf16.msra.mxu0 %v1462
        %1616 = vmatprep.subr.bf16.mxu0 %v1469
        %1617 = vmatpush1.bf16.msra.mxu0 %v1468
        %1618 = vmatprep.subr.bf16.mxu0 %v1475
        %1619 = vmatpush1.bf16.msra.mxu0 %v1474
        %1620 = vmatprep.subr.bf16.mxu0 %v1481
        %1621 = vmatpush1.bf16.msra.mxu0 %v1480
        %1622 = vmatprep.subr.bf16.mxu0 %v1487
        %1623 = vmatpush1.bf16.msra.mxu0 %v1486
        %1624 = vmatprep.subr.bf16.mxu0 %v1493
        %1625 = vmatpush1.bf16.msra.mxu0 %v1492
        %1626 = vmatprep.mubr.bf16.mxu0 0
        %1627 = vmatmul.mubr.bf16.gmra.mrb[0].mxu0 0
        %v1628 = vpop.f32.mrb[0].mxu0
        %v1629 = vadd.f32 %v1087, %v1628
        %v1630 = vpop.f32.mrb[0].mxu0
        %v1631 = vadd.f32 %v1091, %v1630
        %v1632 = vpop.f32.mrb[0].mxu0
        %v1633 = vpop.f32.mrb[0].mxu0
        %1634 = vdwg.mxu0
        %1635 = vmatprep.subr.bf16.mxu0 %v1405
        %1636 = vmatpush1.bf16.msra.mxu0 %v1404
        %1637 = vmatprep.subr.bf16.mxu0 %v1411
        %1638 = vmatpush1.bf16.msra.mxu0 %v1410
        %1639 = vmatprep.subr.bf16.mxu0 %v1417
        %1640 = vmatpush1.bf16.msra.mxu0 %v1416
        %1641 = vmatprep.subr.bf16.mxu0 %v1423
        %1642 = vmatpush1.bf16.msra.mxu0 %v1422
        %1643 = vmatprep.subr.bf16.mxu0 %v1429
        %1644 = vmatpush1.bf16.msra.mxu0 %v1428
        %1645 = vmatprep.subr.bf16.mxu0 %v1435
        %1646 = vmatpush1.bf16.msra.mxu0 %v1434
        %1647 = vmatprep.subr.bf16.mxu0 %v1441
        %1648 = vmatpush1.bf16.msra.mxu0 %v1440
        %1649 = vmatprep.subr.bf16.mxu0 %v1447
        %1650 = vmatpush1.bf16.msra.mxu0 %v1446
        %1651 = vmatprep.subr.bf16.mxu0 %v1453
        %1652 = vmatpush1.bf16.msra.mxu0 %v1452
        %1653 = vmatprep.subr.bf16.mxu0 %v1459
        %1654 = vmatpush1.bf16.msra.mxu0 %v1458
        %1655 = vmatprep.subr.bf16.mxu0 %v1465
        %1656 = vmatpush1.bf16.msra.mxu0 %v1464
        %1657 = vmatprep.subr.bf16.mxu0 %v1471
        %1658 = vmatpush1.bf16.msra.mxu0 %v1470
        %1659 = vmatprep.subr.bf16.mxu0 %v1477
        %1660 = vmatpush1.bf16.msra.mxu0 %v1476
        %1661 = vmatprep.subr.bf16.mxu0 %v1483
        %1662 = vmatpush1.bf16.msra.mxu0 %v1482
        %1663 = vmatprep.subr.bf16.mxu0 %v1489
        %1664 = vmatpush1.bf16.msra.mxu0 %v1488
        %1665 = vmatprep.subr.bf16.mxu0 %v1495
        %1666 = vmatpush1.bf16.msra.mxu0 %v1494
        %1667 = vmatprep.mubr.bf16.mxu0 0
        %1668 = vmatmul.mubr.bf16.gmra.mrb[0].mxu0 0
        %v1669 = vpop.f32.mrb[0].mxu0
        %v1670 = vadd.f32 %v1095, %v1669
        %v1671 = vpop.f32.mrb[0].mxu0
        %v1672 = vadd.f32 %v1099, %v1671
        %v1673 = vpop.f32.mrb[0].mxu0
        %v1674 = vpop.f32.mrb[0].mxu0
        %1675 = vdwg.mxu0
        %1676 = vmatprep.subr.bf16.mxu0 %v1407
        %1677 = vmatpush1.bf16.msra.mxu0 %v1406
        %1678 = vmatprep.subr.bf16.mxu0 %v1413
        %1679 = vmatpush1.bf16.msra.mxu0 %v1412
        %1680 = vmatprep.subr.bf16.mxu0 %v1419
        %1681 = vmatpush1.bf16.msra.mxu0 %v1418
        %1682 = vmatprep.subr.bf16.mxu0 %v1425
        %1683 = vmatpush1.bf16.msra.mxu0 %v1424
        %1684 = vmatprep.subr.bf16.mxu0 %v1431
        %1685 = vmatpush1.bf16.msra.mxu0 %v1430
        %1686 = vmatprep.subr.bf16.mxu0 %v1437
        %1687 = vmatpush1.bf16.msra.mxu0 %v1436
        %1688 = vmatprep.subr.bf16.mxu0 %v1443
        %1689 = vmatpush1.bf16.msra.mxu0 %v1442
        %1690 = vmatprep.subr.bf16.mxu0 %v1449
        %1691 = vmatpush1.bf16.msra.mxu0 %v1448
        %1692 = vmatprep.subr.bf16.mxu0 %v1455
        %1693 = vmatpush1.bf16.msra.mxu0 %v1454
        %1694 = vmatprep.subr.bf16.mxu0 %v1461
        %1695 = vmatpush1.bf16.msra.mxu0 %v1460
        %1696 = vmatprep.subr.bf16.mxu0 %v1467
        %1697 = vmatpush1.bf16.msra.mxu0 %v1466
        %1698 = vmatprep.subr.bf16.mxu0 %v1473
        %1699 = vmatpush1.bf16.msra.mxu0 %v1472
        %1700 = vmatprep.subr.bf16.mxu0 %v1479
        %1701 = vmatpush1.bf16.msra.mxu0 %v1478
        %1702 = vmatprep.subr.bf16.mxu0 %v1485
        %1703 = vmatpush1.bf16.msra.mxu0 %v1484
        %1704 = vmatprep.subr.bf16.mxu0 %v1491
        %1705 = vmatpush1.bf16.msra.mxu0 %v1490
        %1706 = vmatprep.subr.bf16.mxu0 %v1497
        %1707 = vmatpush1.bf16.msra.mxu0 %v1496
        %1708 = vmatprep.mubr.bf16.mxu0 0
        %1709 = vmatmul.mubr.bf16.gmra.mrb[0].mxu0 0
        %v1710 = vpop.f32.mrb[0].mxu0
        %v1711 = vadd.f32 %v1103, %v1710
        %v1712 = vpop.f32.mrb[0].mxu0
        %v1713 = vadd.f32 %v1107, %v1712
        %v1714 = vpop.f32.mrb[0].mxu0
        %v1715 = vpop.f32.mrb[0].mxu0
        %1716 = vdwg.mxu0
        %v1717 = vadd.f32 %v959, %v1629
        %v1718 = vadd.f32 %v961, %v1631
        %v1719 = vmul.f32 %v1717, 0.5
        %v1720 = vmul.f32 %v1718, 0.5
        %v1721 = vtanh.pop %v1719
        %v1722 = vtanh.pop %v1720
        %v1723 = vadd.f32 %v1721, 1.0
        %v1724 = vadd.f32 %v1722, 1.0
        %v1725 = vmul.f32 %v1723, 0.5
        %v1726 = vmul.f32 %v1724, 0.5
        %v1727 = vadd.f32 %v1012, %v1670
        %v1728 = vadd.f32 %v1014, %v1672
        %v1729 = vmul.f32 %v1727, 0.5
        %v1730 = vmul.f32 %v1728, 0.5
        %v1731 = vtanh.pop %v1729
        %v1732 = vtanh.pop %v1730
        %v1733 = vadd.f32 %v1731, 1.0
        %v1734 = vadd.f32 %v1732, 1.0
        %v1735 = vmul.f32 %v1733, 0.5
        %v1736 = vmul.f32 %v1734, 0.5
        %v1737 = vmul.f32 %v1725, %v1711
        %v1738 = vmul.f32 %v1726, %v1713
        %v1739 = vadd.f32 %v1065, %v1737
        %v1740 = vadd.f32 %v1067, %v1738
        %v1741 = vtanh.pop %v1739
        %v1742 = vtanh.pop %v1740
        %v1743 = vsub.f32 1.0, %v1735
        %v1744 = vsub.f32 1.0, %v1736
        %v1745 = vmul.f32 %v1743, %v1741
        %v1746 = vmul.f32 %v1744, %v1742
        %v1747 = vmul.f32 %v1735, 0.0
        %v1748 = vmul.f32 %v1736, 0.0
        %v1749 = vadd.f32 %v1745, %v1747
        %v1750 = vadd.f32 %v1746, %v1748
        %1751 = vst [vmem:[#allocation2] sm:$0xff] %v1749
        %1752 = vst [vmem:[#allocation2 + $0x8] sm:$0xff] %v1750
        %v1753 = vpack.c.bf16 %v1749, %v1749
        %v1754 = vpack.c.bf16 %v1750, %v1750
        %1755 = vmatprep.subr.bf16.mxu0 %v1403
        %1756 = vmatpush1.bf16.msra.mxu0 %v1402
        %1757 = vmatprep.subr.bf16.mxu0 %v1409
        %1758 = vmatpush1.bf16.msra.mxu0 %v1408
        %1759 = vmatprep.subr.bf16.mxu0 %v1415
        %1760 = vmatpush1.bf16.msra.mxu0 %v1414
        %1761 = vmatprep.subr.bf16.mxu0 %v1421
        %1762 = vmatpush1.bf16.msra.mxu0 %v1420
        %1763 = vmatprep.subr.bf16.mxu0 %v1427
        %1764 = vmatpush1.bf16.msra.mxu0 %v1426
        %1765 = vmatprep.subr.bf16.mxu0 %v1433
        %1766 = vmatpush1.bf16.msra.mxu0 %v1432
        %1767 = vmatprep.subr.bf16.mxu0 %v1439
        %1768 = vmatpush1.bf16.msra.mxu0 %v1438
        %1769 = vmatprep.subr.bf16.mxu0 %v1445
        %1770 = vmatpush1.bf16.msra.mxu0 %v1444
        %1771 = vmatprep.subr.bf16.mxu0 %v1451
        %1772 = vmatpush1.bf16.msra.mxu0 %v1450
        %1773 = vmatprep.subr.bf16.mxu0 %v1457
        %1774 = vmatpush1.bf16.msra.mxu0 %v1456
        %1775 = vmatprep.subr.bf16.mxu0 %v1463
        %1776 = vmatpush1.bf16.msra.mxu0 %v1462
        %1777 = vmatprep.subr.bf16.mxu0 %v1469
        %1778 = vmatpush1.bf16.msra.mxu0 %v1468
        %1779 = vmatprep.subr.bf16.mxu0 %v1475
        %1780 = vmatpush1.bf16.msra.mxu0 %v1474
        %1781 = vmatprep.subr.bf16.mxu0 %v1481
        %1782 = vmatpush1.bf16.msra.mxu0 %v1480
        %1783 = vmatprep.subr.bf16.mxu0 %v1487
        %1784 = vmatpush1.bf16.msra.mxu0 %v1486
        %1785 = vmatprep.subr.bf16.mxu0 %v1493
        %1786 = vmatpush1.bf16.msra.mxu0 %v1492
        %1787 = vmatprep.mubr.bf16.mxu0 %v1754
        %1788 = vmatmul.mubr.bf16.gmra.mrb[0].mxu0 %v1753
        %v1789 = vpop.f32.mrb[0].mxu0
        %v1790 = vadd.f32 %v1087, %v1789
        %v1791 = vpop.f32.mrb[0].mxu0
        %v1792 = vadd.f32 %v1091, %v1791
        %v1793 = vpop.f32.mrb[0].mxu0
        %v1794 = vpop.f32.mrb[0].mxu0
        %1795 = vdwg.mxu0
        %1796 = vmatprep.subr.bf16.mxu0 %v1405
        %1797 = vmatpush1.bf16.msra.mxu0 %v1404
        %1798 = vmatprep.subr.bf16.mxu0 %v1411
        %1799 = vmatpush1.bf16.msra.mxu0 %v1410
        %1800 = vmatprep.subr.bf16.mxu0 %v1417
        %1801 = vmatpush1.bf16.msra.mxu0 %v1416
        %1802 = vmatprep.subr.bf16.mxu0 %v1423
        %1803 = vmatpush1.bf16.msra.mxu0 %v1422
        %1804 = vmatprep.subr.bf16.mxu0 %v1429
        %1805 = vmatpush1.bf16.msra.mxu0 %v1428
        %1806 = vmatprep.subr.bf16.mxu0 %v1435
        %1807 = vmatpush1.bf16.msra.mxu0 %v1434
        %1808 = vmatprep.subr.bf16.mxu0 %v1441
        %1809 = vmatpush1.bf16.msra.mxu0 %v1440
        %1810 = vmatprep.subr.bf16.mxu0 %v1447
        %1811 = vmatpush1.bf16.msra.mxu0 %v1446
        %1812 = vmatprep.subr.bf16.mxu0 %v1453
        %1813 = vmatpush1.bf16.msra.mxu0 %v1452
        %1814 = vmatprep.subr.bf16.mxu0 %v1459
        %1815 = vmatpush1.bf16.msra.mxu0 %v1458
        %1816 = vmatprep.subr.bf16.mxu0 %v1465
        %1817 = vmatpush1.bf16.msra.mxu0 %v1464
        %1818 = vmatprep.subr.bf16.mxu0 %v1471
        %1819 = vmatpush1.bf16.msra.mxu0 %v1470
        %1820 = vmatprep.subr.bf16.mxu0 %v1477
        %1821 = vmatpush1.bf16.msra.mxu0 %v1476
        %1822 = vmatprep.subr.bf16.mxu0 %v1483
        %1823 = vmatpush1.bf16.msra.mxu0 %v1482
        %1824 = vmatprep.subr.bf16.mxu0 %v1489
        %1825 = vmatpush1.bf16.msra.mxu0 %v1488
        %1826 = vmatprep.subr.bf16.mxu0 %v1495
        %1827 = vmatpush1.bf16.msra.mxu0 %v1494
        %1828 = vmatprep.mubr.bf16.mxu0 %v1754
        %1829 = vmatmul.mubr.bf16.gmra.mrb[0].mxu0 %v1753
        %v1830 = vpop.f32.mrb[0].mxu0
        %v1831 = vadd.f32 %v1095, %v1830
        %v1832 = vpop.f32.mrb[0].mxu0
        %v1833 = vadd.f32 %v1099, %v1832
        %v1834 = vpop.f32.mrb[0].mxu0
        %v1835 = vpop.f32.mrb[0].mxu0
        %1836 = vdwg.mxu0
        %1837 = vmatprep.subr.bf16.mxu0 %v1407
        %1838 = vmatpush1.bf16.msra.mxu0 %v1406
        %1839 = vmatprep.subr.bf16.mxu0 %v1413
        %1840 = vmatpush1.bf16.msra.mxu0 %v1412
        %1841 = vmatprep.subr.bf16.mxu0 %v1419
        %1842 = vmatpush1.bf16.msra.mxu0 %v1418
        %1843 = vmatprep.subr.bf16.mxu0 %v1425
        %1844 = vmatpush1.bf16.msra.mxu0 %v1424
        %1845 = vmatprep.subr.bf16.mxu0 %v1431
        %1846 = vmatpush1.bf16.msra.mxu0 %v1430
        %1847 = vmatprep.subr.bf16.mxu0 %v1437
        %1848 = vmatpush1.bf16.msra.mxu0 %v1436
        %1849 = vmatprep.subr.bf16.mxu0 %v1443
        %1850 = vmatpush1.bf16.msra.mxu0 %v1442
        %1851 = vmatprep.subr.bf16.mxu0 %v1449
        %1852 = vmatpush1.bf16.msra.mxu0 %v1448
        %1853 = vmatprep.subr.bf16.mxu0 %v1455
        %1854 = vmatpush1.bf16.msra.mxu0 %v1454
        %1855 = vmatprep.subr.bf16.mxu0 %v1461
        %1856 = vmatpush1.bf16.msra.mxu0 %v1460
        %1857 = vmatprep.subr.bf16.mxu0 %v1467
        %1858 = vmatpush1.bf16.msra.mxu0 %v1466
        %1859 = vmatprep.subr.bf16.mxu0 %v1473
        %1860 = vmatpush1.bf16.msra.mxu0 %v1472
        %1861 = vmatprep.subr.bf16.mxu0 %v1479
        %1862 = vmatpush1.bf16.msra.mxu0 %v1478
        %1863 = vmatprep.subr.bf16.mxu0 %v1485
        %1864 = vmatpush1.bf16.msra.mxu0 %v1484
        %1865 = vmatprep.subr.bf16.mxu0 %v1491
        %1866 = vmatpush1.bf16.msra.mxu0 %v1490
        %1867 = vmatprep.subr.bf16.mxu0 %v1497
        %1868 = vmatpush1.bf16.msra.mxu0 %v1496
        %1869 = vmatprep.mubr.bf16.mxu0 %v1754
        %1870 = vmatmul.mubr.bf16.gmra.mrb[0].mxu0 %v1753
        %v1871 = vpop.f32.mrb[0].mxu0
        %v1872 = vadd.f32 %v1103, %v1871
        %v1873 = vpop.f32.mrb[0].mxu0
        %v1874 = vadd.f32 %v1107, %v1873
        %v1875 = vpop.f32.mrb[0].mxu0
        %v1876 = vpop.f32.mrb[0].mxu0
        %1877 = vdwg.mxu0
        %v1878 = vadd.f32 %v963, %v1790
        %v1879 = vadd.f32 %v965, %v1792
        %v1880 = vmul.f32 %v1878, 0.5
        %v1881 = vmul.f32 %v1879, 0.5
        %v1882 = vtanh.pop %v1880
        %v1883 = vtanh.pop %v1881
        %v1884 = vadd.f32 %v1882, 1.0
        %v1885 = vadd.f32 %v1883, 1.0
        %v1886 = vmul.f32 %v1884, 0.5
        %v1887 = vmul.f32 %v1885, 0.5
        %v1888 = vadd.f32 %v1016, %v1831
        %v1889 = vadd.f32 %v1018, %v1833
        %v1890 = vmul.f32 %v1888, 0.5
        %v1891 = vmul.f32 %v1889, 0.5
        %v1892 = vtanh.pop %v1890
        %v1893 = vtanh.pop %v1891
        %v1894 = vadd.f32 %v1892, 1.0
        %v1895 = vadd.f32 %v1893, 1.0
        %v1896 = vmul.f32 %v1894, 0.5
        %v1897 = vmul.f32 %v1895, 0.5
        %v1898 = vmul.f32 %v1886, %v1872
        %v1899 = vmul.f32 %v1887, %v1874
        %v1900 = vadd.f32 %v1069, %v1898
        %v1901 = vadd.f32 %v1071, %v1899
        %v1902 = vtanh.pop %v1900
        %v1903 = vtanh.pop %v1901
        %v1904 = vsub.f32 1.0, %v1896
        %v1905 = vsub.f32 1.0, %v1897
        %v1906 = vmul.f32 %v1904, %v1902
        %v1907 = vmul.f32 %v1905, %v1903
        %v1908 = vmul.f32 %v1896, %v1749
        %v1909 = vmul.f32 %v1897, %v1750
        %v1910 = vadd.f32 %v1906, %v1908
        %v1911 = vadd.f32 %v1907, %v1909
        %1912 = vst [vmem:[#allocation2 + $0x10] sm:$0xff] %v1910
        %1913 = vst [vmem:[#allocation2 + $0x18] sm:$0xff] %v1911
        %v1914 = vpack.c.bf16 %v1910, %v1910
        %v1915 = vpack.c.bf16 %v1911, %v1911
        %1916 = vmatprep.subr.bf16.mxu0 %v1403
        %1917 = vmatpush1.bf16.msra.mxu0 %v1402
        %1918 = vmatprep.subr.bf16.mxu0 %v1409
        %1919 = vmatpush1.bf16.msra.mxu0 %v1408
        %1920 = vmatprep.subr.bf16.mxu0 %v1415
        %1921 = vmatpush1.bf16.msra.mxu0 %v1414
        %1922 = vmatprep.subr.bf16.mxu0 %v1421
        %1923 = vmatpush1.bf16.msra.mxu0 %v1420
        %1924 = vmatprep.subr.bf16.mxu0 %v1427
        %1925 = vmatpush1.bf16.msra.mxu0 %v1426
        %1926 = vmatprep.subr.bf16.mxu0 %v1433
        %1927 = vmatpush1.bf16.msra.mxu0 %v1432
        %1928 = vmatprep.subr.bf16.mxu0 %v1439
        %1929 = vmatpush1.bf16.msra.mxu0 %v1438
        %1930 = vmatprep.subr.bf16.mxu0 %v1445
        %1931 = vmatpush1.bf16.msra.mxu0 %v1444
        %1932 = vmatprep.subr.bf16.mxu0 %v1451
        %1933 = vmatpush1.bf16.msra.mxu0 %v1450
        %1934 = vmatprep.subr.bf16.mxu0 %v1457
        %1935 = vmatpush1.bf16.msra.mxu0 %v1456
        %1936 = vmatprep.subr.bf16.mxu0 %v1463
        %1937 = vmatpush1.bf16.msra.mxu0 %v1462
        %1938 = vmatprep.subr.bf16.mxu0 %v1469
        %1939 = vmatpush1.bf16.msra.mxu0 %v1468
        %1940 = vmatprep.subr.bf16.mxu0 %v1475
        %1941 = vmatpush1.bf16.msra.mxu0 %v1474
        %1942 = vmatprep.subr.bf16.mxu0 %v1481
        %1943 = vmatpush1.bf16.msra.mxu0 %v1480
        %1944 = vmatprep.subr.bf16.mxu0 %v1487
        %1945 = vmatpush1.bf16.msra.mxu0 %v1486
        %1946 = vmatprep.subr.bf16.mxu0 %v1493
        %1947 = vmatpush1.bf16.msra.mxu0 %v1492
        %1948 = vmatprep.mubr.bf16.mxu0 %v1915
        %1949 = vmatmul.mubr.bf16.gmra.mrb[0].mxu0 %v1914
        %v1950 = vpop.f32.mrb[0].mxu0
        %v1951 = vadd.f32 %v1087, %v1950
        %v1952 = vpop.f32.mrb[0].mxu0
        %v1953 = vadd.f32 %v1091, %v1952
        %v1954 = vpop.f32.mrb[0].mxu0
        %v1955 = vpop.f32.mrb[0].mxu0
        %1956 = vdwg.mxu0
        %1957 = vmatprep.subr.bf16.mxu0 %v1405
        %1958 = vmatpush1.bf16.msra.mxu0 %v1404
        %1959 = vmatprep.subr.bf16.mxu0 %v1411
        %1960 = vmatpush1.bf16.msra.mxu0 %v1410
        %1961 = vmatprep.subr.bf16.mxu0 %v1417
        %1962 = vmatpush1.bf16.msra.mxu0 %v1416
        %1963 = vmatprep.subr.bf16.mxu0 %v1423
        %1964 = vmatpush1.bf16.msra.mxu0 %v1422
        %1965 = vmatprep.subr.bf16.mxu0 %v1429
        %1966 = vmatpush1.bf16.msra.mxu0 %v1428
        %1967 = vmatprep.subr.bf16.mxu0 %v1435
        %1968 = vmatpush1.bf16.msra.mxu0 %v1434
        %1969 = vmatprep.subr.bf16.mxu0 %v1441
        %1970 = vmatpush1.bf16.msra.mxu0 %v1440
        %1971 = vmatprep.subr.bf16.mxu0 %v1447
        %1972 = vmatpush1.bf16.msra.mxu0 %v1446
        %1973 = vmatprep.subr.bf16.mxu0 %v1453
        %1974 = vmatpush1.bf16.msra.mxu0 %v1452
        %1975 = vmatprep.subr.bf16.mxu0 %v1459
        %1976 = vmatpush1.bf16.msra.mxu0 %v1458
        %1977 = vmatprep.subr.bf16.mxu0 %v1465
        %1978 = vmatpush1.bf16.msra.mxu0 %v1464
        %1979 = vmatprep.subr.bf16.mxu0 %v1471
        %1980 = vmatpush1.bf16.msra.mxu0 %v1470
        %1981 = vmatprep.subr.bf16.mxu0 %v1477
        %1982 = vmatpush1.bf16.msra.mxu0 %v1476
        %1983 = vmatprep.subr.bf16.mxu0 %v1483
        %1984 = vmatpush1.bf16.msra.mxu0 %v1482
        %1985 = vmatprep.subr.bf16.mxu0 %v1489
        %1986 = vmatpush1.bf16.msra.mxu0 %v1488
        %1987 = vmatprep.subr.bf16.mxu0 %v1495
        %1988 = vmatpush1.bf16.msra.mxu0 %v1494
        %1989 = vmatprep.mubr.bf16.mxu0 %v1915
        %1990 = vmatmul.mubr.bf16.gmra.mrb[0].mxu0 %v1914
        %v1991 = vpop.f32.mrb[0].mxu0
        %v1992 = vadd.f32 %v1095, %v1991
        %v1993 = vpop.f32.mrb[0].mxu0
        %v1994 = vadd.f32 %v1099, %v1993
        %v1995 = vpop.f32.mrb[0].mxu0
        %v1996 = vpop.f32.mrb[0].mxu0
        %1997 = vdwg.mxu0
        %1998 = vmatprep.subr.bf16.mxu0 %v1407
        %1999 = vmatpush1.bf16.msra.mxu0 %v1406
        %2000 = vmatprep.subr.bf16.mxu0 %v1413
        %2001 = vmatpush1.bf16.msra.mxu0 %v1412
        %2002 = vmatprep.subr.bf16.mxu0 %v1419
        %2003 = vmatpush1.bf16.msra.mxu0 %v1418
        %2004 = vmatprep.subr.bf16.mxu0 %v1425
        %2005 = vmatpush1.bf16.msra.mxu0 %v1424
        %2006 = vmatprep.subr.bf16.mxu0 %v1431
        %2007 = vmatpush1.bf16.msra.mxu0 %v1430
        %2008 = vmatprep.subr.bf16.mxu0 %v1437
        %2009 = vmatpush1.bf16.msra.mxu0 %v1436
        %2010 = vmatprep.subr.bf16.mxu0 %v1443
        %2011 = vmatpush1.bf16.msra.mxu0 %v1442
        %2012 = vmatprep.subr.bf16.mxu0 %v1449
        %2013 = vmatpush1.bf16.msra.mxu0 %v1448
        %2014 = vmatprep.subr.bf16.mxu0 %v1455
        %2015 = vmatpush1.bf16.msra.mxu0 %v1454
        %2016 = vmatprep.subr.bf16.mxu0 %v1461
        %2017 = vmatpush1.bf16.msra.mxu0 %v1460
        %2018 = vmatprep.subr.bf16.mxu0 %v1467
        %2019 = vmatpush1.bf16.msra.mxu0 %v1466
        %2020 = vmatprep.subr.bf16.mxu0 %v1473
        %2021 = vmatpush1.bf16.msra.mxu0 %v1472
        %2022 = vmatprep.subr.bf16.mxu0 %v1479
        %2023 = vmatpush1.bf16.msra.mxu0 %v1478
        %2024 = vmatprep.subr.bf16.mxu0 %v1485
        %2025 = vmatpush1.bf16.msra.mxu0 %v1484
        %2026 = vmatprep.subr.bf16.mxu0 %v1491
        %2027 = vmatpush1.bf16.msra.mxu0 %v1490
        %2028 = vmatprep.subr.bf16.mxu0 %v1497
        %2029 = vmatpush1.bf16.msra.mxu0 %v1496
        %2030 = vmatprep.mubr.bf16.mxu0 %v1915
        %2031 = vmatmul.mubr.bf16.gmra.mrb[0].mxu0 %v1914
        %v2032 = vpop.f32.mrb[0].mxu0
        %v2033 = vadd.f32 %v1103, %v2032
        %v2034 = vpop.f32.mrb[0].mxu0
        %v2035 = vadd.f32 %v1107, %v2034
        %v2036 = vpop.f32.mrb[0].mxu0
        %v2037 = vpop.f32.mrb[0].mxu0
        %2038 = vdwg.mxu0
        %v2039 = vadd.f32 %v969, %v1951
        %v2040 = vadd.f32 %v971, %v1953
        %v2041 = vmul.f32 %v2039, 0.5
        %v2042 = vmul.f32 %v2040, 0.5
        %v2043 = vtanh.pop %v2041
        %v2044 = vtanh.pop %v2042
        %v2045 = vadd.f32 %v2043, 1.0
        %v2046 = vadd.f32 %v2044, 1.0
        %v2047 = vmul.f32 %v2045, 0.5
        %v2048 = vmul.f32 %v2046, 0.5
        %v2049 = vadd.f32 %v1022, %v1992
        %v2050 = vadd.f32 %v1024, %v1994
        %v2051 = vmul.f32 %v2049, 0.5
        %v2052 = vmul.f32 %v2050, 0.5
        %v2053 = vtanh.pop %v2051
        %v2054 = vtanh.pop %v2052
        %v2055 = vadd.f32 %v2053, 1.0
        %v2056 = vadd.f32 %v2054, 1.0
        %v2057 = vmul.f32 %v2055, 0.5
        %v2058 = vmul.f32 %v2056, 0.5
        %v2059 = vmul.f32 %v2047, %v2033
        %v2060 = vmul.f32 %v2048, %v2035
        %v2061 = vadd.f32 %v1075, %v2059
        %v2062 = vadd.f32 %v1077, %v2060
        %v2063 = vtanh.pop %v2061
        %v2064 = vtanh.pop %v2062
        %v2065 = vsub.f32 1.0, %v2057
        %v2066 = vsub.f32 1.0, %v2058
        %v2067 = vmul.f32 %v2065, %v2063
        %v2068 = vmul.f32 %v2066, %v2064
        %v2069 = vmul.f32 %v2057, %v1910
        %v2070 = vmul.f32 %v2058, %v1911
        %v2071 = vadd.f32 %v2067, %v2069
        %v2072 = vadd.f32 %v2068, %v2070
        %2073 = vst [vmem:[#allocation2 + $0x20] sm:$0xff] %v2071
        %2074 = vst [vmem:[#allocation2 + $0x28] sm:$0xff] %v2072
        %v2075 = vpack.c.bf16 %v2071, %v2071
        %v2076 = vpack.c.bf16 %v2072, %v2072
        %2077 = vmatprep.subr.bf16.mxu0 %v1403
        %2078 = vmatpush1.bf16.msra.mxu0 %v1402
        %2079 = vmatprep.subr.bf16.mxu0 %v1409
        %2080 = vmatpush1.bf16.msra.mxu0 %v1408
        %2081 = vmatprep.subr.bf16.mxu0 %v1415
        %2082 = vmatpush1.bf16.msra.mxu0 %v1414
        %2083 = vmatprep.subr.bf16.mxu0 %v1421
        %2084 = vmatpush1.bf16.msra.mxu0 %v1420
        %2085 = vmatprep.subr.bf16.mxu0 %v1427
        %2086 = vmatpush1.bf16.msra.mxu0 %v1426
        %2087 = vmatprep.subr.bf16.mxu0 %v1433
        %2088 = vmatpush1.bf16.msra.mxu0 %v1432
        %2089 = vmatprep.subr.bf16.mxu0 %v1439
        %2090 = vmatpush1.bf16.msra.mxu0 %v1438
        %2091 = vmatprep.subr.bf16.mxu0 %v1445
        %2092 = vmatpush1.bf16.msra.mxu0 %v1444
        %2093 = vmatprep.subr.bf16.mxu0 %v1451
        %2094 = vmatpush1.bf16.msra.mxu0 %v1450
        %2095 = vmatprep.subr.bf16.mxu0 %v1457
        %2096 = vmatpush1.bf16.msra.mxu0 %v1456
        %2097 = vmatprep.subr.bf16.mxu0 %v1463
        %2098 = vmatpush1.bf16.msra.mxu0 %v1462
        %2099 = vmatprep.subr.bf16.mxu0 %v1469
        %2100 = vmatpush1.bf16.msra.mxu0 %v1468
        %2101 = vmatprep.subr.bf16.mxu0 %v1475
        %2102 = vmatpush1.bf16.msra.mxu0 %v1474
        %2103 = vmatprep.subr.bf16.mxu0 %v1481
        %2104 = vmatpush1.bf16.msra.mxu0 %v1480
        %2105 = vmatprep.subr.bf16.mxu0 %v1487
        %2106 = vmatpush1.bf16.msra.mxu0 %v1486
        %2107 = vmatprep.subr.bf16.mxu0 %v1493
        %2108 = vmatpush1.bf16.msra.mxu0 %v1492
        %2109 = vmatprep.mubr.bf16.mxu0 %v2076
        %2110 = vmatmul.mubr.bf16.gmra.mrb[0].mxu0 %v2075
        %v2111 = vpop.f32.mrb[0].mxu0
        %v2112 = vadd.f32 %v1087, %v2111
        %v2113 = vpop.f32.mrb[0].mxu0
        %v2114 = vadd.f32 %v1091, %v2113
        %v2115 = vpop.f32.mrb[0].mxu0
        %v2116 = vpop.f32.mrb[0].mxu0
        %2117 = vdwg.mxu0
        %2118 = vmatprep.subr.bf16.mxu0 %v1405
        %2119 = vmatpush1.bf16.msra.mxu0 %v1404
        %2120 = vmatprep.subr.bf16.mxu0 %v1411
        %2121 = vmatpush1.bf16.msra.mxu0 %v1410
        %2122 = vmatprep.subr.bf16.mxu0 %v1417
        %2123 = vmatpush1.bf16.msra.mxu0 %v1416
        %2124 = vmatprep.subr.bf16.mxu0 %v1423
        %2125 = vmatpush1.bf16.msra.mxu0 %v1422
        %2126 = vmatprep.subr.bf16.mxu0 %v1429
        %2127 = vmatpush1.bf16.msra.mxu0 %v1428
        %2128 = vmatprep.subr.bf16.mxu0 %v1435
        %2129 = vmatpush1.bf16.msra.mxu0 %v1434
        %2130 = vmatprep.subr.bf16.mxu0 %v1441
        %2131 = vmatpush1.bf16.msra.mxu0 %v1440
        %2132 = vmatprep.subr.bf16.mxu0 %v1447
        %2133 = vmatpush1.bf16.msra.mxu0 %v1446
        %2134 = vmatprep.subr.bf16.mxu0 %v1453
        %2135 = vmatpush1.bf16.msra.mxu0 %v1452
        %2136 = vmatprep.subr.bf16.mxu0 %v1459
        %2137 = vmatpush1.bf16.msra.mxu0 %v1458
        %2138 = vmatprep.subr.bf16.mxu0 %v1465
        %2139 = vmatpush1.bf16.msra.mxu0 %v1464
        %2140 = vmatprep.subr.bf16.mxu0 %v1471
        %2141 = vmatpush1.bf16.msra.mxu0 %v1470
        %2142 = vmatprep.subr.bf16.mxu0 %v1477
        %2143 = vmatpush1.bf16.msra.mxu0 %v1476
        %2144 = vmatprep.subr.bf16.mxu0 %v1483
        %2145 = vmatpush1.bf16.msra.mxu0 %v1482
        %2146 = vmatprep.subr.bf16.mxu0 %v1489
        %2147 = vmatpush1.bf16.msra.mxu0 %v1488
        %2148 = vmatprep.subr.bf16.mxu0 %v1495
        %2149 = vmatpush1.bf16.msra.mxu0 %v1494
        %2150 = vmatprep.mubr.bf16.mxu0 %v2076
        %2151 = vmatmul.mubr.bf16.gmra.mrb[0].mxu0 %v2075
        %v2152 = vpop.f32.mrb[0].mxu0
        %v2153 = vadd.f32 %v1095, %v2152
        %v2154 = vpop.f32.mrb[0].mxu0
        %v2155 = vadd.f32 %v1099, %v2154
        %v2156 = vpop.f32.mrb[0].mxu0
        %v2157 = vpop.f32.mrb[0].mxu0
        %2158 = vdwg.mxu0
        %2159 = vmatprep.subr.bf16.mxu0 %v1407
        %2160 = vmatpush1.bf16.msra.mxu0 %v1406
        %2161 = vmatprep.subr.bf16.mxu0 %v1413
        %2162 = vmatpush1.bf16.msra.mxu0 %v1412
        %2163 = vmatprep.subr.bf16.mxu0 %v1419
        %2164 = vmatpush1.bf16.msra.mxu0 %v1418
        %2165 = vmatprep.subr.bf16.mxu0 %v1425
        %2166 = vmatpush1.bf16.msra.mxu0 %v1424
        %2167 = vmatprep.subr.bf16.mxu0 %v1431
        %2168 = vmatpush1.bf16.msra.mxu0 %v1430
        %2169 = vmatprep.subr.bf16.mxu0 %v1437
        %2170 = vmatpush1.bf16.msra.mxu0 %v1436
        %2171 = vmatprep.subr.bf16.mxu0 %v1443
        %2172 = vmatpush1.bf16.msra.mxu0 %v1442
        %2173 = vmatprep.subr.bf16.mxu0 %v1449
        %2174 = vmatpush1.bf16.msra.mxu0 %v1448
        %2175 = vmatprep.subr.bf16.mxu0 %v1455
        %2176 = vmatpush1.bf16.msra.mxu0 %v1454
        %2177 = vmatprep.subr.bf16.mxu0 %v1461
        %2178 = vmatpush1.bf16.msra.mxu0 %v1460
        %2179 = vmatprep.subr.bf16.mxu0 %v1467
        %2180 = vmatpush1.bf16.msra.mxu0 %v1466
        %2181 = vmatprep.subr.bf16.mxu0 %v1473
        %2182 = vmatpush1.bf16.msra.mxu0 %v1472
        %2183 = vmatprep.subr.bf16.mxu0 %v1479
        %2184 = vmatpush1.bf16.msra.mxu0 %v1478
        %2185 = vmatprep.subr.bf16.mxu0 %v1485
        %2186 = vmatpush1.bf16.msra.mxu0 %v1484
        %2187 = vmatprep.subr.bf16.mxu0 %v1491
        %2188 = vmatpush1.bf16.msra.mxu0 %v1490
        %2189 = vmatprep.subr.bf16.mxu0 %v1497
        %2190 = vmatpush1.bf16.msra.mxu0 %v1496
        %2191 = vmatprep.mubr.bf16.mxu0 %v2076
        %2192 = vmatmul.mubr.bf16.gmra.mrb[0].mxu0 %v2075
        %v2193 = vpop.f32.mrb[0].mxu0
        %v2194 = vadd.f32 %v1103, %v2193
        %v2195 = vpop.f32.mrb[0].mxu0
        %v2196 = vadd.f32 %v1107, %v2195
        %v2197 = vpop.f32.mrb[0].mxu0
        %v2198 = vpop.f32.mrb[0].mxu0
        %2199 = vdwg.mxu0
        %v2200 = vadd.f32 %v973, %v2112
        %v2201 = vadd.f32 %v975, %v2114
        %v2202 = vmul.f32 %v2200, 0.5
        %v2203 = vmul.f32 %v2201, 0.5
        %v2204 = vtanh.pop %v2202
        %v2205 = vtanh.pop %v2203
        %v2206 = vadd.f32 %v2204, 1.0
        %v2207 = vadd.f32 %v2205, 1.0
        %v2208 = vmul.f32 %v2206, 0.5
        %v2209 = vmul.f32 %v2207, 0.5
        %v2210 = vadd.f32 %v1026, %v2153
        %v2211 = vadd.f32 %v1028, %v2155
        %v2212 = vmul.f32 %v2210, 0.5
        %v2213 = vmul.f32 %v2211, 0.5
        %v2214 = vtanh.pop %v2212
        %v2215 = vtanh.pop %v2213
        %v2216 = vadd.f32 %v2214, 1.0
        %v2217 = vadd.f32 %v2215, 1.0
        %v2218 = vmul.f32 %v2216, 0.5
        %v2219 = vmul.f32 %v2217, 0.5
        %v2220 = vmul.f32 %v2208, %v2194
        %v2221 = vmul.f32 %v2209, %v2196
        %v2222 = vadd.f32 %v1079, %v2220
        %v2223 = vadd.f32 %v1081, %v2221
        %v2224 = vtanh.pop %v2222
        %v2225 = vtanh.pop %v2223
        %v2226 = vsub.f32 1.0, %v2218
        %v2227 = vsub.f32 1.0, %v2219
        %v2228 = vmul.f32 %v2226, %v2224
        %v2229 = vmul.f32 %v2227, %v2225
        %v2230 = vmul.f32 %v2218, %v2071
        %v2231 = vmul.f32 %v2219, %v2072
        %v2232 = vadd.f32 %v2228, %v2230
        %v2233 = vadd.f32 %v2229, %v2231
        %2234 = vst [vmem:[#allocation2 + $0x30] sm:$0xff] %v2232
        %2235 = vst [vmem:[#allocation2 + $0x38] sm:$0xff] %v2233
        %v2236 = vld [vmem:[#allocation2] sm:$0xff]
        %v2237 = vld [vmem:[#allocation2 + $0x8] sm:$0xff]
        %v2238 = vld [vmem:[#allocation2 + $0x10] sm:$0xff]
        %v2239 = vld [vmem:[#allocation2 + $0x18] sm:$0xff]
        %v2240 = vld [vmem:[#allocation2 + $0x20] sm:$0xff]
        %v2241 = vld [vmem:[#allocation2 + $0x28] sm:$0xff]
        %v2242 = vld [vmem:[#allocation2 + $0x30] sm:$0xff]
        %v2243 = vld [vmem:[#allocation2 + $0x38] sm:$0xff]
        %v2244 = vpack.c.bf16 %v2238, %v2236
        %v2245 = vpack.c.bf16 %v2239, %v2237
        %v2246 = vpack.c.bf16 %v2242, %v2240
        %v2247 = vpack.c.bf16 %v2243, %v2241
        %v2248 = vld [vmem:[#allocation6] sm:$0xff]
        %v2249 = vld [vmem:[#allocation6 + $0x8] sm:$0xff]
        %v2250 = vld [vmem:[#allocation6 + $0x10] sm:$0xff]
        %v2251 = vld [vmem:[#allocation6 + $0x18] sm:$0xff]
        %v2252 = vld [vmem:[#allocation6 + $0x20] sm:$0xff]
        %v2253 = vld [vmem:[#allocation6 + $0x28] sm:$0xff]
        %v2254 = vld [vmem:[#allocation6 + $0x30] sm:$0xff]
        %v2255 = vld [vmem:[#allocation6 + $0x38] sm:$0xff]
        %v2256 = vld [vmem:[#allocation6 + $0x40] sm:$0xff]
        %v2257 = vld [vmem:[#allocation6 + $0x48] sm:$0xff]
        %v2258 = vld [vmem:[#allocation6 + $0x50] sm:$0xff]
        %v2259 = vld [vmem:[#allocation6 + $0x58] sm:$0xff]
        %v2260 = vld [vmem:[#allocation6 + $0x60] sm:$0xff]
        %v2261 = vld [vmem:[#allocation6 + $0x68] sm:$0xff]
        %v2262 = vld [vmem:[#allocation6 + $0x70] sm:$0xff]
        %v2263 = vld [vmem:[#allocation6 + $0x78] sm:$0xff]
        %v2264 = vld [vmem:[#allocation6 + $0x80] sm:$0xff]
        %v2265 = vld [vmem:[#allocation6 + $0x88] sm:$0xff]
        %v2266 = vld [vmem:[#allocation6 + $0x90] sm:$0xff]
        %v2267 = vld [vmem:[#allocation6 + $0x98] sm:$0xff]
        %v2268 = vld [vmem:[#allocation6 + $0xa0] sm:$0xff]
        %v2269 = vld [vmem:[#allocation6 + $0xa8] sm:$0xff]
        %v2270 = vld [vmem:[#allocation6 + $0xb0] sm:$0xff]
        %v2271 = vld [vmem:[#allocation6 + $0xb8] sm:$0xff]
        %v2272 = vld [vmem:[#allocation6 + $0xc0] sm:$0xff]
        %v2273 = vld [vmem:[#allocation6 + $0xc8] sm:$0xff]
        %v2274 = vld [vmem:[#allocation6 + $0xd0] sm:$0xff]
        %v2275 = vld [vmem:[#allocation6 + $0xd8] sm:$0xff]
        %v2276 = vld [vmem:[#allocation6 + $0xe0] sm:$0xff]
        %v2277 = vld [vmem:[#allocation6 + $0xe8] sm:$0xff]
        %v2278 = vld [vmem:[#allocation6 + $0xf0] sm:$0xff]
        %v2279 = vld [vmem:[#allocation6 + $0xf8] sm:$0xff]
        %v2280 = vld [vmem:[#allocation6 + $0x100] sm:$0xff]
        %v2281 = vld [vmem:[#allocation6 + $0x108] sm:$0xff]
        %v2282 = vld [vmem:[#allocation6 + $0x110] sm:$0xff]
        %v2283 = vld [vmem:[#allocation6 + $0x118] sm:$0xff]
        %v2284 = vld [vmem:[#allocation6 + $0x120] sm:$0xff]
        %v2285 = vld [vmem:[#allocation6 + $0x128] sm:$0xff]
        %v2286 = vld [vmem:[#allocation6 + $0x130] sm:$0xff]
        %v2287 = vld [vmem:[#allocation6 + $0x138] sm:$0xff]
        %v2288 = vld [vmem:[#allocation6 + $0x140] sm:$0xff]
        %v2289 = vld [vmem:[#allocation6 + $0x148] sm:$0xff]
        %v2290 = vld [vmem:[#allocation6 + $0x150] sm:$0xff]
        %v2291 = vld [vmem:[#allocation6 + $0x158] sm:$0xff]
        %v2292 = vld [vmem:[#allocation6 + $0x160] sm:$0xff]
        %v2293 = vld [vmem:[#allocation6 + $0x168] sm:$0xff]
        %v2294 = vld [vmem:[#allocation6 + $0x170] sm:$0xff]
        %v2295 = vld [vmem:[#allocation6 + $0x178] sm:$0xff]
        %v2296 = vld [vmem:[#allocation6 + $0x180] sm:$0xff]
        %v2297 = vld [vmem:[#allocation6 + $0x188] sm:$0xff]
        %v2298 = vld [vmem:[#allocation6 + $0x190] sm:$0xff]
        %v2299 = vld [vmem:[#allocation6 + $0x198] sm:$0xff]
        %v2300 = vld [vmem:[#allocation6 + $0x1a0] sm:$0xff]
        %v2301 = vld [vmem:[#allocation6 + $0x1a8] sm:$0xff]
        %v2302 = vld [vmem:[#allocation6 + $0x1b0] sm:$0xff]
        %v2303 = vld [vmem:[#allocation6 + $0x1b8] sm:$0xff]
        %v2304 = vld [vmem:[#allocation6 + $0x1c0] sm:$0xff]
        %v2305 = vld [vmem:[#allocation6 + $0x1c8] sm:$0xff]
        %v2306 = vld [vmem:[#allocation6 + $0x1d0] sm:$0xff]
        %v2307 = vld [vmem:[#allocation6 + $0x1d8] sm:$0xff]
        %v2308 = vld [vmem:[#allocation6 + $0x1e0] sm:$0xff]
        %v2309 = vld [vmem:[#allocation6 + $0x1e8] sm:$0xff]
        %v2310 = vld [vmem:[#allocation6 + $0x1f0] sm:$0xff]
        %v2311 = vld [vmem:[#allocation6 + $0x1f8] sm:$0xff]
        %v2312 = vld [vmem:[#allocation6 + $0x200] sm:$0xff]
        %v2313 = vld [vmem:[#allocation6 + $0x208] sm:$0xff]
        %v2314 = vld [vmem:[#allocation6 + $0x210] sm:$0xff]
        %v2315 = vld [vmem:[#allocation6 + $0x218] sm:$0xff]
        %v2316 = vld [vmem:[#allocation6 + $0x220] sm:$0xff]
        %v2317 = vld [vmem:[#allocation6 + $0x228] sm:$0xff]
        %v2318 = vld [vmem:[#allocation6 + $0x230] sm:$0xff]
        %v2319 = vld [vmem:[#allocation6 + $0x238] sm:$0xff]
        %v2320 = vld [vmem:[#allocation6 + $0x240] sm:$0xff]
        %v2321 = vld [vmem:[#allocation6 + $0x248] sm:$0xff]
        %v2322 = vld [vmem:[#allocation6 + $0x250] sm:$0xff]
        %v2323 = vld [vmem:[#allocation6 + $0x258] sm:$0xff]
        %v2324 = vld [vmem:[#allocation6 + $0x260] sm:$0xff]
        %v2325 = vld [vmem:[#allocation6 + $0x268] sm:$0xff]
        %v2326 = vld [vmem:[#allocation6 + $0x270] sm:$0xff]
        %v2327 = vld [vmem:[#allocation6 + $0x278] sm:$0xff]
        %v2328 = vld [vmem:[#allocation6 + $0x280] sm:$0xff]
        %v2329 = vld [vmem:[#allocation6 + $0x288] sm:$0xff]
        %v2330 = vld [vmem:[#allocation6 + $0x290] sm:$0xff]
        %v2331 = vld [vmem:[#allocation6 + $0x298] sm:$0xff]
        %v2332 = vld [vmem:[#allocation6 + $0x2a0] sm:$0xff]
        %v2333 = vld [vmem:[#allocation6 + $0x2a8] sm:$0xff]
        %v2334 = vld [vmem:[#allocation6 + $0x2b0] sm:$0xff]
        %v2335 = vld [vmem:[#allocation6 + $0x2b8] sm:$0xff]
        %v2336 = vld [vmem:[#allocation6 + $0x2c0] sm:$0xff]
        %v2337 = vld [vmem:[#allocation6 + $0x2c8] sm:$0xff]
        %v2338 = vld [vmem:[#allocation6 + $0x2d0] sm:$0xff]
        %v2339 = vld [vmem:[#allocation6 + $0x2d8] sm:$0xff]
        %v2340 = vld [vmem:[#allocation6 + $0x2e0] sm:$0xff]
        %v2341 = vld [vmem:[#allocation6 + $0x2e8] sm:$0xff]
        %v2342 = vld [vmem:[#allocation6 + $0x2f0] sm:$0xff]
        %v2343 = vld [vmem:[#allocation6 + $0x2f8] sm:$0xff]
        %v2344 = vld [vmem:[#allocation8] sm:$0xff]
        %v2345 = vld [vmem:[#allocation8 + $0x8] sm:$0xff]
        %v2346 = vld [vmem:[#allocation8 + $0x10] sm:$0xff]
        %v2347 = vld [vmem:[#allocation8 + $0x18] sm:$0xff]
        %v2348 = vld [vmem:[#allocation8 + $0x20] sm:$0xff]
        %v2349 = vld [vmem:[#allocation8 + $0x28] sm:$0xff]
        %v2350 = vld [vmem:[#allocation8 + $0x30] sm:$0xff]
        %v2351 = vld [vmem:[#allocation8 + $0x38] sm:$0xff]
        %v2352 = vld [vmem:[#allocation8 + $0x40] sm:$0xff]
        %v2353 = vld [vmem:[#allocation8 + $0x48] sm:$0xff]
        %v2354 = vld [vmem:[#allocation8 + $0x50] sm:$0xff]
        %v2355 = vld [vmem:[#allocation8 + $0x58] sm:$0xff]
        %v2356 = vld [vmem:[#allocation8 + $0x60] sm:$0xff]
        %v2357 = vld [vmem:[#allocation8 + $0x68] sm:$0xff]
        %v2358 = vld [vmem:[#allocation8 + $0x70] sm:$0xff]
        %v2359 = vld [vmem:[#allocation8 + $0x78] sm:$0xff]
        %v2360 = vld [vmem:[#allocation8 + $0x80] sm:$0xff]
        %v2361 = vld [vmem:[#allocation8 + $0x88] sm:$0xff]
        %v2362 = vld [vmem:[#allocation8 + $0x90] sm:$0xff]
        %v2363 = vld [vmem:[#allocation8 + $0x98] sm:$0xff]
        %v2364 = vld [vmem:[#allocation8 + $0xa0] sm:$0xff]
        %v2365 = vld [vmem:[#allocation8 + $0xa8] sm:$0xff]
        %v2366 = vld [vmem:[#allocation8 + $0xb0] sm:$0xff]
        %v2367 = vld [vmem:[#allocation8 + $0xb8] sm:$0xff]
        %v2368 = vld [vmem:[#allocation8 + $0xc0] sm:$0xff]
        %v2369 = vld [vmem:[#allocation8 + $0xc8] sm:$0xff]
        %v2370 = vld [vmem:[#allocation8 + $0xd0] sm:$0xff]
        %v2371 = vld [vmem:[#allocation8 + $0xd8] sm:$0xff]
        %v2372 = vld [vmem:[#allocation8 + $0xe0] sm:$0xff]
        %v2373 = vld [vmem:[#allocation8 + $0xe8] sm:$0xff]
        %v2374 = vld [vmem:[#allocation8 + $0xf0] sm:$0xff]
        %v2375 = vld [vmem:[#allocation8 + $0xf8] sm:$0xff]
        %v2376 = vld [vmem:[#allocation8 + $0x100] sm:$0xff]
        %v2377 = vld [vmem:[#allocation8 + $0x108] sm:$0xff]
        %v2378 = vld [vmem:[#allocation8 + $0x110] sm:$0xff]
        %v2379 = vld [vmem:[#allocation8 + $0x118] sm:$0xff]
        %v2380 = vld [vmem:[#allocation8 + $0x120] sm:$0xff]
        %v2381 = vld [vmem:[#allocation8 + $0x128] sm:$0xff]
        %v2382 = vld [vmem:[#allocation8 + $0x130] sm:$0xff]
        %v2383 = vld [vmem:[#allocation8 + $0x138] sm:$0xff]
        %v2384 = vld [vmem:[#allocation8 + $0x140] sm:$0xff]
        %v2385 = vld [vmem:[#allocation8 + $0x148] sm:$0xff]
        %v2386 = vld [vmem:[#allocation8 + $0x150] sm:$0xff]
        %v2387 = vld [vmem:[#allocation8 + $0x158] sm:$0xff]
        %v2388 = vld [vmem:[#allocation8 + $0x160] sm:$0xff]
        %v2389 = vld [vmem:[#allocation8 + $0x168] sm:$0xff]
        %v2390 = vld [vmem:[#allocation8 + $0x170] sm:$0xff]
        %v2391 = vld [vmem:[#allocation8 + $0x178] sm:$0xff]
        %v2392 = vld [vmem:[#allocation8 + $0x180] sm:$0xff]
        %v2393 = vld [vmem:[#allocation8 + $0x188] sm:$0xff]
        %v2394 = vld [vmem:[#allocation8 + $0x190] sm:$0xff]
        %v2395 = vld [vmem:[#allocation8 + $0x198] sm:$0xff]
        %v2396 = vld [vmem:[#allocation8 + $0x1a0] sm:$0xff]
        %v2397 = vld [vmem:[#allocation8 + $0x1a8] sm:$0xff]
        %v2398 = vld [vmem:[#allocation8 + $0x1b0] sm:$0xff]
        %v2399 = vld [vmem:[#allocation8 + $0x1b8] sm:$0xff]
        %v2400 = vld [vmem:[#allocation8 + $0x1c0] sm:$0xff]
        %v2401 = vld [vmem:[#allocation8 + $0x1c8] sm:$0xff]
        %v2402 = vld [vmem:[#allocation8 + $0x1d0] sm:$0xff]
        %v2403 = vld [vmem:[#allocation8 + $0x1d8] sm:$0xff]
        %v2404 = vld [vmem:[#allocation8 + $0x1e0] sm:$0xff]
        %v2405 = vld [vmem:[#allocation8 + $0x1e8] sm:$0xff]
        %v2406 = vld [vmem:[#allocation8 + $0x1f0] sm:$0xff]
        %v2407 = vld [vmem:[#allocation8 + $0x1f8] sm:$0xff]
        %v2408 = vld [vmem:[#allocation8 + $0x200] sm:$0xff]
        %v2409 = vld [vmem:[#allocation8 + $0x208] sm:$0xff]
        %v2410 = vld [vmem:[#allocation8 + $0x210] sm:$0xff]
        %v2411 = vld [vmem:[#allocation8 + $0x218] sm:$0xff]
        %v2412 = vld [vmem:[#allocation8 + $0x220] sm:$0xff]
        %v2413 = vld [vmem:[#allocation8 + $0x228] sm:$0xff]
        %v2414 = vld [vmem:[#allocation8 + $0x230] sm:$0xff]
        %v2415 = vld [vmem:[#allocation8 + $0x238] sm:$0xff]
        %v2416 = vld [vmem:[#allocation8 + $0x240] sm:$0xff]
        %v2417 = vld [vmem:[#allocation8 + $0x248] sm:$0xff]
        %v2418 = vld [vmem:[#allocation8 + $0x250] sm:$0xff]
        %v2419 = vld [vmem:[#allocation8 + $0x258] sm:$0xff]
        %v2420 = vld [vmem:[#allocation8 + $0x260] sm:$0xff]
        %v2421 = vld [vmem:[#allocation8 + $0x268] sm:$0xff]
        %v2422 = vld [vmem:[#allocation8 + $0x270] sm:$0xff]
        %v2423 = vld [vmem:[#allocation8 + $0x278] sm:$0xff]
        %v2424 = vld [vmem:[#allocation8 + $0x280] sm:$0xff]
        %v2425 = vld [vmem:[#allocation8 + $0x288] sm:$0xff]
        %v2426 = vld [vmem:[#allocation8 + $0x290] sm:$0xff]
        %v2427 = vld [vmem:[#allocation8 + $0x298] sm:$0xff]
        %v2428 = vld [vmem:[#allocation8 + $0x2a0] sm:$0xff]
        %v2429 = vld [vmem:[#allocation8 + $0x2a8] sm:$0xff]
        %v2430 = vld [vmem:[#allocation8 + $0x2b0] sm:$0xff]
        %v2431 = vld [vmem:[#allocation8 + $0x2b8] sm:$0xff]
        %v2432 = vld [vmem:[#allocation8 + $0x2c0] sm:$0xff]
        %v2433 = vld [vmem:[#allocation8 + $0x2c8] sm:$0xff]
        %v2434 = vld [vmem:[#allocation8 + $0x2d0] sm:$0xff]
        %v2435 = vld [vmem:[#allocation8 + $0x2d8] sm:$0xff]
        %v2436 = vld [vmem:[#allocation8 + $0x2e0] sm:$0xff]
        %v2437 = vld [vmem:[#allocation8 + $0x2e8] sm:$0xff]
        %v2438 = vld [vmem:[#allocation8 + $0x2f0] sm:$0xff]
        %v2439 = vld [vmem:[#allocation8 + $0x2f8] sm:$0xff]
        %v2440 = vld [vmem:[%s7] sm:$0x3f]
        %v2441 = vld [vmem:[%s8] sm:$0x3f]
        %v2443 = vlaneseq
        %v2444 = vshrl.u32 %v2443, 7
        %v2445 = vsub.s32 0, %v2444
        %v2446 = vrot.slane %v2440, %v2445
        %v2447 = vlaneseq
        %v2448 = vshrl.u32 %v2447, 7
        %v2449 = vsub.s32 1, %v2448
        %v2450 = vrot.slane %v2440, %v2449
        %v2451 = vlaneseq
        %v2452 = vshrl.u32 %v2451, 7
        %v2453 = vsub.s32 2, %v2452
        %v2454 = vrot.slane %v2440, %v2453
        %v2455 = vlaneseq
        %v2456 = vshrl.u32 %v2455, 7
        %v2457 = vsub.s32 3, %v2456
        %v2458 = vrot.slane %v2440, %v2457
        %v2459 = vlaneseq
        %v2460 = vshrl.u32 %v2459, 7
        %v2461 = vsub.s32 4, %v2460
        %v2462 = vrot.slane %v2440, %v2461
        %v2463 = vlaneseq
        %v2464 = vshrl.u32 %v2463, 7
        %v2465 = vsub.s32 5, %v2464
        %v2466 = vrot.slane %v2440, %v2465
        %v2569 = vunpack.c.l.b16 %v2248
        %v2570 = vunpack.c.h.b16 %v2248
        %v2571 = vunpack.c.l.b16 %v2249
        %v2572 = vunpack.c.h.b16 %v2249
        %v2573 = vunpack.c.l.b16 %v2250
        %v2574 = vunpack.c.h.b16 %v2250
        %v2575 = vunpack.c.l.b16 %v2251
        %v2576 = vunpack.c.h.b16 %v2251
        %v2577 = vunpack.c.l.b16 %v2252
        %v2578 = vunpack.c.h.b16 %v2252
        %v2579 = vunpack.c.l.b16 %v2253
        %v2580 = vunpack.c.h.b16 %v2253
        %v2581 = vunpack.c.l.b16 %v2254
        %v2582 = vunpack.c.h.b16 %v2254
        %v2583 = vunpack.c.l.b16 %v2255
        %v2584 = vunpack.c.h.b16 %v2255
        %v2585 = vunpack.c.l.b16 %v2256
        %v2586 = vunpack.c.h.b16 %v2256
        %v2587 = vunpack.c.l.b16 %v2257
        %v2588 = vunpack.c.h.b16 %v2257
        %v2589 = vunpack.c.l.b16 %v2258
        %v2590 = vunpack.c.h.b16 %v2258
        %v2591 = vunpack.c.l.b16 %v2259
        %v2592 = vunpack.c.h.b16 %v2259
        %v2593 = vunpack.c.l.b16 %v2260
        %v2594 = vunpack.c.h.b16 %v2260
        %v2595 = vunpack.c.l.b16 %v2261
        %v2596 = vunpack.c.h.b16 %v2261
        %v2597 = vunpack.c.l.b16 %v2262
        %v2598 = vunpack.c.h.b16 %v2262
        %v2599 = vunpack.c.l.b16 %v2263
        %v2600 = vunpack.c.h.b16 %v2263
        %v2601 = vunpack.c.l.b16 %v2264
        %v2602 = vunpack.c.h.b16 %v2264
        %v2603 = vunpack.c.l.b16 %v2265
        %v2604 = vunpack.c.h.b16 %v2265
        %v2605 = vunpack.c.l.b16 %v2266
        %v2606 = vunpack.c.h.b16 %v2266
        %v2607 = vunpack.c.l.b16 %v2267
        %v2608 = vunpack.c.h.b16 %v2267
        %v2609 = vunpack.c.l.b16 %v2268
        %v2610 = vunpack.c.h.b16 %v2268
        %v2611 = vunpack.c.l.b16 %v2269
        %v2612 = vunpack.c.h.b16 %v2269
        %v2613 = vunpack.c.l.b16 %v2270
        %v2614 = vunpack.c.h.b16 %v2270
        %v2615 = vunpack.c.l.b16 %v2271
        %v2616 = vunpack.c.h.b16 %v2271
        %v2617 = vunpack.c.l.b16 %v2272
        %v2618 = vunpack.c.h.b16 %v2272
        %v2619 = vunpack.c.l.b16 %v2273
        %v2620 = vunpack.c.h.b16 %v2273
        %v2621 = vunpack.c.l.b16 %v2274
        %v2622 = vunpack.c.h.b16 %v2274
        %v2623 = vunpack.c.l.b16 %v2275
        %v2624 = vunpack.c.h.b16 %v2275
        %v2625 = vunpack.c.l.b16 %v2276
        %v2626 = vunpack.c.h.b16 %v2276
        %v2627 = vunpack.c.l.b16 %v2277
        %v2628 = vunpack.c.h.b16 %v2277
        %v2629 = vunpack.c.l.b16 %v2278
        %v2630 = vunpack.c.h.b16 %v2278
        %v2631 = vunpack.c.l.b16 %v2279
        %v2632 = vunpack.c.h.b16 %v2279
        %v2633 = vunpack.c.l.b16 %v2280
        %v2634 = vunpack.c.h.b16 %v2280
        %v2635 = vunpack.c.l.b16 %v2281
        %v2636 = vunpack.c.h.b16 %v2281
        %v2637 = vunpack.c.l.b16 %v2282
        %v2638 = vunpack.c.h.b16 %v2282
        %v2639 = vunpack.c.l.b16 %v2283
        %v2640 = vunpack.c.h.b16 %v2283
        %v2641 = vunpack.c.l.b16 %v2284
        %v2642 = vunpack.c.h.b16 %v2284
        %v2643 = vunpack.c.l.b16 %v2285
        %v2644 = vunpack.c.h.b16 %v2285
        %v2645 = vunpack.c.l.b16 %v2286
        %v2646 = vunpack.c.h.b16 %v2286
        %v2647 = vunpack.c.l.b16 %v2287
        %v2648 = vunpack.c.h.b16 %v2287
        %v2649 = vunpack.c.l.b16 %v2288
        %v2650 = vunpack.c.h.b16 %v2288
        %v2651 = vunpack.c.l.b16 %v2289
        %v2652 = vunpack.c.h.b16 %v2289
        %v2653 = vunpack.c.l.b16 %v2290
        %v2654 = vunpack.c.h.b16 %v2290
        %v2655 = vunpack.c.l.b16 %v2291
        %v2656 = vunpack.c.h.b16 %v2291
        %v2657 = vunpack.c.l.b16 %v2292
        %v2658 = vunpack.c.h.b16 %v2292
        %v2659 = vunpack.c.l.b16 %v2293
        %v2660 = vunpack.c.h.b16 %v2293
        %v2661 = vunpack.c.l.b16 %v2294
        %v2662 = vunpack.c.h.b16 %v2294
        %v2663 = vunpack.c.l.b16 %v2295
        %v2664 = vunpack.c.h.b16 %v2295
        %v2665 = vunpack.c.l.b16 %v2296
        %v2666 = vunpack.c.h.b16 %v2296
        %v2667 = vunpack.c.l.b16 %v2297
        %v2668 = vunpack.c.h.b16 %v2297
        %v2669 = vunpack.c.l.b16 %v2298
        %v2670 = vunpack.c.h.b16 %v2298
        %v2671 = vunpack.c.l.b16 %v2299
        %v2672 = vunpack.c.h.b16 %v2299
        %v2673 = vunpack.c.l.b16 %v2300
        %v2674 = vunpack.c.h.b16 %v2300
        %v2675 = vunpack.c.l.b16 %v2301
        %v2676 = vunpack.c.h.b16 %v2301
        %v2677 = vunpack.c.l.b16 %v2302
        %v2678 = vunpack.c.h.b16 %v2302
        %v2679 = vunpack.c.l.b16 %v2303
        %v2680 = vunpack.c.h.b16 %v2303
        %v2681 = vunpack.c.l.b16 %v2304
        %v2682 = vunpack.c.h.b16 %v2304
        %v2683 = vunpack.c.l.b16 %v2305
        %v2684 = vunpack.c.h.b16 %v2305
        %v2685 = vunpack.c.l.b16 %v2306
        %v2686 = vunpack.c.h.b16 %v2306
        %v2687 = vunpack.c.l.b16 %v2307
        %v2688 = vunpack.c.h.b16 %v2307
        %v2689 = vunpack.c.l.b16 %v2308
        %v2690 = vunpack.c.h.b16 %v2308
        %v2691 = vunpack.c.l.b16 %v2309
        %v2692 = vunpack.c.h.b16 %v2309
        %v2693 = vunpack.c.l.b16 %v2310
        %v2694 = vunpack.c.h.b16 %v2310
        %v2695 = vunpack.c.l.b16 %v2311
        %v2696 = vunpack.c.h.b16 %v2311
        %v2697 = vunpack.c.l.b16 %v2312
        %v2698 = vunpack.c.h.b16 %v2312
        %v2699 = vunpack.c.l.b16 %v2313
        %v2700 = vunpack.c.h.b16 %v2313
        %v2701 = vunpack.c.l.b16 %v2314
        %v2702 = vunpack.c.h.b16 %v2314
        %v2703 = vunpack.c.l.b16 %v2315
        %v2704 = vunpack.c.h.b16 %v2315
        %v2705 = vunpack.c.l.b16 %v2316
        %v2706 = vunpack.c.h.b16 %v2316
        %v2707 = vunpack.c.l.b16 %v2317
        %v2708 = vunpack.c.h.b16 %v2317
        %v2709 = vunpack.c.l.b16 %v2318
        %v2710 = vunpack.c.h.b16 %v2318
        %v2711 = vunpack.c.l.b16 %v2319
        %v2712 = vunpack.c.h.b16 %v2319
        %v2713 = vunpack.c.l.b16 %v2320
        %v2714 = vunpack.c.h.b16 %v2320
        %v2715 = vunpack.c.l.b16 %v2321
        %v2716 = vunpack.c.h.b16 %v2321
        %v2717 = vunpack.c.l.b16 %v2322
        %v2718 = vunpack.c.h.b16 %v2322
        %v2719 = vunpack.c.l.b16 %v2323
        %v2720 = vunpack.c.h.b16 %v2323
        %v2721 = vunpack.c.l.b16 %v2324
        %v2722 = vunpack.c.h.b16 %v2324
        %v2723 = vunpack.c.l.b16 %v2325
        %v2724 = vunpack.c.h.b16 %v2325
        %v2725 = vunpack.c.l.b16 %v2326
        %v2726 = vunpack.c.h.b16 %v2326
        %v2727 = vunpack.c.l.b16 %v2327
        %v2728 = vunpack.c.h.b16 %v2327
        %v2729 = vunpack.c.l.b16 %v2328
        %v2730 = vunpack.c.h.b16 %v2328
        %v2731 = vunpack.c.l.b16 %v2329
        %v2732 = vunpack.c.h.b16 %v2329
        %v2733 = vunpack.c.l.b16 %v2330
        %v2734 = vunpack.c.h.b16 %v2330
        %v2735 = vunpack.c.l.b16 %v2331
        %v2736 = vunpack.c.h.b16 %v2331
        %v2737 = vunpack.c.l.b16 %v2332
        %v2738 = vunpack.c.h.b16 %v2332
        %v2739 = vunpack.c.l.b16 %v2333
        %v2740 = vunpack.c.h.b16 %v2333
        %v2741 = vunpack.c.l.b16 %v2334
        %v2742 = vunpack.c.h.b16 %v2334
        %v2743 = vunpack.c.l.b16 %v2335
        %v2744 = vunpack.c.h.b16 %v2335
        %v2745 = vunpack.c.l.b16 %v2336
        %v2746 = vunpack.c.h.b16 %v2336
        %v2747 = vunpack.c.l.b16 %v2337
        %v2748 = vunpack.c.h.b16 %v2337
        %v2749 = vunpack.c.l.b16 %v2338
        %v2750 = vunpack.c.h.b16 %v2338
        %v2751 = vunpack.c.l.b16 %v2339
        %v2752 = vunpack.c.h.b16 %v2339
        %v2753 = vunpack.c.l.b16 %v2340
        %v2754 = vunpack.c.h.b16 %v2340
        %v2755 = vunpack.c.l.b16 %v2341
        %v2756 = vunpack.c.h.b16 %v2341
        %v2757 = vunpack.c.l.b16 %v2342
        %v2758 = vunpack.c.h.b16 %v2342
        %v2759 = vunpack.c.l.b16 %v2343
        %v2760 = vunpack.c.h.b16 %v2343
        %v2761 = vpack.c.b16 %v2575, %v2569
        %v2762 = vpack.c.b16 %v2576, %v2570
        %v2763 = vpack.c.b16 %v2577, %v2571
        %v2764 = vpack.c.b16 %v2578, %v2572
        %v2765 = vpack.c.b16 %v2579, %v2573
        %v2766 = vpack.c.b16 %v2580, %v2574
        %v2767 = vpack.c.b16 %v2587, %v2581
        %v2768 = vpack.c.b16 %v2588, %v2582
        %v2769 = vpack.c.b16 %v2589, %v2583
        %v2770 = vpack.c.b16 %v2590, %v2584
        %v2771 = vpack.c.b16 %v2591, %v2585
        %v2772 = vpack.c.b16 %v2592, %v2586
        %v2773 = vpack.c.b16 %v2599, %v2593
        %v2774 = vpack.c.b16 %v2600, %v2594
        %v2775 = vpack.c.b16 %v2601, %v2595
        %v2776 = vpack.c.b16 %v2602, %v2596
        %v2777 = vpack.c.b16 %v2603, %v2597
        %v2778 = vpack.c.b16 %v2604, %v2598
        %v2779 = vpack.c.b16 %v2611, %v2605
        %v2780 = vpack.c.b16 %v2612, %v2606
        %v2781 = vpack.c.b16 %v2613, %v2607
        %v2782 = vpack.c.b16 %v2614, %v2608
        %v2783 = vpack.c.b16 %v2615, %v2609
        %v2784 = vpack.c.b16 %v2616, %v2610
        %v2785 = vpack.c.b16 %v2623, %v2617
        %v2786 = vpack.c.b16 %v2624, %v2618
        %v2787 = vpack.c.b16 %v2625, %v2619
        %v2788 = vpack.c.b16 %v2626, %v2620
        %v2789 = vpack.c.b16 %v2627, %v2621
        %v2790 = vpack.c.b16 %v2628, %v2622
        %v2791 = vpack.c.b16 %v2635, %v2629
        %v2792 = vpack.c.b16 %v2636, %v2630
        %v2793 = vpack.c.b16 %v2637, %v2631
        %v2794 = vpack.c.b16 %v2638, %v2632
        %v2795 = vpack.c.b16 %v2639, %v2633
        %v2796 = vpack.c.b16 %v2640, %v2634
        %v2797 = vpack.c.b16 %v2647, %v2641
        %v2798 = vpack.c.b16 %v2648, %v2642
        %v2799 = vpack.c.b16 %v2649, %v2643
        %v2800 = vpack.c.b16 %v2650, %v2644
        %v2801 = vpack.c.b16 %v2651, %v2645
        %v2802 = vpack.c.b16 %v2652, %v2646
        %v2803 = vpack.c.b16 %v2659, %v2653
        %v2804 = vpack.c.b16 %v2660, %v2654
        %v2805 = vpack.c.b16 %v2661, %v2655
        %v2806 = vpack.c.b16 %v2662, %v2656
        %v2807 = vpack.c.b16 %v2663, %v2657
        %v2808 = vpack.c.b16 %v2664, %v2658
        %v2809 = vpack.c.b16 %v2671, %v2665
        %v2810 = vpack.c.b16 %v2672, %v2666
        %v2811 = vpack.c.b16 %v2673, %v2667
        %v2812 = vpack.c.b16 %v2674, %v2668
        %v2813 = vpack.c.b16 %v2675, %v2669
        %v2814 = vpack.c.b16 %v2676, %v2670
        %v2815 = vpack.c.b16 %v2683, %v2677
        %v2816 = vpack.c.b16 %v2684, %v2678
        %v2817 = vpack.c.b16 %v2685, %v2679
        %v2818 = vpack.c.b16 %v2686, %v2680
        %v2819 = vpack.c.b16 %v2687, %v2681
        %v2820 = vpack.c.b16 %v2688, %v2682
        %v2821 = vpack.c.b16 %v2695, %v2689
        %v2822 = vpack.c.b16 %v2696, %v2690
        %v2823 = vpack.c.b16 %v2697, %v2691
        %v2824 = vpack.c.b16 %v2698, %v2692
        %v2825 = vpack.c.b16 %v2699, %v2693
        %v2826 = vpack.c.b16 %v2700, %v2694
        %v2827 = vpack.c.b16 %v2707, %v2701
        %v2828 = vpack.c.b16 %v2708, %v2702
        %v2829 = vpack.c.b16 %v2709, %v2703
        %v2830 = vpack.c.b16 %v2710, %v2704
        %v2831 = vpack.c.b16 %v2711, %v2705
        %v2832 = vpack.c.b16 %v2712, %v2706
        %v2833 = vpack.c.b16 %v2719, %v2713
        %v2834 = vpack.c.b16 %v2720, %v2714
        %v2835 = vpack.c.b16 %v2721, %v2715
        %v2836 = vpack.c.b16 %v2722, %v2716
        %v2837 = vpack.c.b16 %v2723, %v2717
        %v2838 = vpack.c.b16 %v2724, %v2718
        %v2839 = vpack.c.b16 %v2731, %v2725
        %v2840 = vpack.c.b16 %v2732, %v2726
        %v2841 = vpack.c.b16 %v2733, %v2727
        %v2842 = vpack.c.b16 %v2734, %v2728
        %v2843 = vpack.c.b16 %v2735, %v2729
        %v2844 = vpack.c.b16 %v2736, %v2730
        %v2845 = vpack.c.b16 %v2743, %v2737
        %v2846 = vpack.c.b16 %v2744, %v2738
        %v2847 = vpack.c.b16 %v2745, %v2739
        %v2848 = vpack.c.b16 %v2746, %v2740
        %v2849 = vpack.c.b16 %v2747, %v2741
        %v2850 = vpack.c.b16 %v2748, %v2742
        %v2851 = vpack.c.b16 %v2755, %v2749
        %v2852 = vpack.c.b16 %v2756, %v2750
        %v2853 = vpack.c.b16 %v2757, %v2751
        %v2854 = vpack.c.b16 %v2758, %v2752
        %v2855 = vpack.c.b16 %v2759, %v2753
        %v2856 = vpack.c.b16 %v2760, %v2754
        %2953 = vmatprep.subr.bf16.mxu0 %v2762
        %2954 = vmatpush1.bf16.msra.mxu0 %v2761
        %2955 = vmatprep.subr.bf16.mxu0 %v2768
        %2956 = vmatpush1.bf16.msra.mxu0 %v2767
        %2957 = vmatprep.subr.bf16.mxu0 %v2774
        %2958 = vmatpush1.bf16.msra.mxu0 %v2773
        %2959 = vmatprep.subr.bf16.mxu0 %v2780
        %2960 = vmatpush1.bf16.msra.mxu0 %v2779
        %2961 = vmatprep.subr.bf16.mxu0 %v2786
        %2962 = vmatpush1.bf16.msra.mxu0 %v2785
        %2963 = vmatprep.subr.bf16.mxu0 %v2792
        %2964 = vmatpush1.bf16.msra.mxu0 %v2791
        %2965 = vmatprep.subr.bf16.mxu0 %v2798
        %2966 = vmatpush1.bf16.msra.mxu0 %v2797
        %2967 = vmatprep.subr.bf16.mxu0 %v2804
        %2968 = vmatpush1.bf16.msra.mxu0 %v2803
        %2969 = vmatprep.subr.bf16.mxu0 %v2810
        %2970 = vmatpush1.bf16.msra.mxu0 %v2809
        %2971 = vmatprep.subr.bf16.mxu0 %v2816
        %2972 = vmatpush1.bf16.msra.mxu0 %v2815
        %2973 = vmatprep.subr.bf16.mxu0 %v2822
        %2974 = vmatpush1.bf16.msra.mxu0 %v2821
        %2975 = vmatprep.subr.bf16.mxu0 %v2828
        %2976 = vmatpush1.bf16.msra.mxu0 %v2827
        %2977 = vmatprep.subr.bf16.mxu0 %v2834
        %2978 = vmatpush1.bf16.msra.mxu0 %v2833
        %2979 = vmatprep.subr.bf16.mxu0 %v2840
        %2980 = vmatpush1.bf16.msra.mxu0 %v2839
        %2981 = vmatprep.subr.bf16.mxu0 %v2846
        %2982 = vmatpush1.bf16.msra.mxu0 %v2845
        %2983 = vmatprep.subr.bf16.mxu0 %v2852
        %2984 = vmatpush1.bf16.msra.mxu0 %v2851
        %2985 = vmatprep.mubr.bf16.mxu0 %v2245
        %2986 = vmatmul.mubr.bf16.gmra.mrb[0].mxu0 %v2244
        %v2987 = vpop.f32.mrb[0].mxu0
        %v2988 = vadd.f32 %v2446, %v2987
        %v2989 = vpop.f32.mrb[0].mxu0
        %v2990 = vadd.f32 %v2450, %v2989
        %v2991 = vpop.f32.mrb[0].mxu0
        %v2992 = vadd.f32 %v2446, %v2991
        %v2993 = vpop.f32.mrb[0].mxu0
        %v2994 = vadd.f32 %v2450, %v2993
        %2995 = vmatprep.mubr.bf16.mxu0 %v2247
        %2996 = vmatmul.mubr.bf16.gmra.mrb[0].mxu0 %v2246
        %v2997 = vpop.f32.mrb[0].mxu0
        %v2998 = vadd.f32 %v2446, %v2997
        %v2999 = vpop.f32.mrb[0].mxu0
        %v3000 = vadd.f32 %v2450, %v2999
        %v3001 = vpop.f32.mrb[0].mxu0
        %v3002 = vadd.f32 %v2446, %v3001
        %v3003 = vpop.f32.mrb[0].mxu0
        %v3004 = vadd.f32 %v2450, %v3003
        %3005 = vdwg.mxu0
        %3006 = vmatprep.subr.bf16.mxu0 %v2764
        %3007 = vmatpush1.bf16.msra.mxu0 %v2763
        %3008 = vmatprep.subr.bf16.mxu0 %v2770
        %3009 = vmatpush1.bf16.msra.mxu0 %v2769
        %3010 = vmatprep.subr.bf16.mxu0 %v2776
        %3011 = vmatpush1.bf16.msra.mxu0 %v2775
        %3012 = vmatprep.subr.bf16.mxu0 %v2782
        %3013 = vmatpush1.bf16.msra.mxu0 %v2781
        %3014 = vmatprep.subr.bf16.mxu0 %v2788
        %3015 = vmatpush1.bf16.msra.mxu0 %v2787
        %3016 = vmatprep.subr.bf16.mxu0 %v2794
        %3017 = vmatpush1.bf16.msra.mxu0 %v2793
        %3018 = vmatprep.subr.bf16.mxu0 %v2800
        %3019 = vmatpush1.bf16.msra.mxu0 %v2799
        %3020 = vmatprep.subr.bf16.mxu0 %v2806
        %3021 = vmatpush1.bf16.msra.mxu0 %v2805
        %3022 = vmatprep.subr.bf16.mxu0 %v2812
        %3023 = vmatpush1.bf16.msra.mxu0 %v2811
        %3024 = vmatprep.subr.bf16.mxu0 %v2818
        %3025 = vmatpush1.bf16.msra.mxu0 %v2817
        %3026 = vmatprep.subr.bf16.mxu0 %v2824
        %3027 = vmatpush1.bf16.msra.mxu0 %v2823
        %3028 = vmatprep.subr.bf16.mxu0 %v2830
        %3029 = vmatpush1.bf16.msra.mxu0 %v2829
        %3030 = vmatprep.subr.bf16.mxu0 %v2836
        %3031 = vmatpush1.bf16.msra.mxu0 %v2835
        %3032 = vmatprep.subr.bf16.mxu0 %v2842
        %3033 = vmatpush1.bf16.msra.mxu0 %v2841
        %3034 = vmatprep.subr.bf16.mxu0 %v2848
        %3035 = vmatpush1.bf16.msra.mxu0 %v2847
        %3036 = vmatprep.subr.bf16.mxu0 %v2854
        %3037 = vmatpush1.bf16.msra.mxu0 %v2853
        %3038 = vmatprep.mubr.bf16.mxu0 %v2245
        %3039 = vmatmul.mubr.bf16.gmra.mrb[0].mxu0 %v2244
        %v3040 = vpop.f32.mrb[0].mxu0
        %v3041 = vadd.f32 %v2454, %v3040
        %v3042 = vpop.f32.mrb[0].mxu0
        %v3043 = vadd.f32 %v2458, %v3042
        %v3044 = vpop.f32.mrb[0].mxu0
        %v3045 = vadd.f32 %v2454, %v3044
        %v3046 = vpop.f32.mrb[0].mxu0
        %v3047 = vadd.f32 %v2458, %v3046
        %3048 = vmatprep.mubr.bf16.mxu0 %v2247
        %3049 = vmatmul.mubr.bf16.gmra.mrb[0].mxu0 %v2246
        %v3050 = vpop.f32.mrb[0].mxu0
        %v3051 = vadd.f32 %v2454, %v3050
        %v3052 = vpop.f32.mrb[0].mxu0
        %v3053 = vadd.f32 %v2458, %v3052
        %v3054 = vpop.f32.mrb[0].mxu0
        %v3055 = vadd.f32 %v2454, %v3054
        %v3056 = vpop.f32.mrb[0].mxu0
        %v3057 = vadd.f32 %v2458, %v3056
        %3058 = vdwg.mxu0
        %3059 = vmatprep.subr.bf16.mxu0 %v2766
        %3060 = vmatpush1.bf16.msra.mxu0 %v2765
        %3061 = vmatprep.subr.bf16.mxu0 %v2772
        %3062 = vmatpush1.bf16.msra.mxu0 %v2771
        %3063 = vmatprep.subr.bf16.mxu0 %v2778
        %3064 = vmatpush1.bf16.msra.mxu0 %v2777
        %3065 = vmatprep.subr.bf16.mxu0 %v2784
        %3066 = vmatpush1.bf16.msra.mxu0 %v2783
        %3067 = vmatprep.subr.bf16.mxu0 %v2790
        %3068 = vmatpush1.bf16.msra.mxu0 %v2789
        %3069 = vmatprep.subr.bf16.mxu0 %v2796
        %3070 = vmatpush1.bf16.msra.mxu0 %v2795
        %3071 = vmatprep.subr.bf16.mxu0 %v2802
        %3072 = vmatpush1.bf16.msra.mxu0 %v2801
        %3073 = vmatprep.subr.bf16.mxu0 %v2808
        %3074 = vmatpush1.bf16.msra.mxu0 %v2807
        %3075 = vmatprep.subr.bf16.mxu0 %v2814
        %3076 = vmatpush1.bf16.msra.mxu0 %v2813
        %3077 = vmatprep.subr.bf16.mxu0 %v2820
        %3078 = vmatpush1.bf16.msra.mxu0 %v2819
        %3079 = vmatprep.subr.bf16.mxu0 %v2826
        %3080 = vmatpush1.bf16.msra.mxu0 %v2825
        %3081 = vmatprep.subr.bf16.mxu0 %v2832
        %3082 = vmatpush1.bf16.msra.mxu0 %v2831
        %3083 = vmatprep.subr.bf16.mxu0 %v2838
        %3084 = vmatpush1.bf16.msra.mxu0 %v2837
        %3085 = vmatprep.subr.bf16.mxu0 %v2844
        %3086 = vmatpush1.bf16.msra.mxu0 %v2843
        %3087 = vmatprep.subr.bf16.mxu0 %v2850
        %3088 = vmatpush1.bf16.msra.mxu0 %v2849
        %3089 = vmatprep.subr.bf16.mxu0 %v2856
        %3090 = vmatpush1.bf16.msra.mxu0 %v2855
        %3091 = vmatprep.mubr.bf16.mxu0 %v2245
        %3092 = vmatmul.mubr.bf16.gmra.mrb[0].mxu0 %v2244
        %v3093 = vpop.f32.mrb[0].mxu0
        %v3094 = vadd.f32 %v2462, %v3093
        %v3095 = vpop.f32.mrb[0].mxu0
        %v3096 = vadd.f32 %v2466, %v3095
        %v3097 = vpop.f32.mrb[0].mxu0
        %v3098 = vadd.f32 %v2462, %v3097
        %v3099 = vpop.f32.mrb[0].mxu0
        %v3100 = vadd.f32 %v2466, %v3099
        %3101 = vmatprep.mubr.bf16.mxu0 %v2247
        %3102 = vmatmul.mubr.bf16.gmra.mrb[0].mxu0 %v2246
        %v3103 = vpop.f32.mrb[0].mxu0
        %v3104 = vadd.f32 %v2462, %v3103
        %v3105 = vpop.f32.mrb[0].mxu0
        %v3106 = vadd.f32 %v2466, %v3105
        %v3107 = vpop.f32.mrb[0].mxu0
        %v3108 = vadd.f32 %v2462, %v3107
        %v3109 = vpop.f32.mrb[0].mxu0
        %v3110 = vadd.f32 %v2466, %v3109
        %3111 = vdwg.mxu0
        %v3113 = vlaneseq
        %v3114 = vshrl.u32 %v3113, 7
        %v3115 = vsub.s32 0, %v3114
        %v3116 = vrot.slane %v2441, %v3115
        %v3117 = vlaneseq
        %v3118 = vshrl.u32 %v3117, 7
        %v3119 = vsub.s32 1, %v3118
        %v3120 = vrot.slane %v2441, %v3119
        %v3121 = vlaneseq
        %v3122 = vshrl.u32 %v3121, 7
        %v3123 = vsub.s32 2, %v3122
        %v3124 = vrot.slane %v2441, %v3123
        %v3125 = vlaneseq
        %v3126 = vshrl.u32 %v3125, 7
        %v3127 = vsub.s32 3, %v3126
        %v3128 = vrot.slane %v2441, %v3127
        %v3129 = vlaneseq
        %v3130 = vshrl.u32 %v3129, 7
        %v3131 = vsub.s32 4, %v3130
        %v3132 = vrot.slane %v2441, %v3131
        %v3133 = vlaneseq
        %v3134 = vshrl.u32 %v3133, 7
        %v3135 = vsub.s32 5, %v3134
        %v3136 = vrot.slane %v2441, %v3135
        %v3239 = vunpack.c.l.b16 %v2344
        %v3240 = vunpack.c.h.b16 %v2344
        %v3241 = vunpack.c.l.b16 %v2345
        %v3242 = vunpack.c.h.b16 %v2345
        %v3243 = vunpack.c.l.b16 %v2346
        %v3244 = vunpack.c.h.b16 %v2346
        %v3245 = vunpack.c.l.b16 %v2347
        %v3246 = vunpack.c.h.b16 %v2347
        %v3247 = vunpack.c.l.b16 %v2348
        %v3248 = vunpack.c.h.b16 %v2348
        %v3249 = vunpack.c.l.b16 %v2349
        %v3250 = vunpack.c.h.b16 %v2349
        %v3251 = vunpack.c.l.b16 %v2350
        %v3252 = vunpack.c.h.b16 %v2350
        %v3253 = vunpack.c.l.b16 %v2351
        %v3254 = vunpack.c.h.b16 %v2351
        %v3255 = vunpack.c.l.b16 %v2352
        %v3256 = vunpack.c.h.b16 %v2352
        %v3257 = vunpack.c.l.b16 %v2353
        %v3258 = vunpack.c.h.b16 %v2353
        %v3259 = vunpack.c.l.b16 %v2354
        %v3260 = vunpack.c.h.b16 %v2354
        %v3261 = vunpack.c.l.b16 %v2355
        %v3262 = vunpack.c.h.b16 %v2355
        %v3263 = vunpack.c.l.b16 %v2356
        %v3264 = vunpack.c.h.b16 %v2356
        %v3265 = vunpack.c.l.b16 %v2357
        %v3266 = vunpack.c.h.b16 %v2357
        %v3267 = vunpack.c.l.b16 %v2358
        %v3268 = vunpack.c.h.b16 %v2358
        %v3269 = vunpack.c.l.b16 %v2359
        %v3270 = vunpack.c.h.b16 %v2359
        %v3271 = vunpack.c.l.b16 %v2360
        %v3272 = vunpack.c.h.b16 %v2360
        %v3273 = vunpack.c.l.b16 %v2361
        %v3274 = vunpack.c.h.b16 %v2361
        %v3275 = vunpack.c.l.b16 %v2362
        %v3276 = vunpack.c.h.b16 %v2362
        %v3277 = vunpack.c.l.b16 %v2363
        %v3278 = vunpack.c.h.b16 %v2363
        %v3279 = vunpack.c.l.b16 %v2364
        %v3280 = vunpack.c.h.b16 %v2364
        %v3281 = vunpack.c.l.b16 %v2365
        %v3282 = vunpack.c.h.b16 %v2365
        %v3283 = vunpack.c.l.b16 %v2366
        %v3284 = vunpack.c.h.b16 %v2366
        %v3285 = vunpack.c.l.b16 %v2367
        %v3286 = vunpack.c.h.b16 %v2367
        %v3287 = vunpack.c.l.b16 %v2368
        %v3288 = vunpack.c.h.b16 %v2368
        %v3289 = vunpack.c.l.b16 %v2369
        %v3290 = vunpack.c.h.b16 %v2369
        %v3291 = vunpack.c.l.b16 %v2370
        %v3292 = vunpack.c.h.b16 %v2370
        %v3293 = vunpack.c.l.b16 %v2371
        %v3294 = vunpack.c.h.b16 %v2371
        %v3295 = vunpack.c.l.b16 %v2372
        %v3296 = vunpack.c.h.b16 %v2372
        %v3297 = vunpack.c.l.b16 %v2373
        %v3298 = vunpack.c.h.b16 %v2373
        %v3299 = vunpack.c.l.b16 %v2374
        %v3300 = vunpack.c.h.b16 %v2374
        %v3301 = vunpack.c.l.b16 %v2375
        %v3302 = vunpack.c.h.b16 %v2375
        %v3303 = vunpack.c.l.b16 %v2376
        %v3304 = vunpack.c.h.b16 %v2376
        %v3305 = vunpack.c.l.b16 %v2377
        %v3306 = vunpack.c.h.b16 %v2377
        %v3307 = vunpack.c.l.b16 %v2378
        %v3308 = vunpack.c.h.b16 %v2378
        %v3309 = vunpack.c.l.b16 %v2379
        %v3310 = vunpack.c.h.b16 %v2379
        %v3311 = vunpack.c.l.b16 %v2380
        %v3312 = vunpack.c.h.b16 %v2380
        %v3313 = vunpack.c.l.b16 %v2381
        %v3314 = vunpack.c.h.b16 %v2381
        %v3315 = vunpack.c.l.b16 %v2382
        %v3316 = vunpack.c.h.b16 %v2382
        %v3317 = vunpack.c.l.b16 %v2383
        %v3318 = vunpack.c.h.b16 %v2383
        %v3319 = vunpack.c.l.b16 %v2384
        %v3320 = vunpack.c.h.b16 %v2384
        %v3321 = vunpack.c.l.b16 %v2385
        %v3322 = vunpack.c.h.b16 %v2385
        %v3323 = vunpack.c.l.b16 %v2386
        %v3324 = vunpack.c.h.b16 %v2386
        %v3325 = vunpack.c.l.b16 %v2387
        %v3326 = vunpack.c.h.b16 %v2387
        %v3327 = vunpack.c.l.b16 %v2388
        %v3328 = vunpack.c.h.b16 %v2388
        %v3329 = vunpack.c.l.b16 %v2389
        %v3330 = vunpack.c.h.b16 %v2389
        %v3331 = vunpack.c.l.b16 %v2390
        %v3332 = vunpack.c.h.b16 %v2390
        %v3333 = vunpack.c.l.b16 %v2391
        %v3334 = vunpack.c.h.b16 %v2391
        %v3335 = vunpack.c.l.b16 %v2392
        %v3336 = vunpack.c.h.b16 %v2392
        %v3337 = vunpack.c.l.b16 %v2393
        %v3338 = vunpack.c.h.b16 %v2393
        %v3339 = vunpack.c.l.b16 %v2394
        %v3340 = vunpack.c.h.b16 %v2394
        %v3341 = vunpack.c.l.b16 %v2395
        %v3342 = vunpack.c.h.b16 %v2395
        %v3343 = vunpack.c.l.b16 %v2396
        %v3344 = vunpack.c.h.b16 %v2396
        %v3345 = vunpack.c.l.b16 %v2397
        %v3346 = vunpack.c.h.b16 %v2397
        %v3347 = vunpack.c.l.b16 %v2398
        %v3348 = vunpack.c.h.b16 %v2398
        %v3349 = vunpack.c.l.b16 %v2399
        %v3350 = vunpack.c.h.b16 %v2399
        %v3351 = vunpack.c.l.b16 %v2400
        %v3352 = vunpack.c.h.b16 %v2400
        %v3353 = vunpack.c.l.b16 %v2401
        %v3354 = vunpack.c.h.b16 %v2401
        %v3355 = vunpack.c.l.b16 %v2402
        %v3356 = vunpack.c.h.b16 %v2402
        %v3357 = vunpack.c.l.b16 %v2403
        %v3358 = vunpack.c.h.b16 %v2403
        %v3359 = vunpack.c.l.b16 %v2404
        %v3360 = vunpack.c.h.b16 %v2404
        %v3361 = vunpack.c.l.b16 %v2405
        %v3362 = vunpack.c.h.b16 %v2405
        %v3363 = vunpack.c.l.b16 %v2406
        %v3364 = vunpack.c.h.b16 %v2406
        %v3365 = vunpack.c.l.b16 %v2407
        %v3366 = vunpack.c.h.b16 %v2407
        %v3367 = vunpack.c.l.b16 %v2408
        %v3368 = vunpack.c.h.b16 %v2408
        %v3369 = vunpack.c.l.b16 %v2409
        %v3370 = vunpack.c.h.b16 %v2409
        %v3371 = vunpack.c.l.b16 %v2410
        %v3372 = vunpack.c.h.b16 %v2410
        %v3373 = vunpack.c.l.b16 %v2411
        %v3374 = vunpack.c.h.b16 %v2411
        %v3375 = vunpack.c.l.b16 %v2412
        %v3376 = vunpack.c.h.b16 %v2412
        %v3377 = vunpack.c.l.b16 %v2413
        %v3378 = vunpack.c.h.b16 %v2413
        %v3379 = vunpack.c.l.b16 %v2414
        %v3380 = vunpack.c.h.b16 %v2414
        %v3381 = vunpack.c.l.b16 %v2415
        %v3382 = vunpack.c.h.b16 %v2415
        %v3383 = vunpack.c.l.b16 %v2416
        %v3384 = vunpack.c.h.b16 %v2416
        %v3385 = vunpack.c.l.b16 %v2417
        %v3386 = vunpack.c.h.b16 %v2417
        %v3387 = vunpack.c.l.b16 %v2418
        %v3388 = vunpack.c.h.b16 %v2418
        %v3389 = vunpack.c.l.b16 %v2419
        %v3390 = vunpack.c.h.b16 %v2419
        %v3391 = vunpack.c.l.b16 %v2420
        %v3392 = vunpack.c.h.b16 %v2420
        %v3393 = vunpack.c.l.b16 %v2421
        %v3394 = vunpack.c.h.b16 %v2421
        %v3395 = vunpack.c.l.b16 %v2422
        %v3396 = vunpack.c.h.b16 %v2422
        %v3397 = vunpack.c.l.b16 %v2423
        %v3398 = vunpack.c.h.b16 %v2423
        %v3399 = vunpack.c.l.b16 %v2424
        %v3400 = vunpack.c.h.b16 %v2424
        %v3401 = vunpack.c.l.b16 %v2425
        %v3402 = vunpack.c.h.b16 %v2425
        %v3403 = vunpack.c.l.b16 %v2426
        %v3404 = vunpack.c.h.b16 %v2426
        %v3405 = vunpack.c.l.b16 %v2427
        %v3406 = vunpack.c.h.b16 %v2427
        %v3407 = vunpack.c.l.b16 %v2428
        %v3408 = vunpack.c.h.b16 %v2428
        %v3409 = vunpack.c.l.b16 %v2429
        %v3410 = vunpack.c.h.b16 %v2429
        %v3411 = vunpack.c.l.b16 %v2430
        %v3412 = vunpack.c.h.b16 %v2430
        %v3413 = vunpack.c.l.b16 %v2431
        %v3414 = vunpack.c.h.b16 %v2431
        %v3415 = vunpack.c.l.b16 %v2432
        %v3416 = vunpack.c.h.b16 %v2432
        %v3417 = vunpack.c.l.b16 %v2433
        %v3418 = vunpack.c.h.b16 %v2433
        %v3419 = vunpack.c.l.b16 %v2434
        %v3420 = vunpack.c.h.b16 %v2434
        %v3421 = vunpack.c.l.b16 %v2435
        %v3422 = vunpack.c.h.b16 %v2435
        %v3423 = vunpack.c.l.b16 %v2436
        %v3424 = vunpack.c.h.b16 %v2436
        %v3425 = vunpack.c.l.b16 %v2437
        %v3426 = vunpack.c.h.b16 %v2437
        %v3427 = vunpack.c.l.b16 %v2438
        %v3428 = vunpack.c.h.b16 %v2438
        %v3429 = vunpack.c.l.b16 %v2439
        %v3430 = vunpack.c.h.b16 %v2439
        %v3431 = vpack.c.b16 %v3245, %v3239
        %v3432 = vpack.c.b16 %v3246, %v3240
        %v3433 = vpack.c.b16 %v3247, %v3241
        %v3434 = vpack.c.b16 %v3248, %v3242
        %v3435 = vpack.c.b16 %v3249, %v3243
        %v3436 = vpack.c.b16 %v3250, %v3244
        %v3437 = vpack.c.b16 %v3257, %v3251
        %v3438 = vpack.c.b16 %v3258, %v3252
        %v3439 = vpack.c.b16 %v3259, %v3253
        %v3440 = vpack.c.b16 %v3260, %v3254
        %v3441 = vpack.c.b16 %v3261, %v3255
        %v3442 = vpack.c.b16 %v3262, %v3256
        %v3443 = vpack.c.b16 %v3269, %v3263
        %v3444 = vpack.c.b16 %v3270, %v3264
        %v3445 = vpack.c.b16 %v3271, %v3265
        %v3446 = vpack.c.b16 %v3272, %v3266
        %v3447 = vpack.c.b16 %v3273, %v3267
        %v3448 = vpack.c.b16 %v3274, %v3268
        %v3449 = vpack.c.b16 %v3281, %v3275
        %v3450 = vpack.c.b16 %v3282, %v3276
        %v3451 = vpack.c.b16 %v3283, %v3277
        %v3452 = vpack.c.b16 %v3284, %v3278
        %v3453 = vpack.c.b16 %v3285, %v3279
        %v3454 = vpack.c.b16 %v3286, %v3280
        %v3455 = vpack.c.b16 %v3293, %v3287
        %v3456 = vpack.c.b16 %v3294, %v3288
        %v3457 = vpack.c.b16 %v3295, %v3289
        %v3458 = vpack.c.b16 %v3296, %v3290
        %v3459 = vpack.c.b16 %v3297, %v3291
        %v3460 = vpack.c.b16 %v3298, %v3292
        %v3461 = vpack.c.b16 %v3305, %v3299
        %v3462 = vpack.c.b16 %v3306, %v3300
        %v3463 = vpack.c.b16 %v3307, %v3301
        %v3464 = vpack.c.b16 %v3308, %v3302
        %v3465 = vpack.c.b16 %v3309, %v3303
        %v3466 = vpack.c.b16 %v3310, %v3304
        %v3467 = vpack.c.b16 %v3317, %v3311
        %v3468 = vpack.c.b16 %v3318, %v3312
        %v3469 = vpack.c.b16 %v3319, %v3313
        %v3470 = vpack.c.b16 %v3320, %v3314
        %v3471 = vpack.c.b16 %v3321, %v3315
        %v3472 = vpack.c.b16 %v3322, %v3316
        %v3473 = vpack.c.b16 %v3329, %v3323
        %v3474 = vpack.c.b16 %v3330, %v3324
        %v3475 = vpack.c.b16 %v3331, %v3325
        %v3476 = vpack.c.b16 %v3332, %v3326
        %v3477 = vpack.c.b16 %v3333, %v3327
        %v3478 = vpack.c.b16 %v3334, %v3328
        %v3479 = vpack.c.b16 %v3341, %v3335
        %v3480 = vpack.c.b16 %v3342, %v3336
        %v3481 = vpack.c.b16 %v3343, %v3337
        %v3482 = vpack.c.b16 %v3344, %v3338
        %v3483 = vpack.c.b16 %v3345, %v3339
        %v3484 = vpack.c.b16 %v3346, %v3340
        %v3485 = vpack.c.b16 %v3353, %v3347
        %v3486 = vpack.c.b16 %v3354, %v3348
        %v3487 = vpack.c.b16 %v3355, %v3349
        %v3488 = vpack.c.b16 %v3356, %v3350
        %v3489 = vpack.c.b16 %v3357, %v3351
        %v3490 = vpack.c.b16 %v3358, %v3352
        %v3491 = vpack.c.b16 %v3365, %v3359
        %v3492 = vpack.c.b16 %v3366, %v3360
        %v3493 = vpack.c.b16 %v3367, %v3361
        %v3494 = vpack.c.b16 %v3368, %v3362
        %v3495 = vpack.c.b16 %v3369, %v3363
        %v3496 = vpack.c.b16 %v3370, %v3364
        %v3497 = vpack.c.b16 %v3377, %v3371
        %v3498 = vpack.c.b16 %v3378, %v3372
        %v3499 = vpack.c.b16 %v3379, %v3373
        %v3500 = vpack.c.b16 %v3380, %v3374
        %v3501 = vpack.c.b16 %v3381, %v3375
        %v3502 = vpack.c.b16 %v3382, %v3376
        %v3503 = vpack.c.b16 %v3389, %v3383
        %v3504 = vpack.c.b16 %v3390, %v3384
        %v3505 = vpack.c.b16 %v3391, %v3385
        %v3506 = vpack.c.b16 %v3392, %v3386
        %v3507 = vpack.c.b16 %v3393, %v3387
        %v3508 = vpack.c.b16 %v3394, %v3388
        %v3509 = vpack.c.b16 %v3401, %v3395
        %v3510 = vpack.c.b16 %v3402, %v3396
        %v3511 = vpack.c.b16 %v3403, %v3397
        %v3512 = vpack.c.b16 %v3404, %v3398
        %v3513 = vpack.c.b16 %v3405, %v3399
        %v3514 = vpack.c.b16 %v3406, %v3400
        %v3515 = vpack.c.b16 %v3413, %v3407
        %v3516 = vpack.c.b16 %v3414, %v3408
        %v3517 = vpack.c.b16 %v3415, %v3409
        %v3518 = vpack.c.b16 %v3416, %v3410
        %v3519 = vpack.c.b16 %v3417, %v3411
        %v3520 = vpack.c.b16 %v3418, %v3412
        %v3521 = vpack.c.b16 %v3425, %v3419
        %v3522 = vpack.c.b16 %v3426, %v3420
        %v3523 = vpack.c.b16 %v3427, %v3421
        %v3524 = vpack.c.b16 %v3428, %v3422
        %v3525 = vpack.c.b16 %v3429, %v3423
        %v3526 = vpack.c.b16 %v3430, %v3424
        %3623 = vmatprep.subr.bf16.mxu0 %v3432
        %3624 = vmatpush1.bf16.msra.mxu0 %v3431
        %3625 = vmatprep.subr.bf16.mxu0 %v3438
        %3626 = vmatpush1.bf16.msra.mxu0 %v3437
        %3627 = vmatprep.subr.bf16.mxu0 %v3444
        %3628 = vmatpush1.bf16.msra.mxu0 %v3443
        %3629 = vmatprep.subr.bf16.mxu0 %v3450
        %3630 = vmatpush1.bf16.msra.mxu0 %v3449
        %3631 = vmatprep.subr.bf16.mxu0 %v3456
        %3632 = vmatpush1.bf16.msra.mxu0 %v3455
        %3633 = vmatprep.subr.bf16.mxu0 %v3462
        %3634 = vmatpush1.bf16.msra.mxu0 %v3461
        %3635 = vmatprep.subr.bf16.mxu0 %v3468
        %3636 = vmatpush1.bf16.msra.mxu0 %v3467
        %3637 = vmatprep.subr.bf16.mxu0 %v3474
        %3638 = vmatpush1.bf16.msra.mxu0 %v3473
        %3639 = vmatprep.subr.bf16.mxu0 %v3480
        %3640 = vmatpush1.bf16.msra.mxu0 %v3479
        %3641 = vmatprep.subr.bf16.mxu0 %v3486
        %3642 = vmatpush1.bf16.msra.mxu0 %v3485
        %3643 = vmatprep.subr.bf16.mxu0 %v3492
        %3644 = vmatpush1.bf16.msra.mxu0 %v3491
        %3645 = vmatprep.subr.bf16.mxu0 %v3498
        %3646 = vmatpush1.bf16.msra.mxu0 %v3497
        %3647 = vmatprep.subr.bf16.mxu0 %v3504
        %3648 = vmatpush1.bf16.msra.mxu0 %v3503
        %3649 = vmatprep.subr.bf16.mxu0 %v3510
        %3650 = vmatpush1.bf16.msra.mxu0 %v3509
        %3651 = vmatprep.subr.bf16.mxu0 %v3516
        %3652 = vmatpush1.bf16.msra.mxu0 %v3515
        %3653 = vmatprep.subr.bf16.mxu0 %v3522
        %3654 = vmatpush1.bf16.msra.mxu0 %v3521
        %3655 = vmatprep.mubr.bf16.mxu0 0
        %3656 = vmatmul.mubr.bf16.gmra.mrb[0].mxu0 0
        %v3657 = vpop.f32.mrb[0].mxu0
        %v3658 = vadd.f32 %v3116, %v3657
        %v3659 = vpop.f32.mrb[0].mxu0
        %v3660 = vadd.f32 %v3120, %v3659
        %v3661 = vpop.f32.mrb[0].mxu0
        %v3662 = vpop.f32.mrb[0].mxu0
        %3663 = vdwg.mxu0
        %3664 = vmatprep.subr.bf16.mxu0 %v3434
        %3665 = vmatpush1.bf16.msra.mxu0 %v3433
        %3666 = vmatprep.subr.bf16.mxu0 %v3440
        %3667 = vmatpush1.bf16.msra.mxu0 %v3439
        %3668 = vmatprep.subr.bf16.mxu0 %v3446
        %3669 = vmatpush1.bf16.msra.mxu0 %v3445
        %3670 = vmatprep.subr.bf16.mxu0 %v3452
        %3671 = vmatpush1.bf16.msra.mxu0 %v3451
        %3672 = vmatprep.subr.bf16.mxu0 %v3458
        %3673 = vmatpush1.bf16.msra.mxu0 %v3457
        %3674 = vmatprep.subr.bf16.mxu0 %v3464
        %3675 = vmatpush1.bf16.msra.mxu0 %v3463
        %3676 = vmatprep.subr.bf16.mxu0 %v3470
        %3677 = vmatpush1.bf16.msra.mxu0 %v3469
        %3678 = vmatprep.subr.bf16.mxu0 %v3476
        %3679 = vmatpush1.bf16.msra.mxu0 %v3475
        %3680 = vmatprep.subr.bf16.mxu0 %v3482
        %3681 = vmatpush1.bf16.msra.mxu0 %v3481
        %3682 = vmatprep.subr.bf16.mxu0 %v3488
        %3683 = vmatpush1.bf16.msra.mxu0 %v3487
        %3684 = vmatprep.subr.bf16.mxu0 %v3494
        %3685 = vmatpush1.bf16.msra.mxu0 %v3493
        %3686 = vmatprep.subr.bf16.mxu0 %v3500
        %3687 = vmatpush1.bf16.msra.mxu0 %v3499
        %3688 = vmatprep.subr.bf16.mxu0 %v3506
        %3689 = vmatpush1.bf16.msra.mxu0 %v3505
        %3690 = vmatprep.subr.bf16.mxu0 %v3512
        %3691 = vmatpush1.bf16.msra.mxu0 %v3511
        %3692 = vmatprep.subr.bf16.mxu0 %v3518
        %3693 = vmatpush1.bf16.msra.mxu0 %v3517
        %3694 = vmatprep.subr.bf16.mxu0 %v3524
        %3695 = vmatpush1.bf16.msra.mxu0 %v3523
        %3696 = vmatprep.mubr.bf16.mxu0 0
        %3697 = vmatmul.mubr.bf16.gmra.mrb[0].mxu0 0
        %v3698 = vpop.f32.mrb[0].mxu0
        %v3699 = vadd.f32 %v3124, %v3698
        %v3700 = vpop.f32.mrb[0].mxu0
        %v3701 = vadd.f32 %v3128, %v3700
        %v3702 = vpop.f32.mrb[0].mxu0
        %v3703 = vpop.f32.mrb[0].mxu0
        %3704 = vdwg.mxu0
        %3705 = vmatprep.subr.bf16.mxu0 %v3436
        %3706 = vmatpush1.bf16.msra.mxu0 %v3435
        %3707 = vmatprep.subr.bf16.mxu0 %v3442
        %3708 = vmatpush1.bf16.msra.mxu0 %v3441
        %3709 = vmatprep.subr.bf16.mxu0 %v3448
        %3710 = vmatpush1.bf16.msra.mxu0 %v3447
        %3711 = vmatprep.subr.bf16.mxu0 %v3454
        %3712 = vmatpush1.bf16.msra.mxu0 %v3453
        %3713 = vmatprep.subr.bf16.mxu0 %v3460
        %3714 = vmatpush1.bf16.msra.mxu0 %v3459
        %3715 = vmatprep.subr.bf16.mxu0 %v3466
        %3716 = vmatpush1.bf16.msra.mxu0 %v3465
        %3717 = vmatprep.subr.bf16.mxu0 %v3472
        %3718 = vmatpush1.bf16.msra.mxu0 %v3471
        %3719 = vmatprep.subr.bf16.mxu0 %v3478
        %3720 = vmatpush1.bf16.msra.mxu0 %v3477
        %3721 = vmatprep.subr.bf16.mxu0 %v3484
        %3722 = vmatpush1.bf16.msra.mxu0 %v3483
        %3723 = vmatprep.subr.bf16.mxu0 %v3490
        %3724 = vmatpush1.bf16.msra.mxu0 %v3489
        %3725 = vmatprep.subr.bf16.mxu0 %v3496
        %3726 = vmatpush1.bf16.msra.mxu0 %v3495
        %3727 = vmatprep.subr.bf16.mxu0 %v3502
        %3728 = vmatpush1.bf16.msra.mxu0 %v3501
        %3729 = vmatprep.subr.bf16.mxu0 %v3508
        %3730 = vmatpush1.bf16.msra.mxu0 %v3507
        %3731 = vmatprep.subr.bf16.mxu0 %v3514
        %3732 = vmatpush1.bf16.msra.mxu0 %v3513
        %3733 = vmatprep.subr.bf16.mxu0 %v3520
        %3734 = vmatpush1.bf16.msra.mxu0 %v3519
        %3735 = vmatprep.subr.bf16.mxu0 %v3526
        %3736 = vmatpush1.bf16.msra.mxu0 %v3525
        %3737 = vmatprep.mubr.bf16.mxu0 0
        %3738 = vmatmul.mubr.bf16.gmra.mrb[0].mxu0 0
        %v3739 = vpop.f32.mrb[0].mxu0
        %v3740 = vadd.f32 %v3132, %v3739
        %v3741 = vpop.f32.mrb[0].mxu0
        %v3742 = vadd.f32 %v3136, %v3741
        %v3743 = vpop.f32.mrb[0].mxu0
        %v3744 = vpop.f32.mrb[0].mxu0
        %3745 = vdwg.mxu0
        %v3746 = vadd.f32 %v2988, %v3658
        %v3747 = vadd.f32 %v2990, %v3660
        %v3748 = vmul.f32 %v3746, 0.5
        %v3749 = vmul.f32 %v3747, 0.5
        %v3750 = vtanh.pop %v3748
        %v3751 = vtanh.pop %v3749
        %v3752 = vadd.f32 %v3750, 1.0
        %v3753 = vadd.f32 %v3751, 1.0
        %v3754 = vmul.f32 %v3752, 0.5
        %v3755 = vmul.f32 %v3753, 0.5
        %v3756 = vadd.f32 %v3041, %v3699
        %v3757 = vadd.f32 %v3043, %v3701
        %v3758 = vmul.f32 %v3756, 0.5
        %v3759 = vmul.f32 %v3757, 0.5
        %v3760 = vtanh.pop %v3758
        %v3761 = vtanh.pop %v3759
        %v3762 = vadd.f32 %v3760, 1.0
        %v3763 = vadd.f32 %v3761, 1.0
        %v3764 = vmul.f32 %v3762, 0.5
        %v3765 = vmul.f32 %v3763, 0.5
        %v3766 = vmul.f32 %v3754, %v3740
        %v3767 = vmul.f32 %v3755, %v3742
        %v3768 = vadd.f32 %v3094, %v3766
        %v3769 = vadd.f32 %v3096, %v3767
        %v3770 = vtanh.pop %v3768
        %v3771 = vtanh.pop %v3769
        %v3772 = vsub.f32 1.0, %v3764
        %v3773 = vsub.f32 1.0, %v3765
        %v3774 = vmul.f32 %v3772, %v3770
        %v3775 = vmul.f32 %v3773, %v3771
        %v3776 = vmul.f32 %v3764, 0.0
        %v3777 = vmul.f32 %v3765, 0.0
        %v3778 = vadd.f32 %v3774, %v3776
        %v3779 = vadd.f32 %v3775, %v3777
        %3780 = vst [vmem:[#allocation3] sm:$0xff] %v3778
        %3781 = vst [vmem:[#allocation3 + $0x8] sm:$0xff] %v3779
        %v3782 = vpack.c.bf16 %v3778, %v3778
        %v3783 = vpack.c.bf16 %v3779, %v3779
        %3784 = vmatprep.subr.bf16.mxu0 %v3432
        %3785 = vmatpush1.bf16.msra.mxu0 %v3431
        %3786 = vmatprep.subr.bf16.mxu0 %v3438
        %3787 = vmatpush1.bf16.msra.mxu0 %v3437
        %3788 = vmatprep.subr.bf16.mxu0 %v3444
        %3789 = vmatpush1.bf16.msra.mxu0 %v3443
        %3790 = vmatprep.subr.bf16.mxu0 %v3450
        %3791 = vmatpush1.bf16.msra.mxu0 %v3449
        %3792 = vmatprep.subr.bf16.mxu0 %v3456
        %3793 = vmatpush1.bf16.msra.mxu0 %v3455
        %3794 = vmatprep.subr.bf16.mxu0 %v3462
        %3795 = vmatpush1.bf16.msra.mxu0 %v3461
        %3796 = vmatprep.subr.bf16.mxu0 %v3468
        %3797 = vmatpush1.bf16.msra.mxu0 %v3467
        %3798 = vmatprep.subr.bf16.mxu0 %v3474
        %3799 = vmatpush1.bf16.msra.mxu0 %v3473
        %3800 = vmatprep.subr.bf16.mxu0 %v3480
        %3801 = vmatpush1.bf16.msra.mxu0 %v3479
        %3802 = vmatprep.subr.bf16.mxu0 %v3486
        %3803 = vmatpush1.bf16.msra.mxu0 %v3485
        %3804 = vmatprep.subr.bf16.mxu0 %v3492
        %3805 = vmatpush1.bf16.msra.mxu0 %v3491
        %3806 = vmatprep.subr.bf16.mxu0 %v3498
        %3807 = vmatpush1.bf16.msra.mxu0 %v3497
        %3808 = vmatprep.subr.bf16.mxu0 %v3504
        %3809 = vmatpush1.bf16.msra.mxu0 %v3503
        %3810 = vmatprep.subr.bf16.mxu0 %v3510
        %3811 = vmatpush1.bf16.msra.mxu0 %v3509
        %3812 = vmatprep.subr.bf16.mxu0 %v3516
        %3813 = vmatpush1.bf16.msra.mxu0 %v3515
        %3814 = vmatprep.subr.bf16.mxu0 %v3522
        %3815 = vmatpush1.bf16.msra.mxu0 %v3521
        %3816 = vmatprep.mubr.bf16.mxu0 %v3783
        %3817 = vmatmul.mubr.bf16.gmra.mrb[0].mxu0 %v3782
        %v3818 = vpop.f32.mrb[0].mxu0
        %v3819 = vadd.f32 %v3116, %v3818
        %v3820 = vpop.f32.mrb[0].mxu0
        %v3821 = vadd.f32 %v3120, %v3820
        %v3822 = vpop.f32.mrb[0].mxu0
        %v3823 = vpop.f32.mrb[0].mxu0
        %3824 = vdwg.mxu0
        %3825 = vmatprep.subr.bf16.mxu0 %v3434
        %3826 = vmatpush1.bf16.msra.mxu0 %v3433
        %3827 = vmatprep.subr.bf16.mxu0 %v3440
        %3828 = vmatpush1.bf16.msra.mxu0 %v3439
        %3829 = vmatprep.subr.bf16.mxu0 %v3446
        %3830 = vmatpush1.bf16.msra.mxu0 %v3445
        %3831 = vmatprep.subr.bf16.mxu0 %v3452
        %3832 = vmatpush1.bf16.msra.mxu0 %v3451
        %3833 = vmatprep.subr.bf16.mxu0 %v3458
        %3834 = vmatpush1.bf16.msra.mxu0 %v3457
        %3835 = vmatprep.subr.bf16.mxu0 %v3464
        %3836 = vmatpush1.bf16.msra.mxu0 %v3463
        %3837 = vmatprep.subr.bf16.mxu0 %v3470
        %3838 = vmatpush1.bf16.msra.mxu0 %v3469
        %3839 = vmatprep.subr.bf16.mxu0 %v3476
        %3840 = vmatpush1.bf16.msra.mxu0 %v3475
        %3841 = vmatprep.subr.bf16.mxu0 %v3482
        %3842 = vmatpush1.bf16.msra.mxu0 %v3481
        %3843 = vmatprep.subr.bf16.mxu0 %v3488
        %3844 = vmatpush1.bf16.msra.mxu0 %v3487
        %3845 = vmatprep.subr.bf16.mxu0 %v3494
        %3846 = vmatpush1.bf16.msra.mxu0 %v3493
        %3847 = vmatprep.subr.bf16.mxu0 %v3500
        %3848 = vmatpush1.bf16.msra.mxu0 %v3499
        %3849 = vmatprep.subr.bf16.mxu0 %v3506
        %3850 = vmatpush1.bf16.msra.mxu0 %v3505
        %3851 = vmatprep.subr.bf16.mxu0 %v3512
        %3852 = vmatpush1.bf16.msra.mxu0 %v3511
        %3853 = vmatprep.subr.bf16.mxu0 %v3518
        %3854 = vmatpush1.bf16.msra.mxu0 %v3517
        %3855 = vmatprep.subr.bf16.mxu0 %v3524
        %3856 = vmatpush1.bf16.msra.mxu0 %v3523
        %3857 = vmatprep.mubr.bf16.mxu0 %v3783
        %3858 = vmatmul.mubr.bf16.gmra.mrb[0].mxu0 %v3782
        %v3859 = vpop.f32.mrb[0].mxu0
        %v3860 = vadd.f32 %v3124, %v3859
        %v3861 = vpop.f32.mrb[0].mxu0
        %v3862 = vadd.f32 %v3128, %v3861
        %v3863 = vpop.f32.mrb[0].mxu0
        %v3864 = vpop.f32.mrb[0].mxu0
        %3865 = vdwg.mxu0
        %3866 = vmatprep.subr.bf16.mxu0 %v3436
        %3867 = vmatpush1.bf16.msra.mxu0 %v3435
        %3868 = vmatprep.subr.bf16.mxu0 %v3442
        %3869 = vmatpush1.bf16.msra.mxu0 %v3441
        %3870 = vmatprep.subr.bf16.mxu0 %v3448
        %3871 = vmatpush1.bf16.msra.mxu0 %v3447
        %3872 = vmatprep.subr.bf16.mxu0 %v3454
        %3873 = vmatpush1.bf16.msra.mxu0 %v3453
        %3874 = vmatprep.subr.bf16.mxu0 %v3460
        %3875 = vmatpush1.bf16.msra.mxu0 %v3459
        %3876 = vmatprep.subr.bf16.mxu0 %v3466
        %3877 = vmatpush1.bf16.msra.mxu0 %v3465
        %3878 = vmatprep.subr.bf16.mxu0 %v3472
        %3879 = vmatpush1.bf16.msra.mxu0 %v3471
        %3880 = vmatprep.subr.bf16.mxu0 %v3478
        %3881 = vmatpush1.bf16.msra.mxu0 %v3477
        %3882 = vmatprep.subr.bf16.mxu0 %v3484
        %3883 = vmatpush1.bf16.msra.mxu0 %v3483
        %3884 = vmatprep.subr.bf16.mxu0 %v3490
        %3885 = vmatpush1.bf16.msra.mxu0 %v3489
        %3886 = vmatprep.subr.bf16.mxu0 %v3496
        %3887 = vmatpush1.bf16.msra.mxu0 %v3495
        %3888 = vmatprep.subr.bf16.mxu0 %v3502
        %3889 = vmatpush1.bf16.msra.mxu0 %v3501
        %3890 = vmatprep.subr.bf16.mxu0 %v3508
        %3891 = vmatpush1.bf16.msra.mxu0 %v3507
        %3892 = vmatprep.subr.bf16.mxu0 %v3514
        %3893 = vmatpush1.bf16.msra.mxu0 %v3513
        %3894 = vmatprep.subr.bf16.mxu0 %v3520
        %3895 = vmatpush1.bf16.msra.mxu0 %v3519
        %3896 = vmatprep.subr.bf16.mxu0 %v3526
        %3897 = vmatpush1.bf16.msra.mxu0 %v3525
        %3898 = vmatprep.mubr.bf16.mxu0 %v3783
        %3899 = vmatmul.mubr.bf16.gmra.mrb[0].mxu0 %v3782
        %v3900 = vpop.f32.mrb[0].mxu0
        %v3901 = vadd.f32 %v3132, %v3900
        %v3902 = vpop.f32.mrb[0].mxu0
        %v3903 = vadd.f32 %v3136, %v3902
        %v3904 = vpop.f32.mrb[0].mxu0
        %v3905 = vpop.f32.mrb[0].mxu0
        %3906 = vdwg.mxu0
        %v3907 = vadd.f32 %v2992, %v3819
        %v3908 = vadd.f32 %v2994, %v3821
        %v3909 = vmul.f32 %v3907, 0.5
        %v3910 = vmul.f32 %v3908, 0.5
        %v3911 = vtanh.pop %v3909
        %v3912 = vtanh.pop %v3910
        %v3913 = vadd.f32 %v3911, 1.0
        %v3914 = vadd.f32 %v3912, 1.0
        %v3915 = vmul.f32 %v3913, 0.5
        %v3916 = vmul.f32 %v3914, 0.5
        %v3917 = vadd.f32 %v3045, %v3860
        %v3918 = vadd.f32 %v3047, %v3862
        %v3919 = vmul.f32 %v3917, 0.5
        %v3920 = vmul.f32 %v3918, 0.5
        %v3921 = vtanh.pop %v3919
        %v3922 = vtanh.pop %v3920
        %v3923 = vadd.f32 %v3921, 1.0
        %v3924 = vadd.f32 %v3922, 1.0
        %v3925 = vmul.f32 %v3923, 0.5
        %v3926 = vmul.f32 %v3924, 0.5
        %v3927 = vmul.f32 %v3915, %v3901
        %v3928 = vmul.f32 %v3916, %v3903
        %v3929 = vadd.f32 %v3098, %v3927
        %v3930 = vadd.f32 %v3100, %v3928
        %v3931 = vtanh.pop %v3929
        %v3932 = vtanh.pop %v3930
        %v3933 = vsub.f32 1.0, %v3925
        %v3934 = vsub.f32 1.0, %v3926
        %v3935 = vmul.f32 %v3933, %v3931
        %v3936 = vmul.f32 %v3934, %v3932
        %v3937 = vmul.f32 %v3925, %v3778
        %v3938 = vmul.f32 %v3926, %v3779
        %v3939 = vadd.f32 %v3935, %v3937
        %v3940 = vadd.f32 %v3936, %v3938
        %3941 = vst [vmem:[#allocation3 + $0x10] sm:$0xff] %v3939
        %3942 = vst [vmem:[#allocation3 + $0x18] sm:$0xff] %v3940
        %v3943 = vpack.c.bf16 %v3939, %v3939
        %v3944 = vpack.c.bf16 %v3940, %v3940
        %3945 = vmatprep.subr.bf16.mxu0 %v3432
        %3946 = vmatpush1.bf16.msra.mxu0 %v3431
        %3947 = vmatprep.subr.bf16.mxu0 %v3438
        %3948 = vmatpush1.bf16.msra.mxu0 %v3437
        %3949 = vmatprep.subr.bf16.mxu0 %v3444
        %3950 = vmatpush1.bf16.msra.mxu0 %v3443
        %3951 = vmatprep.subr.bf16.mxu0 %v3450
        %3952 = vmatpush1.bf16.msra.mxu0 %v3449
        %3953 = vmatprep.subr.bf16.mxu0 %v3456
        %3954 = vmatpush1.bf16.msra.mxu0 %v3455
        %3955 = vmatprep.subr.bf16.mxu0 %v3462
        %3956 = vmatpush1.bf16.msra.mxu0 %v3461
        %3957 = vmatprep.subr.bf16.mxu0 %v3468
        %3958 = vmatpush1.bf16.msra.mxu0 %v3467
        %3959 = vmatprep.subr.bf16.mxu0 %v3474
        %3960 = vmatpush1.bf16.msra.mxu0 %v3473
        %3961 = vmatprep.subr.bf16.mxu0 %v3480
        %3962 = vmatpush1.bf16.msra.mxu0 %v3479
        %3963 = vmatprep.subr.bf16.mxu0 %v3486
        %3964 = vmatpush1.bf16.msra.mxu0 %v3485
        %3965 = vmatprep.subr.bf16.mxu0 %v3492
        %3966 = vmatpush1.bf16.msra.mxu0 %v3491
        %3967 = vmatprep.subr.bf16.mxu0 %v3498
        %3968 = vmatpush1.bf16.msra.mxu0 %v3497
        %3969 = vmatprep.subr.bf16.mxu0 %v3504
        %3970 = vmatpush1.bf16.msra.mxu0 %v3503
        %3971 = vmatprep.subr.bf16.mxu0 %v3510
        %3972 = vmatpush1.bf16.msra.mxu0 %v3509
        %3973 = vmatprep.subr.bf16.mxu0 %v3516
        %3974 = vmatpush1.bf16.msra.mxu0 %v3515
        %3975 = vmatprep.subr.bf16.mxu0 %v3522
        %3976 = vmatpush1.bf16.msra.mxu0 %v3521
        %3977 = vmatprep.mubr.bf16.mxu0 %v3944
        %3978 = vmatmul.mubr.bf16.gmra.mrb[0].mxu0 %v3943
        %v3979 = vpop.f32.mrb[0].mxu0
        %v3980 = vadd.f32 %v3116, %v3979
        %v3981 = vpop.f32.mrb[0].mxu0
        %v3982 = vadd.f32 %v3120, %v3981
        %v3983 = vpop.f32.mrb[0].mxu0
        %v3984 = vpop.f32.mrb[0].mxu0
        %3985 = vdwg.mxu0
        %3986 = vmatprep.subr.bf16.mxu0 %v3434
        %3987 = vmatpush1.bf16.msra.mxu0 %v3433
        %3988 = vmatprep.subr.bf16.mxu0 %v3440
        %3989 = vmatpush1.bf16.msra.mxu0 %v3439
        %3990 = vmatprep.subr.bf16.mxu0 %v3446
        %3991 = vmatpush1.bf16.msra.mxu0 %v3445
        %3992 = vmatprep.subr.bf16.mxu0 %v3452
        %3993 = vmatpush1.bf16.msra.mxu0 %v3451
        %3994 = vmatprep.subr.bf16.mxu0 %v3458
        %3995 = vmatpush1.bf16.msra.mxu0 %v3457
        %3996 = vmatprep.subr.bf16.mxu0 %v3464
        %3997 = vmatpush1.bf16.msra.mxu0 %v3463
        %3998 = vmatprep.subr.bf16.mxu0 %v3470
        %3999 = vmatpush1.bf16.msra.mxu0 %v3469
        %4000 = vmatprep.subr.bf16.mxu0 %v3476
        %4001 = vmatpush1.bf16.msra.mxu0 %v3475
        %4002 = vmatprep.subr.bf16.mxu0 %v3482
        %4003 = vmatpush1.bf16.msra.mxu0 %v3481
        %4004 = vmatprep.subr.bf16.mxu0 %v3488
        %4005 = vmatpush1.bf16.msra.mxu0 %v3487
        %4006 = vmatprep.subr.bf16.mxu0 %v3494
        %4007 = vmatpush1.bf16.msra.mxu0 %v3493
        %4008 = vmatprep.subr.bf16.mxu0 %v3500
        %4009 = vmatpush1.bf16.msra.mxu0 %v3499
        %4010 = vmatprep.subr.bf16.mxu0 %v3506
        %4011 = vmatpush1.bf16.msra.mxu0 %v3505
        %4012 = vmatprep.subr.bf16.mxu0 %v3512
        %4013 = vmatpush1.bf16.msra.mxu0 %v3511
        %4014 = vmatprep.subr.bf16.mxu0 %v3518
        %4015 = vmatpush1.bf16.msra.mxu0 %v3517
        %4016 = vmatprep.subr.bf16.mxu0 %v3524
        %4017 = vmatpush1.bf16.msra.mxu0 %v3523
        %4018 = vmatprep.mubr.bf16.mxu0 %v3944
        %4019 = vmatmul.mubr.bf16.gmra.mrb[0].mxu0 %v3943
        %v4020 = vpop.f32.mrb[0].mxu0
        %v4021 = vadd.f32 %v3124, %v4020
        %v4022 = vpop.f32.mrb[0].mxu0
        %v4023 = vadd.f32 %v3128, %v4022
        %v4024 = vpop.f32.mrb[0].mxu0
        %v4025 = vpop.f32.mrb[0].mxu0
        %4026 = vdwg.mxu0
        %4027 = vmatprep.subr.bf16.mxu0 %v3436
        %4028 = vmatpush1.bf16.msra.mxu0 %v3435
        %4029 = vmatprep.subr.bf16.mxu0 %v3442
        %4030 = vmatpush1.bf16.msra.mxu0 %v3441
        %4031 = vmatprep.subr.bf16.mxu0 %v3448
        %4032 = vmatpush1.bf16.msra.mxu0 %v3447
        %4033 = vmatprep.subr.bf16.mxu0 %v3454
        %4034 = vmatpush1.bf16.msra.mxu0 %v3453
        %4035 = vmatprep.subr.bf16.mxu0 %v3460
        %4036 = vmatpush1.bf16.msra.mxu0 %v3459
        %4037 = vmatprep.subr.bf16.mxu0 %v3466
        %4038 = vmatpush1.bf16.msra.mxu0 %v3465
        %4039 = vmatprep.subr.bf16.mxu0 %v3472
        %4040 = vmatpush1.bf16.msra.mxu0 %v3471
        %4041 = vmatprep.subr.bf16.mxu0 %v3478
        %4042 = vmatpush1.bf16.msra.mxu0 %v3477
        %4043 = vmatprep.subr.bf16.mxu0 %v3484
        %4044 = vmatpush1.bf16.msra.mxu0 %v3483
        %4045 = vmatprep.subr.bf16.mxu0 %v3490
        %4046 = vmatpush1.bf16.msra.mxu0 %v3489
        %4047 = vmatprep.subr.bf16.mxu0 %v3496
        %4048 = vmatpush1.bf16.msra.mxu0 %v3495
        %4049 = vmatprep.subr.bf16.mxu0 %v3502
        %4050 = vmatpush1.bf16.msra.mxu0 %v3501
        %4051 = vmatprep.subr.bf16.mxu0 %v3508
        %4052 = vmatpush1.bf16.msra.mxu0 %v3507
        %4053 = vmatprep.subr.bf16.mxu0 %v3514
        %4054 = vmatpush1.bf16.msra.mxu0 %v3513
        %4055 = vmatprep.subr.bf16.mxu0 %v3520
        %4056 = vmatpush1.bf16.msra.mxu0 %v3519
        %4057 = vmatprep.subr.bf16.mxu0 %v3526
        %4058 = vmatpush1.bf16.msra.mxu0 %v3525
        %4059 = vmatprep.mubr.bf16.mxu0 %v3944
        %4060 = vmatmul.mubr.bf16.gmra.mrb[0].mxu0 %v3943
        %v4061 = vpop.f32.mrb[0].mxu0
        %v4062 = vadd.f32 %v3132, %v4061
        %v4063 = vpop.f32.mrb[0].mxu0
        %v4064 = vadd.f32 %v3136, %v4063
        %v4065 = vpop.f32.mrb[0].mxu0
        %v4066 = vpop.f32.mrb[0].mxu0
        %4067 = vdwg.mxu0
        %v4068 = vadd.f32 %v2998, %v3980
        %v4069 = vadd.f32 %v3000, %v3982
        %v4070 = vmul.f32 %v4068, 0.5
        %v4071 = vmul.f32 %v4069, 0.5
        %v4072 = vtanh.pop %v4070
        %v4073 = vtanh.pop %v4071
        %v4074 = vadd.f32 %v4072, 1.0
        %v4075 = vadd.f32 %v4073, 1.0
        %v4076 = vmul.f32 %v4074, 0.5
        %v4077 = vmul.f32 %v4075, 0.5
        %v4078 = vadd.f32 %v3051, %v4021
        %v4079 = vadd.f32 %v3053, %v4023
        %v4080 = vmul.f32 %v4078, 0.5
        %v4081 = vmul.f32 %v4079, 0.5
        %v4082 = vtanh.pop %v4080
        %v4083 = vtanh.pop %v4081
        %v4084 = vadd.f32 %v4082, 1.0
        %v4085 = vadd.f32 %v4083, 1.0
        %v4086 = vmul.f32 %v4084, 0.5
        %v4087 = vmul.f32 %v4085, 0.5
        %v4088 = vmul.f32 %v4076, %v4062
        %v4089 = vmul.f32 %v4077, %v4064
        %v4090 = vadd.f32 %v3104, %v4088
        %v4091 = vadd.f32 %v3106, %v4089
        %v4092 = vtanh.pop %v4090
        %v4093 = vtanh.pop %v4091
        %v4094 = vsub.f32 1.0, %v4086
        %v4095 = vsub.f32 1.0, %v4087
        %v4096 = vmul.f32 %v4094, %v4092
        %v4097 = vmul.f32 %v4095, %v4093
        %v4098 = vmul.f32 %v4086, %v3939
        %v4099 = vmul.f32 %v4087, %v3940
        %v4100 = vadd.f32 %v4096, %v4098
        %v4101 = vadd.f32 %v4097, %v4099
        %4102 = vst [vmem:[#allocation3 + $0x20] sm:$0xff] %v4100
        %4103 = vst [vmem:[#allocation3 + $0x28] sm:$0xff] %v4101
        %v4104 = vpack.c.bf16 %v4100, %v4100
        %v4105 = vpack.c.bf16 %v4101, %v4101
        %4106 = vmatprep.subr.bf16.mxu0 %v3432
        %4107 = vmatpush1.bf16.msra.mxu0 %v3431
        %4108 = vmatprep.subr.bf16.mxu0 %v3438
        %4109 = vmatpush1.bf16.msra.mxu0 %v3437
        %4110 = vmatprep.subr.bf16.mxu0 %v3444
        %4111 = vmatpush1.bf16.msra.mxu0 %v3443
        %4112 = vmatprep.subr.bf16.mxu0 %v3450
        %4113 = vmatpush1.bf16.msra.mxu0 %v3449
        %4114 = vmatprep.subr.bf16.mxu0 %v3456
        %4115 = vmatpush1.bf16.msra.mxu0 %v3455
        %4116 = vmatprep.subr.bf16.mxu0 %v3462
        %4117 = vmatpush1.bf16.msra.mxu0 %v3461
        %4118 = vmatprep.subr.bf16.mxu0 %v3468
        %4119 = vmatpush1.bf16.msra.mxu0 %v3467
        %4120 = vmatprep.subr.bf16.mxu0 %v3474
        %4121 = vmatpush1.bf16.msra.mxu0 %v3473
        %4122 = vmatprep.subr.bf16.mxu0 %v3480
        %4123 = vmatpush1.bf16.msra.mxu0 %v3479
        %4124 = vmatprep.subr.bf16.mxu0 %v3486
        %4125 = vmatpush1.bf16.msra.mxu0 %v3485
        %4126 = vmatprep.subr.bf16.mxu0 %v3492
        %4127 = vmatpush1.bf16.msra.mxu0 %v3491
        %4128 = vmatprep.subr.bf16.mxu0 %v3498
        %4129 = vmatpush1.bf16.msra.mxu0 %v3497
        %4130 = vmatprep.subr.bf16.mxu0 %v3504
        %4131 = vmatpush1.bf16.msra.mxu0 %v3503
        %4132 = vmatprep.subr.bf16.mxu0 %v3510
        %4133 = vmatpush1.bf16.msra.mxu0 %v3509
        %4134 = vmatprep.subr.bf16.mxu0 %v3516
        %4135 = vmatpush1.bf16.msra.mxu0 %v3515
        %4136 = vmatprep.subr.bf16.mxu0 %v3522
        %4137 = vmatpush1.bf16.msra.mxu0 %v3521
        %4138 = vmatprep.mubr.bf16.mxu0 %v4105
        %4139 = vmatmul.mubr.bf16.gmra.mrb[0].mxu0 %v4104
        %v4140 = vpop.f32.mrb[0].mxu0
        %v4141 = vadd.f32 %v3116, %v4140
        %v4142 = vpop.f32.mrb[0].mxu0
        %v4143 = vadd.f32 %v3120, %v4142
        %v4144 = vpop.f32.mrb[0].mxu0
        %v4145 = vpop.f32.mrb[0].mxu0
        %4146 = vdwg.mxu0
        %4147 = vmatprep.subr.bf16.mxu0 %v3434
        %4148 = vmatpush1.bf16.msra.mxu0 %v3433
        %4149 = vmatprep.subr.bf16.mxu0 %v3440
        %4150 = vmatpush1.bf16.msra.mxu0 %v3439
        %4151 = vmatprep.subr.bf16.mxu0 %v3446
        %4152 = vmatpush1.bf16.msra.mxu0 %v3445
        %4153 = vmatprep.subr.bf16.mxu0 %v3452
        %4154 = vmatpush1.bf16.msra.mxu0 %v3451
        %4155 = vmatprep.subr.bf16.mxu0 %v3458
        %4156 = vmatpush1.bf16.msra.mxu0 %v3457
        %4157 = vmatprep.subr.bf16.mxu0 %v3464
        %4158 = vmatpush1.bf16.msra.mxu0 %v3463
        %4159 = vmatprep.subr.bf16.mxu0 %v3470
        %4160 = vmatpush1.bf16.msra.mxu0 %v3469
        %4161 = vmatprep.subr.bf16.mxu0 %v3476
        %4162 = vmatpush1.bf16.msra.mxu0 %v3475
        %4163 = vmatprep.subr.bf16.mxu0 %v3482
        %4164 = vmatpush1.bf16.msra.mxu0 %v3481
        %4165 = vmatprep.subr.bf16.mxu0 %v3488
        %4166 = vmatpush1.bf16.msra.mxu0 %v3487
        %4167 = vmatprep.subr.bf16.mxu0 %v3494
        %4168 = vmatpush1.bf16.msra.mxu0 %v3493
        %4169 = vmatprep.subr.bf16.mxu0 %v3500
        %4170 = vmatpush1.bf16.msra.mxu0 %v3499
        %4171 = vmatprep.subr.bf16.mxu0 %v3506
        %4172 = vmatpush1.bf16.msra.mxu0 %v3505
        %4173 = vmatprep.subr.bf16.mxu0 %v3512
        %4174 = vmatpush1.bf16.msra.mxu0 %v3511
        %4175 = vmatprep.subr.bf16.mxu0 %v3518
        %4176 = vmatpush1.bf16.msra.mxu0 %v3517
        %4177 = vmatprep.subr.bf16.mxu0 %v3524
        %4178 = vmatpush1.bf16.msra.mxu0 %v3523
        %4179 = vmatprep.mubr.bf16.mxu0 %v4105
        %4180 = vmatmul.mubr.bf16.gmra.mrb[0].mxu0 %v4104
        %v4181 = vpop.f32.mrb[0].mxu0
        %v4182 = vadd.f32 %v3124, %v4181
        %v4183 = vpop.f32.mrb[0].mxu0
        %v4184 = vadd.f32 %v3128, %v4183
        %v4185 = vpop.f32.mrb[0].mxu0
        %v4186 = vpop.f32.mrb[0].mxu0
        %4187 = vdwg.mxu0
        %4188 = vmatprep.subr.bf16.mxu0 %v3436
        %4189 = vmatpush1.bf16.msra.mxu0 %v3435
        %4190 = vmatprep.subr.bf16.mxu0 %v3442
        %4191 = vmatpush1.bf16.msra.mxu0 %v3441
        %4192 = vmatprep.subr.bf16.mxu0 %v3448
        %4193 = vmatpush1.bf16.msra.mxu0 %v3447
        %4194 = vmatprep.subr.bf16.mxu0 %v3454
        %4195 = vmatpush1.bf16.msra.mxu0 %v3453
        %4196 = vmatprep.subr.bf16.mxu0 %v3460
        %4197 = vmatpush1.bf16.msra.mxu0 %v3459
        %4198 = vmatprep.subr.bf16.mxu0 %v3466
        %4199 = vmatpush1.bf16.msra.mxu0 %v3465
        %4200 = vmatprep.subr.bf16.mxu0 %v3472
        %4201 = vmatpush1.bf16.msra.mxu0 %v3471
        %4202 = vmatprep.subr.bf16.mxu0 %v3478
        %4203 = vmatpush1.bf16.msra.mxu0 %v3477
        %4204 = vmatprep.subr.bf16.mxu0 %v3484
        %4205 = vmatpush1.bf16.msra.mxu0 %v3483
        %4206 = vmatprep.subr.bf16.mxu0 %v3490
        %4207 = vmatpush1.bf16.msra.mxu0 %v3489
        %4208 = vmatprep.subr.bf16.mxu0 %v3496
        %4209 = vmatpush1.bf16.msra.mxu0 %v3495
        %4210 = vmatprep.subr.bf16.mxu0 %v3502
        %4211 = vmatpush1.bf16.msra.mxu0 %v3501
        %4212 = vmatprep.subr.bf16.mxu0 %v3508
        %4213 = vmatpush1.bf16.msra.mxu0 %v3507
        %4214 = vmatprep.subr.bf16.mxu0 %v3514
        %4215 = vmatpush1.bf16.msra.mxu0 %v3513
        %4216 = vmatprep.subr.bf16.mxu0 %v3520
        %4217 = vmatpush1.bf16.msra.mxu0 %v3519
        %4218 = vmatprep.subr.bf16.mxu0 %v3526
        %4219 = vmatpush1.bf16.msra.mxu0 %v3525
        %4220 = vmatprep.mubr.bf16.mxu0 %v4105
        %4221 = vmatmul.mubr.bf16.gmra.mrb[0].mxu0 %v4104
        %v4222 = vpop.f32.mrb[0].mxu0
        %v4223 = vadd.f32 %v3132, %v4222
        %v4224 = vpop.f32.mrb[0].mxu0
        %v4225 = vadd.f32 %v3136, %v4224
        %v4226 = vpop.f32.mrb[0].mxu0
        %v4227 = vpop.f32.mrb[0].mxu0
        %4228 = vdwg.mxu0
        %v4229 = vadd.f32 %v3002, %v4141
        %v4230 = vadd.f32 %v3004, %v4143
        %v4231 = vmul.f32 %v4229, 0.5
        %v4232 = vmul.f32 %v4230, 0.5
        %v4233 = vtanh.pop %v4231
        %v4234 = vtanh.pop %v4232
        %v4235 = vadd.f32 %v4233, 1.0
        %v4236 = vadd.f32 %v4234, 1.0
        %v4237 = vmul.f32 %v4235, 0.5
        %v4238 = vmul.f32 %v4236, 0.5
        %v4239 = vadd.f32 %v3055, %v4182
        %v4240 = vadd.f32 %v3057, %v4184
        %v4241 = vmul.f32 %v4239, 0.5
        %v4242 = vmul.f32 %v4240, 0.5
        %v4243 = vtanh.pop %v4241
        %v4244 = vtanh.pop %v4242
        %v4245 = vadd.f32 %v4243, 1.0
        %v4246 = vadd.f32 %v4244, 1.0
        %v4247 = vmul.f32 %v4245, 0.5
        %v4248 = vmul.f32 %v4246, 0.5
        %v4249 = vmul.f32 %v4237, %v4223
        %v4250 = vmul.f32 %v4238, %v4225
        %v4251 = vadd.f32 %v3108, %v4249
        %v4252 = vadd.f32 %v3110, %v4250
        %v4253 = vtanh.pop %v4251
        %v4254 = vtanh.pop %v4252
        %v4255 = vsub.f32 1.0, %v4247
        %v4256 = vsub.f32 1.0, %v4248
        %v4257 = vmul.f32 %v4255, %v4253
        %v4258 = vmul.f32 %v4256, %v4254
        %v4259 = vmul.f32 %v4247, %v4100
        %v4260 = vmul.f32 %v4248, %v4101
        %v4261 = vadd.f32 %v4257, %v4259
        %v4262 = vadd.f32 %v4258, %v4260
        %4263 = vst [vmem:[#allocation3 + $0x30] sm:$0xff] %v4261
        %4264 = vst [vmem:[#allocation3 + $0x38] sm:$0xff] %v4262
        %v4265 = vld [vmem:[#allocation3] sm:$0xff]
        %v4266 = vld [vmem:[#allocation3 + $0x8] sm:$0xff]
        %v4267 = vld [vmem:[#allocation3 + $0x10] sm:$0xff]
        %v4268 = vld [vmem:[#allocation3 + $0x18] sm:$0xff]
        %v4269 = vld [vmem:[#allocation3 + $0x20] sm:$0xff]
        %v4270 = vld [vmem:[#allocation3 + $0x28] sm:$0xff]
        %v4271 = vld [vmem:[#allocation3 + $0x30] sm:$0xff]
        %v4272 = vld [vmem:[#allocation3 + $0x38] sm:$0xff]
        %v4273 = vld [vmem:[#allocation9] sm:$0x3]
        %v4274 = vld [vmem:[#allocation11] sm:$0x3]
        %v4275 = vadd.f32 %v4265, %v4266
        %4276 = vadd.xlane.f32.xlu0 %v4275
        %v4277 = vpop.xlane.xlu0 %4276
        %v4278 = vadd.f32 %v4267, %v4268
        %4279 = vadd.xlane.f32.xlu0 %v4278
        %v4280 = vpop.xlane.xlu0 %4279
        %v4281 = vadd.f32 %v4269, %v4270
        %4282 = vadd.xlane.f32.xlu0 %v4281
        %v4283 = vpop.xlane.xlu0 %4282
        %v4284 = vadd.f32 %v4271, %v4272
        %4285 = vadd.xlane.f32.xlu0 %v4284
        %v4286 = vpop.xlane.xlu0 %4285
        %v4287 = vrcp.pop 256.0
        %v4288 = vmul.f32 %v4277, %v4287
        %v4289 = vmul.f32 %v4280, %v4287
        %v4290 = vmul.f32 %v4283, %v4287
        %v4291 = vmul.f32 %v4286, %v4287
        %v4292 = vsub.f32 %v4265, %v4288
        %v4293 = vsub.f32 %v4266, %v4288
        %v4294 = vsub.f32 %v4267, %v4289
        %v4295 = vsub.f32 %v4268, %v4289
        %v4296 = vsub.f32 %v4269, %v4290
        %v4297 = vsub.f32 %v4270, %v4290
        %v4298 = vsub.f32 %v4271, %v4291
        %v4299 = vsub.f32 %v4272, %v4291
        %v4300 = vmul.f32 %v4292, %v4292
        %v4301 = vmul.f32 %v4293, %v4293
        %v4302 = vmul.f32 %v4294, %v4294
        %v4303 = vmul.f32 %v4295, %v4295
        %v4304 = vmul.f32 %v4296, %v4296
        %v4305 = vmul.f32 %v4297, %v4297
        %v4306 = vmul.f32 %v4298, %v4298
        %v4307 = vmul.f32 %v4299, %v4299
        %v4308 = vadd.f32 %v4300, %v4301
        %4309 = vadd.xlane.f32.xlu0 %v4308
        %v4310 = vpop.xlane.xlu0 %4309
        %v4311 = vadd.f32 %v4302, %v4303
        %4312 = vadd.xlane.f32.xlu0 %v4311
        %v4313 = vpop.xlane.xlu0 %4312
        %v4314 = vadd.f32 %v4304, %v4305
        %4315 = vadd.xlane.f32.xlu0 %v4314
        %v4316 = vpop.xlane.xlu0 %4315
        %v4317 = vadd.f32 %v4306, %v4307
        %4318 = vadd.xlane.f32.xlu0 %v4317
        %v4319 = vpop.xlane.xlu0 %4318
        %v4320 = vmul.f32 %v4310, %v4287
        %v4321 = vmul.f32 %v4313, %v4287
        %v4322 = vmul.f32 %v4316, %v4287
        %v4323 = vmul.f32 %v4319, %v4287
        %v4324 = vadd.f32 %v4320, 1e-05
        %v4325 = vadd.f32 %v4321, 1e-05
        %v4326 = vadd.f32 %v4322, 1e-05
        %v4327 = vadd.f32 %v4323, 1e-05
        %v4328 = vrsqrt.pop %v4324
        %v4329 = vrsqrt.pop %v4325
        %v4330 = vrsqrt.pop %v4326
        %v4331 = vrsqrt.pop %v4327
        %v4332 = vmul.f32 %v4292, %v4328
        %v4333 = vmul.f32 %v4293, %v4328
        %v4334 = vmul.f32 %v4294, %v4329
        %v4335 = vmul.f32 %v4295, %v4329
        %v4336 = vmul.f32 %v4296, %v4330
        %v4337 = vmul.f32 %v4297, %v4330
        %v4338 = vmul.f32 %v4298, %v4331
        %v4339 = vmul.f32 %v4299, %v4331
        %v4341 = vlaneseq
        %v4342 = vshrl.u32 %v4341, 7
        %v4343 = vsub.s32 0, %v4342
        %v4344 = vrot.slane %v4273, %v4343
        %v4345 = vlaneseq
        %v4346 = vshrl.u32 %v4345, 7
        %v4347 = vsub.s32 1, %v4346
        %v4348 = vrot.slane %v4273, %v4347
        %v4351 = vmul.f32 %v4332, %v4344
        %v4352 = vmul.f32 %v4333, %v4348
        %v4353 = vmul.f32 %v4334, %v4344
        %v4354 = vmul.f32 %v4335, %v4348
        %v4355 = vmul.f32 %v4336, %v4344
        %v4356 = vmul.f32 %v4337, %v4348
        %v4357 = vmul.f32 %v4338, %v4344
        %v4358 = vmul.f32 %v4339, %v4348
        %v4360 = vlaneseq
        %v4361 = vshrl.u32 %v4360, 7
        %v4362 = vsub.s32 0, %v4361
        %v4363 = vrot.slane %v4274, %v4362
        %v4364 = vlaneseq
        %v4365 = vshrl.u32 %v4364, 7
        %v4366 = vsub.s32 1, %v4365
        %v4367 = vrot.slane %v4274, %v4366
        %v4370 = vadd.f32 %v4351, %v4363
        %v4371 = vadd.f32 %v4352, %v4367
        %v4372 = vadd.f32 %v4353, %v4363
        %v4373 = vadd.f32 %v4354, %v4367
        %v4374 = vadd.f32 %v4355, %v4363
        %v4375 = vadd.f32 %v4356, %v4367
        %v4376 = vadd.f32 %v4357, %v4363
        %v4377 = vadd.f32 %v4358, %v4367
        %v4378 = vpack.c.bf16 %v4372, %v4370
        %v4379 = vpack.c.bf16 %v4373, %v4371
        %v4380 = vpack.c.bf16 %v4376, %v4374
        %v4381 = vpack.c.bf16 %v4377, %v4375
        %v4382 = vld [vmem:[%s11] sm:$0xf]
        %v4383 = vld [vmem:[%s11 + $0x4] sm:$0xf]
        %v4384 = vld [vmem:[%s11 + $0x8] sm:$0xf]
        %v4385 = vld [vmem:[%s11 + $0xc] sm:$0xf]
        %v4386 = vld [vmem:[%s11 + $0x10] sm:$0xf]
        %v4387 = vld [vmem:[%s11 + $0x14] sm:$0xf]
        %v4388 = vld [vmem:[%s11 + $0x18] sm:$0xf]
        %v4389 = vld [vmem:[%s11 + $0x1c] sm:$0xf]
        %v4390 = vld [vmem:[%s11 + $0x20] sm:$0xf]
        %v4391 = vld [vmem:[%s11 + $0x24] sm:$0xf]
        %v4402 = vunpack.c.l.b16 %v4382
        %v4403 = vunpack.c.l.b16 %v4383
        %v4404 = vunpack.c.l.b16 %v4384
        %v4405 = vunpack.c.l.b16 %v4385
        %v4406 = vunpack.c.l.b16 %v4386
        %v4407 = vunpack.c.l.b16 %v4387
        %v4408 = vunpack.c.l.b16 %v4388
        %v4409 = vunpack.c.l.b16 %v4389
        %v4410 = vunpack.c.l.b16 %v4390
        %v4411 = vunpack.c.l.b16 %v4391
        %v4412 = vpack.c.b16 %v4403, %v4402
        %v4413 = vpack.c.b16 %v4405, %v4404
        %v4414 = vpack.c.b16 %v4407, %v4406
        %v4415 = vpack.c.b16 %v4409, %v4408
        %v4416 = vpack.c.b16 %v4411, %v4410
        %vm4417 = vcmask 261120
        %v4419 = vsel %vm4417, %v4412, 0
        %v4422 = vsel %vm4417, %v4413, 0
        %v4425 = vsel %vm4417, %v4414, 0
        %v4428 = vsel %vm4417, %v4415, 0
        %v4431 = vsel %vm4417, %v4416, 0
        %4433 = vmatprep.subr.bf16.mxu0 %v4379
        %4434 = vmatpush1.bf16.msra.mxu0 %v4378
        %4435 = vmatprep.subr.bf16.mxu0 %v4381
        %4436 = vmatpush1.bf16.msra.mxu0 %v4380
        %4437 = vmatprep.subr.bf16.mxu0 0
        %4438 = vmatpush1.bf16.msra.mxu0 0
        %4439 = vmatprep.subr.bf16.mxu0 0
        %4440 = vmatpush1.bf16.msra.mxu0 0
        %4441 = vmatprep.subr.bf16.mxu0 0
        %4442 = vmatpush1.bf16.msra.mxu0 0
        %4443 = vmatprep.subr.bf16.mxu0 0
        %4444 = vmatpush1.bf16.msra.mxu0 0
        %4445 = vmatprep.subr.bf16.mxu0 0
        %4446 = vmatpush1.bf16.msra.mxu0 0
        %4447 = vmatprep.subr.bf16.mxu0 0
        %4448 = vmatpush1.bf16.msra.mxu0 0
        %4449 = vmatprep.subr.bf16.mxu0 0
        %4450 = vmatpush1.bf16.msra.mxu0 0
        %4451 = vmatprep.subr.bf16.mxu0 0
        %4452 = vmatpush1.bf16.msra.mxu0 0
        %4453 = vmatprep.subr.bf16.mxu0 0
        %4454 = vmatpush1.bf16.msra.mxu0 0
        %4455 = vmatprep.subr.bf16.mxu0 0
        %4456 = vmatpush1.bf16.msra.mxu0 0
        %4457 = vmatprep.subr.bf16.mxu0 0
        %4458 = vmatpush1.bf16.msra.mxu0 0
        %4459 = vmatprep.subr.bf16.mxu0 0
        %4460 = vmatpush1.bf16.msra.mxu0 0
        %4461 = vmatprep.subr.bf16.mxu0 0
        %4462 = vmatpush1.bf16.msra.mxu0 0
        %4463 = vmatprep.subr.bf16.mxu0 0
        %4464 = vmatpush1.bf16.msra.mxu0 0
        %4465 = vmatprep.mubr.bf16.mxu0 0
        %4466 = vmatmul.mubr.bf16.gmra.mrb[0].mxu0 %v4419
        %v4467 = vpop.f32.mrb[0].mxu0
        %v4468 = vadd.f32 0.0, %v4467
        %v4469 = vpop.f32.mrb[0].mxu0
        %v4470 = vadd.f32 0.0, %v4469
        %v4471 = vpop.f32.mrb[0].mxu0
        %v4472 = vadd.f32 0.0, %v4471
        %v4473 = vpop.f32.mrb[0].mxu0
        %v4474 = vadd.f32 0.0, %v4473
        %4475 = vmatprep.mubr.bf16.mxu0 0
        %4476 = vmatmul.mubr.bf16.gmra.mrb[0].mxu0 %v4422
        %v4477 = vpop.f32.mrb[0].mxu0
        %v4478 = vadd.f32 0.0, %v4477
        %v4479 = vpop.f32.mrb[0].mxu0
        %v4480 = vadd.f32 0.0, %v4479
        %v4481 = vpop.f32.mrb[0].mxu0
        %v4482 = vadd.f32 0.0, %v4481
        %v4483 = vpop.f32.mrb[0].mxu0
        %v4484 = vadd.f32 0.0, %v4483
        %4485 = vmatprep.mubr.bf16.mxu0 0
        %4486 = vmatmul.mubr.bf16.gmra.mrb[0].mxu0 %v4425
        %v4487 = vpop.f32.mrb[0].mxu0
        %v4488 = vadd.f32 0.0, %v4487
        %v4489 = vpop.f32.mrb[0].mxu0
        %v4490 = vadd.f32 0.0, %v4489
        %v4491 = vpop.f32.mrb[0].mxu0
        %v4492 = vadd.f32 0.0, %v4491
        %v4493 = vpop.f32.mrb[0].mxu0
        %v4494 = vadd.f32 0.0, %v4493
        %4495 = vmatprep.mubr.bf16.mxu0 0
        %4496 = vmatmul.mubr.bf16.gmra.mrb[0].mxu0 %v4428
        %v4497 = vpop.f32.mrb[0].mxu0
        %v4498 = vadd.f32 0.0, %v4497
        %v4499 = vpop.f32.mrb[0].mxu0
        %v4500 = vadd.f32 0.0, %v4499
        %v4501 = vpop.f32.mrb[0].mxu0
        %v4502 = vadd.f32 0.0, %v4501
        %v4503 = vpop.f32.mrb[0].mxu0
        %v4504 = vadd.f32 0.0, %v4503
        %4505 = vmatprep.mubr.bf16.mxu0 0
        %4506 = vmatmul.mubr.bf16.gmra.mrb[0].mxu0 %v4431
        %v4507 = vpop.f32.mrb[0].mxu0
        %v4508 = vadd.f32 0.0, %v4507
        %v4509 = vpop.f32.mrb[0].mxu0
        %v4510 = vadd.f32 0.0, %v4509
        %v4511 = vpop.f32.mrb[0].mxu0
        %v4512 = vadd.f32 0.0, %v4511
        %v4513 = vpop.f32.mrb[0].mxu0
        %v4514 = vadd.f32 0.0, %v4513
        %4515 = vdwg.mxu0
        %s4516 = scalar_lea.vmem %s11, 40
        %v4517 = vld [vmem:[%s4516] sm:$0xf]
        %v4518 = vld [vmem:[%s4516 + $0x4] sm:$0xf]
        %v4519 = vld [vmem:[%s4516 + $0x8] sm:$0xf]
        %v4520 = vld [vmem:[%s4516 + $0xc] sm:$0xf]
        %v4521 = vld [vmem:[%s4516 + $0x10] sm:$0xf]
        %v4522 = vld [vmem:[%s4516 + $0x14] sm:$0xf]
        %v4523 = vld [vmem:[%s4516 + $0x18] sm:$0xf]
        %v4524 = vld [vmem:[%s4516 + $0x1c] sm:$0xf]
        %v4525 = vld [vmem:[%s4516 + $0x20] sm:$0xf]
        %v4526 = vld [vmem:[%s4516 + $0x24] sm:$0xf]
        %v4537 = vunpack.c.l.b16 %v4517
        %v4538 = vunpack.c.l.b16 %v4518
        %v4539 = vunpack.c.l.b16 %v4519
        %v4540 = vunpack.c.l.b16 %v4520
        %v4541 = vunpack.c.l.b16 %v4521
        %v4542 = vunpack.c.l.b16 %v4522
        %v4543 = vunpack.c.l.b16 %v4523
        %v4544 = vunpack.c.l.b16 %v4524
        %v4545 = vunpack.c.l.b16 %v4525
        %v4546 = vunpack.c.l.b16 %v4526
        %v4547 = vpack.c.b16 %v4538, %v4537
        %v4548 = vpack.c.b16 %v4540, %v4539
        %v4549 = vpack.c.b16 %v4542, %v4541
        %v4550 = vpack.c.b16 %v4544, %v4543
        %v4551 = vpack.c.b16 %v4546, %v4545
        %v4553 = vsel %vm4417, %v4547, 0
        %v4556 = vsel %vm4417, %v4548, 0
        %v4559 = vsel %vm4417, %v4549, 0
        %v4562 = vsel %vm4417, %v4550, 0
        %v4565 = vsel %vm4417, %v4551, 0
        %4567 = vmatprep.subr.bf16.mxu0 %v4379
        %4568 = vmatpush1.bf16.msra.mxu0 %v4378
        %4569 = vmatprep.subr.bf16.mxu0 %v4381
        %4570 = vmatpush1.bf16.msra.mxu0 %v4380
        %4571 = vmatprep.subr.bf16.mxu0 0
        %4572 = vmatpush1.bf16.msra.mxu0 0
        %4573 = vmatprep.subr.bf16.mxu0 0
        %4574 = vmatpush1.bf16.msra.mxu0 0
        %4575 = vmatprep.subr.bf16.mxu0 0
        %4576 = vmatpush1.bf16.msra.mxu0 0
        %4577 = vmatprep.subr.bf16.mxu0 0
        %4578 = vmatpush1.bf16.msra.mxu0 0
        %4579 = vmatprep.subr.bf16.mxu0 0
        %4580 = vmatpush1.bf16.msra.mxu0 0
        %4581 = vmatprep.subr.bf16.mxu0 0
        %4582 = vmatpush1.bf16.msra.mxu0 0
        %4583 = vmatprep.subr.bf16.mxu0 0
        %4584 = vmatpush1.bf16.msra.mxu0 0
        %4585 = vmatprep.subr.bf16.mxu0 0
        %4586 = vmatpush1.bf16.msra.mxu0 0
        %4587 = vmatprep.subr.bf16.mxu0 0
        %4588 = vmatpush1.bf16.msra.mxu0 0
        %4589 = vmatprep.subr.bf16.mxu0 0
        %4590 = vmatpush1.bf16.msra.mxu0 0
        %4591 = vmatprep.subr.bf16.mxu0 0
        %4592 = vmatpush1.bf16.msra.mxu0 0
        %4593 = vmatprep.subr.bf16.mxu0 0
        %4594 = vmatpush1.bf16.msra.mxu0 0
        %4595 = vmatprep.subr.bf16.mxu0 0
        %4596 = vmatpush1.bf16.msra.mxu0 0
        %4597 = vmatprep.subr.bf16.mxu0 0
        %4598 = vmatpush1.bf16.msra.mxu0 0
        %4599 = vmatprep.mubr.bf16.mxu0 0
        %4600 = vmatmul.mubr.bf16.gmra.mrb[0].mxu0 %v4553
        %v4601 = vpop.f32.mrb[0].mxu0
        %v4602 = vadd.f32 0.0, %v4601
        %v4603 = vpop.f32.mrb[0].mxu0
        %v4604 = vadd.f32 0.0, %v4603
        %v4605 = vpop.f32.mrb[0].mxu0
        %v4606 = vadd.f32 0.0, %v4605
        %v4607 = vpop.f32.mrb[0].mxu0
        %v4608 = vadd.f32 0.0, %v4607
        %4609 = vmatprep.mubr.bf16.mxu0 0
        %4610 = vmatmul.mubr.bf16.gmra.mrb[0].mxu0 %v4556
        %v4611 = vpop.f32.mrb[0].mxu0
        %v4612 = vadd.f32 0.0, %v4611
        %v4613 = vpop.f32.mrb[0].mxu0
        %v4614 = vadd.f32 0.0, %v4613
        %v4615 = vpop.f32.mrb[0].mxu0
        %v4616 = vadd.f32 0.0, %v4615
        %v4617 = vpop.f32.mrb[0].mxu0
        %v4618 = vadd.f32 0.0, %v4617
        %4619 = vmatprep.mubr.bf16.mxu0 0
        %4620 = vmatmul.mubr.bf16.gmra.mrb[0].mxu0 %v4559
        %v4621 = vpop.f32.mrb[0].mxu0
        %v4622 = vadd.f32 0.0, %v4621
        %v4623 = vpop.f32.mrb[0].mxu0
        %v4624 = vadd.f32 0.0, %v4623
        %v4625 = vpop.f32.mrb[0].mxu0
        %v4626 = vadd.f32 0.0, %v4625
        %v4627 = vpop.f32.mrb[0].mxu0
        %v4628 = vadd.f32 0.0, %v4627
        %4629 = vmatprep.mubr.bf16.mxu0 0
        %4630 = vmatmul.mubr.bf16.gmra.mrb[0].mxu0 %v4562
        %v4631 = vpop.f32.mrb[0].mxu0
        %v4632 = vadd.f32 0.0, %v4631
        %v4633 = vpop.f32.mrb[0].mxu0
        %v4634 = vadd.f32 0.0, %v4633
        %v4635 = vpop.f32.mrb[0].mxu0
        %v4636 = vadd.f32 0.0, %v4635
        %v4637 = vpop.f32.mrb[0].mxu0
        %v4638 = vadd.f32 0.0, %v4637
        %4639 = vmatprep.mubr.bf16.mxu0 0
        %4640 = vmatmul.mubr.bf16.gmra.mrb[0].mxu0 %v4565
        %v4641 = vpop.f32.mrb[0].mxu0
        %v4642 = vadd.f32 0.0, %v4641
        %v4643 = vpop.f32.mrb[0].mxu0
        %v4644 = vadd.f32 0.0, %v4643
        %v4645 = vpop.f32.mrb[0].mxu0
        %v4646 = vadd.f32 0.0, %v4645
        %v4647 = vpop.f32.mrb[0].mxu0
        %v4648 = vadd.f32 0.0, %v4647
        %4649 = vdwg.mxu0
        %s4650 = scalar_lea.vmem %s11, 80
        %v4651 = vld [vmem:[%s4650] sm:$0xf]
        %v4652 = vld [vmem:[%s4650 + $0x4] sm:$0xf]
        %v4653 = vld [vmem:[%s4650 + $0x8] sm:$0xf]
        %v4654 = vld [vmem:[%s4650 + $0xc] sm:$0xf]
        %v4655 = vld [vmem:[%s4650 + $0x10] sm:$0xf]
        %v4656 = vld [vmem:[%s4650 + $0x14] sm:$0xf]
        %v4657 = vld [vmem:[%s4650 + $0x18] sm:$0xf]
        %v4658 = vld [vmem:[%s4650 + $0x1c] sm:$0xf]
        %v4659 = vld [vmem:[%s4650 + $0x20] sm:$0xf]
        %v4660 = vld [vmem:[%s4650 + $0x24] sm:$0xf]
        %v4671 = vunpack.c.l.b16 %v4651
        %v4672 = vunpack.c.l.b16 %v4652
        %v4673 = vunpack.c.l.b16 %v4653
        %v4674 = vunpack.c.l.b16 %v4654
        %v4675 = vunpack.c.l.b16 %v4655
        %v4676 = vunpack.c.l.b16 %v4656
        %v4677 = vunpack.c.l.b16 %v4657
        %v4678 = vunpack.c.l.b16 %v4658
        %v4679 = vunpack.c.l.b16 %v4659
        %v4680 = vunpack.c.l.b16 %v4660
        %v4681 = vpack.c.b16 %v4672, %v4671
        %v4682 = vpack.c.b16 %v4674, %v4673
        %v4683 = vpack.c.b16 %v4676, %v4675
        %v4684 = vpack.c.b16 %v4678, %v4677
        %v4685 = vpack.c.b16 %v4680, %v4679
        %v4687 = vsel %vm4417, %v4681, 0
        %v4690 = vsel %vm4417, %v4682, 0
        %v4693 = vsel %vm4417, %v4683, 0
        %v4696 = vsel %vm4417, %v4684, 0
        %v4699 = vsel %vm4417, %v4685, 0
        %4701 = vmatprep.subr.bf16.mxu0 %v4379
        %4702 = vmatpush1.bf16.msra.mxu0 %v4378
        %4703 = vmatprep.subr.bf16.mxu0 %v4381
        %4704 = vmatpush1.bf16.msra.mxu0 %v4380
        %4705 = vmatprep.subr.bf16.mxu0 0
        %4706 = vmatpush1.bf16.msra.mxu0 0
        %4707 = vmatprep.subr.bf16.mxu0 0
        %4708 = vmatpush1.bf16.msra.mxu0 0
        %4709 = vmatprep.subr.bf16.mxu0 0
        %4710 = vmatpush1.bf16.msra.mxu0 0
        %4711 = vmatprep.subr.bf16.mxu0 0
        %4712 = vmatpush1.bf16.msra.mxu0 0
        %4713 = vmatprep.subr.bf16.mxu0 0
        %4714 = vmatpush1.bf16.msra.mxu0 0
        %4715 = vmatprep.subr.bf16.mxu0 0
        %4716 = vmatpush1.bf16.msra.mxu0 0
        %4717 = vmatprep.subr.bf16.mxu0 0
        %4718 = vmatpush1.bf16.msra.mxu0 0
        %4719 = vmatprep.subr.bf16.mxu0 0
        %4720 = vmatpush1.bf16.msra.mxu0 0
        %4721 = vmatprep.subr.bf16.mxu0 0
        %4722 = vmatpush1.bf16.msra.mxu0 0
        %4723 = vmatprep.subr.bf16.mxu0 0
        %4724 = vmatpush1.bf16.msra.mxu0 0
        %4725 = vmatprep.subr.bf16.mxu0 0
        %4726 = vmatpush1.bf16.msra.mxu0 0
        %4727 = vmatprep.subr.bf16.mxu0 0
        %4728 = vmatpush1.bf16.msra.mxu0 0
        %4729 = vmatprep.subr.bf16.mxu0 0
        %4730 = vmatpush1.bf16.msra.mxu0 0
        %4731 = vmatprep.subr.bf16.mxu0 0
        %4732 = vmatpush1.bf16.msra.mxu0 0
        %4733 = vmatprep.mubr.bf16.mxu0 0
        %4734 = vmatmul.mubr.bf16.gmra.mrb[0].mxu0 %v4687
        %v4735 = vpop.f32.mrb[0].mxu0
        %v4736 = vadd.f32 0.0, %v4735
        %v4737 = vpop.f32.mrb[0].mxu0
        %v4738 = vadd.f32 0.0, %v4737
        %v4739 = vpop.f32.mrb[0].mxu0
        %v4740 = vadd.f32 0.0, %v4739
        %v4741 = vpop.f32.mrb[0].mxu0
        %v4742 = vadd.f32 0.0, %v4741
        %4743 = vmatprep.mubr.bf16.mxu0 0
        %4744 = vmatmul.mubr.bf16.gmra.mrb[0].mxu0 %v4690
        %v4745 = vpop.f32.mrb[0].mxu0
        %v4746 = vadd.f32 0.0, %v4745
        %v4747 = vpop.f32.mrb[0].mxu0
        %v4748 = vadd.f32 0.0, %v4747
        %v4749 = vpop.f32.mrb[0].mxu0
        %v4750 = vadd.f32 0.0, %v4749
        %v4751 = vpop.f32.mrb[0].mxu0
        %v4752 = vadd.f32 0.0, %v4751
        %4753 = vmatprep.mubr.bf16.mxu0 0
        %4754 = vmatmul.mubr.bf16.gmra.mrb[0].mxu0 %v4693
        %v4755 = vpop.f32.mrb[0].mxu0
        %v4756 = vadd.f32 0.0, %v4755
        %v4757 = vpop.f32.mrb[0].mxu0
        %v4758 = vadd.f32 0.0, %v4757
        %v4759 = vpop.f32.mrb[0].mxu0
        %v4760 = vadd.f32 0.0, %v4759
        %v4761 = vpop.f32.mrb[0].mxu0
        %v4762 = vadd.f32 0.0, %v4761
        %4763 = vmatprep.mubr.bf16.mxu0 0
        %4764 = vmatmul.mubr.bf16.gmra.mrb[0].mxu0 %v4696
        %v4765 = vpop.f32.mrb[0].mxu0
        %v4766 = vadd.f32 0.0, %v4765
        %v4767 = vpop.f32.mrb[0].mxu0
        %v4768 = vadd.f32 0.0, %v4767
        %v4769 = vpop.f32.mrb[0].mxu0
        %v4770 = vadd.f32 0.0, %v4769
        %v4771 = vpop.f32.mrb[0].mxu0
        %v4772 = vadd.f32 0.0, %v4771
        %4773 = vmatprep.mubr.bf16.mxu0 0
        %4774 = vmatmul.mubr.bf16.gmra.mrb[0].mxu0 %v4699
        %v4775 = vpop.f32.mrb[0].mxu0
        %v4776 = vadd.f32 0.0, %v4775
        %v4777 = vpop.f32.mrb[0].mxu0
        %v4778 = vadd.f32 0.0, %v4777
        %v4779 = vpop.f32.mrb[0].mxu0
        %v4780 = vadd.f32 0.0, %v4779
        %v4781 = vpop.f32.mrb[0].mxu0
        %v4782 = vadd.f32 0.0, %v4781
        %4783 = vdwg.mxu0
        %v4784 = vpack.c.bf16 %v4472, %v4468
        %v4785 = vpack.c.bf16 %v4474, %v4470
        %v4786 = vpack.c.bf16 %v4606, %v4602
        %v4787 = vpack.c.bf16 %v4608, %v4604
        %v4788 = vpack.c.bf16 %v4740, %v4736
        %v4789 = vpack.c.bf16 %v4742, %v4738
        %v4790 = vpack.c.bf16 %v4482, %v4478
        %v4791 = vpack.c.bf16 %v4484, %v4480
        %v4792 = vpack.c.bf16 %v4616, %v4612
        %v4793 = vpack.c.bf16 %v4618, %v4614
        %v4794 = vpack.c.bf16 %v4750, %v4746
        %v4795 = vpack.c.bf16 %v4752, %v4748
        %v4796 = vpack.c.bf16 %v4492, %v4488
        %v4797 = vpack.c.bf16 %v4494, %v4490
        %v4798 = vpack.c.bf16 %v4626, %v4622
        %v4799 = vpack.c.bf16 %v4628, %v4624
        %v4800 = vpack.c.bf16 %v4760, %v4756
        %v4801 = vpack.c.bf16 %v4762, %v4758
        %v4802 = vpack.c.bf16 %v4502, %v4498
        %v4803 = vpack.c.bf16 %v4504, %v4500
        %v4804 = vpack.c.bf16 %v4636, %v4632
        %v4805 = vpack.c.bf16 %v4638, %v4634
        %v4806 = vpack.c.bf16 %v4770, %v4766
        %v4807 = vpack.c.bf16 %v4772, %v4768
        %v4808 = vpack.c.bf16 %v4512, %v4508
        %v4809 = vpack.c.bf16 %v4514, %v4510
        %v4810 = vpack.c.bf16 %v4646, %v4642
        %v4811 = vpack.c.bf16 %v4648, %v4644
        %v4812 = vpack.c.bf16 %v4780, %v4776
        %v4813 = vpack.c.bf16 %v4782, %v4778
        %v4814 = vld [vmem:[#allocation12] sm:$0xf]
        %v4815 = vld [vmem:[#allocation12 + $0x4] sm:$0xf]
        %v4816 = vld [vmem:[#allocation12 + $0x8] sm:$0xf]
        %v4817 = vld [vmem:[#allocation12 + $0xc] sm:$0xf]
        %v4818 = vld [vmem:[#allocation12 + $0x10] sm:$0xf]
        %v4819 = vld [vmem:[#allocation12 + $0x14] sm:$0xf]
        %v4820 = vld [vmem:[#allocation12 + $0x18] sm:$0xf]
        %v4821 = vld [vmem:[#allocation12 + $0x1c] sm:$0xf]
        %v4822 = vld [vmem:[#allocation12 + $0x20] sm:$0xf]
        %v4823 = vld [vmem:[#allocation12 + $0x24] sm:$0xf]
        %v4824 = vld [vmem:[#allocation12 + $0x28] sm:$0xf]
        %v4825 = vld [vmem:[#allocation12 + $0x2c] sm:$0xf]
        %v4826 = vld [vmem:[#allocation12 + $0x30] sm:$0xf]
        %v4827 = vld [vmem:[#allocation12 + $0x34] sm:$0xf]
        %v4828 = vld [vmem:[#allocation12 + $0x38] sm:$0xf]
        %v4829 = vld [vmem:[#allocation12 + $0x3c] sm:$0xf]
        %v4830 = vld [vmem:[#allocation12 + $0x40] sm:$0xf]
        %v4831 = vld [vmem:[#allocation12 + $0x44] sm:$0xf]
        %v4832 = vld [vmem:[#allocation12 + $0x48] sm:$0xf]
        %v4833 = vld [vmem:[#allocation12 + $0x4c] sm:$0xf]
        %v4834 = vld [vmem:[#allocation12 + $0x50] sm:$0xf]
        %v4835 = vld [vmem:[#allocation12 + $0x54] sm:$0xf]
        %v4836 = vld [vmem:[#allocation12 + $0x58] sm:$0xf]
        %v4837 = vld [vmem:[#allocation12 + $0x5c] sm:$0xf]
        %v4838 = vld [vmem:[#allocation12 + $0x60] sm:$0xf]
        %v4839 = vld [vmem:[#allocation12 + $0x64] sm:$0xf]
        %v4840 = vld [vmem:[#allocation12 + $0x68] sm:$0xf]
        %v4841 = vld [vmem:[#allocation12 + $0x6c] sm:$0xf]
        %v4842 = vld [vmem:[#allocation12 + $0x70] sm:$0xf]
        %v4843 = vld [vmem:[#allocation12 + $0x74] sm:$0xf]
        %v4844 = vld [vmem:[#allocation12 + $0x78] sm:$0xf]
        %v4845 = vld [vmem:[#allocation12 + $0x7c] sm:$0xf]
        %v4846 = vld [vmem:[#allocation12 + $0x80] sm:$0xf]
        %v4847 = vld [vmem:[#allocation12 + $0x84] sm:$0xf]
        %v4848 = vld [vmem:[#allocation12 + $0x88] sm:$0xf]
        %v4849 = vld [vmem:[#allocation12 + $0x8c] sm:$0xf]
        %v4850 = vld [vmem:[#allocation12 + $0x90] sm:$0xf]
        %v4851 = vld [vmem:[#allocation12 + $0x94] sm:$0xf]
        %v4852 = vld [vmem:[#allocation12 + $0x98] sm:$0xf]
        %v4853 = vld [vmem:[#allocation12 + $0x9c] sm:$0xf]
        %v4854 = vld [vmem:[#allocation12 + $0xa0] sm:$0xf]
        %v4855 = vld [vmem:[#allocation12 + $0xa4] sm:$0xf]
        %v4856 = vld [vmem:[#allocation12 + $0xa8] sm:$0xf]
        %v4857 = vld [vmem:[#allocation12 + $0xac] sm:$0xf]
        %v4858 = vld [vmem:[#allocation12 + $0xb0] sm:$0xf]
        %v4859 = vld [vmem:[#allocation12 + $0xb4] sm:$0xf]
        %v4860 = vld [vmem:[#allocation12 + $0xb8] sm:$0xf]
        %v4861 = vld [vmem:[#allocation12 + $0xbc] sm:$0xf]
        %v4862 = vld [vmem:[#allocation12 + $0xc0] sm:$0xf]
        %v4863 = vld [vmem:[#allocation12 + $0xc4] sm:$0xf]
        %v4864 = vld [vmem:[#allocation12 + $0xc8] sm:$0xf]
        %v4865 = vld [vmem:[#allocation12 + $0xcc] sm:$0xf]
        %v4866 = vld [vmem:[#allocation12 + $0xd0] sm:$0xf]
        %v4867 = vld [vmem:[#allocation12 + $0xd4] sm:$0xf]
        %v4868 = vld [vmem:[#allocation12 + $0xd8] sm:$0xf]
        %v4869 = vld [vmem:[#allocation12 + $0xdc] sm:$0xf]
        %v4870 = vld [vmem:[#allocation12 + $0xe0] sm:$0xf]
        %v4871 = vld [vmem:[#allocation12 + $0xe4] sm:$0xf]
        %v4872 = vld [vmem:[#allocation12 + $0xe8] sm:$0xf]
        %v4873 = vld [vmem:[#allocation12 + $0xec] sm:$0xf]
        %v4874 = vld [vmem:[#allocation12 + $0xf0] sm:$0xf]
        %v4875 = vld [vmem:[#allocation12 + $0xf4] sm:$0xf]
        %v4876 = vld [vmem:[#allocation12 + $0xf8] sm:$0xf]
        %v4877 = vld [vmem:[#allocation12 + $0xfc] sm:$0xf]
        %v4878 = vld [vmem:[#allocation12 + $0x100] sm:$0xf]
        %v4879 = vld [vmem:[#allocation12 + $0x104] sm:$0xf]
        %v4880 = vld [vmem:[#allocation12 + $0x108] sm:$0xf]
        %v4881 = vld [vmem:[#allocation12 + $0x10c] sm:$0xf]
        %v4882 = vld [vmem:[#allocation12 + $0x110] sm:$0xf]
        %v4883 = vld [vmem:[#allocation12 + $0x114] sm:$0xf]
        %v4884 = vld [vmem:[#allocation12 + $0x118] sm:$0xf]
        %v4885 = vld [vmem:[#allocation12 + $0x11c] sm:$0xf]
        %v4886 = vld [vmem:[#allocation12 + $0x120] sm:$0xf]
        %v4887 = vld [vmem:[#allocation12 + $0x124] sm:$0xf]
        %v4888 = vld [vmem:[#allocation12 + $0x128] sm:$0xf]
        %v4889 = vld [vmem:[#allocation12 + $0x12c] sm:$0xf]
        %v4890 = vld [vmem:[#allocation12 + $0x130] sm:$0xf]
        %v4891 = vld [vmem:[#allocation12 + $0x134] sm:$0xf]
        %v4892 = vld [vmem:[#allocation12 + $0x138] sm:$0xf]
        %v4893 = vld [vmem:[#allocation12 + $0x13c] sm:$0xf]
        %v4894 = vld [vmem:[#allocation12 + $0x140] sm:$0xf]
        %v4895 = vld [vmem:[#allocation12 + $0x144] sm:$0xf]
        %v4896 = vld [vmem:[#allocation12 + $0x148] sm:$0xf]
        %v4897 = vld [vmem:[#allocation12 + $0x14c] sm:$0xf]
        %v4898 = vld [vmem:[#allocation12 + $0x150] sm:$0xf]
        %v4899 = vld [vmem:[#allocation12 + $0x154] sm:$0xf]
        %v4900 = vld [vmem:[#allocation12 + $0x158] sm:$0xf]
        %v4901 = vld [vmem:[#allocation12 + $0x15c] sm:$0xf]
        %v4902 = vld [vmem:[#allocation12 + $0x160] sm:$0xf]
        %v4903 = vld [vmem:[#allocation12 + $0x164] sm:$0xf]
        %v4904 = vld [vmem:[#allocation12 + $0x168] sm:$0xf]
        %v4905 = vld [vmem:[#allocation12 + $0x16c] sm:$0xf]
        %v4906 = vld [vmem:[#allocation12 + $0x170] sm:$0xf]
        %v4907 = vld [vmem:[#allocation12 + $0x174] sm:$0xf]
        %v4908 = vld [vmem:[#allocation12 + $0x178] sm:$0xf]
        %v4909 = vld [vmem:[#allocation12 + $0x17c] sm:$0xf]
        %v4910 = vld [vmem:[#allocation14] sm:$0x1]
        %v4912 = vlaneseq
        %v4913 = vshrl.u32 %v4912, 7
        %v4914 = vsub.s32 0, %v4913
        %v4915 = vrot.slane %v4910, %v4914
        %v5013 = vunpack.c.l.b16 %v4814
        %v5014 = vunpack.c.l.b16 %v4815
        %v5015 = vunpack.c.l.b16 %v4816
        %v5016 = vunpack.c.l.b16 %v4817
        %v5017 = vunpack.c.l.b16 %v4818
        %v5018 = vunpack.c.l.b16 %v4819
        %v5019 = vunpack.c.l.b16 %v4820
        %v5020 = vunpack.c.l.b16 %v4821
        %v5021 = vunpack.c.l.b16 %v4822
        %v5022 = vunpack.c.l.b16 %v4823
        %v5023 = vunpack.c.l.b16 %v4824
        %v5024 = vunpack.c.l.b16 %v4825
        %v5025 = vunpack.c.l.b16 %v4826
        %v5026 = vunpack.c.l.b16 %v4827
        %v5027 = vunpack.c.l.b16 %v4828
        %v5028 = vunpack.c.l.b16 %v4829
        %v5029 = vunpack.c.l.b16 %v4830
        %v5030 = vunpack.c.l.b16 %v4831
        %v5031 = vunpack.c.l.b16 %v4832
        %v5032 = vunpack.c.l.b16 %v4833
        %v5033 = vunpack.c.l.b16 %v4834
        %v5034 = vunpack.c.l.b16 %v4835
        %v5035 = vunpack.c.l.b16 %v4836
        %v5036 = vunpack.c.l.b16 %v4837
        %v5037 = vunpack.c.l.b16 %v4838
        %v5038 = vunpack.c.l.b16 %v4839
        %v5039 = vunpack.c.l.b16 %v4840
        %v5040 = vunpack.c.l.b16 %v4841
        %v5041 = vunpack.c.l.b16 %v4842
        %v5042 = vunpack.c.l.b16 %v4843
        %v5043 = vunpack.c.l.b16 %v4844
        %v5044 = vunpack.c.l.b16 %v4845
        %v5045 = vunpack.c.l.b16 %v4846
        %v5046 = vunpack.c.l.b16 %v4847
        %v5047 = vunpack.c.l.b16 %v4848
        %v5048 = vunpack.c.l.b16 %v4849
        %v5049 = vunpack.c.l.b16 %v4850
        %v5050 = vunpack.c.l.b16 %v4851
        %v5051 = vunpack.c.l.b16 %v4852
        %v5052 = vunpack.c.l.b16 %v4853
        %v5053 = vunpack.c.l.b16 %v4854
        %v5054 = vunpack.c.l.b16 %v4855
        %v5055 = vunpack.c.l.b16 %v4856
        %v5056 = vunpack.c.l.b16 %v4857
        %v5057 = vunpack.c.l.b16 %v4858
        %v5058 = vunpack.c.l.b16 %v4859
        %v5059 = vunpack.c.l.b16 %v4860
        %v5060 = vunpack.c.l.b16 %v4861
        %v5061 = vunpack.c.l.b16 %v4862
        %v5062 = vunpack.c.l.b16 %v4863
        %v5063 = vunpack.c.l.b16 %v4864
        %v5064 = vunpack.c.l.b16 %v4865
        %v5065 = vunpack.c.l.b16 %v4866
        %v5066 = vunpack.c.l.b16 %v4867
        %v5067 = vunpack.c.l.b16 %v4868
        %v5068 = vunpack.c.l.b16 %v4869
        %v5069 = vunpack.c.l.b16 %v4870
        %v5070 = vunpack.c.l.b16 %v4871
        %v5071 = vunpack.c.l.b16 %v4872
        %v5072 = vunpack.c.l.b16 %v4873
        %v5073 = vunpack.c.l.b16 %v4874
        %v5074 = vunpack.c.l.b16 %v4875
        %v5075 = vunpack.c.l.b16 %v4876
        %v5076 = vunpack.c.l.b16 %v4877
        %v5077 = vunpack.c.l.b16 %v4878
        %v5078 = vunpack.c.l.b16 %v4879
        %v5079 = vunpack.c.l.b16 %v4880
        %v5080 = vunpack.c.l.b16 %v4881
        %v5081 = vunpack.c.l.b16 %v4882
        %v5082 = vunpack.c.l.b16 %v4883
        %v5083 = vunpack.c.l.b16 %v4884
        %v5084 = vunpack.c.l.b16 %v4885
        %v5085 = vunpack.c.l.b16 %v4886
        %v5086 = vunpack.c.l.b16 %v4887
        %v5087 = vunpack.c.l.b16 %v4888
        %v5088 = vunpack.c.l.b16 %v4889
        %v5089 = vunpack.c.l.b16 %v4890
        %v5090 = vunpack.c.l.b16 %v4891
        %v5091 = vunpack.c.l.b16 %v4892
        %v5092 = vunpack.c.l.b16 %v4893
        %v5093 = vunpack.c.l.b16 %v4894
        %v5094 = vunpack.c.l.b16 %v4895
        %v5095 = vunpack.c.l.b16 %v4896
        %v5096 = vunpack.c.l.b16 %v4897
        %v5097 = vunpack.c.l.b16 %v4898
        %v5098 = vunpack.c.l.b16 %v4899
        %v5099 = vunpack.c.l.b16 %v4900
        %v5100 = vunpack.c.l.b16 %v4901
        %v5101 = vunpack.c.l.b16 %v4902
        %v5102 = vunpack.c.l.b16 %v4903
        %v5103 = vunpack.c.l.b16 %v4904
        %v5104 = vunpack.c.l.b16 %v4905
        %v5105 = vunpack.c.l.b16 %v4906
        %v5106 = vunpack.c.l.b16 %v4907
        %v5107 = vunpack.c.l.b16 %v4908
        %v5108 = vunpack.c.l.b16 %v4909
        %v5109 = vpack.c.b16 %v5014, %v5013
        %v5110 = vpack.c.b16 %v5016, %v5015
        %v5111 = vpack.c.b16 %v5018, %v5017
        %v5112 = vpack.c.b16 %v5020, %v5019
        %v5113 = vpack.c.b16 %v5022, %v5021
        %v5114 = vpack.c.b16 %v5024, %v5023
        %v5115 = vpack.c.b16 %v5026, %v5025
        %v5116 = vpack.c.b16 %v5028, %v5027
        %v5117 = vpack.c.b16 %v5030, %v5029
        %v5118 = vpack.c.b16 %v5032, %v5031
        %v5119 = vpack.c.b16 %v5034, %v5033
        %v5120 = vpack.c.b16 %v5036, %v5035
        %v5121 = vpack.c.b16 %v5038, %v5037
        %v5122 = vpack.c.b16 %v5040, %v5039
        %v5123 = vpack.c.b16 %v5042, %v5041
        %v5124 = vpack.c.b16 %v5044, %v5043
        %v5125 = vpack.c.b16 %v5046, %v5045
        %v5126 = vpack.c.b16 %v5048, %v5047
        %v5127 = vpack.c.b16 %v5050, %v5049
        %v5128 = vpack.c.b16 %v5052, %v5051
        %v5129 = vpack.c.b16 %v5054, %v5053
        %v5130 = vpack.c.b16 %v5056, %v5055
        %v5131 = vpack.c.b16 %v5058, %v5057
        %v5132 = vpack.c.b16 %v5060, %v5059
        %v5133 = vpack.c.b16 %v5062, %v5061
        %v5134 = vpack.c.b16 %v5064, %v5063
        %v5135 = vpack.c.b16 %v5066, %v5065
        %v5136 = vpack.c.b16 %v5068, %v5067
        %v5137 = vpack.c.b16 %v5070, %v5069
        %v5138 = vpack.c.b16 %v5072, %v5071
        %v5139 = vpack.c.b16 %v5074, %v5073
        %v5140 = vpack.c.b16 %v5076, %v5075
        %v5141 = vpack.c.b16 %v5078, %v5077
        %v5142 = vpack.c.b16 %v5080, %v5079
        %v5143 = vpack.c.b16 %v5082, %v5081
        %v5144 = vpack.c.b16 %v5084, %v5083
        %v5145 = vpack.c.b16 %v5086, %v5085
        %v5146 = vpack.c.b16 %v5088, %v5087
        %v5147 = vpack.c.b16 %v5090, %v5089
        %v5148 = vpack.c.b16 %v5092, %v5091
        %v5149 = vpack.c.b16 %v5094, %v5093
        %v5150 = vpack.c.b16 %v5096, %v5095
        %v5151 = vpack.c.b16 %v5098, %v5097
        %v5152 = vpack.c.b16 %v5100, %v5099
        %v5153 = vpack.c.b16 %v5102, %v5101
        %v5154 = vpack.c.b16 %v5104, %v5103
        %v5155 = vpack.c.b16 %v5106, %v5105
        %v5156 = vpack.c.b16 %v5108, %v5107
        %5205 = vmatprep.subr.bf16.mxu0 0
        %5206 = vmatpush1.bf16.msra.mxu0 %v5109
        %5207 = vmatprep.subr.bf16.mxu0 0
        %5208 = vmatpush1.bf16.msra.mxu0 %v5110
        %5209 = vmatprep.subr.bf16.mxu0 0
        %5210 = vmatpush1.bf16.msra.mxu0 %v5111
        %5211 = vmatprep.subr.bf16.mxu0 0
        %5212 = vmatpush1.bf16.msra.mxu0 %v5112
        %5213 = vmatprep.subr.bf16.mxu0 0
        %5214 = vmatpush1.bf16.msra.mxu0 %v5113
        %5215 = vmatprep.subr.bf16.mxu0 0
        %5216 = vmatpush1.bf16.msra.mxu0 %v5114
        %5217 = vmatprep.subr.bf16.mxu0 0
        %5218 = vmatpush1.bf16.msra.mxu0 %v5115
        %5219 = vmatprep.subr.bf16.mxu0 0
        %5220 = vmatpush1.bf16.msra.mxu0 %v5116
        %5221 = vmatprep.subr.bf16.mxu0 0
        %5222 = vmatpush1.bf16.msra.mxu0 %v5117
        %5223 = vmatprep.subr.bf16.mxu0 0
        %5224 = vmatpush1.bf16.msra.mxu0 %v5118
        %5225 = vmatprep.subr.bf16.mxu0 0
        %5226 = vmatpush1.bf16.msra.mxu0 %v5119
        %5227 = vmatprep.subr.bf16.mxu0 0
        %5228 = vmatpush1.bf16.msra.mxu0 %v5120
        %5229 = vmatprep.subr.bf16.mxu0 0
        %5230 = vmatpush1.bf16.msra.mxu0 %v5121
        %5231 = vmatprep.subr.bf16.mxu0 0
        %5232 = vmatpush1.bf16.msra.mxu0 %v5122
        %5233 = vmatprep.subr.bf16.mxu0 0
        %5234 = vmatpush1.bf16.msra.mxu0 %v5123
        %5235 = vmatprep.subr.bf16.mxu0 0
        %5236 = vmatpush1.bf16.msra.mxu0 %v5124
        %5237 = vmatprep.mubr.bf16.mxu0 %v4785
        %5238 = vmatmul.mubr.bf16.gmra.mrb[0].mxu0 %v4784
        %v5239 = vpop.f32.mrb[0].mxu0
        %v5240 = vadd.f32 %v4915, %v5239
        %v5241 = vpop.f32.mrb[0].mxu0
        %v5242 = vpop.f32.mrb[0].mxu0
        %v5243 = vadd.f32 %v4915, %v5242
        %v5244 = vpop.f32.mrb[0].mxu0
        %5245 = vmatprep.mubr.bf16.mxu0 %v4791
        %5246 = vmatmul.mubr.bf16.gmra.mrb[0].mxu0 %v4790
        %v5247 = vpop.f32.mrb[0].mxu0
        %v5248 = vadd.f32 %v4915, %v5247
        %v5249 = vpop.f32.mrb[0].mxu0
        %v5250 = vpop.f32.mrb[0].mxu0
        %v5251 = vadd.f32 %v4915, %v5250
        %v5252 = vpop.f32.mrb[0].mxu0
        %5253 = vmatprep.mubr.bf16.mxu0 %v4797
        %5254 = vmatmul.mubr.bf16.gmra.mrb[0].mxu0 %v4796
        %v5255 = vpop.f32.mrb[0].mxu0
        %v5256 = vadd.f32 %v4915, %v5255
        %v5257 = vpop.f32.mrb[0].mxu0
        %v5258 = vpop.f32.mrb[0].mxu0
        %v5259 = vadd.f32 %v4915, %v5258
        %v5260 = vpop.f32.mrb[0].mxu0
        %5261 = vmatprep.mubr.bf16.mxu0 %v4803
        %5262 = vmatmul.mubr.bf16.gmra.mrb[0].mxu0 %v4802
        %v5263 = vpop.f32.mrb[0].mxu0
        %v5264 = vadd.f32 %v4915, %v5263
        %v5265 = vpop.f32.mrb[0].mxu0
        %v5266 = vpop.f32.mrb[0].mxu0
        %v5267 = vadd.f32 %v4915, %v5266
        %v5268 = vpop.f32.mrb[0].mxu0
        %5269 = vmatprep.mubr.bf16.mxu0 %v4809
        %5270 = vmatmul.mubr.bf16.gmra.mrb[0].mxu0 %v4808
        %v5271 = vpop.f32.mrb[0].mxu0
        %v5272 = vadd.f32 %v4915, %v5271
        %v5273 = vpop.f32.mrb[0].mxu0
        %v5274 = vpop.f32.mrb[0].mxu0
        %v5275 = vadd.f32 %v4915, %v5274
        %v5276 = vpop.f32.mrb[0].mxu0
        %5277 = vdwg.mxu0
        %5278 = vmatprep.subr.bf16.mxu0 0
        %5279 = vmatpush1.bf16.msra.mxu0 %v5125
        %5280 = vmatprep.subr.bf16.mxu0 0
        %5281 = vmatpush1.bf16.msra.mxu0 %v5126
        %5282 = vmatprep.subr.bf16.mxu0 0
        %5283 = vmatpush1.bf16.msra.mxu0 %v5127
        %5284 = vmatprep.subr.bf16.mxu0 0
        %5285 = vmatpush1.bf16.msra.mxu0 %v5128
        %5286 = vmatprep.subr.bf16.mxu0 0
        %5287 = vmatpush1.bf16.msra.mxu0 %v5129
        %5288 = vmatprep.subr.bf16.mxu0 0
        %5289 = vmatpush1.bf16.msra.mxu0 %v5130
        %5290 = vmatprep.subr.bf16.mxu0 0
        %5291 = vmatpush1.bf16.msra.mxu0 %v5131
        %5292 = vmatprep.subr.bf16.mxu0 0
        %5293 = vmatpush1.bf16.msra.mxu0 %v5132
        %5294 = vmatprep.subr.bf16.mxu0 0
        %5295 = vmatpush1.bf16.msra.mxu0 %v5133
        %5296 = vmatprep.subr.bf16.mxu0 0
        %5297 = vmatpush1.bf16.msra.mxu0 %v5134
        %5298 = vmatprep.subr.bf16.mxu0 0
        %5299 = vmatpush1.bf16.msra.mxu0 %v5135
        %5300 = vmatprep.subr.bf16.mxu0 0
        %5301 = vmatpush1.bf16.msra.mxu0 %v5136
        %5302 = vmatprep.subr.bf16.mxu0 0
        %5303 = vmatpush1.bf16.msra.mxu0 %v5137
        %5304 = vmatprep.subr.bf16.mxu0 0
        %5305 = vmatpush1.bf16.msra.mxu0 %v5138
        %5306 = vmatprep.subr.bf16.mxu0 0
        %5307 = vmatpush1.bf16.msra.mxu0 %v5139
        %5308 = vmatprep.subr.bf16.mxu0 0
        %5309 = vmatpush1.bf16.msra.mxu0 %v5140
        %5310 = vmatprep.mubr.bf16.mxu0 %v4787
        %5311 = vmatmul.mubr.bf16.gmra.mrb[0].mxu0 %v4786
        %v5312 = vpop.f32.mrb[0].mxu0
        %v5313 = vadd.f32 %v5240, %v5312
        %v5314 = vpop.f32.mrb[0].mxu0
        %v5315 = vpop.f32.mrb[0].mxu0
        %v5316 = vadd.f32 %v5243, %v5315
        %v5317 = vpop.f32.mrb[0].mxu0
        %5318 = vmatprep.mubr.bf16.mxu0 %v4793
        %5319 = vmatmul.mubr.bf16.gmra.mrb[0].mxu0 %v4792
        %v5320 = vpop.f32.mrb[0].mxu0
        %v5321 = vadd.f32 %v5248, %v5320
        %v5322 = vpop.f32.mrb[0].mxu0
        %v5323 = vpop.f32.mrb[0].mxu0
        %v5324 = vadd.f32 %v5251, %v5323
        %v5325 = vpop.f32.mrb[0].mxu0
        %5326 = vmatprep.mubr.bf16.mxu0 %v4799
        %5327 = vmatmul.mubr.bf16.gmra.mrb[0].mxu0 %v4798
        %v5328 = vpop.f32.mrb[0].mxu0
        %v5329 = vadd.f32 %v5256, %v5328
        %v5330 = vpop.f32.mrb[0].mxu0
        %v5331 = vpop.f32.mrb[0].mxu0
        %v5332 = vadd.f32 %v5259, %v5331
        %v5333 = vpop.f32.mrb[0].mxu0
        %5334 = vmatprep.mubr.bf16.mxu0 %v4805
        %5335 = vmatmul.mubr.bf16.gmra.mrb[0].mxu0 %v4804
        %v5336 = vpop.f32.mrb[0].mxu0
        %v5337 = vadd.f32 %v5264, %v5336
        %v5338 = vpop.f32.mrb[0].mxu0
        %v5339 = vpop.f32.mrb[0].mxu0
        %v5340 = vadd.f32 %v5267, %v5339
        %v5341 = vpop.f32.mrb[0].mxu0
        %5342 = vmatprep.mubr.bf16.mxu0 %v4811
        %5343 = vmatmul.mubr.bf16.gmra.mrb[0].mxu0 %v4810
        %v5344 = vpop.f32.mrb[0].mxu0
        %v5345 = vadd.f32 %v5272, %v5344
        %v5346 = vpop.f32.mrb[0].mxu0
        %v5347 = vpop.f32.mrb[0].mxu0
        %v5348 = vadd.f32 %v5275, %v5347
        %v5349 = vpop.f32.mrb[0].mxu0
        %5350 = vdwg.mxu0
        %5351 = vmatprep.subr.bf16.mxu0 0
        %5352 = vmatpush1.bf16.msra.mxu0 %v5141
        %5353 = vmatprep.subr.bf16.mxu0 0
        %5354 = vmatpush1.bf16.msra.mxu0 %v5142
        %5355 = vmatprep.subr.bf16.mxu0 0
        %5356 = vmatpush1.bf16.msra.mxu0 %v5143
        %5357 = vmatprep.subr.bf16.mxu0 0
        %5358 = vmatpush1.bf16.msra.mxu0 %v5144
        %5359 = vmatprep.subr.bf16.mxu0 0
        %5360 = vmatpush1.bf16.msra.mxu0 %v5145
        %5361 = vmatprep.subr.bf16.mxu0 0
        %5362 = vmatpush1.bf16.msra.mxu0 %v5146
        %5363 = vmatprep.subr.bf16.mxu0 0
        %5364 = vmatpush1.bf16.msra.mxu0 %v5147
        %5365 = vmatprep.subr.bf16.mxu0 0
        %5366 = vmatpush1.bf16.msra.mxu0 %v5148
        %5367 = vmatprep.subr.bf16.mxu0 0
        %5368 = vmatpush1.bf16.msra.mxu0 %v5149
        %5369 = vmatprep.subr.bf16.mxu0 0
        %5370 = vmatpush1.bf16.msra.mxu0 %v5150
        %5371 = vmatprep.subr.bf16.mxu0 0
        %5372 = vmatpush1.bf16.msra.mxu0 %v5151
        %5373 = vmatprep.subr.bf16.mxu0 0
        %5374 = vmatpush1.bf16.msra.mxu0 %v5152
        %5375 = vmatprep.subr.bf16.mxu0 0
        %5376 = vmatpush1.bf16.msra.mxu0 %v5153
        %5377 = vmatprep.subr.bf16.mxu0 0
        %5378 = vmatpush1.bf16.msra.mxu0 %v5154
        %5379 = vmatprep.subr.bf16.mxu0 0
        %5380 = vmatpush1.bf16.msra.mxu0 %v5155
        %5381 = vmatprep.subr.bf16.mxu0 0
        %5382 = vmatpush1.bf16.msra.mxu0 %v5156
        %5383 = vmatprep.mubr.bf16.mxu0 %v4789
        %5384 = vmatmul.mubr.bf16.gmra.mrb[0].mxu0 %v4788
        %v5385 = vpop.f32.mrb[0].mxu0
        %v5386 = vadd.f32 %v5313, %v5385
        %v5387 = vpop.f32.mrb[0].mxu0
        %v5388 = vpop.f32.mrb[0].mxu0
        %v5389 = vadd.f32 %v5316, %v5388
        %v5390 = vpop.f32.mrb[0].mxu0
        %5391 = vmatprep.mubr.bf16.mxu0 %v4795
        %5392 = vmatmul.mubr.bf16.gmra.mrb[0].mxu0 %v4794
        %v5393 = vpop.f32.mrb[0].mxu0
        %v5394 = vadd.f32 %v5321, %v5393
        %v5395 = vpop.f32.mrb[0].mxu0
        %v5396 = vpop.f32.mrb[0].mxu0
        %v5397 = vadd.f32 %v5324, %v5396
        %v5398 = vpop.f32.mrb[0].mxu0
        %5399 = vmatprep.mubr.bf16.mxu0 %v4801
        %5400 = vmatmul.mubr.bf16.gmra.mrb[0].mxu0 %v4800
        %v5401 = vpop.f32.mrb[0].mxu0
        %v5402 = vadd.f32 %v5329, %v5401
        %v5403 = vpop.f32.mrb[0].mxu0
        %v5404 = vpop.f32.mrb[0].mxu0
        %v5405 = vadd.f32 %v5332, %v5404
        %v5406 = vpop.f32.mrb[0].mxu0
        %5407 = vmatprep.mubr.bf16.mxu0 %v4807
        %5408 = vmatmul.mubr.bf16.gmra.mrb[0].mxu0 %v4806
        %v5409 = vpop.f32.mrb[0].mxu0
        %v5410 = vadd.f32 %v5337, %v5409
        %v5411 = vpop.f32.mrb[0].mxu0
        %v5412 = vpop.f32.mrb[0].mxu0
        %v5413 = vadd.f32 %v5340, %v5412
        %v5414 = vpop.f32.mrb[0].mxu0
        %5415 = vmatprep.mubr.bf16.mxu0 %v4813
        %5416 = vmatmul.mubr.bf16.gmra.mrb[0].mxu0 %v4812
        %v5417 = vpop.f32.mrb[0].mxu0
        %v5418 = vadd.f32 %v5345, %v5417
        %v5419 = vpop.f32.mrb[0].mxu0
        %v5420 = vpop.f32.mrb[0].mxu0
        %v5421 = vadd.f32 %v5348, %v5420
        %v5422 = vpop.f32.mrb[0].mxu0
        %5423 = vdwg.mxu0
        %v5424 = vmax.f32 %v5386, 0.0
        %v5425 = vmax.f32 %v5389, 0.0
        %v5426 = vmax.f32 %v5394, 0.0
        %v5427 = vmax.f32 %v5397, 0.0
        %v5428 = vmax.f32 %v5402, 0.0
        %v5429 = vmax.f32 %v5405, 0.0
        %v5430 = vmax.f32 %v5410, 0.0
        %v5431 = vmax.f32 %v5413, 0.0
        %v5432 = vmax.f32 %v5418, 0.0
        %v5433 = vmax.f32 %v5421, 0.0
        %v5434 = vld [vmem:[#allocation15] sm:$0x1]
        %v5435 = vld [vmem:[#allocation17] sm:$0x1]
        %5436 = vadd.xlane.f32.xlu0 %v5424
        %v5437 = vpop.xlane.xlu0 %5436
        %5438 = vadd.xlane.f32.xlu0 %v5425
        %v5439 = vpop.xlane.xlu0 %5438
        %5440 = vadd.xlane.f32.xlu0 %v5426
        %v5441 = vpop.xlane.xlu0 %5440
        %5442 = vadd.xlane.f32.xlu0 %v5427
        %v5443 = vpop.xlane.xlu0 %5442
        %5444 = vadd.xlane.f32.xlu0 %v5428
        %v5445 = vpop.xlane.xlu0 %5444
        %5446 = vadd.xlane.f32.xlu0 %v5429
        %v5447 = vpop.xlane.xlu0 %5446
        %5448 = vadd.xlane.f32.xlu0 %v5430
        %v5449 = vpop.xlane.xlu0 %5448
        %5450 = vadd.xlane.f32.xlu0 %v5431
        %v5451 = vpop.xlane.xlu0 %5450
        %5452 = vadd.xlane.f32.xlu0 %v5432
        %v5453 = vpop.xlane.xlu0 %5452
        %5454 = vadd.xlane.f32.xlu0 %v5433
        %v5455 = vpop.xlane.xlu0 %5454
        %v5456 = vrcp.pop 128.0
        %v5457 = vmul.f32 %v5437, %v5456
        %v5458 = vmul.f32 %v5439, %v5456
        %v5459 = vmul.f32 %v5441, %v5456
        %v5460 = vmul.f32 %v5443, %v5456
        %v5461 = vmul.f32 %v5445, %v5456
        %v5462 = vmul.f32 %v5447, %v5456
        %v5463 = vmul.f32 %v5449, %v5456
        %v5464 = vmul.f32 %v5451, %v5456
        %v5465 = vmul.f32 %v5453, %v5456
        %v5466 = vmul.f32 %v5455, %v5456
        %v5467 = vsub.f32 %v5424, %v5457
        %v5468 = vsub.f32 %v5425, %v5458
        %v5469 = vsub.f32 %v5426, %v5459
        %v5470 = vsub.f32 %v5427, %v5460
        %v5471 = vsub.f32 %v5428, %v5461
        %v5472 = vsub.f32 %v5429, %v5462
        %v5473 = vsub.f32 %v5430, %v5463
        %v5474 = vsub.f32 %v5431, %v5464
        %v5475 = vsub.f32 %v5432, %v5465
        %v5476 = vsub.f32 %v5433, %v5466
        %v5477 = vmul.f32 %v5467, %v5467
        %v5478 = vmul.f32 %v5468, %v5468
        %v5479 = vmul.f32 %v5469, %v5469
        %v5480 = vmul.f32 %v5470, %v5470
        %v5481 = vmul.f32 %v5471, %v5471
        %v5482 = vmul.f32 %v5472, %v5472
        %v5483 = vmul.f32 %v5473, %v5473
        %v5484 = vmul.f32 %v5474, %v5474
        %v5485 = vmul.f32 %v5475, %v5475
        %v5486 = vmul.f32 %v5476, %v5476
        %5487 = vadd.xlane.f32.xlu0 %v5477
        %v5488 = vpop.xlane.xlu0 %5487
        %5489 = vadd.xlane.f32.xlu0 %v5478
        %v5490 = vpop.xlane.xlu0 %5489
        %5491 = vadd.xlane.f32.xlu0 %v5479
        %v5492 = vpop.xlane.xlu0 %5491
        %5493 = vadd.xlane.f32.xlu0 %v5480
        %v5494 = vpop.xlane.xlu0 %5493
        %5495 = vadd.xlane.f32.xlu0 %v5481
        %v5496 = vpop.xlane.xlu0 %5495
        %5497 = vadd.xlane.f32.xlu0 %v5482
        %v5498 = vpop.xlane.xlu0 %5497
        %5499 = vadd.xlane.f32.xlu0 %v5483
        %v5500 = vpop.xlane.xlu0 %5499
        %5501 = vadd.xlane.f32.xlu0 %v5484
        %v5502 = vpop.xlane.xlu0 %5501
        %5503 = vadd.xlane.f32.xlu0 %v5485
        %v5504 = vpop.xlane.xlu0 %5503
        %5505 = vadd.xlane.f32.xlu0 %v5486
        %v5506 = vpop.xlane.xlu0 %5505
        %v5507 = vmul.f32 %v5488, %v5456
        %v5508 = vmul.f32 %v5490, %v5456
        %v5509 = vmul.f32 %v5492, %v5456
        %v5510 = vmul.f32 %v5494, %v5456
        %v5511 = vmul.f32 %v5496, %v5456
        %v5512 = vmul.f32 %v5498, %v5456
        %v5513 = vmul.f32 %v5500, %v5456
        %v5514 = vmul.f32 %v5502, %v5456
        %v5515 = vmul.f32 %v5504, %v5456
        %v5516 = vmul.f32 %v5506, %v5456
        %v5517 = vadd.f32 %v5507, 1e-05
        %v5518 = vadd.f32 %v5508, 1e-05
        %v5519 = vadd.f32 %v5509, 1e-05
        %v5520 = vadd.f32 %v5510, 1e-05
        %v5521 = vadd.f32 %v5511, 1e-05
        %v5522 = vadd.f32 %v5512, 1e-05
        %v5523 = vadd.f32 %v5513, 1e-05
        %v5524 = vadd.f32 %v5514, 1e-05
        %v5525 = vadd.f32 %v5515, 1e-05
        %v5526 = vadd.f32 %v5516, 1e-05
        %v5527 = vrsqrt.pop %v5517
        %v5528 = vrsqrt.pop %v5518
        %v5529 = vrsqrt.pop %v5519
        %v5530 = vrsqrt.pop %v5520
        %v5531 = vrsqrt.pop %v5521
        %v5532 = vrsqrt.pop %v5522
        %v5533 = vrsqrt.pop %v5523
        %v5534 = vrsqrt.pop %v5524
        %v5535 = vrsqrt.pop %v5525
        %v5536 = vrsqrt.pop %v5526
        %v5537 = vmul.f32 %v5467, %v5527
        %v5538 = vmul.f32 %v5468, %v5528
        %v5539 = vmul.f32 %v5469, %v5529
        %v5540 = vmul.f32 %v5470, %v5530
        %v5541 = vmul.f32 %v5471, %v5531
        %v5542 = vmul.f32 %v5472, %v5532
        %v5543 = vmul.f32 %v5473, %v5533
        %v5544 = vmul.f32 %v5474, %v5534
        %v5545 = vmul.f32 %v5475, %v5535
        %v5546 = vmul.f32 %v5476, %v5536
        %v5548 = vlaneseq
        %v5549 = vshrl.u32 %v5548, 7
        %v5550 = vsub.s32 0, %v5549
        %v5551 = vrot.slane %v5434, %v5550
        %v5553 = vmul.f32 %v5537, %v5551
        %v5554 = vmul.f32 %v5538, %v5551
        %v5555 = vmul.f32 %v5539, %v5551
        %v5556 = vmul.f32 %v5540, %v5551
        %v5557 = vmul.f32 %v5541, %v5551
        %v5558 = vmul.f32 %v5542, %v5551
        %v5559 = vmul.f32 %v5543, %v5551
        %v5560 = vmul.f32 %v5544, %v5551
        %v5561 = vmul.f32 %v5545, %v5551
        %v5562 = vmul.f32 %v5546, %v5551
        %v5564 = vlaneseq
        %v5565 = vshrl.u32 %v5564, 7
        %v5566 = vsub.s32 0, %v5565
        %v5567 = vrot.slane %v5435, %v5566
        %v5569 = vadd.f32 %v5553, %v5567
        %v5570 = vadd.f32 %v5554, %v5567
        %v5571 = vadd.f32 %v5555, %v5567
        %v5572 = vadd.f32 %v5556, %v5567
        %v5573 = vadd.f32 %v5557, %v5567
        %v5574 = vadd.f32 %v5558, %v5567
        %v5575 = vadd.f32 %v5559, %v5567
        %v5576 = vadd.f32 %v5560, %v5567
        %v5577 = vadd.f32 %v5561, %v5567
        %v5578 = vadd.f32 %v5562, %v5567
        %v5579 = vpack.c.bf16 %v5570, %v5569
        %v5580 = vpack.c.bf16 %v5572, %v5571
        %v5581 = vpack.c.bf16 %v5574, %v5573
        %v5582 = vpack.c.bf16 %v5576, %v5575
        %v5583 = vpack.c.bf16 %v5578, %v5577
        %v5584 = vld [vmem:[%s12] sm:$0xf]
        %v5585 = vld [vmem:[%s12 + $0x4] sm:$0xf]
        %v5586 = vld [vmem:[%s12 + $0x8] sm:$0xf]
        %v5587 = vld [vmem:[%s12 + $0xc] sm:$0xf]
        %v5588 = vld [vmem:[%s12 + $0x10] sm:$0xf]
        %v5589 = vld [vmem:[%s12 + $0x14] sm:$0xf]
        %v5590 = vld [vmem:[%s12 + $0x18] sm:$0xf]
        %v5591 = vld [vmem:[%s12 + $0x1c] sm:$0xf]
        %v5592 = vld [vmem:[%s12 + $0x20] sm:$0xf]
        %v5593 = vld [vmem:[%s12 + $0x24] sm:$0xf]
        %v5604 = vunpack.c.l.b16 %v5584
        %v5605 = vunpack.c.l.b16 %v5585
        %v5606 = vunpack.c.l.b16 %v5586
        %v5607 = vunpack.c.l.b16 %v5587
        %v5608 = vunpack.c.l.b16 %v5588
        %v5609 = vunpack.c.l.b16 %v5589
        %v5610 = vunpack.c.l.b16 %v5590
        %v5611 = vunpack.c.l.b16 %v5591
        %v5612 = vunpack.c.l.b16 %v5592
        %v5613 = vunpack.c.l.b16 %v5593
        %v5614 = vpack.c.b16 %v5605, %v5604
        %v5615 = vpack.c.b16 %v5607, %v5606
        %v5616 = vpack.c.b16 %v5609, %v5608
        %v5617 = vpack.c.b16 %v5611, %v5610
        %v5618 = vpack.c.b16 %v5613, %v5612
        %vm5619 = vcmask 654336
        %v5621 = vsel %vm5619, %v5614, 0
        %v5624 = vsel %vm5619, %v5615, 0
        %v5627 = vsel %vm5619, %v5616, 0
        %v5630 = vsel %vm5619, %v5617, 0
        %v5633 = vsel %vm5619, %v5618, 0
        %5635 = vmatprep.subr.bf16.mxu0 0
        %5636 = vmatpush1.bf16.msra.mxu0 %v5579
        %5637 = vmatprep.subr.bf16.mxu0 0
        %5638 = vmatpush1.bf16.msra.mxu0 %v5580
        %5639 = vmatprep.subr.bf16.mxu0 0
        %5640 = vmatpush1.bf16.msra.mxu0 %v5581
        %5641 = vmatprep.subr.bf16.mxu0 0
        %5642 = vmatpush1.bf16.msra.mxu0 %v5582
        %5643 = vmatprep.subr.bf16.mxu0 0
        %5644 = vmatpush1.bf16.msra.mxu0 %v5583
        %5645 = vmatprep.subr.bf16.mxu0 0
        %5646 = vmatpush1.bf16.msra.mxu0 0
        %5647 = vmatprep.subr.bf16.mxu0 0
        %5648 = vmatpush1.bf16.msra.mxu0 0
        %5649 = vmatprep.subr.bf16.mxu0 0
        %5650 = vmatpush1.bf16.msra.mxu0 0
        %5651 = vmatprep.subr.bf16.mxu0 0
        %5652 = vmatpush1.bf16.msra.mxu0 0
        %5653 = vmatprep.subr.bf16.mxu0 0
        %5654 = vmatpush1.bf16.msra.mxu0 0
        %5655 = vmatprep.subr.bf16.mxu0 0
        %5656 = vmatpush1.bf16.msra.mxu0 0
        %5657 = vmatprep.subr.bf16.mxu0 0
        %5658 = vmatpush1.bf16.msra.mxu0 0
        %5659 = vmatprep.subr.bf16.mxu0 0
        %5660 = vmatpush1.bf16.msra.mxu0 0
        %5661 = vmatprep.subr.bf16.mxu0 0
        %5662 = vmatpush1.bf16.msra.mxu0 0
        %5663 = vmatprep.subr.bf16.mxu0 0
        %5664 = vmatpush1.bf16.msra.mxu0 0
        %5665 = vmatprep.subr.bf16.mxu0 0
        %5666 = vmatpush1.bf16.msra.mxu0 0
        %5667 = vmatprep.mubr.bf16.mxu0 0
        %5668 = vmatmul.mubr.bf16.gmra.mrb[0].mxu0 %v5621
        %v5669 = vpop.f32.mrb[0].mxu0
        %v5670 = vadd.f32 0.0, %v5669
        %v5671 = vpop.f32.mrb[0].mxu0
        %v5672 = vpop.f32.mrb[0].mxu0
        %v5673 = vadd.f32 0.0, %v5672
        %v5674 = vpop.f32.mrb[0].mxu0
        %5675 = vmatprep.mubr.bf16.mxu0 0
        %5676 = vmatmul.mubr.bf16.gmra.mrb[0].mxu0 %v5624
        %v5677 = vpop.f32.mrb[0].mxu0
        %v5678 = vadd.f32 0.0, %v5677
        %v5679 = vpop.f32.mrb[0].mxu0
        %v5680 = vpop.f32.mrb[0].mxu0
        %v5681 = vadd.f32 0.0, %v5680
        %v5682 = vpop.f32.mrb[0].mxu0
        %5683 = vmatprep.mubr.bf16.mxu0 0
        %5684 = vmatmul.mubr.bf16.gmra.mrb[0].mxu0 %v5627
        %v5685 = vpop.f32.mrb[0].mxu0
        %v5686 = vadd.f32 0.0, %v5685
        %v5687 = vpop.f32.mrb[0].mxu0
        %v5688 = vpop.f32.mrb[0].mxu0
        %v5689 = vadd.f32 0.0, %v5688
        %v5690 = vpop.f32.mrb[0].mxu0
        %5691 = vmatprep.mubr.bf16.mxu0 0
        %5692 = vmatmul.mubr.bf16.gmra.mrb[0].mxu0 %v5630
        %v5693 = vpop.f32.mrb[0].mxu0
        %v5694 = vadd.f32 0.0, %v5693
        %v5695 = vpop.f32.mrb[0].mxu0
        %v5696 = vpop.f32.mrb[0].mxu0
        %v5697 = vadd.f32 0.0, %v5696
        %v5698 = vpop.f32.mrb[0].mxu0
        %5699 = vmatprep.mubr.bf16.mxu0 0
        %5700 = vmatmul.mubr.bf16.gmra.mrb[0].mxu0 %v5633
        %v5701 = vpop.f32.mrb[0].mxu0
        %v5702 = vadd.f32 0.0, %v5701
        %v5703 = vpop.f32.mrb[0].mxu0
        %v5704 = vpop.f32.mrb[0].mxu0
        %v5705 = vadd.f32 0.0, %v5704
        %v5706 = vpop.f32.mrb[0].mxu0
        %5707 = vdwg.mxu0
        %s5708 = scalar_lea.vmem %s12, 40
        %v5709 = vld [vmem:[%s5708] sm:$0xf]
        %v5710 = vld [vmem:[%s5708 + $0x4] sm:$0xf]
        %v5711 = vld [vmem:[%s5708 + $0x8] sm:$0xf]
        %v5712 = vld [vmem:[%s5708 + $0xc] sm:$0xf]
        %v5713 = vld [vmem:[%s5708 + $0x10] sm:$0xf]
        %v5714 = vld [vmem:[%s5708 + $0x14] sm:$0xf]
        %v5715 = vld [vmem:[%s5708 + $0x18] sm:$0xf]
        %v5716 = vld [vmem:[%s5708 + $0x1c] sm:$0xf]
        %v5717 = vld [vmem:[%s5708 + $0x20] sm:$0xf]
        %v5718 = vld [vmem:[%s5708 + $0x24] sm:$0xf]
        %v5729 = vunpack.c.l.b16 %v5709
        %v5730 = vunpack.c.l.b16 %v5710
        %v5731 = vunpack.c.l.b16 %v5711
        %v5732 = vunpack.c.l.b16 %v5712
        %v5733 = vunpack.c.l.b16 %v5713
        %v5734 = vunpack.c.l.b16 %v5714
        %v5735 = vunpack.c.l.b16 %v5715
        %v5736 = vunpack.c.l.b16 %v5716
        %v5737 = vunpack.c.l.b16 %v5717
        %v5738 = vunpack.c.l.b16 %v5718
        %v5739 = vpack.c.b16 %v5730, %v5729
        %v5740 = vpack.c.b16 %v5732, %v5731
        %v5741 = vpack.c.b16 %v5734, %v5733
        %v5742 = vpack.c.b16 %v5736, %v5735
        %v5743 = vpack.c.b16 %v5738, %v5737
        %v5745 = vsel %vm5619, %v5739, 0
        %v5748 = vsel %vm5619, %v5740, 0
        %v5751 = vsel %vm5619, %v5741, 0
        %v5754 = vsel %vm5619, %v5742, 0
        %v5757 = vsel %vm5619, %v5743, 0
        %5759 = vmatprep.subr.bf16.mxu0 0
        %5760 = vmatpush1.bf16.msra.mxu0 %v5579
        %5761 = vmatprep.subr.bf16.mxu0 0
        %5762 = vmatpush1.bf16.msra.mxu0 %v5580
        %5763 = vmatprep.subr.bf16.mxu0 0
        %5764 = vmatpush1.bf16.msra.mxu0 %v5581
        %5765 = vmatprep.subr.bf16.mxu0 0
        %5766 = vmatpush1.bf16.msra.mxu0 %v5582
        %5767 = vmatprep.subr.bf16.mxu0 0
        %5768 = vmatpush1.bf16.msra.mxu0 %v5583
        %5769 = vmatprep.subr.bf16.mxu0 0
        %5770 = vmatpush1.bf16.msra.mxu0 0
        %5771 = vmatprep.subr.bf16.mxu0 0
        %5772 = vmatpush1.bf16.msra.mxu0 0
        %5773 = vmatprep.subr.bf16.mxu0 0
        %5774 = vmatpush1.bf16.msra.mxu0 0
        %5775 = vmatprep.subr.bf16.mxu0 0
        %5776 = vmatpush1.bf16.msra.mxu0 0
        %5777 = vmatprep.subr.bf16.mxu0 0
        %5778 = vmatpush1.bf16.msra.mxu0 0
        %5779 = vmatprep.subr.bf16.mxu0 0
        %5780 = vmatpush1.bf16.msra.mxu0 0
        %5781 = vmatprep.subr.bf16.mxu0 0
        %5782 = vmatpush1.bf16.msra.mxu0 0
        %5783 = vmatprep.subr.bf16.mxu0 0
        %5784 = vmatpush1.bf16.msra.mxu0 0
        %5785 = vmatprep.subr.bf16.mxu0 0
        %5786 = vmatpush1.bf16.msra.mxu0 0
        %5787 = vmatprep.subr.bf16.mxu0 0
        %5788 = vmatpush1.bf16.msra.mxu0 0
        %5789 = vmatprep.subr.bf16.mxu0 0
        %5790 = vmatpush1.bf16.msra.mxu0 0
        %5791 = vmatprep.mubr.bf16.mxu0 0
        %5792 = vmatmul.mubr.bf16.gmra.mrb[0].mxu0 %v5745
        %v5793 = vpop.f32.mrb[0].mxu0
        %v5794 = vadd.f32 0.0, %v5793
        %v5795 = vpop.f32.mrb[0].mxu0
        %v5796 = vpop.f32.mrb[0].mxu0
        %v5797 = vadd.f32 0.0, %v5796
        %v5798 = vpop.f32.mrb[0].mxu0
        %5799 = vmatprep.mubr.bf16.mxu0 0
        %5800 = vmatmul.mubr.bf16.gmra.mrb[0].mxu0 %v5748
        %v5801 = vpop.f32.mrb[0].mxu0
        %v5802 = vadd.f32 0.0, %v5801
        %v5803 = vpop.f32.mrb[0].mxu0
        %v5804 = vpop.f32.mrb[0].mxu0
        %v5805 = vadd.f32 0.0, %v5804
        %v5806 = vpop.f32.mrb[0].mxu0
        %5807 = vmatprep.mubr.bf16.mxu0 0
        %5808 = vmatmul.mubr.bf16.gmra.mrb[0].mxu0 %v5751
        %v5809 = vpop.f32.mrb[0].mxu0
        %v5810 = vadd.f32 0.0, %v5809
        %v5811 = vpop.f32.mrb[0].mxu0
        %v5812 = vpop.f32.mrb[0].mxu0
        %v5813 = vadd.f32 0.0, %v5812
        %v5814 = vpop.f32.mrb[0].mxu0
        %5815 = vmatprep.mubr.bf16.mxu0 0
        %5816 = vmatmul.mubr.bf16.gmra.mrb[0].mxu0 %v5754
        %v5817 = vpop.f32.mrb[0].mxu0
        %v5818 = vadd.f32 0.0, %v5817
        %v5819 = vpop.f32.mrb[0].mxu0
        %v5820 = vpop.f32.mrb[0].mxu0
        %v5821 = vadd.f32 0.0, %v5820
        %v5822 = vpop.f32.mrb[0].mxu0
        %5823 = vmatprep.mubr.bf16.mxu0 0
        %5824 = vmatmul.mubr.bf16.gmra.mrb[0].mxu0 %v5757
        %v5825 = vpop.f32.mrb[0].mxu0
        %v5826 = vadd.f32 0.0, %v5825
        %v5827 = vpop.f32.mrb[0].mxu0
        %v5828 = vpop.f32.mrb[0].mxu0
        %v5829 = vadd.f32 0.0, %v5828
        %v5830 = vpop.f32.mrb[0].mxu0
        %5831 = vdwg.mxu0
        %s5832 = scalar_lea.vmem %s12, 80
        %v5833 = vld [vmem:[%s5832] sm:$0xf]
        %v5834 = vld [vmem:[%s5832 + $0x4] sm:$0xf]
        %v5835 = vld [vmem:[%s5832 + $0x8] sm:$0xf]
        %v5836 = vld [vmem:[%s5832 + $0xc] sm:$0xf]
        %v5837 = vld [vmem:[%s5832 + $0x10] sm:$0xf]
        %v5838 = vld [vmem:[%s5832 + $0x14] sm:$0xf]
        %v5839 = vld [vmem:[%s5832 + $0x18] sm:$0xf]
        %v5840 = vld [vmem:[%s5832 + $0x1c] sm:$0xf]
        %v5841 = vld [vmem:[%s5832 + $0x20] sm:$0xf]
        %v5842 = vld [vmem:[%s5832 + $0x24] sm:$0xf]
        %v5853 = vunpack.c.l.b16 %v5833
        %v5854 = vunpack.c.l.b16 %v5834
        %v5855 = vunpack.c.l.b16 %v5835
        %v5856 = vunpack.c.l.b16 %v5836
        %v5857 = vunpack.c.l.b16 %v5837
        %v5858 = vunpack.c.l.b16 %v5838
        %v5859 = vunpack.c.l.b16 %v5839
        %v5860 = vunpack.c.l.b16 %v5840
        %v5861 = vunpack.c.l.b16 %v5841
        %v5862 = vunpack.c.l.b16 %v5842
        %v5863 = vpack.c.b16 %v5854, %v5853
        %v5864 = vpack.c.b16 %v5856, %v5855
        %v5865 = vpack.c.b16 %v5858, %v5857
        %v5866 = vpack.c.b16 %v5860, %v5859
        %v5867 = vpack.c.b16 %v5862, %v5861
        %v5869 = vsel %vm5619, %v5863, 0
        %v5872 = vsel %vm5619, %v5864, 0
        %v5875 = vsel %vm5619, %v5865, 0
        %v5878 = vsel %vm5619, %v5866, 0
        %v5881 = vsel %vm5619, %v5867, 0
        %5883 = vmatprep.subr.bf16.mxu0 0
        %5884 = vmatpush1.bf16.msra.mxu0 %v5579
        %5885 = vmatprep.subr.bf16.mxu0 0
        %5886 = vmatpush1.bf16.msra.mxu0 %v5580
        %5887 = vmatprep.subr.bf16.mxu0 0
        %5888 = vmatpush1.bf16.msra.mxu0 %v5581
        %5889 = vmatprep.subr.bf16.mxu0 0
        %5890 = vmatpush1.bf16.msra.mxu0 %v5582
        %5891 = vmatprep.subr.bf16.mxu0 0
        %5892 = vmatpush1.bf16.msra.mxu0 %v5583
        %5893 = vmatprep.subr.bf16.mxu0 0
        %5894 = vmatpush1.bf16.msra.mxu0 0
        %5895 = vmatprep.subr.bf16.mxu0 0
        %5896 = vmatpush1.bf16.msra.mxu0 0
        %5897 = vmatprep.subr.bf16.mxu0 0
        %5898 = vmatpush1.bf16.msra.mxu0 0
        %5899 = vmatprep.subr.bf16.mxu0 0
        %5900 = vmatpush1.bf16.msra.mxu0 0
        %5901 = vmatprep.subr.bf16.mxu0 0
        %5902 = vmatpush1.bf16.msra.mxu0 0
        %5903 = vmatprep.subr.bf16.mxu0 0
        %5904 = vmatpush1.bf16.msra.mxu0 0
        %5905 = vmatprep.subr.bf16.mxu0 0
        %5906 = vmatpush1.bf16.msra.mxu0 0
        %5907 = vmatprep.subr.bf16.mxu0 0
        %5908 = vmatpush1.bf16.msra.mxu0 0
        %5909 = vmatprep.subr.bf16.mxu0 0
        %5910 = vmatpush1.bf16.msra.mxu0 0
        %5911 = vmatprep.subr.bf16.mxu0 0
        %5912 = vmatpush1.bf16.msra.mxu0 0
        %5913 = vmatprep.subr.bf16.mxu0 0
        %5914 = vmatpush1.bf16.msra.mxu0 0
        %5915 = vmatprep.mubr.bf16.mxu0 0
        %5916 = vmatmul.mubr.bf16.gmra.mrb[0].mxu0 %v5869
        %v5917 = vpop.f32.mrb[0].mxu0
        %v5918 = vadd.f32 0.0, %v5917
        %v5919 = vpop.f32.mrb[0].mxu0
        %v5920 = vpop.f32.mrb[0].mxu0
        %v5921 = vadd.f32 0.0, %v5920
        %v5922 = vpop.f32.mrb[0].mxu0
        %5923 = vmatprep.mubr.bf16.mxu0 0
        %5924 = vmatmul.mubr.bf16.gmra.mrb[0].mxu0 %v5872
        %v5925 = vpop.f32.mrb[0].mxu0
        %v5926 = vadd.f32 0.0, %v5925
        %v5927 = vpop.f32.mrb[0].mxu0
        %v5928 = vpop.f32.mrb[0].mxu0
        %v5929 = vadd.f32 0.0, %v5928
        %v5930 = vpop.f32.mrb[0].mxu0
        %5931 = vmatprep.mubr.bf16.mxu0 0
        %5932 = vmatmul.mubr.bf16.gmra.mrb[0].mxu0 %v5875
        %v5933 = vpop.f32.mrb[0].mxu0
        %v5934 = vadd.f32 0.0, %v5933
        %v5935 = vpop.f32.mrb[0].mxu0
        %v5936 = vpop.f32.mrb[0].mxu0
        %v5937 = vadd.f32 0.0, %v5936
        %v5938 = vpop.f32.mrb[0].mxu0
        %5939 = vmatprep.mubr.bf16.mxu0 0
        %5940 = vmatmul.mubr.bf16.gmra.mrb[0].mxu0 %v5878
        %v5941 = vpop.f32.mrb[0].mxu0
        %v5942 = vadd.f32 0.0, %v5941
        %v5943 = vpop.f32.mrb[0].mxu0
        %v5944 = vpop.f32.mrb[0].mxu0
        %v5945 = vadd.f32 0.0, %v5944
        %v5946 = vpop.f32.mrb[0].mxu0
        %5947 = vmatprep.mubr.bf16.mxu0 0
        %5948 = vmatmul.mubr.bf16.gmra.mrb[0].mxu0 %v5881
        %v5949 = vpop.f32.mrb[0].mxu0
        %v5950 = vadd.f32 0.0, %v5949
        %v5951 = vpop.f32.mrb[0].mxu0
        %v5952 = vpop.f32.mrb[0].mxu0
        %v5953 = vadd.f32 0.0, %v5952
        %v5954 = vpop.f32.mrb[0].mxu0
        %5955 = vdwg.mxu0
        %v5956 = vpack.c.bf16 %v5673, %v5670
        %v5957 = vpack.c.bf16 %v5797, %v5794
        %v5958 = vpack.c.bf16 %v5921, %v5918
        %v5959 = vpack.c.bf16 %v5681, %v5678
        %v5960 = vpack.c.bf16 %v5805, %v5802
        %v5961 = vpack.c.bf16 %v5929, %v5926
        %v5962 = vpack.c.bf16 %v5689, %v5686
        %v5963 = vpack.c.bf16 %v5813, %v5810
        %v5964 = vpack.c.bf16 %v5937, %v5934
        %v5965 = vpack.c.bf16 %v5697, %v5694
        %v5966 = vpack.c.bf16 %v5821, %v5818
        %v5967 = vpack.c.bf16 %v5945, %v5942
        %v5968 = vpack.c.bf16 %v5705, %v5702
        %v5969 = vpack.c.bf16 %v5829, %v5826
        %v5970 = vpack.c.bf16 %v5953, %v5950
        %v5971 = vld [vmem:[%s17] sm:$0xf]
        %v5972 = vld [vmem:[%s17 + $0x4] sm:$0xf]
        %v5973 = vld [vmem:[%s17 + $0x8] sm:$0xf]
        %v5974 = vld [vmem:[%s17 + $0xc] sm:$0xf]
        %v5975 = vld [vmem:[%s17 + $0x10] sm:$0xf]
        %v5976 = vld [vmem:[%s17 + $0x14] sm:$0xf]
        %v5977 = vld [vmem:[%s17 + $0x18] sm:$0xf]
        %v5978 = vld [vmem:[%s17 + $0x1c] sm:$0xf]
        %v5979 = vld [vmem:[%s17 + $0x20] sm:$0xf]
        %v5980 = vld [vmem:[%s17 + $0x24] sm:$0xf]
        %v5981 = vld [vmem:[%s17 + $0x28] sm:$0xf]
        %v5982 = vld [vmem:[%s17 + $0x2c] sm:$0xf]
        %v5983 = vld [vmem:[%s17 + $0x30] sm:$0xf]
        %v5984 = vld [vmem:[%s17 + $0x34] sm:$0xf]
        %v5985 = vld [vmem:[%s17 + $0x38] sm:$0xf]
        %v5986 = vld [vmem:[%s17 + $0x3c] sm:$0xf]
        %v5987 = vld [vmem:[%s17 + $0x40] sm:$0xf]
        %v5988 = vld [vmem:[%s17 + $0x44] sm:$0xf]
        %v5989 = vld [vmem:[%s17 + $0x48] sm:$0xf]
        %v5990 = vld [vmem:[%s17 + $0x4c] sm:$0xf]
        %v5991 = vld [vmem:[%s17 + $0x50] sm:$0xf]
        %v5992 = vld [vmem:[%s17 + $0x54] sm:$0xf]
        %v5993 = vld [vmem:[%s17 + $0x58] sm:$0xf]
        %v5994 = vld [vmem:[%s17 + $0x5c] sm:$0xf]
        %v5995 = vld [vmem:[%s17 + $0x60] sm:$0xf]
        %v5996 = vld [vmem:[%s17 + $0x64] sm:$0xf]
        %v5997 = vld [vmem:[%s17 + $0x68] sm:$0xf]
        %v5998 = vld [vmem:[%s17 + $0x6c] sm:$0xf]
        %v5999 = vld [vmem:[%s17 + $0x70] sm:$0xf]
        %v6000 = vld [vmem:[%s17 + $0x74] sm:$0xf]
        %v6001 = vld [vmem:[%s17 + $0x78] sm:$0xf]
        %v6002 = vld [vmem:[%s17 + $0x7c] sm:$0xf]
        %v6003 = vld [vmem:[%s17 + $0x80] sm:$0xf]
        %v6004 = vld [vmem:[%s17 + $0x84] sm:$0xf]
        %v6005 = vld [vmem:[%s17 + $0x88] sm:$0xf]
        %v6006 = vld [vmem:[%s17 + $0x8c] sm:$0xf]
        %v6007 = vld [vmem:[%s17 + $0x90] sm:$0xf]
        %v6008 = vld [vmem:[%s17 + $0x94] sm:$0xf]
        %v6009 = vld [vmem:[%s17 + $0x98] sm:$0xf]
        %v6010 = vld [vmem:[%s17 + $0x9c] sm:$0xf]
        %v6011 = vld [vmem:[%s17 + $0xa0] sm:$0xf]
        %v6012 = vld [vmem:[%s17 + $0xa4] sm:$0xf]
        %v6013 = vld [vmem:[%s17 + $0xa8] sm:$0xf]
        %v6014 = vld [vmem:[%s17 + $0xac] sm:$0xf]
        %v6015 = vld [vmem:[%s17 + $0xb0] sm:$0xf]
        %v6016 = vld [vmem:[%s17 + $0xb4] sm:$0xf]
        %v6017 = vld [vmem:[%s17 + $0xb8] sm:$0xf]
        %v6018 = vld [vmem:[%s17 + $0xbc] sm:$0xf]
        %v6019 = vld [vmem:[#allocation18] sm:$0x1]
        %v6021 = vlaneseq
        %v6022 = vshrl.u32 %v6021, 7
        %v6023 = vsub.s32 0, %v6022
        %v6024 = vrot.slane %v6019, %v6023
        %v6074 = vunpack.c.l.b16 %v5971
        %v6075 = vunpack.c.l.b16 %v5972
        %v6076 = vunpack.c.l.b16 %v5973
        %v6077 = vunpack.c.l.b16 %v5974
        %v6078 = vunpack.c.l.b16 %v5975
        %v6079 = vunpack.c.l.b16 %v5976
        %v6080 = vunpack.c.l.b16 %v5977
        %v6081 = vunpack.c.l.b16 %v5978
        %v6082 = vunpack.c.l.b16 %v5979
        %v6083 = vunpack.c.l.b16 %v5980
        %v6084 = vunpack.c.l.b16 %v5981
        %v6085 = vunpack.c.l.b16 %v5982
        %v6086 = vunpack.c.l.b16 %v5983
        %v6087 = vunpack.c.l.b16 %v5984
        %v6088 = vunpack.c.l.b16 %v5985
        %v6089 = vunpack.c.l.b16 %v5986
        %v6090 = vunpack.c.l.b16 %v5987
        %v6091 = vunpack.c.l.b16 %v5988
        %v6092 = vunpack.c.l.b16 %v5989
        %v6093 = vunpack.c.l.b16 %v5990
        %v6094 = vunpack.c.l.b16 %v5991
        %v6095 = vunpack.c.l.b16 %v5992
        %v6096 = vunpack.c.l.b16 %v5993
        %v6097 = vunpack.c.l.b16 %v5994
        %v6098 = vunpack.c.l.b16 %v5995
        %v6099 = vunpack.c.l.b16 %v5996
        %v6100 = vunpack.c.l.b16 %v5997
        %v6101 = vunpack.c.l.b16 %v5998
        %v6102 = vunpack.c.l.b16 %v5999
        %v6103 = vunpack.c.l.b16 %v6000
        %v6104 = vunpack.c.l.b16 %v6001
        %v6105 = vunpack.c.l.b16 %v6002
        %v6106 = vunpack.c.l.b16 %v6003
        %v6107 = vunpack.c.l.b16 %v6004
        %v6108 = vunpack.c.l.b16 %v6005
        %v6109 = vunpack.c.l.b16 %v6006
        %v6110 = vunpack.c.l.b16 %v6007
        %v6111 = vunpack.c.l.b16 %v6008
        %v6112 = vunpack.c.l.b16 %v6009
        %v6113 = vunpack.c.l.b16 %v6010
        %v6114 = vunpack.c.l.b16 %v6011
        %v6115 = vunpack.c.l.b16 %v6012
        %v6116 = vunpack.c.l.b16 %v6013
        %v6117 = vunpack.c.l.b16 %v6014
        %v6118 = vunpack.c.l.b16 %v6015
        %v6119 = vunpack.c.l.b16 %v6016
        %v6120 = vunpack.c.l.b16 %v6017
        %v6121 = vunpack.c.l.b16 %v6018
        %v6122 = vpack.c.b16 %v6075, %v6074
        %v6123 = vpack.c.b16 %v6077, %v6076
        %v6124 = vpack.c.b16 %v6079, %v6078
        %v6125 = vpack.c.b16 %v6081, %v6080
        %v6126 = vpack.c.b16 %v6083, %v6082
        %v6127 = vpack.c.b16 %v6085, %v6084
        %v6128 = vpack.c.b16 %v6087, %v6086
        %v6129 = vpack.c.b16 %v6089, %v6088
        %v6130 = vpack.c.b16 %v6091, %v6090
        %v6131 = vpack.c.b16 %v6093, %v6092
        %v6132 = vpack.c.b16 %v6095, %v6094
        %v6133 = vpack.c.b16 %v6097, %v6096
        %v6134 = vpack.c.b16 %v6099, %v6098
        %v6135 = vpack.c.b16 %v6101, %v6100
        %v6136 = vpack.c.b16 %v6103, %v6102
        %v6137 = vpack.c.b16 %v6105, %v6104
        %v6138 = vpack.c.b16 %v6107, %v6106
        %v6139 = vpack.c.b16 %v6109, %v6108
        %v6140 = vpack.c.b16 %v6111, %v6110
        %v6141 = vpack.c.b16 %v6113, %v6112
        %v6142 = vpack.c.b16 %v6115, %v6114
        %v6143 = vpack.c.b16 %v6117, %v6116
        %v6144 = vpack.c.b16 %v6119, %v6118
        %v6145 = vpack.c.b16 %v6121, %v6120
        %6170 = vmatprep.subr.bf16.mxu0 0
        %6171 = vmatpush1.bf16.msra.mxu0 %v6122
        %6172 = vmatprep.subr.bf16.mxu0 0
        %6173 = vmatpush1.bf16.msra.mxu0 %v6123
        %6174 = vmatprep.subr.bf16.mxu0 0
        %6175 = vmatpush1.bf16.msra.mxu0 %v6124
        %6176 = vmatprep.subr.bf16.mxu0 0
        %6177 = vmatpush1.bf16.msra.mxu0 %v6125
        %6178 = vmatprep.subr.bf16.mxu0 0
        %6179 = vmatpush1.bf16.msra.mxu0 %v6126
        %6180 = vmatprep.subr.bf16.mxu0 0
        %6181 = vmatpush1.bf16.msra.mxu0 %v6127
        %6182 = vmatprep.subr.bf16.mxu0 0
        %6183 = vmatpush1.bf16.msra.mxu0 %v6128
        %6184 = vmatprep.subr.bf16.mxu0 0
        %6185 = vmatpush1.bf16.msra.mxu0 %v6129
        %6186 = vmatprep.subr.bf16.mxu0 0
        %6187 = vmatpush1.bf16.msra.mxu0 %v6130
        %6188 = vmatprep.subr.bf16.mxu0 0
        %6189 = vmatpush1.bf16.msra.mxu0 %v6131
        %6190 = vmatprep.subr.bf16.mxu0 0
        %6191 = vmatpush1.bf16.msra.mxu0 %v6132
        %6192 = vmatprep.subr.bf16.mxu0 0
        %6193 = vmatpush1.bf16.msra.mxu0 %v6133
        %6194 = vmatprep.subr.bf16.mxu0 0
        %6195 = vmatpush1.bf16.msra.mxu0 %v6134
        %6196 = vmatprep.subr.bf16.mxu0 0
        %6197 = vmatpush1.bf16.msra.mxu0 %v6135
        %6198 = vmatprep.subr.bf16.mxu0 0
        %6199 = vmatpush1.bf16.msra.mxu0 %v6136
        %6200 = vmatprep.subr.bf16.mxu0 0
        %6201 = vmatpush1.bf16.msra.mxu0 %v6137
        %6202 = vmatprep.mubr.bf16.mxu0 %v5957
        %6203 = vmatmul.mubr.bf16.gmra.mrb[0].mxu0 %v5956
        %v6204 = vpop.f32.mrb[0].mxu0
        %v6205 = vadd.f32 %v6024, %v6204
        %v6206 = vpop.f32.mrb[0].mxu0
        %v6207 = vpop.f32.mrb[0].mxu0
        %v6208 = vadd.f32 %v6024, %v6207
        %v6209 = vpop.f32.mrb[0].mxu0
        %6210 = vmatprep.mubr.bf16.mxu0 %v5960
        %6211 = vmatmul.mubr.bf16.gmra.mrb[0].mxu0 %v5959
        %v6212 = vpop.f32.mrb[0].mxu0
        %v6213 = vadd.f32 %v6024, %v6212
        %v6214 = vpop.f32.mrb[0].mxu0
        %v6215 = vpop.f32.mrb[0].mxu0
        %v6216 = vadd.f32 %v6024, %v6215
        %v6217 = vpop.f32.mrb[0].mxu0
        %6218 = vmatprep.mubr.bf16.mxu0 %v5963
        %6219 = vmatmul.mubr.bf16.gmra.mrb[0].mxu0 %v5962
        %v6220 = vpop.f32.mrb[0].mxu0
        %v6221 = vadd.f32 %v6024, %v6220
        %v6222 = vpop.f32.mrb[0].mxu0
        %v6223 = vpop.f32.mrb[0].mxu0
        %v6224 = vadd.f32 %v6024, %v6223
        %v6225 = vpop.f32.mrb[0].mxu0
        %6226 = vmatprep.mubr.bf16.mxu0 %v5966
        %6227 = vmatmul.mubr.bf16.gmra.mrb[0].mxu0 %v5965
        %v6228 = vpop.f32.mrb[0].mxu0
        %v6229 = vadd.f32 %v6024, %v6228
        %v6230 = vpop.f32.mrb[0].mxu0
        %v6231 = vpop.f32.mrb[0].mxu0
        %v6232 = vadd.f32 %v6024, %v6231
        %v6233 = vpop.f32.mrb[0].mxu0
        %6234 = vmatprep.mubr.bf16.mxu0 %v5969
        %6235 = vmatmul.mubr.bf16.gmra.mrb[0].mxu0 %v5968
        %v6236 = vpop.f32.mrb[0].mxu0
        %v6237 = vadd.f32 %v6024, %v6236
        %v6238 = vpop.f32.mrb[0].mxu0
        %v6239 = vpop.f32.mrb[0].mxu0
        %v6240 = vadd.f32 %v6024, %v6239
        %v6241 = vpop.f32.mrb[0].mxu0
        %6242 = vdwg.mxu0
        %6243 = vmatprep.subr.bf16.mxu0 0
        %6244 = vmatpush1.bf16.msra.mxu0 %v6138
        %6245 = vmatprep.subr.bf16.mxu0 0
        %6246 = vmatpush1.bf16.msra.mxu0 %v6139
        %6247 = vmatprep.subr.bf16.mxu0 0
        %6248 = vmatpush1.bf16.msra.mxu0 %v6140
        %6249 = vmatprep.subr.bf16.mxu0 0
        %6250 = vmatpush1.bf16.msra.mxu0 %v6141
        %6251 = vmatprep.subr.bf16.mxu0 0
        %6252 = vmatpush1.bf16.msra.mxu0 %v6142
        %6253 = vmatprep.subr.bf16.mxu0 0
        %6254 = vmatpush1.bf16.msra.mxu0 %v6143
        %6255 = vmatprep.subr.bf16.mxu0 0
        %6256 = vmatpush1.bf16.msra.mxu0 %v6144
        %6257 = vmatprep.subr.bf16.mxu0 0
        %6258 = vmatpush1.bf16.msra.mxu0 %v6145
        %6259 = vmatprep.subr.bf16.mxu0 0
        %6260 = vmatpush1.bf16.msra.mxu0 0
        %6261 = vmatprep.subr.bf16.mxu0 0
        %6262 = vmatpush1.bf16.msra.mxu0 0
        %6263 = vmatprep.subr.bf16.mxu0 0
        %6264 = vmatpush1.bf16.msra.mxu0 0
        %6265 = vmatprep.subr.bf16.mxu0 0
        %6266 = vmatpush1.bf16.msra.mxu0 0
        %6267 = vmatprep.subr.bf16.mxu0 0
        %6268 = vmatpush1.bf16.msra.mxu0 0
        %6269 = vmatprep.subr.bf16.mxu0 0
        %6270 = vmatpush1.bf16.msra.mxu0 0
        %6271 = vmatprep.subr.bf16.mxu0 0
        %6272 = vmatpush1.bf16.msra.mxu0 0
        %6273 = vmatprep.subr.bf16.mxu0 0
        %6274 = vmatpush1.bf16.msra.mxu0 0
        %6275 = vmatprep.mubr.bf16.mxu0 0
        %6276 = vmatmul.mubr.bf16.gmra.mrb[0].mxu0 %v5958
        %v6277 = vpop.f32.mrb[0].mxu0
        %v6278 = vadd.f32 %v6205, %v6277
        %v6279 = vpop.f32.mrb[0].mxu0
        %v6280 = vpop.f32.mrb[0].mxu0
        %v6281 = vadd.f32 %v6208, %v6280
        %v6282 = vpop.f32.mrb[0].mxu0
        %6283 = vmatprep.mubr.bf16.mxu0 0
        %6284 = vmatmul.mubr.bf16.gmra.mrb[0].mxu0 %v5961
        %v6285 = vpop.f32.mrb[0].mxu0
        %v6286 = vadd.f32 %v6213, %v6285
        %v6287 = vpop.f32.mrb[0].mxu0
        %v6288 = vpop.f32.mrb[0].mxu0
        %v6289 = vadd.f32 %v6216, %v6288
        %v6290 = vpop.f32.mrb[0].mxu0
        %6291 = vmatprep.mubr.bf16.mxu0 0
        %6292 = vmatmul.mubr.bf16.gmra.mrb[0].mxu0 %v5964
        %v6293 = vpop.f32.mrb[0].mxu0
        %v6294 = vadd.f32 %v6221, %v6293
        %v6295 = vpop.f32.mrb[0].mxu0
        %v6296 = vpop.f32.mrb[0].mxu0
        %v6297 = vadd.f32 %v6224, %v6296
        %v6298 = vpop.f32.mrb[0].mxu0
        %6299 = vmatprep.mubr.bf16.mxu0 0
        %6300 = vmatmul.mubr.bf16.gmra.mrb[0].mxu0 %v5967
        %v6301 = vpop.f32.mrb[0].mxu0
        %v6302 = vadd.f32 %v6229, %v6301
        %v6303 = vpop.f32.mrb[0].mxu0
        %v6304 = vpop.f32.mrb[0].mxu0
        %v6305 = vadd.f32 %v6232, %v6304
        %v6306 = vpop.f32.mrb[0].mxu0
        %6307 = vmatprep.mubr.bf16.mxu0 0
        %6308 = vmatmul.mubr.bf16.gmra.mrb[0].mxu0 %v5970
        %v6309 = vpop.f32.mrb[0].mxu0
        %v6310 = vadd.f32 %v6237, %v6309
        %v6311 = vpop.f32.mrb[0].mxu0
        %v6312 = vpop.f32.mrb[0].mxu0
        %v6313 = vadd.f32 %v6240, %v6312
        %v6314 = vpop.f32.mrb[0].mxu0
        %6315 = vdwg.mxu0
        %6316 = vst [vmem:[%s736] sm:$0xff] %v6278
        %6317 = vst [vmem:[%s736 + $0x8] sm:$0xff] %v6281
        %6318 = vst [vmem:[%s736 + $0x10] sm:$0xff] %v6286
        %6319 = vst [vmem:[%s736 + $0x18] sm:$0xff] %v6289
        %6320 = vst [vmem:[%s736 + $0x20] sm:$0xff] %v6294
        %6321 = vst [vmem:[%s736 + $0x28] sm:$0xff] %v6297
        %6322 = vst [vmem:[%s736 + $0x30] sm:$0xff] %v6302
        %6323 = vst [vmem:[%s736 + $0x38] sm:$0xff] %v6305
        %6324 = vst [vmem:[%s736 + $0x40] sm:$0xff] %v6310
        %6325 = vst [vmem:[%s736 + $0x48] sm:$0xff] %v6313
        %p6326 = scmp.lt.s32.totalorder %s36, 1
        %s6327 = scalar_select %p6326, %s36, 1
        %s6328 = smul.addr %s6327, 10
        %s6329 = smul.addr %s6328, 8
        %s6330 = scalar_lea.vmem %s19, %s6329
        // Predicated region
        $region137: #{decoder_forward.1} parent=95 // pred_check
          %p6331 = pneg %p458
        $region138: #{decoder_forward.1} parent=95 // pred_check_branch
          %6333 = sbr.rel (%p6331) target = $region140
        $region139: #{decoder_forward.1} parent=95 // pred_region
          _
        $region140: #{decoder_forward.1} parent=95 // pred_fallthru
          _
      $region96: #{decoder_forward.1} parent=5 // pred_fallthru
        _
      %p6334 = scmp.le.s32.totalorder 2, %s31
      // Predicated region
      $region141: #{decoder_forward.1} parent=5 // pred_check
        %p6335 = pneg %p6334
      $region142: #{decoder_forward.1} parent=5 // pred_check_branch
        %6337 = sbr.rel (%p6335) target = $region144
      $region143: #{decoder_forward.1} parent=5 // pred_region
        %s6338 = ssub.s32 %s31, 2
        // Predicated region
        $region145: #{decoder_forward.1} parent=143 // pred_check
          %p6339 = pneg %p464
        $region146: #{decoder_forward.1} parent=143 // pred_check_branch
          %6341 = sbr.rel (%p6339) target = $region148
        $region147: #{decoder_forward.1} parent=143 // pred_region
          %p6342 = scmp.lt.s32.totalorder %s37, 1
          %s6343 = scalar_select %p6342, %s37, 1
          %s6344 = smul.addr %s6343, 10
          %s6345 = smul.addr %s6344, 8
          %s6346 = scalar_lea.vmem %s19, %s6345
        $region148: #{decoder_forward.1} parent=143 // pred_fallthru
          _
      $region144: #{decoder_forward.1} parent=5 // pred_fallthru
        _
    $region6: #{decoder_forward.1} parent=1 // loop_footer
      %s35 = sadd.s32 1, %s31
    $region7: #{decoder_forward.1} parent=1 // loop_footer_branch
      %30 = sbr.rel target = $region3
    $region8: #{decoder_forward.1} parent=1 // loop_exit
      _
    %6347 = vsyncpa [#allocation5], 1
    %s6348 = scalar_lea.sflag [#allocation5], 1
    %6349 = vsyncpa %s6348, 1
    %6350 = vsyncpa [#allocation7], 1
    %6351 = vsyncpa [#allocation10], 1
    %6352 = vsyncpa [#allocation13], 1
    %6353 = vsyncpa [#allocation16], 1
    %6354 = vsyncpa [#allocation19], 1

</llo_original>
